<compile_context>
chip_gen: v7x
topology: tpu7x:2x2x1
jax: 0.10.0
libtpu: 0.0.40
codegen_flags: <defaults>
</compile_context>

<pallas_src>
import jax
import jax.numpy as jnp
from jax.experimental import pallas as pl
from jax.experimental.pallas import tpu as pltpu

EPS = 1e-6  # clamp for the attention-weight denominator


def _make_rfa_kernel(*, has_mask, batch_block, tgt_len, src_len,
                     num_heads, head_dim, proj_dim):
    two_p = 2 * proj_dim
    scale = float(proj_dim) ** -0.5
    f32 = jnp.float32

    def kernel(*refs):
        if has_mask:
            (q_in_ref, k_in_ref, mask_ref, wq_ref, bq_ref, wk_ref, bk_ref,
             wv_ref, bv_ref, rm_ref, ph_ref, wo_ref, bo_ref, out_ref) = refs
        else:
            (q_in_ref, k_in_ref, wq_ref, bq_ref, wk_ref, bk_ref,
             wv_ref, bv_ref, rm_ref, ph_ref, wo_ref, bo_ref, out_ref) = refs
            mask_ref = None

        xq = q_in_ref[...]                     # (bb*tgt, E)
        xk = k_in_ref[...]                     # (bb*src, E)

        # Batch-fused q/k/v projections (E x E matmuls on the MXU).
        q = jnp.dot(xq, wq_ref[...], preferred_element_type=f32) + bq_ref[...]
        k = jnp.dot(xk, wk_ref[...], preferred_element_type=f32) + bk_ref[...]
        v = jnp.dot(xk, wv_ref[...], preferred_element_type=f32) + bv_ref[...]

        # Random feature map for all heads at once; cos folded into sin via the
        # duplicated block-diagonal random matrix + pi/2 phase bias.
        phi_q = jnp.sin(jnp.dot(q, rm_ref[...], preferred_element_type=f32)
                        + ph_ref[...]) * scale              # (bb*tgt, H*2P)
        phi_k = jnp.sin(jnp.dot(k, rm_ref[...], preferred_element_type=f32)
                        + ph_ref[...]) * scale              # (bb*src, H*2P)

        if has_mask:
            # Zero padded key rows once -> masked score columns are exactly 0.
            phi_k = jnp.where(mask_ref[...] > 0.5, 0.0, phi_k)

        # Head-major layout: one transpose per operand, then head-batched dots.
        phi_qh = jnp.transpose(
            phi_q.reshape(batch_block * tgt_len, num_heads, two_p), (1, 0, 2))
        phi_kh = jnp.transpose(
            phi_k.reshape(batch_block * src_len, num_heads, two_p), (1, 0, 2))
        vh = jnp.transpose(
            v.reshape(batch_block * src_len, num_heads, head_dim), (1, 0, 2))

        dn_scores = (((2,), (2,)), ((0,), (0,)))   # contract 2P, batch over H
        dn_pv = (((2,), (1,)), ((0,), (0,)))       # contract src, batch over H

        for b in range(batch_block):               # static, tiny unroll
            t0, t1 = b * tgt_len, (b + 1) * tgt_len
            s0, s1 = b * src_len, (b + 1) * src_len
            aw = jax.lax.dot_general(phi_qh[:, t0:t1, :], phi_kh[:, s0:s1, :],
                                     dn_scores,
                                     preferred_element_type=f32)  # (H, tgt, src)
            denom = jnp.sum(aw, axis=-1, keepdims=True)
            aw = aw * pl.reciprocal(jnp.maximum(denom, EPS), approx=False)
            attn = jax.lax.dot_general(aw, vh[:, s0:s1, :], dn_pv,
                                       preferred_element_type=f32)  # (H, tgt, hd)
            # Output projection accumulated head-by-head (no lane concat).
            out_b = jnp.dot(attn[0], wo_ref[0], preferred_element_type=f32)
            for h in range(1, num_heads):
                out_b = out_b + jnp.dot(attn[h], wo_ref[h],
                                        preferred_element_type=f32)
            out_ref[t0:t1, :] = out_b + bo_ref[...]

    return kernel


def rfa_cross_attention(query, key, random_matrices, params, *, num_heads,
                        tau=1.0, key_padding_mask=None, batch_block=None):
    """query: [tgt, bsz, E], key: [src, bsz, E],
    random_matrices: [H, proj_dim, head_dim] -> attn: [tgt, bsz, E]."""
    tgt_len, bsz, embed_dim = query.shape
    src_len = key.shape[0]
    head_dim = embed_dim // num_heads
    proj_dim = random_matrices.shape[1]
    two_p = 2 * proj_dim
    f32 = jnp.float32

    if batch_block is None:
        # Keep >= 2 grid steps when possible (v7x has 2 TensorCores).
        batch_block = 2 if (bsz % 2 == 0 and bsz >= 4) else 1
    assert bsz % batch_block == 0
    num_blocks = bsz // batch_block

    # Batch-major, batch-fused activations: (bsz*seq, E) row slabs.
    # TODO(synk): at production sizes keep activations batch-major upstream so
    # this extra HBM transpose pass disappears.
    q_in = jnp.transpose(query, (1, 0, 2)).reshape(bsz * tgt_len, embed_dim).astype(f32)
    k_in = jnp.transpose(key, (1, 0, 2)).reshape(bsz * src_len, embed_dim).astype(f32)

    # torch Linear: y = x @ W^T + b  (W is [out, in]) -> pre-transpose once.
    wq_t = params["wq"].T.astype(f32)
    wk_t = params["wk"].T.astype(f32)
    wv_t = params["wv"].T.astype(f32)
    bq = params["bq"].reshape(1, embed_dim).astype(f32)
    bk = params["bk"].reshape(1, embed_dim).astype(f32)
    bv = params["bv"].reshape(1, embed_dim).astype(f32)
    # Wo^T split per head so the kernel accumulates attn_h @ Wo^T[h] directly.
    wo3 = params["wo"].T.reshape(num_heads, head_dim, embed_dim).astype(f32)
    bo = params["bo"].reshape(1, embed_dim).astype(f32)

    # build_random_matrices (reparam_proj=False): W / tau.  Block-diagonal
    # (E, H*2P) packing with each head block duplicated [W_h | W_h]; the second
    # copy gets a +pi/2 phase so sin(x@R + phase) == [sin(xW), cos(xW)] per head.
    # TODO(synk): at large H/E switch to a head-batched dot_general here to
    # avoid the off-diagonal-zero FLOPs of the block-diagonal form.
    rm_t = jnp.transpose(random_matrices.astype(f32) / tau, (0, 2, 1))   # (H, hd, P)
    rm_bd = jnp.zeros((embed_dim, num_heads * two_p), f32)
    for h in range(num_heads):
        blk = jnp.concatenate([rm_t[h], rm_t[h]], axis=-1)               # (hd, 2P)
        rm_bd = rm_bd.at[h * head_dim:(h + 1) * head_dim,
                         h * two_p:(h + 1) * two_p].set(blk)
    phase = jnp.tile(
        jnp.concatenate([jnp.zeros((proj_dim,), f32),
                         jnp.full((proj_dim,), jnp.pi / 2, f32)]),
        num_heads).reshape(1, num_heads * two_p)

    has_mask = key_padding_mask is not None
    kernel = _make_rfa_kernel(has_mask=has_mask, batch_block=batch_block,
                              tgt_len=tgt_len, src_len=src_len,
                              num_heads=num_heads, head_dim=head_dim,
                              proj_dim=proj_dim)

    const2 = lambda i: (0, 0)
    const3 = lambda i: (0, 0, 0)
    act_specs = [
        pl.BlockSpec((batch_block * tgt_len, embed_dim), lambda i: (i, 0)),   # q rows
        pl.BlockSpec((batch_block * src_len, embed_dim), lambda i: (i, 0)),   # k rows
    ]
    inputs = [q_in, k_in]
    if has_mask:
        mask_flat = key_padding_mask.astype(f32).reshape(bsz * src_len, 1)
        act_specs.append(pl.BlockSpec((batch_block * src_len, 1), lambda i: (i, 0)))
        inputs.append(mask_flat)
    # Constant-index weight blocks: fetched once, VMEM-resident across the grid.
    # (At production E, single-buffer these via pipeline_mode=pl.Buffered(1) to
    #  stay inside v7x's 64 MiB VMEM.)
    weight_specs = [
        pl.BlockSpec((embed_dim, embed_dim), const2),             # Wq^T
        pl.BlockSpec((1, embed_dim), const2),                     # bq
        pl.BlockSpec((embed_dim, embed_dim), const2),             # Wk^T
        pl.BlockSpec((1, embed_dim), const2),                     # bk
        pl.BlockSpec((embed_dim, embed_dim), const2),             # Wv^T
        pl.BlockSpec((1, embed_dim), const2),                     # bv
        pl.BlockSpec((embed_dim, num_heads * two_p), const2),     # random blkdiag
        pl.BlockSpec((1, num_heads * two_p), const2),             # phase bias
        pl.BlockSpec((num_heads, head_dim, embed_dim), const3),   # Wo^T per head
        pl.BlockSpec((1, embed_dim), const2),                     # bo
    ]
    inputs += [wq_t, bq, wk_t, bk, wv_t, bv, rm_bd, phase, wo3, bo]

    # Advisory cost estimate so XLA schedules this small custom call sensibly.
    flops = 2 * bsz * (tgt_len + 2 * src_len) * embed_dim * embed_dim
    flops += 2 * bsz * (tgt_len + src_len) * embed_dim * num_heads * two_p
    flops += 2 * bsz * num_heads * tgt_len * src_len * (two_p + head_dim)
    flops += 2 * bsz * tgt_len * embed_dim * embed_dim
    transcend = bsz * (tgt_len + src_len) * num_heads * two_p
    bytes_acc = 4 * (q_in.size + k_in.size + bsz * tgt_len * embed_dim
                     + 4 * embed_dim * embed_dim
                     + embed_dim * num_heads * two_p + 4 * embed_dim)

    out_flat = pl.pallas_call(
        kernel,
        out_shape=jax.ShapeDtypeStruct((bsz * tgt_len, embed_dim), f32),
        grid_spec=pltpu.PrefetchScalarGridSpec(
            num_scalar_prefetch=0,
            grid=(num_blocks,),
            in_specs=act_specs + weight_specs,
            out_specs=pl.BlockSpec((batch_block * tgt_len, embed_dim),
                                   lambda i: (i, 0)),
        ),
        compiler_params=pltpu.CompilerParams(
            dimension_semantics=("parallel",),       # batch chunks independent
            vmem_limit_bytes=32 * 1024 * 1024),
        cost_estimate=pl.CostEstimate(flops=int(flops),
                                      transcendentals=int(transcend),
                                      bytes_accessed=int(bytes_acc)),
    )(*inputs)

    return jnp.transpose(out_flat.reshape(bsz, tgt_len, embed_dim), (1, 0, 2))


def reference(query, key, random_matrices, params, *, num_heads, tau=1.0,
              key_padding_mask=None):
    """Pure-JAX mirror of the PyTorch forward (same helper semantics)."""
    tgt_len, bsz, embed_dim = query.shape
    src_len = key.shape[0]
    head_dim = embed_dim // num_heads
    proj_dim = random_matrices.shape[1]
    hp = jax.lax.Precision.HIGHEST   # keep the reference at full f32 on TPU

    q = jnp.dot(query, params["wq"].T, precision=hp) + params["bq"]
    k = jnp.dot(key, params["wk"].T, precision=hp) + params["bk"]
    v = jnp.dot(key, params["wv"].T, precision=hp) + params["bv"]
    q = q.reshape(tgt_len, bsz, num_heads, head_dim)
    k = k.reshape(src_len, bsz, num_heads, head_dim)
    v = v.reshape(src_len, bsz, num_heads, head_dim)

    rm = random_matrices / tau

    def phi(x):
        p = jnp.einsum('tbhd,hkd->tbhk', x, rm, precision=hp)
        return jnp.concatenate([jnp.sin(p), jnp.cos(p)], axis=-1) * proj_dim ** -0.5

    phi_q, phi_k = phi(q), phi(k)
    aw = jnp.einsum('tbhk,sbhk->bhts', phi_q, phi_k, precision=hp)
    if key_padding_mask is not None:
        m = key_padding_mask.astype(jnp.float32)[:, None, None, :]
        aw = jnp.where(m > 0.5, 0.0, aw)
    aw = aw / jnp.maximum(aw.sum(-1, keepdims=True), EPS)
    attn = jnp.einsum('bhts,sbhd->tbhd', aw, v, precision=hp)
    attn = attn.reshape(tgt_len, bsz, embed_dim)
    return jnp.dot(attn, params["wo"].T, precision=hp) + params["bo"]


def _xavier_uniform(key, shape, gain=1.0):
    fan_out, fan_in = shape
    bound = gain * (6.0 / (fan_in + fan_out)) ** 0.5
    return jax.random.uniform(key, shape, jnp.float32, -bound, bound)


if __name__ == "__main__":
    # Small, module-consistent shapes.
    embed_dim, num_heads = 64, 4
    head_dim = embed_dim // num_heads          # 16
    tgt_len, src_len, bsz = 16, 24, 4
    proj_dim = 32
    # tau keeps the random-feature phases small so the per-row score sums stay
    # far above the EPS clamp in the normalization; near/below the clamp the
    # 1/denominator amplifies f32 rounding noise unboundedly and a
    # kernel-vs-reference comparison stops being meaningful (previous failure).
    tau = 8.0
    init_scale = 1.0                           # args.init_scale
    gain = init_scale ** -0.5

    root = jax.random.PRNGKey(0)
    ks = jax.random.split(root, 8)

    # Deterministic synthetic parameters (torch Linear layout: [out, in]).
    params = {
        "wq": _xavier_uniform(ks[0], (embed_dim, embed_dim), gain=gain),
        "bq": jax.random.uniform(ks[1], (embed_dim,), jnp.float32, -0.1, 0.1),
        "wk": _xavier_uniform(ks[2], (embed_dim, embed_dim)),
        "bk": jax.random.uniform(ks[3], (embed_dim,), jnp.float32, -0.1, 0.1),
        "wv": _xavier_uniform(ks[4], (embed_dim, embed_dim)),
        "bv": jax.random.uniform(ks[5], (embed_dim,), jnp.float32, -0.1, 0.1),
        "wo": _xavier_uniform(ks[6], (embed_dim, embed_dim), gain=gain),
        "bo": jnp.zeros((embed_dim,), jnp.float32),
    }

    dk = jax.random.split(ks[7], 4)
    query = 0.5 * jax.random.normal(dk[0], (tgt_len, bsz, embed_dim), jnp.float32)
    key = 0.5 * jax.random.normal(dk[1], (src_len, bsz, embed_dim), jnp.float32)
    random_matrices = jax.random.normal(dk[2], (num_heads, proj_dim, head_dim),
                                        jnp.float32)
    key_padding_mask = jnp.zeros((bsz, src_len), jnp.float32).at[1, -3:].set(1.0)

    # Check both the masked path and the specialized mask-free path.
    for mask in (key_padding_mask, None):
        out = rfa_cross_attention(query, key, random_matrices, params,
                                  num_heads=num_heads, tau=tau,
                                  key_padding_mask=mask)
        out = jax.block_until_ready(out)
        assert out.shape == (tgt_len, bsz, embed_dim)

        ref = reference(query, key, random_matrices, params, num_heads=num_heads,
                        tau=tau, key_padding_mask=mask)
        ref = jax.block_until_ready(ref)
        err = float(jnp.max(jnp.abs(out - ref)))
        # Tolerance covers f32 MXU multi-pass rounding and the sin(x+pi/2)==cos(x)
        # fold; with the well-conditioned denominators above this is ~1e-5.
        assert jnp.allclose(out, ref, atol=2e-3, rtol=2e-3), err

    print("KERNEL_OK")
</pallas_src>

<mosaic_0001>
module attributes {stable_mosaic.version = 11 : i64} {
  func.func @kernel(%arg0: i32, %arg1: memref<32x64xf32, #tpu.memory_space<vmem>>, %arg2: memref<48x64xf32, #tpu.memory_space<vmem>>, %arg3: memref<48x1xf32, #tpu.memory_space<vmem>>, %arg4: memref<64x64xf32, #tpu.memory_space<vmem>>, %arg5: memref<1x64xf32, #tpu.memory_space<vmem>>, %arg6: memref<64x64xf32, #tpu.memory_space<vmem>>, %arg7: memref<1x64xf32, #tpu.memory_space<vmem>>, %arg8: memref<64x64xf32, #tpu.memory_space<vmem>>, %arg9: memref<1x64xf32, #tpu.memory_space<vmem>>, %arg10: memref<64x256xf32, #tpu.memory_space<vmem>>, %arg11: memref<1x256xf32, #tpu.memory_space<vmem>>, %arg12: memref<4x16x64xf32, #tpu.memory_space<vmem>>, %arg13: memref<1x64xf32, #tpu.memory_space<vmem>>, %arg14: memref<32x64xf32, #tpu.memory_space<vmem>>) attributes {dimension_semantics = [#tpu.dimension_semantics<parallel>], iteration_bounds = array<i64: 2>, scalar_prefetch = 0 : i64, scratch_operands = 0 : i64, tpu.core_type = #tpu.core_type<tc>, window_params = [{transform_indices = @transform_0, window_bounds = array<i64: 32, 64>}, {transform_indices = @transform_1, window_bounds = array<i64: 48, 64>}, {transform_indices = @transform_2, window_bounds = array<i64: 48, 1>}, {pipeline_mode = #tpu.pipeline_mode<synchronous>, transform_indices = @transform_3, window_bounds = array<i64: 64, 64>}, {pipeline_mode = #tpu.pipeline_mode<synchronous>, transform_indices = @transform_4, window_bounds = array<i64: 1, 64>}, {pipeline_mode = #tpu.pipeline_mode<synchronous>, transform_indices = @transform_5, window_bounds = array<i64: 64, 64>}, {pipeline_mode = #tpu.pipeline_mode<synchronous>, transform_indices = @transform_6, window_bounds = array<i64: 1, 64>}, {pipeline_mode = #tpu.pipeline_mode<synchronous>, transform_indices = @transform_7, window_bounds = array<i64: 64, 64>}, {pipeline_mode = #tpu.pipeline_mode<synchronous>, transform_indices = @transform_8, window_bounds = array<i64: 1, 64>}, {pipeline_mode = #tpu.pipeline_mode<synchronous>, transform_indices = @transform_9, window_bounds = array<i64: 64, 256>}, {pipeline_mode = #tpu.pipeline_mode<synchronous>, transform_indices = @transform_10, window_bounds = array<i64: 1, 256>}, {pipeline_mode = #tpu.pipeline_mode<synchronous>, transform_indices = @transform_11, window_bounds = array<i64: 4, 16, 64>}, {pipeline_mode = #tpu.pipeline_mode<synchronous>, transform_indices = @transform_12, window_bounds = array<i64: 1, 64>}, {transform_indices = @transform_13, window_bounds = array<i64: 32, 64>}]} {
    %c0 = arith.constant 0 : index
    %c0_0 = arith.constant 0 : index
    %0 = vector.load %arg1[%c0, %c0_0] : memref<32x64xf32, #tpu.memory_space<vmem>>, vector<32x64xf32>
    %c0_1 = arith.constant 0 : index
    %c0_2 = arith.constant 0 : index
    %1 = vector.load %arg2[%c0_1, %c0_2] : memref<48x64xf32, #tpu.memory_space<vmem>>, vector<48x64xf32>
    %c0_3 = arith.constant 0 : index
    %c0_4 = arith.constant 0 : index
    %2 = vector.load %arg4[%c0_3, %c0_4] : memref<64x64xf32, #tpu.memory_space<vmem>>, vector<64x64xf32>
    %cst = arith.constant dense<0.000000e+00> : vector<32x64xf32>
    %3 = tpu.matmul %0, %2, %cst {dimension_numbers = #tpu.dot_dimension_numbers<[1], [0], [0], [1], [0, 0, 1, 1], [], []>} : vector<32x64xf32>, vector<64x64xf32>, vector<32x64xf32> -> vector<32x64xf32>
    %c0_5 = arith.constant 0 : index
    %c0_6 = arith.constant 0 : index
    %4 = vector.load %arg5[%c0_5, %c0_6] : memref<1x64xf32, #tpu.memory_space<vmem>>, vector<1x64xf32>
    %5 = vector.broadcast %4 : vector<1x64xf32> to vector<32x64xf32>
    %6 = arith.addf %3, %5 : vector<32x64xf32>
    %c0_7 = arith.constant 0 : index
    %c0_8 = arith.constant 0 : index
    %7 = vector.load %arg6[%c0_7, %c0_8] : memref<64x64xf32, #tpu.memory_space<vmem>>, vector<64x64xf32>
    %cst_9 = arith.constant dense<0.000000e+00> : vector<48x64xf32>
    %8 = tpu.matmul %1, %7, %cst_9 {dimension_numbers = #tpu.dot_dimension_numbers<[1], [0], [0], [1], [0, 0, 1, 1], [], []>} : vector<48x64xf32>, vector<64x64xf32>, vector<48x64xf32> -> vector<48x64xf32>
    %c0_10 = arith.constant 0 : index
    %c0_11 = arith.constant 0 : index
    %9 = vector.load %arg7[%c0_10, %c0_11] : memref<1x64xf32, #tpu.memory_space<vmem>>, vector<1x64xf32>
    %10 = vector.broadcast %9 : vector<1x64xf32> to vector<48x64xf32>
    %11 = arith.addf %8, %10 : vector<48x64xf32>
    %c0_12 = arith.constant 0 : index
    %c0_13 = arith.constant 0 : index
    %12 = vector.load %arg8[%c0_12, %c0_13] : memref<64x64xf32, #tpu.memory_space<vmem>>, vector<64x64xf32>
    %cst_14 = arith.constant dense<0.000000e+00> : vector<48x64xf32>
    %13 = tpu.matmul %1, %12, %cst_14 {dimension_numbers = #tpu.dot_dimension_numbers<[1], [0], [0], [1], [0, 0, 1, 1], [], []>} : vector<48x64xf32>, vector<64x64xf32>, vector<48x64xf32> -> vector<48x64xf32>
    %c0_15 = arith.constant 0 : index
    %c0_16 = arith.constant 0 : index
    %14 = vector.load %arg9[%c0_15, %c0_16] : memref<1x64xf32, #tpu.memory_space<vmem>>, vector<1x64xf32>
    %15 = vector.broadcast %14 : vector<1x64xf32> to vector<48x64xf32>
    %16 = arith.addf %13, %15 : vector<48x64xf32>
    %c0_17 = arith.constant 0 : index
    %c0_18 = arith.constant 0 : index
    %17 = vector.load %arg10[%c0_17, %c0_18] : memref<64x256xf32, #tpu.memory_space<vmem>>, vector<64x256xf32>
    %cst_19 = arith.constant dense<0.000000e+00> : vector<32x256xf32>
    %18 = tpu.matmul %6, %17, %cst_19 {dimension_numbers = #tpu.dot_dimension_numbers<[1], [0], [0], [1], [0, 0, 1, 1], [], []>} : vector<32x64xf32>, vector<64x256xf32>, vector<32x256xf32> -> vector<32x256xf32>
    %c0_20 = arith.constant 0 : index
    %c0_21 = arith.constant 0 : index
    %19 = vector.load %arg11[%c0_20, %c0_21] : memref<1x256xf32, #tpu.memory_space<vmem>>, vector<1x256xf32>
    %20 = vector.broadcast %19 : vector<1x256xf32> to vector<32x256xf32>
    %21 = arith.addf %18, %20 : vector<32x256xf32>
    %22 = math.sin %21 : vector<32x256xf32>
    %cst_22 = arith.constant 0.176776692 : f32
    %23 = vector.broadcast %cst_22 : f32 to vector<32x256xf32>
    %24 = arith.mulf %22, %23 : vector<32x256xf32>
    %c0_23 = arith.constant 0 : index
    %c0_24 = arith.constant 0 : index
    %25 = vector.load %arg10[%c0_23, %c0_24] : memref<64x256xf32, #tpu.memory_space<vmem>>, vector<64x256xf32>
    %cst_25 = arith.constant dense<0.000000e+00> : vector<48x256xf32>
    %26 = tpu.matmul %11, %25, %cst_25 {dimension_numbers = #tpu.dot_dimension_numbers<[1], [0], [0], [1], [0, 0, 1, 1], [], []>} : vector<48x64xf32>, vector<64x256xf32>, vector<48x256xf32> -> vector<48x256xf32>
    %c0_26 = arith.constant 0 : index
    %c0_27 = arith.constant 0 : index
    %27 = vector.load %arg11[%c0_26, %c0_27] : memref<1x256xf32, #tpu.memory_space<vmem>>, vector<1x256xf32>
    %28 = vector.broadcast %27 : vector<1x256xf32> to vector<48x256xf32>
    %29 = arith.addf %26, %28 : vector<48x256xf32>
    %30 = math.sin %29 : vector<48x256xf32>
    %cst_28 = arith.constant 0.176776692 : f32
    %31 = vector.broadcast %cst_28 : f32 to vector<48x256xf32>
    %32 = arith.mulf %30, %31 : vector<48x256xf32>
    %c0_29 = arith.constant 0 : index
    %c0_30 = arith.constant 0 : index
    %33 = vector.load %arg3[%c0_29, %c0_30] : memref<48x1xf32, #tpu.memory_space<vmem>>, vector<48x1xf32>
    %cst_31 = arith.constant 5.000000e-01 : f32
    %34 = vector.broadcast %cst_31 : f32 to vector<48x1xf32>
    %35 = arith.cmpf ogt, %33, %34 : vector<48x1xf32>
    %cst_32 = arith.constant 0.000000e+00 : f32
    %36 = vector.shape_cast %35 : vector<48x1xi1> to vector<48x1xi1>
    %37 = vector.broadcast %36 : vector<48x1xi1> to vector<48x256xi1>
    %38 = vector.broadcast %cst_32 : f32 to vector<48x256xf32>
    %39 = arith.select %37, %38, %32 : vector<48x256xi1>, vector<48x256xf32>
    %40 = vector.shape_cast %24 : vector<32x256xf32> to vector<32x4x64xf32>
    %41 = tpu.transpose %40, [1, 0, 2] : vector<32x4x64xf32> -> vector<4x32x64xf32>
    %42 = vector.shape_cast %39 : vector<48x256xf32> to vector<48x4x64xf32>
    %43 = tpu.transpose %42, [1, 0, 2] : vector<48x4x64xf32> -> vector<4x48x64xf32>
    %44 = vector.shape_cast %16 : vector<48x64xf32> to vector<48x4x16xf32>
    %45 = tpu.transpose %44, [1, 0, 2] : vector<48x4x16xf32> -> vector<4x48x16xf32>
    %46 = vector.extract_strided_slice %41 {offsets = [0, 0, 0], sizes = [4, 16, 64], strides = [1, 1, 1]} : vector<4x32x64xf32> to vector<4x16x64xf32>
    %47 = vector.extract_strided_slice %43 {offsets = [0, 0, 0], sizes = [4, 24, 64], strides = [1, 1, 1]} : vector<4x48x64xf32> to vector<4x24x64xf32>
    %cst_33 = arith.constant dense<0.000000e+00> : vector<4x16x24xf32>
    %48 = tpu.matmul %46, %47, %cst_33 {dimension_numbers = #tpu.dot_dimension_numbers<[2], [2], [1], [1], [0, 0, 0, 1, 1, 1], [0], [0]>} : vector<4x16x64xf32>, vector<4x24x64xf32>, vector<4x16x24xf32> -> vector<4x16x24xf32>
    %cst_34 = arith.constant dense<0.000000e+00> : vector<4x16xf32>
    %49 = vector.multi_reduction <add>, %48, %cst_34 [2] : vector<4x16x24xf32> to vector<4x16xf32>
    %50 = vector.shape_cast %49 : vector<4x16xf32> to vector<4x16x1xf32>
    %cst_35 = arith.constant 9.99999997E-7 : f32
    %51 = vector.broadcast %cst_35 : f32 to vector<4x16x1xf32>
    %52 = arith.maximumf %50, %51 : vector<4x16x1xf32>
    %53 = tpu.reciprocal %52 : vector<4x16x1xf32> -> vector<4x16x1xf32>
    %54 = vector.broadcast %53 : vector<4x16x1xf32> to vector<4x16x24xf32>
    %55 = arith.mulf %48, %54 : vector<4x16x24xf32>
    %56 = vector.extract_strided_slice %45 {offsets = [0, 0, 0], sizes = [4, 24, 16], strides = [1, 1, 1]} : vector<4x48x16xf32> to vector<4x24x16xf32>
    %cst_36 = arith.constant dense<0.000000e+00> : vector<4x16x16xf32>
    %57 = tpu.matmul %55, %56, %cst_36 {dimension_numbers = #tpu.dot_dimension_numbers<[2], [1], [1], [2], [0, 0, 0, 1, 1, 2], [0], [0]>} : vector<4x16x24xf32>, vector<4x24x16xf32>, vector<4x16x16xf32> -> vector<4x16x16xf32>
    %58 = vector.extract_strided_slice %57 {offsets = [0, 0, 0], sizes = [1, 16, 16], strides = [1, 1, 1]} : vector<4x16x16xf32> to vector<1x16x16xf32>
    %59 = vector.shape_cast %58 : vector<1x16x16xf32> to vector<16x16xf32>
    %c0_37 = arith.constant 0 : index
    %c0_38 = arith.constant 0 : index
    %c0_39 = arith.constant 0 : index
    %60 = vector.load %arg12[%c0_37, %c0_38, %c0_39] : memref<4x16x64xf32, #tpu.memory_space<vmem>>, vector<1x16x64xf32>
    %61 = vector.shape_cast %60 : vector<1x16x64xf32> to vector<16x64xf32>
    %cst_40 = arith.constant dense<0.000000e+00> : vector<16x64xf32>
    %62 = tpu.matmul %59, %61, %cst_40 {dimension_numbers = #tpu.dot_dimension_numbers<[1], [0], [0], [1], [0, 0, 1, 1], [], []>} : vector<16x16xf32>, vector<16x64xf32>, vector<16x64xf32> -> vector<16x64xf32>
    %63 = vector.extract_strided_slice %57 {offsets = [1, 0, 0], sizes = [1, 16, 16], strides = [1, 1, 1]} : vector<4x16x16xf32> to vector<1x16x16xf32>
    %64 = vector.shape_cast %63 : vector<1x16x16xf32> to vector<16x16xf32>
    %c1 = arith.constant 1 : index
    %c0_41 = arith.constant 0 : index
    %c0_42 = arith.constant 0 : index
    %65 = vector.load %arg12[%c1, %c0_41, %c0_42] : memref<4x16x64xf32, #tpu.memory_space<vmem>>, vector<1x16x64xf32>
    %66 = vector.shape_cast %65 : vector<1x16x64xf32> to vector<16x64xf32>
    %cst_43 = arith.constant dense<0.000000e+00> : vector<16x64xf32>
    %67 = tpu.matmul %64, %66, %cst_43 {dimension_numbers = #tpu.dot_dimension_numbers<[1], [0], [0], [1], [0, 0, 1, 1], [], []>} : vector<16x16xf32>, vector<16x64xf32>, vector<16x64xf32> -> vector<16x64xf32>
    %68 = arith.addf %62, %67 : vector<16x64xf32>
    %69 = vector.extract_strided_slice %57 {offsets = [2, 0, 0], sizes = [1, 16, 16], strides = [1, 1, 1]} : vector<4x16x16xf32> to vector<1x16x16xf32>
    %70 = vector.shape_cast %69 : vector<1x16x16xf32> to vector<16x16xf32>
    %c2 = arith.constant 2 : index
    %c0_44 = arith.constant 0 : index
    %c0_45 = arith.constant 0 : index
    %71 = vector.load %arg12[%c2, %c0_44, %c0_45] : memref<4x16x64xf32, #tpu.memory_space<vmem>>, vector<1x16x64xf32>
    %72 = vector.shape_cast %71 : vector<1x16x64xf32> to vector<16x64xf32>
    %cst_46 = arith.constant dense<0.000000e+00> : vector<16x64xf32>
    %73 = tpu.matmul %70, %72, %cst_46 {dimension_numbers = #tpu.dot_dimension_numbers<[1], [0], [0], [1], [0, 0, 1, 1], [], []>} : vector<16x16xf32>, vector<16x64xf32>, vector<16x64xf32> -> vector<16x64xf32>
    %74 = arith.addf %68, %73 : vector<16x64xf32>
    %75 = vector.extract_strided_slice %57 {offsets = [3, 0, 0], sizes = [1, 16, 16], strides = [1, 1, 1]} : vector<4x16x16xf32> to vector<1x16x16xf32>
    %76 = vector.shape_cast %75 : vector<1x16x16xf32> to vector<16x16xf32>
    %c3 = arith.constant 3 : index
    %c0_47 = arith.constant 0 : index
    %c0_48 = arith.constant 0 : index
    %77 = vector.load %arg12[%c3, %c0_47, %c0_48] : memref<4x16x64xf32, #tpu.memory_space<vmem>>, vector<1x16x64xf32>
    %78 = vector.shape_cast %77 : vector<1x16x64xf32> to vector<16x64xf32>
    %cst_49 = arith.constant dense<0.000000e+00> : vector<16x64xf32>
    %79 = tpu.matmul %76, %78, %cst_49 {dimension_numbers = #tpu.dot_dimension_numbers<[1], [0], [0], [1], [0, 0, 1, 1], [], []>} : vector<16x16xf32>, vector<16x64xf32>, vector<16x64xf32> -> vector<16x64xf32>
    %80 = arith.addf %74, %79 : vector<16x64xf32>
    %c0_50 = arith.constant 0 : index
    %c0_51 = arith.constant 0 : index
    %81 = vector.load %arg13[%c0_50, %c0_51] : memref<1x64xf32, #tpu.memory_space<vmem>>, vector<1x64xf32>
    %82 = vector.broadcast %81 : vector<1x64xf32> to vector<16x64xf32>
    %83 = arith.addf %80, %82 : vector<16x64xf32>
    %c0_52 = arith.constant 0 : index
    %c0_53 = arith.constant 0 : index
    %84 = vector.load %arg14[%c0_52, %c0_53] : memref<32x64xf32, #tpu.memory_space<vmem>>, vector<16x64xf32>
    tpu.vector_store %arg14[%c0_52, %c0_53], %83 {strides = array<i32>} : memref<32x64xf32, #tpu.memory_space<vmem>>, vector<16x64xf32>,
    %85 = vector.extract_strided_slice %41 {offsets = [0, 16, 0], sizes = [4, 16, 64], strides = [1, 1, 1]} : vector<4x32x64xf32> to vector<4x16x64xf32>
    %86 = vector.extract_strided_slice %43 {offsets = [0, 24, 0], sizes = [4, 24, 64], strides = [1, 1, 1]} : vector<4x48x64xf32> to vector<4x24x64xf32>
    %cst_54 = arith.constant dense<0.000000e+00> : vector<4x16x24xf32>
    %87 = tpu.matmul %85, %86, %cst_54 {dimension_numbers = #tpu.dot_dimension_numbers<[2], [2], [1], [1], [0, 0, 0, 1, 1, 1], [0], [0]>} : vector<4x16x64xf32>, vector<4x24x64xf32>, vector<4x16x24xf32> -> vector<4x16x24xf32>
    %cst_55 = arith.constant dense<0.000000e+00> : vector<4x16xf32>
    %88 = vector.multi_reduction <add>, %87, %cst_55 [2] : vector<4x16x24xf32> to vector<4x16xf32>
    %89 = vector.shape_cast %88 : vector<4x16xf32> to vector<4x16x1xf32>
    %cst_56 = arith.constant 9.99999997E-7 : f32
    %90 = vector.broadcast %cst_56 : f32 to vector<4x16x1xf32>
    %91 = arith.maximumf %89, %90 : vector<4x16x1xf32>
    %92 = tpu.reciprocal %91 : vector<4x16x1xf32> -> vector<4x16x1xf32>
    %93 = vector.broadcast %92 : vector<4x16x1xf32> to vector<4x16x24xf32>
    %94 = arith.mulf %87, %93 : vector<4x16x24xf32>
    %95 = vector.extract_strided_slice %45 {offsets = [0, 24, 0], sizes = [4, 24, 16], strides = [1, 1, 1]} : vector<4x48x16xf32> to vector<4x24x16xf32>
    %cst_57 = arith.constant dense<0.000000e+00> : vector<4x16x16xf32>
    %96 = tpu.matmul %94, %95, %cst_57 {dimension_numbers = #tpu.dot_dimension_numbers<[2], [1], [1], [2], [0, 0, 0, 1, 1, 2], [0], [0]>} : vector<4x16x24xf32>, vector<4x24x16xf32>, vector<4x16x16xf32> -> vector<4x16x16xf32>
    %97 = vector.extract_strided_slice %96 {offsets = [0, 0, 0], sizes = [1, 16, 16], strides = [1, 1, 1]} : vector<4x16x16xf32> to vector<1x16x16xf32>
    %98 = vector.shape_cast %97 : vector<1x16x16xf32> to vector<16x16xf32>
    %c0_58 = arith.constant 0 : index
    %c0_59 = arith.constant 0 : index
    %c0_60 = arith.constant 0 : index
    %99 = vector.load %arg12[%c0_58, %c0_59, %c0_60] : memref<4x16x64xf32, #tpu.memory_space<vmem>>, vector<1x16x64xf32>
    %100 = vector.shape_cast %99 : vector<1x16x64xf32> to vector<16x64xf32>
    %cst_61 = arith.constant dense<0.000000e+00> : vector<16x64xf32>
    %101 = tpu.matmul %98, %100, %cst_61 {dimension_numbers = #tpu.dot_dimension_numbers<[1], [0], [0], [1], [0, 0, 1, 1], [], []>} : vector<16x16xf32>, vector<16x64xf32>, vector<16x64xf32> -> vector<16x64xf32>
    %102 = vector.extract_strided_slice %96 {offsets = [1, 0, 0], sizes = [1, 16, 16], strides = [1, 1, 1]} : vector<4x16x16xf32> to vector<1x16x16xf32>
    %103 = vector.shape_cast %102 : vector<1x16x16xf32> to vector<16x16xf32>
    %c1_62 = arith.constant 1 : index
    %c0_63 = arith.constant 0 : index
    %c0_64 = arith.constant 0 : index
    %104 = vector.load %arg12[%c1_62, %c0_63, %c0_64] : memref<4x16x64xf32, #tpu.memory_space<vmem>>, vector<1x16x64xf32>
    %105 = vector.shape_cast %104 : vector<1x16x64xf32> to vector<16x64xf32>
    %cst_65 = arith.constant dense<0.000000e+00> : vector<16x64xf32>
    %106 = tpu.matmul %103, %105, %cst_65 {dimension_numbers = #tpu.dot_dimension_numbers<[1], [0], [0], [1], [0, 0, 1, 1], [], []>} : vector<16x16xf32>, vector<16x64xf32>, vector<16x64xf32> -> vector<16x64xf32>
    %107 = arith.addf %101, %106 : vector<16x64xf32>
    %108 = vector.extract_strided_slice %96 {offsets = [2, 0, 0], sizes = [1, 16, 16], strides = [1, 1, 1]} : vector<4x16x16xf32> to vector<1x16x16xf32>
    %109 = vector.shape_cast %108 : vector<1x16x16xf32> to vector<16x16xf32>
    %c2_66 = arith.constant 2 : index
    %c0_67 = arith.constant 0 : index
    %c0_68 = arith.constant 0 : index
    %110 = vector.load %arg12[%c2_66, %c0_67, %c0_68] : memref<4x16x64xf32, #tpu.memory_space<vmem>>, vector<1x16x64xf32>
    %111 = vector.shape_cast %110 : vector<1x16x64xf32> to vector<16x64xf32>
    %cst_69 = arith.constant dense<0.000000e+00> : vector<16x64xf32>
    %112 = tpu.matmul %109, %111, %cst_69 {dimension_numbers = #tpu.dot_dimension_numbers<[1], [0], [0], [1], [0, 0, 1, 1], [], []>} : vector<16x16xf32>, vector<16x64xf32>, vector<16x64xf32> -> vector<16x64xf32>
    %113 = arith.addf %107, %112 : vector<16x64xf32>
    %114 = vector.extract_strided_slice %96 {offsets = [3, 0, 0], sizes = [1, 16, 16], strides = [1, 1, 1]} : vector<4x16x16xf32> to vector<1x16x16xf32>
    %115 = vector.shape_cast %114 : vector<1x16x16xf32> to vector<16x16xf32>
    %c3_70 = arith.constant 3 : index
    %c0_71 = arith.constant 0 : index
    %c0_72 = arith.constant 0 : index
    %116 = vector.load %arg12[%c3_70, %c0_71, %c0_72] : memref<4x16x64xf32, #tpu.memory_space<vmem>>, vector<1x16x64xf32>
    %117 = vector.shape_cast %116 : vector<1x16x64xf32> to vector<16x64xf32>
    %cst_73 = arith.constant dense<0.000000e+00> : vector<16x64xf32>
    %118 = tpu.matmul %115, %117, %cst_73 {dimension_numbers = #tpu.dot_dimension_numbers<[1], [0], [0], [1], [0, 0, 1, 1], [], []>} : vector<16x16xf32>, vector<16x64xf32>, vector<16x64xf32> -> vector<16x64xf32>
    %119 = arith.addf %113, %118 : vector<16x64xf32>
    %c0_74 = arith.constant 0 : index
    %c0_75 = arith.constant 0 : index
    %120 = vector.load %arg13[%c0_74, %c0_75] : memref<1x64xf32, #tpu.memory_space<vmem>>, vector<1x64xf32>
    %121 = vector.broadcast %120 : vector<1x64xf32> to vector<16x64xf32>
    %122 = arith.addf %119, %121 : vector<16x64xf32>
    %c16 = arith.constant 16 : index
    %c0_76 = arith.constant 0 : index
    %123 = vector.load %arg14[%c16, %c0_76] : memref<32x64xf32, #tpu.memory_space<vmem>>, vector<16x64xf32>
    tpu.vector_store %arg14[%c16, %c0_76], %122 {strides = array<i32>} : memref<32x64xf32, #tpu.memory_space<vmem>>, vector<16x64xf32>,
    return
  }
  func.func @transform_0(%arg0: i32) -> (i32, i32) {
    %c0_i32 = arith.constant 0 : i32
    %c0_i32_0 = arith.constant 0 : i32
    return %arg0, %c0_i32 : i32, i32
  }
  func.func @transform_1(%arg0: i32) -> (i32, i32) {
    %c0_i32 = arith.constant 0 : i32
    %c0_i32_0 = arith.constant 0 : i32
    return %arg0, %c0_i32 : i32, i32
  }
  func.func @transform_2(%arg0: i32) -> (i32, i32) {
    %c0_i32 = arith.constant 0 : i32
    %c0_i32_0 = arith.constant 0 : i32
    return %arg0, %c0_i32 : i32, i32
  }
  func.func @transform_3(%arg0: i32) -> (i32, i32) {
    %c0_i32 = arith.constant 0 : i32
    %c0_i32_0 = arith.constant 0 : i32
    %c0_i32_1 = arith.constant 0 : i32
    return %c0_i32, %c0_i32_0 : i32, i32
  }
  func.func @transform_4(%arg0: i32) -> (i32, i32) {
    %c0_i32 = arith.constant 0 : i32
    %c0_i32_0 = arith.constant 0 : i32
    %c0_i32_1 = arith.constant 0 : i32
    return %c0_i32, %c0_i32_0 : i32, i32
  }
  func.func @transform_5(%arg0: i32) -> (i32, i32) {
    %c0_i32 = arith.constant 0 : i32
    %c0_i32_0 = arith.constant 0 : i32
    %c0_i32_1 = arith.constant 0 : i32
    return %c0_i32, %c0_i32_0 : i32, i32
  }
  func.func @transform_6(%arg0: i32) -> (i32, i32) {
    %c0_i32 = arith.constant 0 : i32
    %c0_i32_0 = arith.constant 0 : i32
    %c0_i32_1 = arith.constant 0 : i32
    return %c0_i32, %c0_i32_0 : i32, i32
  }
  func.func @transform_7(%arg0: i32) -> (i32, i32) {
    %c0_i32 = arith.constant 0 : i32
    %c0_i32_0 = arith.constant 0 : i32
    %c0_i32_1 = arith.constant 0 : i32
    return %c0_i32, %c0_i32_0 : i32, i32
  }
  func.func @transform_8(%arg0: i32) -> (i32, i32) {
    %c0_i32 = arith.constant 0 : i32
    %c0_i32_0 = arith.constant 0 : i32
    %c0_i32_1 = arith.constant 0 : i32
    return %c0_i32, %c0_i32_0 : i32, i32
  }
  func.func @transform_9(%arg0: i32) -> (i32, i32) {
    %c0_i32 = arith.constant 0 : i32
    %c0_i32_0 = arith.constant 0 : i32
    %c0_i32_1 = arith.constant 0 : i32
    return %c0_i32, %c0_i32_0 : i32, i32
  }
  func.func @transform_10(%arg0: i32) -> (i32, i32) {
    %c0_i32 = arith.constant 0 : i32
    %c0_i32_0 = arith.constant 0 : i32
    %c0_i32_1 = arith.constant 0 : i32
    return %c0_i32, %c0_i32_0 : i32, i32
  }
  func.func @transform_11(%arg0: i32) -> (i32, i32, i32) {
    %c0_i32 = arith.constant 0 : i32
    %c0_i32_0 = arith.constant 0 : i32
    %c0_i32_1 = arith.constant 0 : i32
    %c0_i32_2 = arith.constant 0 : i32
    return %c0_i32, %c0_i32_0, %c0_i32_1 : i32, i32, i32
  }
  func.func @transform_12(%arg0: i32) -> (i32, i32) {
    %c0_i32 = arith.constant 0 : i32
    %c0_i32_0 = arith.constant 0 : i32
    %c0_i32_1 = arith.constant 0 : i32
    return %c0_i32, %c0_i32_0 : i32, i32
  }
  func.func @transform_13(%arg0: i32) -> (i32, i32) {
    %c0_i32 = arith.constant 0 : i32
    %c0_i32_0 = arith.constant 0 : i32
    return %arg0, %c0_i32 : i32, i32
  }
}

</mosaic_0001>

<llo_original>
// kernel: tpu_custom_call.1
$region0: #{tpu_custom_call.1}
  #allocation0 [shape = 'u32[]', space=smem, size = 0x4, offset = 0x4, fixed_abs, tag = 'smem constant byte address 0x4 - core index']
  #allocation1 [shape = 'u32[144,128]{1,0:T(1,128)}', space=vmem, size = 0x12000, scoped, tag = 'internal scratch']
  %s0 = inlined_call_operand.vmem [shape: f32[64,64], index: 0, kind: input, shape index: {}]
  %s1 = inlined_call_operand.vmem [shape: f32[96,64], index: 1, kind: input, shape index: {}]
  %s2 = inlined_call_operand.vmem [shape: f32[96,1], index: 2, kind: input, shape index: {}]
  %s3 = inlined_call_operand.vmem [shape: f32[64,64], index: 3, kind: input, shape index: {}]
  %s4 = inlined_call_operand.vmem [shape: f32[1,64], index: 4, kind: input, shape index: {}]
  %s5 = inlined_call_operand.hbm [shape: f32[64,64], index: 5, kind: input, shape index: {}]
  %s6 = inlined_call_operand.vmem [shape: f32[1,64], index: 6, kind: input, shape index: {}]
  %s7 = inlined_call_operand.hbm [shape: f32[64,64], index: 7, kind: input, shape index: {}]
  %s8 = inlined_call_operand.vmem [shape: f32[1,64], index: 8, kind: input, shape index: {}]
  %s9 = inlined_call_operand.vmem [shape: f32[64,256], index: 9, kind: input, shape index: {}]
  %s10 = inlined_call_operand.vmem [shape: f32[1,256], index: 10, kind: input, shape index: {}]
  %s11 = inlined_call_operand.hbm [shape: f32[4,16,64], index: 11, kind: input, shape index: {}]
  %s12 = inlined_call_operand.vmem [shape: f32[1,64], index: 12, kind: input, shape index: {}]
  %s13 = inlined_call_operand.hbm [shape: f32[64,64], index: 13, kind: output, shape index: {}]
  %s14 = sld [smem:[#allocation0]]
  $region97: #{tpu_custom_call.1} parent=0
    _
  %s16 = ssub.s32 1, %s14
  %s17 = scalar_select 0, %s16, %s14
  $region1: #{tpu_custom_call.1} parent=0
    #allocation2 [shape = 'u8[32768]{0}', space=vmem, size = 0x8000, scoped, tag = 'input window, operand 5, single buffered']
    #allocation3 [shape = 's32[2]{0}', space=sflag, size = 0x8, scoped, tag = 'scoped memory for tpu_custom_call.1']
    #allocation4 [shape = 's32[2]{0}', space=sflag, size = 0x8, scoped, tag = 'scoped memory for tpu_custom_call.1']
    #allocation5 [shape = 'u8[32768]{0}', space=vmem, size = 0x8000, scoped, tag = 'input window, operand 7, single buffered']
    #allocation6 [shape = 's32[1]{0}', space=sflag, size = 0x4, scoped, tag = 'scoped memory for tpu_custom_call.1']
    #allocation7 [shape = 'u8[32768]{0}', space=vmem, size = 0x8000, scoped, tag = 'input window, operand 11, single buffered']
    #allocation8 [shape = 'u8[32768]{0}', space=vmem, size = 0x8000, scoped, tag = 'output window, operand 0']
    %18 = vsyncpa [#allocation3], 0
    %19 = vsyncpa [#allocation6], 0
    %20 = vsyncpa [#allocation4], 0
    %s21 = scalar_lea.sflag [#allocation4], 1
    %22 = vsyncpa %s21, 0
    loop: start=0, step=1, limit=4
    $region2: #{tpu_custom_call.1} parent=1 // loop_pre_header
      _
    $region3: #{tpu_custom_call.1} parent=1 // loop_header
      %s24 = sphi 0, %s28
      %p25 = scmp.ge.s32.totalorder %s24, 4
      %s34 = sphi 0, %s36
      %s37 = sphi 0, %s34
      %s38 = sphi 0, %s37
      %s54 = sphi 0, %s38
      %s60 = sphi 0, %s62
      %s63 = sphi 0, %s60
      %s64 = sphi 0, %s63
      %s80 = sphi 0, %s64
      %s86 = sphi 0, %s88
      %s89 = sphi 0, %s86
      %s90 = sphi 0, %s89
      %s106 = sphi 0, %s90
      %s110 = sphi 0, %s110
      %s112 = sphi 0, %s110
      %s113 = sphi 0, %s112
      %s127 = sphi 0, %s113
      %s131 = sphi 0, %s131
      %s133 = sphi 0, %s131
      %s134 = sphi 0, %s133
      %s148 = sphi 0, %s134
      %s152 = sphi 0, %s152
      %s154 = sphi 0, %s152
      %s155 = sphi 0, %s154
      %s169 = sphi 0, %s155
      %s173 = sphi 0, %s173
      %s175 = sphi 0, %s173
      %s176 = sphi 0, %s175
      %s190 = sphi 0, %s176
      %s194 = sphi 0, %s194
      %s196 = sphi 0, %s194
      %s197 = sphi 0, %s196
      %s211 = sphi 0, %s197
      %s215 = sphi 0, %s215
      %s217 = sphi 0, %s215
      %s218 = sphi 0, %s217
      %s232 = sphi 0, %s218
      %s236 = sphi 0, %s236
      %s238 = sphi 0, %s236
      %s239 = sphi 0, %s238
      %s253 = sphi 0, %s239
      %s257 = sphi 0, %s257
      %s259 = sphi 0, %s257
      %s260 = sphi 0, %s259
      %s274 = sphi 0, %s260
      %s278 = sphi 0, %s278
      %s280 = sphi 0, %s278
      %s281 = sphi 0, %s280
      %s295 = sphi 0, %s281
      %s299 = sphi 0, %s299
      %s301 = sphi 0, %s299
      %s302 = sphi 0, %s301
      %s316 = sphi 0, %s302
      %s322 = sphi 0, %s324
      %s325 = sphi 0, %s322
      %s326 = sphi 0, %s325
      %s342 = sphi 0, %s326
    $region4: #{tpu_custom_call.1} parent=1 // loop_header_branch
      %27 = sbr.rel (%p25) target = $region8
    $region5: #{tpu_custom_call.1} parent=1 // loop_body
      %s29 = ssub.s32 %s24, 1
      %s30 = ssub.s32 %s24, 2
      %s31 = sadd.s32 %s24, 1
      %s32 = ssub.s32 %s24, %s31
      %p33 = scmp.eq.s32.totalorder %s32, 0
      %s35 = sadd.s32 %s34, 1
      %s36 = scalar_select %p33, %s34, %s35
      %p39 = pneg %p33
      %p40 = scmp.eq.s32.totalorder %s24, 1
      %p41 = por %p39, %p40
      %p42 = scmp.ne.s32.totalorder %s34, %s37
      %p43 = scmp.eq.s32.totalorder %s24, 0
      %p44 = por %p42, %p43
      %p45 = scmp.ne.s32.totalorder %s34, %s37
      %p46 = scmp.eq.s32.totalorder %s29, 1
      %p47 = por %p45, %p46
      %p48 = scmp.ne.s32.totalorder %s37, %s38
      %p49 = scmp.eq.s32.totalorder %s29, 0
      %p50 = por %p48, %p49
      %p51 = scmp.ne.s32.totalorder %s37, %s38
      %p52 = scmp.eq.s32.totalorder %s30, 1
      %p53 = por %p51, %p52
      %p55 = scmp.ne.s32.totalorder %s38, %s54
      %p56 = scmp.eq.s32.totalorder %s30, 0
      %p57 = por %p55, %p56
      %s58 = ssub.s32 %s24, %s31
      %p59 = scmp.eq.s32.totalorder %s58, 0
      %s61 = sadd.s32 %s60, 1
      %s62 = scalar_select %p59, %s60, %s61
      %p65 = pneg %p59
      %p66 = scmp.eq.s32.totalorder %s24, 1
      %p67 = por %p65, %p66
      %p68 = scmp.ne.s32.totalorder %s60, %s63
      %p69 = scmp.eq.s32.totalorder %s24, 0
      %p70 = por %p68, %p69
      %p71 = scmp.ne.s32.totalorder %s60, %s63
      %p72 = scmp.eq.s32.totalorder %s29, 1
      %p73 = por %p71, %p72
      %p74 = scmp.ne.s32.totalorder %s63, %s64
      %p75 = scmp.eq.s32.totalorder %s29, 0
      %p76 = por %p74, %p75
      %p77 = scmp.ne.s32.totalorder %s63, %s64
      %p78 = scmp.eq.s32.totalorder %s30, 1
      %p79 = por %p77, %p78
      %p81 = scmp.ne.s32.totalorder %s64, %s80
      %p82 = scmp.eq.s32.totalorder %s30, 0
      %p83 = por %p81, %p82
      %s84 = ssub.s32 %s24, %s31
      %p85 = scmp.eq.s32.totalorder %s84, 0
      %s87 = sadd.s32 %s86, 1
      %s88 = scalar_select %p85, %s86, %s87
      %p91 = pneg %p85
      %p92 = scmp.eq.s32.totalorder %s24, 1
      %p93 = por %p91, %p92
      %p94 = scmp.ne.s32.totalorder %s86, %s89
      %p95 = scmp.eq.s32.totalorder %s24, 0
      %p96 = por %p94, %p95
      %p97 = scmp.ne.s32.totalorder %s86, %s89
      %p98 = scmp.eq.s32.totalorder %s29, 1
      %p99 = por %p97, %p98
      %p100 = scmp.ne.s32.totalorder %s89, %s90
      %p101 = scmp.eq.s32.totalorder %s29, 0
      %p102 = por %p100, %p101
      %p103 = scmp.ne.s32.totalorder %s89, %s90
      %p104 = scmp.eq.s32.totalorder %s30, 1
      %p105 = por %p103, %p104
      %p107 = scmp.ne.s32.totalorder %s90, %s106
      %p108 = scmp.eq.s32.totalorder %s30, 0
      %p109 = por %p107, %p108
      %s111 = sadd.s32 %s110, 1
      %p114 = scmp.eq.s32.totalorder %s24, 1
      %p115 = scmp.ne.s32.totalorder %s110, %s112
      %p116 = scmp.eq.s32.totalorder %s24, 0
      %p117 = por %p115, %p116
      %p118 = scmp.ne.s32.totalorder %s110, %s112
      %p119 = scmp.eq.s32.totalorder %s29, 1
      %p120 = por %p118, %p119
      %p121 = scmp.ne.s32.totalorder %s112, %s113
      %p122 = scmp.eq.s32.totalorder %s29, 0
      %p123 = por %p121, %p122
      %p124 = scmp.ne.s32.totalorder %s112, %s113
      %p125 = scmp.eq.s32.totalorder %s30, 1
      %p126 = por %p124, %p125
      %p128 = scmp.ne.s32.totalorder %s113, %s127
      %p129 = scmp.eq.s32.totalorder %s30, 0
      %p130 = por %p128, %p129
      %s132 = sadd.s32 %s131, 1
      %p135 = scmp.eq.s32.totalorder %s24, 1
      %p136 = scmp.ne.s32.totalorder %s131, %s133
      %p137 = scmp.eq.s32.totalorder %s24, 0
      %p138 = por %p136, %p137
      %p139 = scmp.ne.s32.totalorder %s131, %s133
      %p140 = scmp.eq.s32.totalorder %s29, 1
      %p141 = por %p139, %p140
      %p142 = scmp.ne.s32.totalorder %s133, %s134
      %p143 = scmp.eq.s32.totalorder %s29, 0
      %p144 = por %p142, %p143
      %p145 = scmp.ne.s32.totalorder %s133, %s134
      %p146 = scmp.eq.s32.totalorder %s30, 1
      %p147 = por %p145, %p146
      %p149 = scmp.ne.s32.totalorder %s134, %s148
      %p150 = scmp.eq.s32.totalorder %s30, 0
      %p151 = por %p149, %p150
      %s153 = sadd.s32 %s152, 1
      %p156 = scmp.eq.s32.totalorder %s24, 1
      %p157 = scmp.ne.s32.totalorder %s152, %s154
      %p158 = scmp.eq.s32.totalorder %s24, 0
      %p159 = por %p157, %p158
      %p160 = scmp.ne.s32.totalorder %s152, %s154
      %p161 = scmp.eq.s32.totalorder %s29, 1
      %p162 = por %p160, %p161
      %p163 = scmp.ne.s32.totalorder %s154, %s155
      %p164 = scmp.eq.s32.totalorder %s29, 0
      %p165 = por %p163, %p164
      %p166 = scmp.ne.s32.totalorder %s154, %s155
      %p167 = scmp.eq.s32.totalorder %s30, 1
      %p168 = por %p166, %p167
      %p170 = scmp.ne.s32.totalorder %s155, %s169
      %p171 = scmp.eq.s32.totalorder %s30, 0
      %p172 = por %p170, %p171
      %s174 = sadd.s32 %s173, 1
      %p177 = scmp.eq.s32.totalorder %s24, 1
      %p178 = scmp.ne.s32.totalorder %s173, %s175
      %p179 = scmp.eq.s32.totalorder %s24, 0
      %p180 = por %p178, %p179
      %p181 = scmp.ne.s32.totalorder %s173, %s175
      %p182 = scmp.eq.s32.totalorder %s29, 1
      %p183 = por %p181, %p182
      %p184 = scmp.ne.s32.totalorder %s175, %s176
      %p185 = scmp.eq.s32.totalorder %s29, 0
      %p186 = por %p184, %p185
      %p187 = scmp.ne.s32.totalorder %s175, %s176
      %p188 = scmp.eq.s32.totalorder %s30, 1
      %p189 = por %p187, %p188
      %p191 = scmp.ne.s32.totalorder %s176, %s190
      %p192 = scmp.eq.s32.totalorder %s30, 0
      %p193 = por %p191, %p192
      %s195 = sadd.s32 %s194, 1
      %p198 = scmp.eq.s32.totalorder %s24, 1
      %p199 = scmp.ne.s32.totalorder %s194, %s196
      %p200 = scmp.eq.s32.totalorder %s24, 0
      %p201 = por %p199, %p200
      %p202 = scmp.ne.s32.totalorder %s194, %s196
      %p203 = scmp.eq.s32.totalorder %s29, 1
      %p204 = por %p202, %p203
      %p205 = scmp.ne.s32.totalorder %s196, %s197
      %p206 = scmp.eq.s32.totalorder %s29, 0
      %p207 = por %p205, %p206
      %p208 = scmp.ne.s32.totalorder %s196, %s197
      %p209 = scmp.eq.s32.totalorder %s30, 1
      %p210 = por %p208, %p209
      %p212 = scmp.ne.s32.totalorder %s197, %s211
      %p213 = scmp.eq.s32.totalorder %s30, 0
      %p214 = por %p212, %p213
      %s216 = sadd.s32 %s215, 1
      %p219 = scmp.eq.s32.totalorder %s24, 1
      %p220 = scmp.ne.s32.totalorder %s215, %s217
      %p221 = scmp.eq.s32.totalorder %s24, 0
      %p222 = por %p220, %p221
      %p223 = scmp.ne.s32.totalorder %s215, %s217
      %p224 = scmp.eq.s32.totalorder %s29, 1
      %p225 = por %p223, %p224
      %p226 = scmp.ne.s32.totalorder %s217, %s218
      %p227 = scmp.eq.s32.totalorder %s29, 0
      %p228 = por %p226, %p227
      %p229 = scmp.ne.s32.totalorder %s217, %s218
      %p230 = scmp.eq.s32.totalorder %s30, 1
      %p231 = por %p229, %p230
      %p233 = scmp.ne.s32.totalorder %s218, %s232
      %p234 = scmp.eq.s32.totalorder %s30, 0
      %p235 = por %p233, %p234
      %s237 = sadd.s32 %s236, 1
      %p240 = scmp.eq.s32.totalorder %s24, 1
      %p241 = scmp.ne.s32.totalorder %s236, %s238
      %p242 = scmp.eq.s32.totalorder %s24, 0
      %p243 = por %p241, %p242
      %p244 = scmp.ne.s32.totalorder %s236, %s238
      %p245 = scmp.eq.s32.totalorder %s29, 1
      %p246 = por %p244, %p245
      %p247 = scmp.ne.s32.totalorder %s238, %s239
      %p248 = scmp.eq.s32.totalorder %s29, 0
      %p249 = por %p247, %p248
      %p250 = scmp.ne.s32.totalorder %s238, %s239
      %p251 = scmp.eq.s32.totalorder %s30, 1
      %p252 = por %p250, %p251
      %p254 = scmp.ne.s32.totalorder %s239, %s253
      %p255 = scmp.eq.s32.totalorder %s30, 0
      %p256 = por %p254, %p255
      %s258 = sadd.s32 %s257, 1
      %p261 = scmp.eq.s32.totalorder %s24, 1
      %p262 = scmp.ne.s32.totalorder %s257, %s259
      %p263 = scmp.eq.s32.totalorder %s24, 0
      %p264 = por %p262, %p263
      %p265 = scmp.ne.s32.totalorder %s257, %s259
      %p266 = scmp.eq.s32.totalorder %s29, 1
      %p267 = por %p265, %p266
      %p268 = scmp.ne.s32.totalorder %s259, %s260
      %p269 = scmp.eq.s32.totalorder %s29, 0
      %p270 = por %p268, %p269
      %p271 = scmp.ne.s32.totalorder %s259, %s260
      %p272 = scmp.eq.s32.totalorder %s30, 1
      %p273 = por %p271, %p272
      %p275 = scmp.ne.s32.totalorder %s260, %s274
      %p276 = scmp.eq.s32.totalorder %s30, 0
      %p277 = por %p275, %p276
      %s279 = sadd.s32 %s278, 1
      %p282 = scmp.eq.s32.totalorder %s24, 1
      %p283 = scmp.ne.s32.totalorder %s278, %s280
      %p284 = scmp.eq.s32.totalorder %s24, 0
      %p285 = por %p283, %p284
      %p286 = scmp.ne.s32.totalorder %s278, %s280
      %p287 = scmp.eq.s32.totalorder %s29, 1
      %p288 = por %p286, %p287
      %p289 = scmp.ne.s32.totalorder %s280, %s281
      %p290 = scmp.eq.s32.totalorder %s29, 0
      %p291 = por %p289, %p290
      %p292 = scmp.ne.s32.totalorder %s280, %s281
      %p293 = scmp.eq.s32.totalorder %s30, 1
      %p294 = por %p292, %p293
      %p296 = scmp.ne.s32.totalorder %s281, %s295
      %p297 = scmp.eq.s32.totalorder %s30, 0
      %p298 = por %p296, %p297
      %s300 = sadd.s32 %s299, 1
      %p303 = scmp.eq.s32.totalorder %s24, 1
      %p304 = scmp.ne.s32.totalorder %s299, %s301
      %p305 = scmp.eq.s32.totalorder %s24, 0
      %p306 = por %p304, %p305
      %p307 = scmp.ne.s32.totalorder %s299, %s301
      %p308 = scmp.eq.s32.totalorder %s29, 1
      %p309 = por %p307, %p308
      %p310 = scmp.ne.s32.totalorder %s301, %s302
      %p311 = scmp.eq.s32.totalorder %s29, 0
      %p312 = por %p310, %p311
      %p313 = scmp.ne.s32.totalorder %s301, %s302
      %p314 = scmp.eq.s32.totalorder %s30, 1
      %p315 = por %p313, %p314
      %p317 = scmp.ne.s32.totalorder %s302, %s316
      %p318 = scmp.eq.s32.totalorder %s30, 0
      %p319 = por %p317, %p318
      %s320 = ssub.s32 %s24, %s31
      %p321 = scmp.eq.s32.totalorder %s320, 0
      %s323 = sadd.s32 %s322, 1
      %s324 = scalar_select %p321, %s322, %s323
      %p327 = pneg %p321
      %p328 = scmp.eq.s32.totalorder %s24, 1
      %p329 = por %p327, %p328
      %p330 = scmp.ne.s32.totalorder %s322, %s325
      %p331 = scmp.eq.s32.totalorder %s24, 0
      %p332 = por %p330, %p331
      %p333 = scmp.ne.s32.totalorder %s322, %s325
      %p334 = scmp.eq.s32.totalorder %s29, 1
      %p335 = por %p333, %p334
      %p336 = scmp.ne.s32.totalorder %s325, %s326
      %p337 = scmp.eq.s32.totalorder %s29, 0
      %p338 = por %p336, %p337
      %p339 = scmp.ne.s32.totalorder %s325, %s326
      %p340 = scmp.eq.s32.totalorder %s30, 1
      %p341 = por %p339, %p340
      %p343 = scmp.ne.s32.totalorder %s326, %s342
      %p344 = scmp.eq.s32.totalorder %s30, 0
      %p345 = por %p343, %p344
      %p346 = scmp.le.s32.totalorder 1, %s24
      %p347 = scmp.lt.s32.totalorder %s24, 3
      %p348 = pnand %p346, %p347
      %p349 = pneg %p348
      // Predicated region
      $region9: #{tpu_custom_call.1} parent=5 // pred_check
        _
      $region10: #{tpu_custom_call.1} parent=5 // pred_check_branch
        %351 = sbr.rel (%p348) target = $region12
      $region11: #{tpu_custom_call.1} parent=5 // pred_region
        %s352 = ssub.s32 %s24, 1
        // Predicated region
        $region13: #{tpu_custom_call.1} parent=11 // pred_check
          %p353 = pneg %p123
        $region14: #{tpu_custom_call.1} parent=11 // pred_check_branch
          %355 = sbr.rel (%p353) target = $region16
        $region15: #{tpu_custom_call.1} parent=11 // pred_region
          _
        $region16: #{tpu_custom_call.1} parent=11 // pred_fallthru
          _
        // Predicated region
        $region17: #{tpu_custom_call.1} parent=11 // pred_check
          %p356 = pneg %p144
        $region18: #{tpu_custom_call.1} parent=11 // pred_check_branch
          %358 = sbr.rel (%p356) target = $region20
        $region19: #{tpu_custom_call.1} parent=11 // pred_region
          _
        $region20: #{tpu_custom_call.1} parent=11 // pred_fallthru
          _
        // Predicated region
        $region21: #{tpu_custom_call.1} parent=11 // pred_check
          %p359 = pneg %p165
        $region22: #{tpu_custom_call.1} parent=11 // pred_check_branch
          %361 = sbr.rel (%p359) target = $region24
        $region23: #{tpu_custom_call.1} parent=11 // pred_region
          %s363 = ssub.s32 1024, 1024
          %364 = vsyncadd [#allocation3], %s363
          %s365 = sshll.u32 [#allocation2], 4
          %s366 = int_to_ptr.vmem [resolvable:$true] %s365
          %371 = dma.hbm_to_vmem [thread:$0]  %s5, 1024, %s366, [#allocation3], 128, 128, 8
        $region24: #{tpu_custom_call.1} parent=11 // pred_fallthru
          _
        // Predicated region
        $region25: #{tpu_custom_call.1} parent=11 // pred_check
          %p372 = pneg %p186
        $region26: #{tpu_custom_call.1} parent=11 // pred_check_branch
          %374 = sbr.rel (%p372) target = $region28
        $region27: #{tpu_custom_call.1} parent=11 // pred_region
          _
        $region28: #{tpu_custom_call.1} parent=11 // pred_fallthru
          _
        // Predicated region
        $region29: #{tpu_custom_call.1} parent=11 // pred_check
          %p375 = pneg %p207
        $region30: #{tpu_custom_call.1} parent=11 // pred_check_branch
          %377 = sbr.rel (%p375) target = $region32
        $region31: #{tpu_custom_call.1} parent=11 // pred_region
          %s379 = ssub.s32 1024, 1024
          %380 = vsyncadd [#allocation6], %s379
          %s381 = sshll.u32 [#allocation5], 4
          %s382 = int_to_ptr.vmem [resolvable:$true] %s381
          %387 = dma.hbm_to_vmem [thread:$0]  %s7, 1024, %s382, [#allocation6], 128, 128, 8
        $region32: #{tpu_custom_call.1} parent=11 // pred_fallthru
          _
        // Predicated region
        $region33: #{tpu_custom_call.1} parent=11 // pred_check
          %p388 = pneg %p228
        $region34: #{tpu_custom_call.1} parent=11 // pred_check_branch
          %390 = sbr.rel (%p388) target = $region36
        $region35: #{tpu_custom_call.1} parent=11 // pred_region
          _
        $region36: #{tpu_custom_call.1} parent=11 // pred_fallthru
          _
        // Predicated region
        $region37: #{tpu_custom_call.1} parent=11 // pred_check
          %p391 = pneg %p249
        $region38: #{tpu_custom_call.1} parent=11 // pred_check_branch
          %393 = sbr.rel (%p391) target = $region40
        $region39: #{tpu_custom_call.1} parent=11 // pred_region
          _
        $region40: #{tpu_custom_call.1} parent=11 // pred_fallthru
          _
        // Predicated region
        $region41: #{tpu_custom_call.1} parent=11 // pred_check
          %p394 = pneg %p270
        $region42: #{tpu_custom_call.1} parent=11 // pred_check_branch
          %396 = sbr.rel (%p394) target = $region44
        $region43: #{tpu_custom_call.1} parent=11 // pred_region
          _
        $region44: #{tpu_custom_call.1} parent=11 // pred_fallthru
          _
        // Predicated region
        $region45: #{tpu_custom_call.1} parent=11 // pred_check
          %p397 = pneg %p291
        $region46: #{tpu_custom_call.1} parent=11 // pred_check_branch
          %399 = sbr.rel (%p397) target = $region48
        $region47: #{tpu_custom_call.1} parent=11 // pred_region
          %s401 = ssub.s32 1024, 1024
          %402 = vsyncadd [#allocation6], %s401
          %s403 = sshll.u32 [#allocation7], 4
          %s404 = int_to_ptr.vmem [resolvable:$true] %s403
          %409 = dma.hbm_to_vmem [thread:$0]  %s11, 1024, %s404, [#allocation6], 128, 128, 8
        $region48: #{tpu_custom_call.1} parent=11 // pred_fallthru
          _
        // Predicated region
        $region49: #{tpu_custom_call.1} parent=11 // pred_check
          %p410 = pneg %p312
        $region50: #{tpu_custom_call.1} parent=11 // pred_check_branch
          %412 = sbr.rel (%p410) target = $region52
        $region51: #{tpu_custom_call.1} parent=11 // pred_region
          _
        $region52: #{tpu_custom_call.1} parent=11 // pred_fallthru
          _
      $region12: #{tpu_custom_call.1} parent=5 // pred_fallthru
        _
      %p413 = scmp.lt.s32.totalorder %s24, 2
      // Predicated region
      $region53: #{tpu_custom_call.1} parent=5 // pred_check
        %p414 = pneg %p413
      $region54: #{tpu_custom_call.1} parent=5 // pred_check_branch
        %416 = sbr.rel (%p414) target = $region56
      $region55: #{tpu_custom_call.1} parent=5 // pred_region
        // Predicated region
        $region57: #{tpu_custom_call.1} parent=55 // pred_check
          %p417 = pneg %p44
        $region58: #{tpu_custom_call.1} parent=55 // pred_check_branch
          %419 = sbr.rel (%p417) target = $region60
        $region59: #{tpu_custom_call.1} parent=55 // pred_region
          %s420 = smul.u32 4, %s24
          %p421 = scmp.lt.s32.totalorder %s420, 7
          %s422 = scalar_select %p421, %s420, 7
          %s423 = smul.addr %s422, 8
          %s424 = scalar_lea.vmem %s0, %s423
          %s425 = smul.u32 4, %s24
        $region60: #{tpu_custom_call.1} parent=55 // pred_fallthru
          _
        // Predicated region
        $region61: #{tpu_custom_call.1} parent=55 // pred_check
          %p426 = pneg %p70
        $region62: #{tpu_custom_call.1} parent=55 // pred_check_branch
          %428 = sbr.rel (%p426) target = $region64
        $region63: #{tpu_custom_call.1} parent=55 // pred_region
          %s429 = smul.u32 6, %s24
          %p430 = scmp.lt.s32.totalorder %s429, 11
          %s431 = scalar_select %p430, %s429, 11
          %s432 = smul.addr %s431, 8
          %s433 = scalar_lea.vmem %s1, %s432
          %s434 = smul.u32 6, %s24
        $region64: #{tpu_custom_call.1} parent=55 // pred_fallthru
          _
        // Predicated region
        $region65: #{tpu_custom_call.1} parent=55 // pred_check
          %p435 = pneg %p96
        $region66: #{tpu_custom_call.1} parent=55 // pred_check_branch
          %437 = sbr.rel (%p435) target = $region68
        $region67: #{tpu_custom_call.1} parent=55 // pred_region
          %s438 = smul.u32 6, %s24
          %p439 = scmp.lt.s32.totalorder %s438, 11
          %s440 = scalar_select %p439, %s438, 11
          %s441 = smul.addr %s440, 8
          %s442 = scalar_lea.vmem %s2, %s441
          %s443 = smul.u32 6, %s24
        $region68: #{tpu_custom_call.1} parent=55 // pred_fallthru
          _
      $region56: #{tpu_custom_call.1} parent=5 // pred_fallthru
        _
      %p444 = scmp.le.s32.totalorder 1, %s24
      %p445 = scmp.lt.s32.totalorder %s24, 3
      %p446 = pnand %p444, %p445
      %p447 = pneg %p446
      // Predicated region
      $region69: #{tpu_custom_call.1} parent=5 // pred_check
        _
      $region70: #{tpu_custom_call.1} parent=5 // pred_check_branch
        %449 = sbr.rel (%p446) target = $region72
      $region71: #{tpu_custom_call.1} parent=5 // pred_region
        %s450 = ssub.s32 %s24, 1
        // Predicated region
        $region73: #{tpu_custom_call.1} parent=71 // pred_check
          %p451 = pneg %p165
        $region74: #{tpu_custom_call.1} parent=71 // pred_check_branch
          %453 = sbr.rel (%p451) target = $region76
        $region75: #{tpu_custom_call.1} parent=71 // pred_region
          %454 = dma.done [#allocation3], 1024
        $region76: #{tpu_custom_call.1} parent=71 // pred_fallthru
          _
        // Predicated region
        $region77: #{tpu_custom_call.1} parent=71 // pred_check
          %p455 = pneg %p207
        $region78: #{tpu_custom_call.1} parent=71 // pred_check_branch
          %457 = sbr.rel (%p455) target = $region80
        $region79: #{tpu_custom_call.1} parent=71 // pred_region
          %458 = dma.done [#allocation6], 1024
        $region80: #{tpu_custom_call.1} parent=71 // pred_fallthru
          _
        // Predicated region
        $region81: #{tpu_custom_call.1} parent=71 // pred_check
          %p459 = pneg %p291
        $region82: #{tpu_custom_call.1} parent=71 // pred_check_branch
          %461 = sbr.rel (%p459) target = $region84
        $region83: #{tpu_custom_call.1} parent=71 // pred_region
          %462 = dma.done [#allocation6], 1024
        $region84: #{tpu_custom_call.1} parent=71 // pred_fallthru
          _
        %s463 = smul.u32 4, %s29
        %p464 = scmp.lt.s32.totalorder %s463, 7
        %s465 = scalar_select %p464, %s463, 7
        %s466 = smul.addr %s465, 8
        %s467 = scalar_lea.vmem %s0, %s466
        %p468 = pneg %p50
        %p469 = pneg %p47
        %s470 = smul.u32 6, %s29
        %p471 = scmp.lt.s32.totalorder %s470, 11
        %s472 = scalar_select %p471, %s470, 11
        %s473 = smul.addr %s472, 8
        %s474 = scalar_lea.vmem %s1, %s473
        %p475 = pneg %p76
        %p476 = pneg %p73
        %s477 = smul.u32 6, %s29
        %p478 = scmp.lt.s32.totalorder %s477, 11
        %s479 = scalar_select %p478, %s477, 11
        %s480 = smul.addr %s479, 8
        %s481 = scalar_lea.vmem %s2, %s480
        %p482 = pneg %p102
        %p483 = pneg %p99
        %p484 = pneg %p123
        %p485 = pneg %p120
        %p486 = pneg %p144
        %p487 = pneg %p141
        %p488 = pneg %p165
        %p489 = pneg %p162
        %p490 = pneg %p186
        %p491 = pneg %p183
        %p492 = pneg %p207
        %p493 = pneg %p204
        %p494 = pneg %p228
        %p495 = pneg %p225
        %p496 = pneg %p249
        %p497 = pneg %p246
        %p498 = pneg %p270
        %p499 = pneg %p267
        %p500 = pneg %p291
        %p501 = pneg %p288
        %p502 = pneg %p312
        %p503 = pneg %p309
        %p504 = pneg %p338
        %p505 = pneg %p335
        %s506 = sand.u32 %s325, 1
        %s507 = scalar_lea.sflag [#allocation4], %s506
        %s508 = sand.u32 %s325, 1
        %s509 = smul.addr %s508, 32
        %s510 = scalar_lea.vmem [#allocation8], %s509
        %s511 = smul.u32 4, %s29
        %p512 = scmp.lt.s32.totalorder %s511, 7
        %s513 = scalar_select %p512, %s511, 7
        %s514 = smul.addr %s513, 8
        %s515 = scalar_lea.vmem %s0, %s514
        %s516 = smul.u32 4, %s29
        %s517 = smul.u32 6, %s29
        %p518 = scmp.lt.s32.totalorder %s517, 11
        %s519 = scalar_select %p518, %s517, 11
        %s520 = smul.addr %s519, 8
        %s521 = scalar_lea.vmem %s1, %s520
        %s522 = smul.u32 6, %s29
        %s523 = smul.u32 6, %s29
        %p524 = scmp.lt.s32.totalorder %s523, 11
        %s525 = scalar_select %p524, %s523, 11
        %s526 = smul.addr %s525, 8
        %s527 = scalar_lea.vmem %s2, %s526
        %s528 = smul.u32 6, %s29
        %s529 = smul.u32 4, %s29
        %v530 = vld [vmem:[%s515] sm:$0xff]
        %v531 = vld [vmem:[%s515 + $0x8] sm:$0xff]
        %v532 = vld [vmem:[%s515 + $0x10] sm:$0xff]
        %v533 = vld [vmem:[%s515 + $0x18] sm:$0xff]
        %v534 = vld [vmem:[%s521] sm:$0xff]
        %v535 = vld [vmem:[%s521 + $0x8] sm:$0xff]
        %v536 = vld [vmem:[%s521 + $0x10] sm:$0xff]
        %v537 = vld [vmem:[%s521 + $0x18] sm:$0xff]
        %v538 = vld [vmem:[%s521 + $0x20] sm:$0xff]
        %v539 = vld [vmem:[%s521 + $0x28] sm:$0xff]
        %v540 = vld [vmem:[%s3] sm:$0xff]
        %v541 = vld [vmem:[%s3 + $0x8] sm:$0xff]
        %v542 = vld [vmem:[%s3 + $0x10] sm:$0xff]
        %v543 = vld [vmem:[%s3 + $0x18] sm:$0xff]
        %v544 = vld [vmem:[%s3 + $0x20] sm:$0xff]
        %v545 = vld [vmem:[%s3 + $0x28] sm:$0xff]
        %v546 = vld [vmem:[%s3 + $0x30] sm:$0xff]
        %v547 = vld [vmem:[%s3 + $0x38] sm:$0xff]
        %v548 = vld [vmem:[%s4] sm:$0x1]
        %v550 = vlaneseq
        %v551 = vshrl.u32 %v550, 7
        %v552 = vsub.s32 0, %v551
        %v553 = vrot.slane %v548, %v552
        %vm555 = vcmask 523264
        %v557 = vsel %vm555, %v530, 0
        %v560 = vsel %vm555, %v531, 0
        %v563 = vsel %vm555, %v532, 0
        %v566 = vsel %vm555, %v533, 0
        %568 = vmatprep.subr.mxu0 0.0
        %569 = vmatpush1.msra.mxu0 %v540
        %570 = vmatprep.subr.mxu0 0.0
        %571 = vmatpush1.msra.mxu0 %v541
        %572 = vmatprep.subr.mxu0 0.0
        %573 = vmatpush1.msra.mxu0 %v542
        %574 = vmatprep.subr.mxu0 0.0
        %575 = vmatpush1.msra.mxu0 %v543
        %576 = vmatprep.subr.mxu0 0.0
        %577 = vmatpush1.msra.mxu0 %v544
        %578 = vmatprep.subr.mxu0 0.0
        %579 = vmatpush1.msra.mxu0 %v545
        %580 = vmatprep.subr.mxu0 0.0
        %581 = vmatpush1.msra.mxu0 %v546
        %582 = vmatprep.subr.mxu0 0.0
        %583 = vmatpush1.msra.mxu0 %v547
        %584 = vmatprep.subr.mxu0 0.0
        %585 = vmatpush1.msra.mxu0 0.0
        %586 = vmatprep.subr.mxu0 0.0
        %587 = vmatpush1.msra.mxu0 0.0
        %588 = vmatprep.subr.mxu0 0.0
        %589 = vmatpush1.msra.mxu0 0.0
        %590 = vmatprep.subr.mxu0 0.0
        %591 = vmatpush1.msra.mxu0 0.0
        %592 = vmatprep.subr.mxu0 0.0
        %593 = vmatpush1.msra.mxu0 0.0
        %594 = vmatprep.subr.mxu0 0.0
        %595 = vmatpush1.msra.mxu0 0.0
        %596 = vmatprep.subr.mxu0 0.0
        %597 = vmatpush1.msra.mxu0 0.0
        %598 = vmatprep.subr.mxu0 0.0
        %599 = vmatpush1.msra.mxu0 0.0
        %600 = vmatprep.subr.mxu0 0.0
        %601 = vmatpush1.msra.mxu0 0.0
        %602 = vmatprep.subr.mxu0 0.0
        %603 = vmatpush1.msra.mxu0 0.0
        %604 = vmatprep.subr.mxu0 0.0
        %605 = vmatpush1.msra.mxu0 0.0
        %606 = vmatprep.subr.mxu0 0.0
        %607 = vmatpush1.msra.mxu0 0.0
        %608 = vmatprep.subr.mxu0 0.0
        %609 = vmatpush1.msra.mxu0 0.0
        %610 = vmatprep.subr.mxu0 0.0
        %611 = vmatpush1.msra.mxu0 0.0
        %612 = vmatprep.subr.mxu0 0.0
        %613 = vmatpush1.msra.mxu0 0.0
        %614 = vmatprep.subr.mxu0 0.0
        %615 = vmatpush1.msra.mxu0 0.0
        %616 = vmatprep.subr.mxu0 0.0
        %617 = vmatpush1.msra.mxu0 0.0
        %618 = vmatprep.subr.mxu0 0.0
        %619 = vmatpush1.msra.mxu0 0.0
        %620 = vmatprep.subr.mxu0 0.0
        %621 = vmatpush1.msra.mxu0 0.0
        %622 = vmatprep.subr.mxu0 0.0
        %623 = vmatpush1.msra.mxu0 0.0
        %624 = vmatprep.subr.mxu0 0.0
        %625 = vmatpush1.msra.mxu0 0.0
        %626 = vmatprep.subr.mxu0 0.0
        %627 = vmatpush1.msra.mxu0 0.0
        %628 = vmatprep.subr.mxu0 0.0
        %629 = vmatpush1.msra.mxu0 0.0
        %630 = vmatprep.subr.mxu0 0.0
        %631 = vmatpush1.msra.mxu0 0.0
        %632 = vmatprep.mubr.f32.mxu0 0.0
        %633 = vmatmul.mubr.f32.gmra.mrb[0].mxu0 %v557
        %v634 = vpop.f32.mrb[0].mxu0
        %v635 = vadd.f32 %v553, %v634
        %v636 = vpop.f32.mrb[0].mxu0
        %637 = vmatprep.mubr.f32.mxu0 0.0
        %638 = vmatmul.mubr.f32.gmra.mrb[0].mxu0 %v560
        %v639 = vpop.f32.mrb[0].mxu0
        %v640 = vadd.f32 %v553, %v639
        %v641 = vpop.f32.mrb[0].mxu0
        %642 = vmatprep.mubr.f32.mxu0 0.0
        %643 = vmatmul.mubr.f32.gmra.mrb[0].mxu0 %v563
        %v644 = vpop.f32.mrb[0].mxu0
        %v645 = vadd.f32 %v553, %v644
        %v646 = vpop.f32.mrb[0].mxu0
        %647 = vmatprep.mubr.f32.mxu0 0.0
        %648 = vmatmul.mubr.f32.gmra.mrb[0].mxu0 %v566
        %v649 = vpop.f32.mrb[0].mxu0
        %v650 = vadd.f32 %v553, %v649
        %v651 = vpop.f32.mrb[0].mxu0
        %652 = vdwg.mxu0
        %v653 = vld [vmem:[#allocation2] sm:$0xff]
        %v654 = vld [vmem:[#allocation2 + $0x8] sm:$0xff]
        %v655 = vld [vmem:[#allocation2 + $0x10] sm:$0xff]
        %v656 = vld [vmem:[#allocation2 + $0x18] sm:$0xff]
        %v657 = vld [vmem:[#allocation2 + $0x20] sm:$0xff]
        %v658 = vld [vmem:[#allocation2 + $0x28] sm:$0xff]
        %v659 = vld [vmem:[#allocation2 + $0x30] sm:$0xff]
        %v660 = vld [vmem:[#allocation2 + $0x38] sm:$0xff]
        %v661 = vld [vmem:[%s6] sm:$0x1]
        %v663 = vlaneseq
        %v664 = vshrl.u32 %v663, 7
        %v665 = vsub.s32 0, %v664
        %v666 = vrot.slane %v661, %v665
        %v669 = vsel %vm555, %v534, 0
        %v672 = vsel %vm555, %v535, 0
        %v675 = vsel %vm555, %v536, 0
        %v678 = vsel %vm555, %v537, 0
        %v681 = vsel %vm555, %v538, 0
        %v684 = vsel %vm555, %v539, 0
        %686 = vmatprep.subr.mxu0 0.0
        %687 = vmatpush1.msra.mxu0 %v653
        %688 = vmatprep.subr.mxu0 0.0
        %689 = vmatpush1.msra.mxu0 %v654
        %690 = vmatprep.subr.mxu0 0.0
        %691 = vmatpush1.msra.mxu0 %v655
        %692 = vmatprep.subr.mxu0 0.0
        %693 = vmatpush1.msra.mxu0 %v656
        %694 = vmatprep.subr.mxu0 0.0
        %695 = vmatpush1.msra.mxu0 %v657
        %696 = vmatprep.subr.mxu0 0.0
        %697 = vmatpush1.msra.mxu0 %v658
        %698 = vmatprep.subr.mxu0 0.0
        %699 = vmatpush1.msra.mxu0 %v659
        %700 = vmatprep.subr.mxu0 0.0
        %701 = vmatpush1.msra.mxu0 %v660
        %702 = vmatprep.subr.mxu0 0.0
        %703 = vmatpush1.msra.mxu0 0.0
        %704 = vmatprep.subr.mxu0 0.0
        %705 = vmatpush1.msra.mxu0 0.0
        %706 = vmatprep.subr.mxu0 0.0
        %707 = vmatpush1.msra.mxu0 0.0
        %708 = vmatprep.subr.mxu0 0.0
        %709 = vmatpush1.msra.mxu0 0.0
        %710 = vmatprep.subr.mxu0 0.0
        %711 = vmatpush1.msra.mxu0 0.0
        %712 = vmatprep.subr.mxu0 0.0
        %713 = vmatpush1.msra.mxu0 0.0
        %714 = vmatprep.subr.mxu0 0.0
        %715 = vmatpush1.msra.mxu0 0.0
        %716 = vmatprep.subr.mxu0 0.0
        %717 = vmatpush1.msra.mxu0 0.0
        %718 = vmatprep.subr.mxu0 0.0
        %719 = vmatpush1.msra.mxu0 0.0
        %720 = vmatprep.subr.mxu0 0.0
        %721 = vmatpush1.msra.mxu0 0.0
        %722 = vmatprep.subr.mxu0 0.0
        %723 = vmatpush1.msra.mxu0 0.0
        %724 = vmatprep.subr.mxu0 0.0
        %725 = vmatpush1.msra.mxu0 0.0
        %726 = vmatprep.subr.mxu0 0.0
        %727 = vmatpush1.msra.mxu0 0.0
        %728 = vmatprep.subr.mxu0 0.0
        %729 = vmatpush1.msra.mxu0 0.0
        %730 = vmatprep.subr.mxu0 0.0
        %731 = vmatpush1.msra.mxu0 0.0
        %732 = vmatprep.subr.mxu0 0.0
        %733 = vmatpush1.msra.mxu0 0.0
        %734 = vmatprep.subr.mxu0 0.0
        %735 = vmatpush1.msra.mxu0 0.0
        %736 = vmatprep.subr.mxu0 0.0
        %737 = vmatpush1.msra.mxu0 0.0
        %738 = vmatprep.subr.mxu0 0.0
        %739 = vmatpush1.msra.mxu0 0.0
        %740 = vmatprep.subr.mxu0 0.0
        %741 = vmatpush1.msra.mxu0 0.0
        %742 = vmatprep.subr.mxu0 0.0
        %743 = vmatpush1.msra.mxu0 0.0
        %744 = vmatprep.subr.mxu0 0.0
        %745 = vmatpush1.msra.mxu0 0.0
        %746 = vmatprep.subr.mxu0 0.0
        %747 = vmatpush1.msra.mxu0 0.0
        %748 = vmatprep.subr.mxu0 0.0
        %749 = vmatpush1.msra.mxu0 0.0
        %750 = vmatprep.mubr.f32.mxu0 0.0
        %751 = vmatmul.mubr.f32.gmra.mrb[0].mxu0 %v669
        %v752 = vpop.f32.mrb[0].mxu0
        %v753 = vadd.f32 %v666, %v752
        %v754 = vpop.f32.mrb[0].mxu0
        %755 = vmatprep.mubr.f32.mxu0 0.0
        %756 = vmatmul.mubr.f32.gmra.mrb[0].mxu0 %v672
        %v757 = vpop.f32.mrb[0].mxu0
        %v758 = vadd.f32 %v666, %v757
        %v759 = vpop.f32.mrb[0].mxu0
        %760 = vmatprep.mubr.f32.mxu0 0.0
        %761 = vmatmul.mubr.f32.gmra.mrb[0].mxu0 %v675
        %v762 = vpop.f32.mrb[0].mxu0
        %v763 = vadd.f32 %v666, %v762
        %v764 = vpop.f32.mrb[0].mxu0
        %765 = vmatprep.mubr.f32.mxu0 0.0
        %766 = vmatmul.mubr.f32.gmra.mrb[0].mxu0 %v678
        %v767 = vpop.f32.mrb[0].mxu0
        %v768 = vadd.f32 %v666, %v767
        %v769 = vpop.f32.mrb[0].mxu0
        %770 = vmatprep.mubr.f32.mxu0 0.0
        %771 = vmatmul.mubr.f32.gmra.mrb[0].mxu0 %v681
        %v772 = vpop.f32.mrb[0].mxu0
        %v773 = vadd.f32 %v666, %v772
        %v774 = vpop.f32.mrb[0].mxu0
        %775 = vmatprep.mubr.f32.mxu0 0.0
        %776 = vmatmul.mubr.f32.gmra.mrb[0].mxu0 %v684
        %v777 = vpop.f32.mrb[0].mxu0
        %v778 = vadd.f32 %v666, %v777
        %v779 = vpop.f32.mrb[0].mxu0
        %780 = vdwg.mxu0
        %v781 = vld [vmem:[#allocation5] sm:$0xff]
        %v782 = vld [vmem:[#allocation5 + $0x8] sm:$0xff]
        %v783 = vld [vmem:[#allocation5 + $0x10] sm:$0xff]
        %v784 = vld [vmem:[#allocation5 + $0x18] sm:$0xff]
        %v785 = vld [vmem:[#allocation5 + $0x20] sm:$0xff]
        %v786 = vld [vmem:[#allocation5 + $0x28] sm:$0xff]
        %v787 = vld [vmem:[#allocation5 + $0x30] sm:$0xff]
        %v788 = vld [vmem:[#allocation5 + $0x38] sm:$0xff]
        %v789 = vld [vmem:[%s8] sm:$0x1]
        %v791 = vlaneseq
        %v792 = vshrl.u32 %v791, 7
        %v793 = vsub.s32 0, %v792
        %v794 = vrot.slane %v789, %v793
        %796 = vmatprep.subr.mxu0 0.0
        %797 = vmatpush1.msra.mxu0 %v781
        %798 = vmatprep.subr.mxu0 0.0
        %799 = vmatpush1.msra.mxu0 %v782
        %800 = vmatprep.subr.mxu0 0.0
        %801 = vmatpush1.msra.mxu0 %v783
        %802 = vmatprep.subr.mxu0 0.0
        %803 = vmatpush1.msra.mxu0 %v784
        %804 = vmatprep.subr.mxu0 0.0
        %805 = vmatpush1.msra.mxu0 %v785
        %806 = vmatprep.subr.mxu0 0.0
        %807 = vmatpush1.msra.mxu0 %v786
        %808 = vmatprep.subr.mxu0 0.0
        %809 = vmatpush1.msra.mxu0 %v787
        %810 = vmatprep.subr.mxu0 0.0
        %811 = vmatpush1.msra.mxu0 %v788
        %812 = vmatprep.subr.mxu0 0.0
        %813 = vmatpush1.msra.mxu0 0.0
        %814 = vmatprep.subr.mxu0 0.0
        %815 = vmatpush1.msra.mxu0 0.0
        %816 = vmatprep.subr.mxu0 0.0
        %817 = vmatpush1.msra.mxu0 0.0
        %818 = vmatprep.subr.mxu0 0.0
        %819 = vmatpush1.msra.mxu0 0.0
        %820 = vmatprep.subr.mxu0 0.0
        %821 = vmatpush1.msra.mxu0 0.0
        %822 = vmatprep.subr.mxu0 0.0
        %823 = vmatpush1.msra.mxu0 0.0
        %824 = vmatprep.subr.mxu0 0.0
        %825 = vmatpush1.msra.mxu0 0.0
        %826 = vmatprep.subr.mxu0 0.0
        %827 = vmatpush1.msra.mxu0 0.0
        %828 = vmatprep.subr.mxu0 0.0
        %829 = vmatpush1.msra.mxu0 0.0
        %830 = vmatprep.subr.mxu0 0.0
        %831 = vmatpush1.msra.mxu0 0.0
        %832 = vmatprep.subr.mxu0 0.0
        %833 = vmatpush1.msra.mxu0 0.0
        %834 = vmatprep.subr.mxu0 0.0
        %835 = vmatpush1.msra.mxu0 0.0
        %836 = vmatprep.subr.mxu0 0.0
        %837 = vmatpush1.msra.mxu0 0.0
        %838 = vmatprep.subr.mxu0 0.0
        %839 = vmatpush1.msra.mxu0 0.0
        %840 = vmatprep.subr.mxu0 0.0
        %841 = vmatpush1.msra.mxu0 0.0
        %842 = vmatprep.subr.mxu0 0.0
        %843 = vmatpush1.msra.mxu0 0.0
        %844 = vmatprep.subr.mxu0 0.0
        %845 = vmatpush1.msra.mxu0 0.0
        %846 = vmatprep.subr.mxu0 0.0
        %847 = vmatpush1.msra.mxu0 0.0
        %848 = vmatprep.subr.mxu0 0.0
        %849 = vmatpush1.msra.mxu0 0.0
        %850 = vmatprep.subr.mxu0 0.0
        %851 = vmatpush1.msra.mxu0 0.0
        %852 = vmatprep.subr.mxu0 0.0
        %853 = vmatpush1.msra.mxu0 0.0
        %854 = vmatprep.subr.mxu0 0.0
        %855 = vmatpush1.msra.mxu0 0.0
        %856 = vmatprep.subr.mxu0 0.0
        %857 = vmatpush1.msra.mxu0 0.0
        %858 = vmatprep.subr.mxu0 0.0
        %859 = vmatpush1.msra.mxu0 0.0
        %860 = vmatprep.mubr.f32.mxu0 0.0
        %861 = vmatmul.mubr.f32.gmra.mrb[0].mxu0 %v669
        %v862 = vpop.f32.mrb[0].mxu0
        %v863 = vadd.f32 %v794, %v862
        %v864 = vpop.f32.mrb[0].mxu0
        %865 = vmatprep.mubr.f32.mxu0 0.0
        %866 = vmatmul.mubr.f32.gmra.mrb[0].mxu0 %v672
        %v867 = vpop.f32.mrb[0].mxu0
        %v868 = vadd.f32 %v794, %v867
        %v869 = vpop.f32.mrb[0].mxu0
        %870 = vmatprep.mubr.f32.mxu0 0.0
        %871 = vmatmul.mubr.f32.gmra.mrb[0].mxu0 %v675
        %v872 = vpop.f32.mrb[0].mxu0
        %v873 = vadd.f32 %v794, %v872
        %v874 = vpop.f32.mrb[0].mxu0
        %875 = vmatprep.mubr.f32.mxu0 0.0
        %876 = vmatmul.mubr.f32.gmra.mrb[0].mxu0 %v678
        %v877 = vpop.f32.mrb[0].mxu0
        %v878 = vadd.f32 %v794, %v877
        %v879 = vpop.f32.mrb[0].mxu0
        %880 = vmatprep.mubr.f32.mxu0 0.0
        %881 = vmatmul.mubr.f32.gmra.mrb[0].mxu0 %v681
        %v882 = vpop.f32.mrb[0].mxu0
        %v883 = vadd.f32 %v794, %v882
        %v884 = vpop.f32.mrb[0].mxu0
        %885 = vmatprep.mubr.f32.mxu0 0.0
        %886 = vmatmul.mubr.f32.gmra.mrb[0].mxu0 %v684
        %v887 = vpop.f32.mrb[0].mxu0
        %v888 = vadd.f32 %v794, %v887
        %v889 = vpop.f32.mrb[0].mxu0
        %890 = vdwg.mxu0
        %v891 = vld [vmem:[%s9] sm:$0xff]
        %v892 = vld [vmem:[%s9 + $0x8] sm:$0xff]
        %v893 = vld [vmem:[%s9 + $0x10] sm:$0xff]
        %v894 = vld [vmem:[%s9 + $0x18] sm:$0xff]
        %v895 = vld [vmem:[%s9 + $0x20] sm:$0xff]
        %v896 = vld [vmem:[%s9 + $0x28] sm:$0xff]
        %v897 = vld [vmem:[%s9 + $0x30] sm:$0xff]
        %v898 = vld [vmem:[%s9 + $0x38] sm:$0xff]
        %v899 = vld [vmem:[%s9 + $0x40] sm:$0xff]
        %v900 = vld [vmem:[%s9 + $0x48] sm:$0xff]
        %v901 = vld [vmem:[%s9 + $0x50] sm:$0xff]
        %v902 = vld [vmem:[%s9 + $0x58] sm:$0xff]
        %v903 = vld [vmem:[%s9 + $0x60] sm:$0xff]
        %v904 = vld [vmem:[%s9 + $0x68] sm:$0xff]
        %v905 = vld [vmem:[%s9 + $0x70] sm:$0xff]
        %v906 = vld [vmem:[%s9 + $0x78] sm:$0xff]
        %v907 = vld [vmem:[%s10] sm:$0x3]
        %v909 = vlaneseq
        %v910 = vshrl.u32 %v909, 7
        %v911 = vsub.s32 0, %v910
        %v912 = vrot.slane %v907, %v911
        %v913 = vlaneseq
        %v914 = vshrl.u32 %v913, 7
        %v915 = vsub.s32 1, %v914
        %v916 = vrot.slane %v907, %v915
        %v920 = vsel %vm555, %v635, 0
        %v923 = vsel %vm555, %v640, 0
        %v926 = vsel %vm555, %v645, 0
        %v929 = vsel %vm555, %v650, 0
        %931 = vmatprep.subr.mxu0 %v892
        %932 = vmatpush1.msra.mxu0 %v891
        %933 = vmatprep.subr.mxu0 %v894
        %934 = vmatpush1.msra.mxu0 %v893
        %935 = vmatprep.subr.mxu0 %v896
        %936 = vmatpush1.msra.mxu0 %v895
        %937 = vmatprep.subr.mxu0 %v898
        %938 = vmatpush1.msra.mxu0 %v897
        %939 = vmatprep.subr.mxu0 %v900
        %940 = vmatpush1.msra.mxu0 %v899
        %941 = vmatprep.subr.mxu0 %v902
        %942 = vmatpush1.msra.mxu0 %v901
        %943 = vmatprep.subr.mxu0 %v904
        %944 = vmatpush1.msra.mxu0 %v903
        %945 = vmatprep.subr.mxu0 %v906
        %946 = vmatpush1.msra.mxu0 %v905
        %947 = vmatprep.subr.mxu0 0.0
        %948 = vmatpush1.msra.mxu0 0.0
        %949 = vmatprep.subr.mxu0 0.0
        %950 = vmatpush1.msra.mxu0 0.0
        %951 = vmatprep.subr.mxu0 0.0
        %952 = vmatpush1.msra.mxu0 0.0
        %953 = vmatprep.subr.mxu0 0.0
        %954 = vmatpush1.msra.mxu0 0.0
        %955 = vmatprep.subr.mxu0 0.0
        %956 = vmatpush1.msra.mxu0 0.0
        %957 = vmatprep.subr.mxu0 0.0
        %958 = vmatpush1.msra.mxu0 0.0
        %959 = vmatprep.subr.mxu0 0.0
        %960 = vmatpush1.msra.mxu0 0.0
        %961 = vmatprep.subr.mxu0 0.0
        %962 = vmatpush1.msra.mxu0 0.0
        %963 = vmatprep.subr.mxu0 0.0
        %964 = vmatpush1.msra.mxu0 0.0
        %965 = vmatprep.subr.mxu0 0.0
        %966 = vmatpush1.msra.mxu0 0.0
        %967 = vmatprep.subr.mxu0 0.0
        %968 = vmatpush1.msra.mxu0 0.0
        %969 = vmatprep.subr.mxu0 0.0
        %970 = vmatpush1.msra.mxu0 0.0
        %971 = vmatprep.subr.mxu0 0.0
        %972 = vmatpush1.msra.mxu0 0.0
        %973 = vmatprep.subr.mxu0 0.0
        %974 = vmatpush1.msra.mxu0 0.0
        %975 = vmatprep.subr.mxu0 0.0
        %976 = vmatpush1.msra.mxu0 0.0
        %977 = vmatprep.subr.mxu0 0.0
        %978 = vmatpush1.msra.mxu0 0.0
        %979 = vmatprep.subr.mxu0 0.0
        %980 = vmatpush1.msra.mxu0 0.0
        %981 = vmatprep.subr.mxu0 0.0
        %982 = vmatpush1.msra.mxu0 0.0
        %983 = vmatprep.subr.mxu0 0.0
        %984 = vmatpush1.msra.mxu0 0.0
        %985 = vmatprep.subr.mxu0 0.0
        %986 = vmatpush1.msra.mxu0 0.0
        %987 = vmatprep.subr.mxu0 0.0
        %988 = vmatpush1.msra.mxu0 0.0
        %989 = vmatprep.subr.mxu0 0.0
        %990 = vmatpush1.msra.mxu0 0.0
        %991 = vmatprep.subr.mxu0 0.0
        %992 = vmatpush1.msra.mxu0 0.0
        %993 = vmatprep.subr.mxu0 0.0
        %994 = vmatpush1.msra.mxu0 0.0
        %995 = vmatprep.mubr.f32.mxu0 0.0
        %996 = vmatmul.mubr.f32.gmra.mrb[0].mxu0 %v920
        %v997 = vpop.f32.mrb[0].mxu0
        %v998 = vadd.f32 %v912, %v997
        %v999 = vpop.f32.mrb[0].mxu0
        %v1000 = vadd.f32 %v916, %v999
        %1001 = vmatprep.mubr.f32.mxu0 0.0
        %1002 = vmatmul.mubr.f32.gmra.mrb[0].mxu0 %v923
        %v1003 = vpop.f32.mrb[0].mxu0
        %v1004 = vadd.f32 %v912, %v1003
        %v1005 = vpop.f32.mrb[0].mxu0
        %v1006 = vadd.f32 %v916, %v1005
        %1007 = vmatprep.mubr.f32.mxu0 0.0
        %1008 = vmatmul.mubr.f32.gmra.mrb[0].mxu0 %v926
        %v1009 = vpop.f32.mrb[0].mxu0
        %v1010 = vadd.f32 %v912, %v1009
        %v1011 = vpop.f32.mrb[0].mxu0
        %v1012 = vadd.f32 %v916, %v1011
        %1013 = vmatprep.mubr.f32.mxu0 0.0
        %1014 = vmatmul.mubr.f32.gmra.mrb[0].mxu0 %v929
        %v1015 = vpop.f32.mrb[0].mxu0
        %v1016 = vadd.f32 %v912, %v1015
        %v1017 = vpop.f32.mrb[0].mxu0
        %v1018 = vadd.f32 %v916, %v1017
        %1019 = vdwg.mxu0
        %v1020 = vand.u32 2147483647, %v998
        %vm1021 = vcmp.le.f32.partialorder %v1020, 0.7853982
        %vm1022 = vcmp.lt.s32.totalorder %v998, 0
        %v1023 = vand.u32 %v998, 2139095040
        %v1024 = vshrl.u32 %v1023, 23
        %v1025 = vsub.s32 %v1024, 127
        %v1026 = vand.u32 2147483647, %v998
        %v1027 = vand.u32 %v1026, 8388607
        %v1028 = vor.u32 %v1027, 8388608
        %v1029 = vsub.s32 0, %v1028
        %v1030 = vadd.s32 %v1025, 1
        %vm1031 = vcmp.gt.s32.totalorder %v1030, 0
        %v1032 = vsel %vm1031, %v1030, 0
        %v1033 = vshrl.u32 %v1032, 5
        %v1034 = vand.u32 %v1032, 31
        %v1035 = vsub.s32 32, %v1034
        %v1036 = vshrl.u32 683565275, %v1035
        %v1037 = vshll.u32 683565275, %v1034
        %v1038 = vshrl.u32 2475754826, %v1035
        %v1039 = vor.u32 %v1037, %v1038
        %v1040 = vshll.u32 2475754826, %v1034
        %v1041 = vshrl.u32 2131351028, %v1035
        %v1042 = vor.u32 %v1040, %v1041
        %v1043 = vshll.u32 2131351028, %v1034
        %v1044 = vshrl.u32 2102212464, %v1035
        %v1045 = vor.u32 %v1043, %v1044
        %v1046 = vshll.u32 2102212464, %v1034
        %v1047 = vshrl.u32 920167782, %v1035
        %v1048 = vor.u32 %v1046, %v1047
        %v1049 = vshll.u32 920167782, %v1034
        %v1050 = vshrl.u32 1326507024, %v1035
        %v1051 = vor.u32 %v1049, %v1050
        %vm1052 = vcmp.lt.s32.totalorder %v1033, 1
        %vm1053 = vcmp.lt.s32.totalorder %v1033, 2
        %vm1054 = vcmp.lt.s32.totalorder %v1033, 3
        %vm1055 = vcmp.lt.s32.totalorder %v1033, 4
        %v1056 = vsel %vm1052, %v1036, %v1039
        %v1057 = vsel %vm1055, %v1045, 2102212464
        %v1058 = vsel %vm1054, %v1042, %v1057
        %v1059 = vsel %vm1053, %v1056, %v1058
        %v1060 = vsel %vm1052, %v1039, %v1042
        %v1061 = vsel %vm1055, %v1048, 920167782
        %v1062 = vsel %vm1054, %v1045, %v1061
        %v1063 = vsel %vm1053, %v1060, %v1062
        %v1064 = vsel %vm1052, %v1042, %v1045
        %v1065 = vsel %vm1055, %v1051, 1326507024
        %v1066 = vsel %vm1054, %v1048, %v1065
        %v1067 = vsel %vm1053, %v1064, %v1066
        %v1068 = vshll.u32 %v1028, 8
        %v1069 = vmul.u32.u64.compose %v1068, %v1067
        %v1070 = vextract.low.u32 %v1069
        %v1071 = vextract.high.u32 %v1069
        %v1072 = vmul.u32.u64.compose %v1068, %v1063
        %v1073 = vextract.low.u32 %v1072
        %v1074 = vextract.high.u32 %v1072
        %v1075 = vmul.u32 %v1068, %v1059
        %v1076 = vadd.s32 %v1071, %v1073
        %vm1077 = vc.u32 %v1071, %v1073
        %v1078 = vadd.s32 %v1074, 1
        %v1079 = vsel %vm1077, %v1078, %v1074
        %v1080 = vadd.s32 %v1075, %v1079
        %v1081 = vadd.s32 %v1080, 536870912
        %v1082 = vshrl.u32 %v1081, 30
        %v1083 = vshll.u32 %v1082, 30
        %v1084 = vsub.s32 %v1080, %v1083
        %vm1085 = vcmp.lt.s32.totalorder %v1084, 0
        %v1086 = vsub.s32 0, %v1084
        %v1087 = vsel %vm1085, %v1086, %v1084
        %v1088 = vclz %v1087
        %v1089 = vsub.s32 %v1088, 2
        %vm1090 = vcmp.gt.s32.totalorder 0, %v1089
        %v1091 = vsel %vm1090, 0, %v1089
        %v1092 = vsub.s32 32, %v1091
        %v1093 = vshll.u32 %v1084, %v1091
        %v1094 = vshrl.u32 %v1076, %v1092
        %v1095 = vor.u32 %v1093, %v1094
        %v1096 = vsub.s32 4294967266, %v1091
        %v1097 = vadd.s32 %v1096, 127
        %v1098 = vshll.u32 %v1097, 23
        %v1099 = vor.u32 4788187, %v1098
        %v1100 = vand.u32 2147483647, %v1099
        %v1102 = vcvt.s32.f32 %v1095
        %v1103 = vmul.f32 %v1102, %v1100
        %v1104 = vxor.u32 %v1103, 2147483648
        %v1105 = vsel %vm1022, %v1104, %v1103
        %v1106 = vsub.s32 4, %v1082
        %v1107 = vsel %vm1022, %v1106, %v1082
        %v1108 = vsel %vm1021, %v998, %v1105
        %v1109 = vsel %vm1021, 0, %v1107
        %v1110 = vcosq.f32.pop %v1108
        %v1111 = vsinq.f32.pop %v1108
        %vm1112 = vweird.f32 %v998
        %v1113 = vadd.s32 %v1109, 3
        %v1114 = vand.u32 %v1113, 3
        %vm1115 = vcmp.lt.s32.totalorder %v1114, 2
        %vm1116 = vcmp.eq.s32.totalorder %v1114, 0
        %v1117 = vxor.u32 %v1111, 2147483648
        %v1118 = vsel %vm1116, %v1110, %v1117
        %vm1119 = vcmp.eq.s32.totalorder %v1114, 2
        %v1120 = vxor.u32 %v1110, 2147483648
        %v1121 = vsel %vm1119, %v1120, %v1111
        %v1122 = vsel %vm1115, %v1118, %v1121
        %v1123 = vsel %vm1112, nan, %v1122
        %v1124 = vand.u32 2147483647, %v1000
        %vm1125 = vcmp.le.f32.partialorder %v1124, 0.7853982
        %vm1126 = vcmp.lt.s32.totalorder %v1000, 0
        %v1127 = vand.u32 %v1000, 2139095040
        %v1128 = vshrl.u32 %v1127, 23
        %v1129 = vsub.s32 %v1128, 127
        %v1130 = vand.u32 2147483647, %v1000
        %v1131 = vand.u32 %v1130, 8388607
        %v1132 = vor.u32 %v1131, 8388608
        %v1133 = vsub.s32 0, %v1132
        %v1134 = vadd.s32 %v1129, 1
        %vm1135 = vcmp.gt.s32.totalorder %v1134, 0
        %v1136 = vsel %vm1135, %v1134, 0
        %v1137 = vshrl.u32 %v1136, 5
        %v1138 = vand.u32 %v1136, 31
        %v1139 = vsub.s32 32, %v1138
        %v1140 = vshrl.u32 683565275, %v1139
        %v1141 = vshll.u32 683565275, %v1138
        %v1142 = vshrl.u32 2475754826, %v1139
        %v1143 = vor.u32 %v1141, %v1142
        %v1144 = vshll.u32 2475754826, %v1138
        %v1145 = vshrl.u32 2131351028, %v1139
        %v1146 = vor.u32 %v1144, %v1145
        %v1147 = vshll.u32 2131351028, %v1138
        %v1148 = vshrl.u32 2102212464, %v1139
        %v1149 = vor.u32 %v1147, %v1148
        %v1150 = vshll.u32 2102212464, %v1138
        %v1151 = vshrl.u32 920167782, %v1139
        %v1152 = vor.u32 %v1150, %v1151
        %v1153 = vshll.u32 920167782, %v1138
        %v1154 = vshrl.u32 1326507024, %v1139
        %v1155 = vor.u32 %v1153, %v1154
        %vm1156 = vcmp.lt.s32.totalorder %v1137, 1
        %vm1157 = vcmp.lt.s32.totalorder %v1137, 2
        %vm1158 = vcmp.lt.s32.totalorder %v1137, 3
        %vm1159 = vcmp.lt.s32.totalorder %v1137, 4
        %v1160 = vsel %vm1156, %v1140, %v1143
        %v1161 = vsel %vm1159, %v1149, 2102212464
        %v1162 = vsel %vm1158, %v1146, %v1161
        %v1163 = vsel %vm1157, %v1160, %v1162
        %v1164 = vsel %vm1156, %v1143, %v1146
        %v1165 = vsel %vm1159, %v1152, 920167782
        %v1166 = vsel %vm1158, %v1149, %v1165
        %v1167 = vsel %vm1157, %v1164, %v1166
        %v1168 = vsel %vm1156, %v1146, %v1149
        %v1169 = vsel %vm1159, %v1155, 1326507024
        %v1170 = vsel %vm1158, %v1152, %v1169
        %v1171 = vsel %vm1157, %v1168, %v1170
        %v1172 = vshll.u32 %v1132, 8
        %v1173 = vmul.u32.u64.compose %v1172, %v1171
        %v1174 = vextract.low.u32 %v1173
        %v1175 = vextract.high.u32 %v1173
        %v1176 = vmul.u32.u64.compose %v1172, %v1167
        %v1177 = vextract.low.u32 %v1176
        %v1178 = vextract.high.u32 %v1176
        %v1179 = vmul.u32 %v1172, %v1163
        %v1180 = vadd.s32 %v1175, %v1177
        %vm1181 = vc.u32 %v1175, %v1177
        %v1182 = vadd.s32 %v1178, 1
        %v1183 = vsel %vm1181, %v1182, %v1178
        %v1184 = vadd.s32 %v1179, %v1183
        %v1185 = vadd.s32 %v1184, 536870912
        %v1186 = vshrl.u32 %v1185, 30
        %v1187 = vshll.u32 %v1186, 30
        %v1188 = vsub.s32 %v1184, %v1187
        %vm1189 = vcmp.lt.s32.totalorder %v1188, 0
        %v1190 = vsub.s32 0, %v1188
        %v1191 = vsel %vm1189, %v1190, %v1188
        %v1192 = vclz %v1191
        %v1193 = vsub.s32 %v1192, 2
        %vm1194 = vcmp.gt.s32.totalorder 0, %v1193
        %v1195 = vsel %vm1194, 0, %v1193
        %v1196 = vsub.s32 32, %v1195
        %v1197 = vshll.u32 %v1188, %v1195
        %v1198 = vshrl.u32 %v1180, %v1196
        %v1199 = vor.u32 %v1197, %v1198
        %v1200 = vsub.s32 4294967266, %v1195
        %v1201 = vadd.s32 %v1200, 127
        %v1202 = vshll.u32 %v1201, 23
        %v1203 = vor.u32 4788187, %v1202
        %v1204 = vand.u32 2147483647, %v1203
        %v1206 = vcvt.s32.f32 %v1199
        %v1207 = vmul.f32 %v1206, %v1204
        %v1208 = vxor.u32 %v1207, 2147483648
        %v1209 = vsel %vm1126, %v1208, %v1207
        %v1210 = vsub.s32 4, %v1186
        %v1211 = vsel %vm1126, %v1210, %v1186
        %v1212 = vsel %vm1125, %v1000, %v1209
        %v1213 = vsel %vm1125, 0, %v1211
        %v1214 = vcosq.f32.pop %v1212
        %v1215 = vsinq.f32.pop %v1212
        %vm1216 = vweird.f32 %v1000
        %v1217 = vadd.s32 %v1213, 3
        %v1218 = vand.u32 %v1217, 3
        %vm1219 = vcmp.lt.s32.totalorder %v1218, 2
        %vm1220 = vcmp.eq.s32.totalorder %v1218, 0
        %v1221 = vxor.u32 %v1215, 2147483648
        %v1222 = vsel %vm1220, %v1214, %v1221
        %vm1223 = vcmp.eq.s32.totalorder %v1218, 2
        %v1224 = vxor.u32 %v1214, 2147483648
        %v1225 = vsel %vm1223, %v1224, %v1215
        %v1226 = vsel %vm1219, %v1222, %v1225
        %v1227 = vsel %vm1216, nan, %v1226
        %v1228 = vand.u32 2147483647, %v1004
        %vm1229 = vcmp.le.f32.partialorder %v1228, 0.7853982
        %vm1230 = vcmp.lt.s32.totalorder %v1004, 0
        %v1231 = vand.u32 %v1004, 2139095040
        %v1232 = vshrl.u32 %v1231, 23
        %v1233 = vsub.s32 %v1232, 127
        %v1234 = vand.u32 2147483647, %v1004
        %v1235 = vand.u32 %v1234, 8388607
        %v1236 = vor.u32 %v1235, 8388608
        %v1237 = vsub.s32 0, %v1236
        %v1238 = vadd.s32 %v1233, 1
        %vm1239 = vcmp.gt.s32.totalorder %v1238, 0
        %v1240 = vsel %vm1239, %v1238, 0
        %v1241 = vshrl.u32 %v1240, 5
        %v1242 = vand.u32 %v1240, 31
        %v1243 = vsub.s32 32, %v1242
        %v1244 = vshrl.u32 683565275, %v1243
        %v1245 = vshll.u32 683565275, %v1242
        %v1246 = vshrl.u32 2475754826, %v1243
        %v1247 = vor.u32 %v1245, %v1246
        %v1248 = vshll.u32 2475754826, %v1242
        %v1249 = vshrl.u32 2131351028, %v1243
        %v1250 = vor.u32 %v1248, %v1249
        %v1251 = vshll.u32 2131351028, %v1242
        %v1252 = vshrl.u32 2102212464, %v1243
        %v1253 = vor.u32 %v1251, %v1252
        %v1254 = vshll.u32 2102212464, %v1242
        %v1255 = vshrl.u32 920167782, %v1243
        %v1256 = vor.u32 %v1254, %v1255
        %v1257 = vshll.u32 920167782, %v1242
        %v1258 = vshrl.u32 1326507024, %v1243
        %v1259 = vor.u32 %v1257, %v1258
        %vm1260 = vcmp.lt.s32.totalorder %v1241, 1
        %vm1261 = vcmp.lt.s32.totalorder %v1241, 2
        %vm1262 = vcmp.lt.s32.totalorder %v1241, 3
        %vm1263 = vcmp.lt.s32.totalorder %v1241, 4
        %v1264 = vsel %vm1260, %v1244, %v1247
        %v1265 = vsel %vm1263, %v1253, 2102212464
        %v1266 = vsel %vm1262, %v1250, %v1265
        %v1267 = vsel %vm1261, %v1264, %v1266
        %v1268 = vsel %vm1260, %v1247, %v1250
        %v1269 = vsel %vm1263, %v1256, 920167782
        %v1270 = vsel %vm1262, %v1253, %v1269
        %v1271 = vsel %vm1261, %v1268, %v1270
        %v1272 = vsel %vm1260, %v1250, %v1253
        %v1273 = vsel %vm1263, %v1259, 1326507024
        %v1274 = vsel %vm1262, %v1256, %v1273
        %v1275 = vsel %vm1261, %v1272, %v1274
        %v1276 = vshll.u32 %v1236, 8
        %v1277 = vmul.u32.u64.compose %v1276, %v1275
        %v1278 = vextract.low.u32 %v1277
        %v1279 = vextract.high.u32 %v1277
        %v1280 = vmul.u32.u64.compose %v1276, %v1271
        %v1281 = vextract.low.u32 %v1280
        %v1282 = vextract.high.u32 %v1280
        %v1283 = vmul.u32 %v1276, %v1267
        %v1284 = vadd.s32 %v1279, %v1281
        %vm1285 = vc.u32 %v1279, %v1281
        %v1286 = vadd.s32 %v1282, 1
        %v1287 = vsel %vm1285, %v1286, %v1282
        %v1288 = vadd.s32 %v1283, %v1287
        %v1289 = vadd.s32 %v1288, 536870912
        %v1290 = vshrl.u32 %v1289, 30
        %v1291 = vshll.u32 %v1290, 30
        %v1292 = vsub.s32 %v1288, %v1291
        %vm1293 = vcmp.lt.s32.totalorder %v1292, 0
        %v1294 = vsub.s32 0, %v1292
        %v1295 = vsel %vm1293, %v1294, %v1292
        %v1296 = vclz %v1295
        %v1297 = vsub.s32 %v1296, 2
        %vm1298 = vcmp.gt.s32.totalorder 0, %v1297
        %v1299 = vsel %vm1298, 0, %v1297
        %v1300 = vsub.s32 32, %v1299
        %v1301 = vshll.u32 %v1292, %v1299
        %v1302 = vshrl.u32 %v1284, %v1300
        %v1303 = vor.u32 %v1301, %v1302
        %v1304 = vsub.s32 4294967266, %v1299
        %v1305 = vadd.s32 %v1304, 127
        %v1306 = vshll.u32 %v1305, 23
        %v1307 = vor.u32 4788187, %v1306
        %v1308 = vand.u32 2147483647, %v1307
        %v1310 = vcvt.s32.f32 %v1303
        %v1311 = vmul.f32 %v1310, %v1308
        %v1312 = vxor.u32 %v1311, 2147483648
        %v1313 = vsel %vm1230, %v1312, %v1311
        %v1314 = vsub.s32 4, %v1290
        %v1315 = vsel %vm1230, %v1314, %v1290
        %v1316 = vsel %vm1229, %v1004, %v1313
        %v1317 = vsel %vm1229, 0, %v1315
        %v1318 = vcosq.f32.pop %v1316
        %v1319 = vsinq.f32.pop %v1316
        %vm1320 = vweird.f32 %v1004
        %v1321 = vadd.s32 %v1317, 3
        %v1322 = vand.u32 %v1321, 3
        %vm1323 = vcmp.lt.s32.totalorder %v1322, 2
        %vm1324 = vcmp.eq.s32.totalorder %v1322, 0
        %v1325 = vxor.u32 %v1319, 2147483648
        %v1326 = vsel %vm1324, %v1318, %v1325
        %vm1327 = vcmp.eq.s32.totalorder %v1322, 2
        %v1328 = vxor.u32 %v1318, 2147483648
        %v1329 = vsel %vm1327, %v1328, %v1319
        %v1330 = vsel %vm1323, %v1326, %v1329
        %v1331 = vsel %vm1320, nan, %v1330
        %v1332 = vand.u32 2147483647, %v1006
        %vm1333 = vcmp.le.f32.partialorder %v1332, 0.7853982
        %vm1334 = vcmp.lt.s32.totalorder %v1006, 0
        %v1335 = vand.u32 %v1006, 2139095040
        %v1336 = vshrl.u32 %v1335, 23
        %v1337 = vsub.s32 %v1336, 127
        %v1338 = vand.u32 2147483647, %v1006
        %v1339 = vand.u32 %v1338, 8388607
        %v1340 = vor.u32 %v1339, 8388608
        %v1341 = vsub.s32 0, %v1340
        %v1342 = vadd.s32 %v1337, 1
        %vm1343 = vcmp.gt.s32.totalorder %v1342, 0
        %v1344 = vsel %vm1343, %v1342, 0
        %v1345 = vshrl.u32 %v1344, 5
        %v1346 = vand.u32 %v1344, 31
        %v1347 = vsub.s32 32, %v1346
        %v1348 = vshrl.u32 683565275, %v1347
        %v1349 = vshll.u32 683565275, %v1346
        %v1350 = vshrl.u32 2475754826, %v1347
        %v1351 = vor.u32 %v1349, %v1350
        %v1352 = vshll.u32 2475754826, %v1346
        %v1353 = vshrl.u32 2131351028, %v1347
        %v1354 = vor.u32 %v1352, %v1353
        %v1355 = vshll.u32 2131351028, %v1346
        %v1356 = vshrl.u32 2102212464, %v1347
        %v1357 = vor.u32 %v1355, %v1356
        %v1358 = vshll.u32 2102212464, %v1346
        %v1359 = vshrl.u32 920167782, %v1347
        %v1360 = vor.u32 %v1358, %v1359
        %v1361 = vshll.u32 920167782, %v1346
        %v1362 = vshrl.u32 1326507024, %v1347
        %v1363 = vor.u32 %v1361, %v1362
        %vm1364 = vcmp.lt.s32.totalorder %v1345, 1
        %vm1365 = vcmp.lt.s32.totalorder %v1345, 2
        %vm1366 = vcmp.lt.s32.totalorder %v1345, 3
        %vm1367 = vcmp.lt.s32.totalorder %v1345, 4
        %v1368 = vsel %vm1364, %v1348, %v1351
        %v1369 = vsel %vm1367, %v1357, 2102212464
        %v1370 = vsel %vm1366, %v1354, %v1369
        %v1371 = vsel %vm1365, %v1368, %v1370
        %v1372 = vsel %vm1364, %v1351, %v1354
        %v1373 = vsel %vm1367, %v1360, 920167782
        %v1374 = vsel %vm1366, %v1357, %v1373
        %v1375 = vsel %vm1365, %v1372, %v1374
        %v1376 = vsel %vm1364, %v1354, %v1357
        %v1377 = vsel %vm1367, %v1363, 1326507024
        %v1378 = vsel %vm1366, %v1360, %v1377
        %v1379 = vsel %vm1365, %v1376, %v1378
        %v1380 = vshll.u32 %v1340, 8
        %v1381 = vmul.u32.u64.compose %v1380, %v1379
        %v1382 = vextract.low.u32 %v1381
        %v1383 = vextract.high.u32 %v1381
        %v1384 = vmul.u32.u64.compose %v1380, %v1375
        %v1385 = vextract.low.u32 %v1384
        %v1386 = vextract.high.u32 %v1384
        %v1387 = vmul.u32 %v1380, %v1371
        %v1388 = vadd.s32 %v1383, %v1385
        %vm1389 = vc.u32 %v1383, %v1385
        %v1390 = vadd.s32 %v1386, 1
        %v1391 = vsel %vm1389, %v1390, %v1386
        %v1392 = vadd.s32 %v1387, %v1391
        %v1393 = vadd.s32 %v1392, 536870912
        %v1394 = vshrl.u32 %v1393, 30
        %v1395 = vshll.u32 %v1394, 30
        %v1396 = vsub.s32 %v1392, %v1395
        %vm1397 = vcmp.lt.s32.totalorder %v1396, 0
        %v1398 = vsub.s32 0, %v1396
        %v1399 = vsel %vm1397, %v1398, %v1396
        %v1400 = vclz %v1399
        %v1401 = vsub.s32 %v1400, 2
        %vm1402 = vcmp.gt.s32.totalorder 0, %v1401
        %v1403 = vsel %vm1402, 0, %v1401
        %v1404 = vsub.s32 32, %v1403
        %v1405 = vshll.u32 %v1396, %v1403
        %v1406 = vshrl.u32 %v1388, %v1404
        %v1407 = vor.u32 %v1405, %v1406
        %v1408 = vsub.s32 4294967266, %v1403
        %v1409 = vadd.s32 %v1408, 127
        %v1410 = vshll.u32 %v1409, 23
        %v1411 = vor.u32 4788187, %v1410
        %v1412 = vand.u32 2147483647, %v1411
        %v1414 = vcvt.s32.f32 %v1407
        %v1415 = vmul.f32 %v1414, %v1412
        %v1416 = vxor.u32 %v1415, 2147483648
        %v1417 = vsel %vm1334, %v1416, %v1415
        %v1418 = vsub.s32 4, %v1394
        %v1419 = vsel %vm1334, %v1418, %v1394
        %v1420 = vsel %vm1333, %v1006, %v1417
        %v1421 = vsel %vm1333, 0, %v1419
        %v1422 = vcosq.f32.pop %v1420
        %v1423 = vsinq.f32.pop %v1420
        %vm1424 = vweird.f32 %v1006
        %v1425 = vadd.s32 %v1421, 3
        %v1426 = vand.u32 %v1425, 3
        %vm1427 = vcmp.lt.s32.totalorder %v1426, 2
        %vm1428 = vcmp.eq.s32.totalorder %v1426, 0
        %v1429 = vxor.u32 %v1423, 2147483648
        %v1430 = vsel %vm1428, %v1422, %v1429
        %vm1431 = vcmp.eq.s32.totalorder %v1426, 2
        %v1432 = vxor.u32 %v1422, 2147483648
        %v1433 = vsel %vm1431, %v1432, %v1423
        %v1434 = vsel %vm1427, %v1430, %v1433
        %v1435 = vsel %vm1424, nan, %v1434
        %v1436 = vand.u32 2147483647, %v1010
        %vm1437 = vcmp.le.f32.partialorder %v1436, 0.7853982
        %vm1438 = vcmp.lt.s32.totalorder %v1010, 0
        %v1439 = vand.u32 %v1010, 2139095040
        %v1440 = vshrl.u32 %v1439, 23
        %v1441 = vsub.s32 %v1440, 127
        %v1442 = vand.u32 2147483647, %v1010
        %v1443 = vand.u32 %v1442, 8388607
        %v1444 = vor.u32 %v1443, 8388608
        %v1445 = vsub.s32 0, %v1444
        %v1446 = vadd.s32 %v1441, 1
        %vm1447 = vcmp.gt.s32.totalorder %v1446, 0
        %v1448 = vsel %vm1447, %v1446, 0
        %v1449 = vshrl.u32 %v1448, 5
        %v1450 = vand.u32 %v1448, 31
        %v1451 = vsub.s32 32, %v1450
        %v1452 = vshrl.u32 683565275, %v1451
        %v1453 = vshll.u32 683565275, %v1450
        %v1454 = vshrl.u32 2475754826, %v1451
        %v1455 = vor.u32 %v1453, %v1454
        %v1456 = vshll.u32 2475754826, %v1450
        %v1457 = vshrl.u32 2131351028, %v1451
        %v1458 = vor.u32 %v1456, %v1457
        %v1459 = vshll.u32 2131351028, %v1450
        %v1460 = vshrl.u32 2102212464, %v1451
        %v1461 = vor.u32 %v1459, %v1460
        %v1462 = vshll.u32 2102212464, %v1450
        %v1463 = vshrl.u32 920167782, %v1451
        %v1464 = vor.u32 %v1462, %v1463
        %v1465 = vshll.u32 920167782, %v1450
        %v1466 = vshrl.u32 1326507024, %v1451
        %v1467 = vor.u32 %v1465, %v1466
        %vm1468 = vcmp.lt.s32.totalorder %v1449, 1
        %vm1469 = vcmp.lt.s32.totalorder %v1449, 2
        %vm1470 = vcmp.lt.s32.totalorder %v1449, 3
        %vm1471 = vcmp.lt.s32.totalorder %v1449, 4
        %v1472 = vsel %vm1468, %v1452, %v1455
        %v1473 = vsel %vm1471, %v1461, 2102212464
        %v1474 = vsel %vm1470, %v1458, %v1473
        %v1475 = vsel %vm1469, %v1472, %v1474
        %v1476 = vsel %vm1468, %v1455, %v1458
        %v1477 = vsel %vm1471, %v1464, 920167782
        %v1478 = vsel %vm1470, %v1461, %v1477
        %v1479 = vsel %vm1469, %v1476, %v1478
        %v1480 = vsel %vm1468, %v1458, %v1461
        %v1481 = vsel %vm1471, %v1467, 1326507024
        %v1482 = vsel %vm1470, %v1464, %v1481
        %v1483 = vsel %vm1469, %v1480, %v1482
        %v1484 = vshll.u32 %v1444, 8
        %v1485 = vmul.u32.u64.compose %v1484, %v1483
        %v1486 = vextract.low.u32 %v1485
        %v1487 = vextract.high.u32 %v1485
        %v1488 = vmul.u32.u64.compose %v1484, %v1479
        %v1489 = vextract.low.u32 %v1488
        %v1490 = vextract.high.u32 %v1488
        %v1491 = vmul.u32 %v1484, %v1475
        %v1492 = vadd.s32 %v1487, %v1489
        %vm1493 = vc.u32 %v1487, %v1489
        %v1494 = vadd.s32 %v1490, 1
        %v1495 = vsel %vm1493, %v1494, %v1490
        %v1496 = vadd.s32 %v1491, %v1495
        %v1497 = vadd.s32 %v1496, 536870912
        %v1498 = vshrl.u32 %v1497, 30
        %v1499 = vshll.u32 %v1498, 30
        %v1500 = vsub.s32 %v1496, %v1499
        %vm1501 = vcmp.lt.s32.totalorder %v1500, 0
        %v1502 = vsub.s32 0, %v1500
        %v1503 = vsel %vm1501, %v1502, %v1500
        %v1504 = vclz %v1503
        %v1505 = vsub.s32 %v1504, 2
        %vm1506 = vcmp.gt.s32.totalorder 0, %v1505
        %v1507 = vsel %vm1506, 0, %v1505
        %v1508 = vsub.s32 32, %v1507
        %v1509 = vshll.u32 %v1500, %v1507
        %v1510 = vshrl.u32 %v1492, %v1508
        %v1511 = vor.u32 %v1509, %v1510
        %v1512 = vsub.s32 4294967266, %v1507
        %v1513 = vadd.s32 %v1512, 127
        %v1514 = vshll.u32 %v1513, 23
        %v1515 = vor.u32 4788187, %v1514
        %v1516 = vand.u32 2147483647, %v1515
        %v1518 = vcvt.s32.f32 %v1511
        %v1519 = vmul.f32 %v1518, %v1516
        %v1520 = vxor.u32 %v1519, 2147483648
        %v1521 = vsel %vm1438, %v1520, %v1519
        %v1522 = vsub.s32 4, %v1498
        %v1523 = vsel %vm1438, %v1522, %v1498
        %v1524 = vsel %vm1437, %v1010, %v1521
        %v1525 = vsel %vm1437, 0, %v1523
        %v1526 = vcosq.f32.pop %v1524
        %v1527 = vsinq.f32.pop %v1524
        %vm1528 = vweird.f32 %v1010
        %v1529 = vadd.s32 %v1525, 3
        %v1530 = vand.u32 %v1529, 3
        %vm1531 = vcmp.lt.s32.totalorder %v1530, 2
        %vm1532 = vcmp.eq.s32.totalorder %v1530, 0
        %v1533 = vxor.u32 %v1527, 2147483648
        %v1534 = vsel %vm1532, %v1526, %v1533
        %vm1535 = vcmp.eq.s32.totalorder %v1530, 2
        %v1536 = vxor.u32 %v1526, 2147483648
        %v1537 = vsel %vm1535, %v1536, %v1527
        %v1538 = vsel %vm1531, %v1534, %v1537
        %v1539 = vsel %vm1528, nan, %v1538
        %v1540 = vand.u32 2147483647, %v1012
        %vm1541 = vcmp.le.f32.partialorder %v1540, 0.7853982
        %vm1542 = vcmp.lt.s32.totalorder %v1012, 0
        %v1543 = vand.u32 %v1012, 2139095040
        %v1544 = vshrl.u32 %v1543, 23
        %v1545 = vsub.s32 %v1544, 127
        %v1546 = vand.u32 2147483647, %v1012
        %v1547 = vand.u32 %v1546, 8388607
        %v1548 = vor.u32 %v1547, 8388608
        %v1549 = vsub.s32 0, %v1548
        %v1550 = vadd.s32 %v1545, 1
        %vm1551 = vcmp.gt.s32.totalorder %v1550, 0
        %v1552 = vsel %vm1551, %v1550, 0
        %v1553 = vshrl.u32 %v1552, 5
        %v1554 = vand.u32 %v1552, 31
        %v1555 = vsub.s32 32, %v1554
        %v1556 = vshrl.u32 683565275, %v1555
        %v1557 = vshll.u32 683565275, %v1554
        %v1558 = vshrl.u32 2475754826, %v1555
        %v1559 = vor.u32 %v1557, %v1558
        %v1560 = vshll.u32 2475754826, %v1554
        %v1561 = vshrl.u32 2131351028, %v1555
        %v1562 = vor.u32 %v1560, %v1561
        %v1563 = vshll.u32 2131351028, %v1554
        %v1564 = vshrl.u32 2102212464, %v1555
        %v1565 = vor.u32 %v1563, %v1564
        %v1566 = vshll.u32 2102212464, %v1554
        %v1567 = vshrl.u32 920167782, %v1555
        %v1568 = vor.u32 %v1566, %v1567
        %v1569 = vshll.u32 920167782, %v1554
        %v1570 = vshrl.u32 1326507024, %v1555
        %v1571 = vor.u32 %v1569, %v1570
        %vm1572 = vcmp.lt.s32.totalorder %v1553, 1
        %vm1573 = vcmp.lt.s32.totalorder %v1553, 2
        %vm1574 = vcmp.lt.s32.totalorder %v1553, 3
        %vm1575 = vcmp.lt.s32.totalorder %v1553, 4
        %v1576 = vsel %vm1572, %v1556, %v1559
        %v1577 = vsel %vm1575, %v1565, 2102212464
        %v1578 = vsel %vm1574, %v1562, %v1577
        %v1579 = vsel %vm1573, %v1576, %v1578
        %v1580 = vsel %vm1572, %v1559, %v1562
        %v1581 = vsel %vm1575, %v1568, 920167782
        %v1582 = vsel %vm1574, %v1565, %v1581
        %v1583 = vsel %vm1573, %v1580, %v1582
        %v1584 = vsel %vm1572, %v1562, %v1565
        %v1585 = vsel %vm1575, %v1571, 1326507024
        %v1586 = vsel %vm1574, %v1568, %v1585
        %v1587 = vsel %vm1573, %v1584, %v1586
        %v1588 = vshll.u32 %v1548, 8
        %v1589 = vmul.u32.u64.compose %v1588, %v1587
        %v1590 = vextract.low.u32 %v1589
        %v1591 = vextract.high.u32 %v1589
        %v1592 = vmul.u32.u64.compose %v1588, %v1583
        %v1593 = vextract.low.u32 %v1592
        %v1594 = vextract.high.u32 %v1592
        %v1595 = vmul.u32 %v1588, %v1579
        %v1596 = vadd.s32 %v1591, %v1593
        %vm1597 = vc.u32 %v1591, %v1593
        %v1598 = vadd.s32 %v1594, 1
        %v1599 = vsel %vm1597, %v1598, %v1594
        %v1600 = vadd.s32 %v1595, %v1599
        %v1601 = vadd.s32 %v1600, 536870912
        %v1602 = vshrl.u32 %v1601, 30
        %v1603 = vshll.u32 %v1602, 30
        %v1604 = vsub.s32 %v1600, %v1603
        %vm1605 = vcmp.lt.s32.totalorder %v1604, 0
        %v1606 = vsub.s32 0, %v1604
        %v1607 = vsel %vm1605, %v1606, %v1604
        %v1608 = vclz %v1607
        %v1609 = vsub.s32 %v1608, 2
        %vm1610 = vcmp.gt.s32.totalorder 0, %v1609
        %v1611 = vsel %vm1610, 0, %v1609
        %v1612 = vsub.s32 32, %v1611
        %v1613 = vshll.u32 %v1604, %v1611
        %v1614 = vshrl.u32 %v1596, %v1612
        %v1615 = vor.u32 %v1613, %v1614
        %v1616 = vsub.s32 4294967266, %v1611
        %v1617 = vadd.s32 %v1616, 127
        %v1618 = vshll.u32 %v1617, 23
        %v1619 = vor.u32 4788187, %v1618
        %v1620 = vand.u32 2147483647, %v1619
        %v1622 = vcvt.s32.f32 %v1615
        %v1623 = vmul.f32 %v1622, %v1620
        %v1624 = vxor.u32 %v1623, 2147483648
        %v1625 = vsel %vm1542, %v1624, %v1623
        %v1626 = vsub.s32 4, %v1602
        %v1627 = vsel %vm1542, %v1626, %v1602
        %v1628 = vsel %vm1541, %v1012, %v1625
        %v1629 = vsel %vm1541, 0, %v1627
        %v1630 = vcosq.f32.pop %v1628
        %v1631 = vsinq.f32.pop %v1628
        %vm1632 = vweird.f32 %v1012
        %v1633 = vadd.s32 %v1629, 3
        %v1634 = vand.u32 %v1633, 3
        %vm1635 = vcmp.lt.s32.totalorder %v1634, 2
        %vm1636 = vcmp.eq.s32.totalorder %v1634, 0
        %v1637 = vxor.u32 %v1631, 2147483648
        %v1638 = vsel %vm1636, %v1630, %v1637
        %vm1639 = vcmp.eq.s32.totalorder %v1634, 2
        %v1640 = vxor.u32 %v1630, 2147483648
        %v1641 = vsel %vm1639, %v1640, %v1631
        %v1642 = vsel %vm1635, %v1638, %v1641
        %v1643 = vsel %vm1632, nan, %v1642
        %v1644 = vand.u32 2147483647, %v1016
        %vm1645 = vcmp.le.f32.partialorder %v1644, 0.7853982
        %vm1646 = vcmp.lt.s32.totalorder %v1016, 0
        %v1647 = vand.u32 %v1016, 2139095040
        %v1648 = vshrl.u32 %v1647, 23
        %v1649 = vsub.s32 %v1648, 127
        %v1650 = vand.u32 2147483647, %v1016
        %v1651 = vand.u32 %v1650, 8388607
        %v1652 = vor.u32 %v1651, 8388608
        %v1653 = vsub.s32 0, %v1652
        %v1654 = vadd.s32 %v1649, 1
        %vm1655 = vcmp.gt.s32.totalorder %v1654, 0
        %v1656 = vsel %vm1655, %v1654, 0
        %v1657 = vshrl.u32 %v1656, 5
        %v1658 = vand.u32 %v1656, 31
        %v1659 = vsub.s32 32, %v1658
        %v1660 = vshrl.u32 683565275, %v1659
        %v1661 = vshll.u32 683565275, %v1658
        %v1662 = vshrl.u32 2475754826, %v1659
        %v1663 = vor.u32 %v1661, %v1662
        %v1664 = vshll.u32 2475754826, %v1658
        %v1665 = vshrl.u32 2131351028, %v1659
        %v1666 = vor.u32 %v1664, %v1665
        %v1667 = vshll.u32 2131351028, %v1658
        %v1668 = vshrl.u32 2102212464, %v1659
        %v1669 = vor.u32 %v1667, %v1668
        %v1670 = vshll.u32 2102212464, %v1658
        %v1671 = vshrl.u32 920167782, %v1659
        %v1672 = vor.u32 %v1670, %v1671
        %v1673 = vshll.u32 920167782, %v1658
        %v1674 = vshrl.u32 1326507024, %v1659
        %v1675 = vor.u32 %v1673, %v1674
        %vm1676 = vcmp.lt.s32.totalorder %v1657, 1
        %vm1677 = vcmp.lt.s32.totalorder %v1657, 2
        %vm1678 = vcmp.lt.s32.totalorder %v1657, 3
        %vm1679 = vcmp.lt.s32.totalorder %v1657, 4
        %v1680 = vsel %vm1676, %v1660, %v1663
        %v1681 = vsel %vm1679, %v1669, 2102212464
        %v1682 = vsel %vm1678, %v1666, %v1681
        %v1683 = vsel %vm1677, %v1680, %v1682
        %v1684 = vsel %vm1676, %v1663, %v1666
        %v1685 = vsel %vm1679, %v1672, 920167782
        %v1686 = vsel %vm1678, %v1669, %v1685
        %v1687 = vsel %vm1677, %v1684, %v1686
        %v1688 = vsel %vm1676, %v1666, %v1669
        %v1689 = vsel %vm1679, %v1675, 1326507024
        %v1690 = vsel %vm1678, %v1672, %v1689
        %v1691 = vsel %vm1677, %v1688, %v1690
        %v1692 = vshll.u32 %v1652, 8
        %v1693 = vmul.u32.u64.compose %v1692, %v1691
        %v1694 = vextract.low.u32 %v1693
        %v1695 = vextract.high.u32 %v1693
        %v1696 = vmul.u32.u64.compose %v1692, %v1687
        %v1697 = vextract.low.u32 %v1696
        %v1698 = vextract.high.u32 %v1696
        %v1699 = vmul.u32 %v1692, %v1683
        %v1700 = vadd.s32 %v1695, %v1697
        %vm1701 = vc.u32 %v1695, %v1697
        %v1702 = vadd.s32 %v1698, 1
        %v1703 = vsel %vm1701, %v1702, %v1698
        %v1704 = vadd.s32 %v1699, %v1703
        %v1705 = vadd.s32 %v1704, 536870912
        %v1706 = vshrl.u32 %v1705, 30
        %v1707 = vshll.u32 %v1706, 30
        %v1708 = vsub.s32 %v1704, %v1707
        %vm1709 = vcmp.lt.s32.totalorder %v1708, 0
        %v1710 = vsub.s32 0, %v1708
        %v1711 = vsel %vm1709, %v1710, %v1708
        %v1712 = vclz %v1711
        %v1713 = vsub.s32 %v1712, 2
        %vm1714 = vcmp.gt.s32.totalorder 0, %v1713
        %v1715 = vsel %vm1714, 0, %v1713
        %v1716 = vsub.s32 32, %v1715
        %v1717 = vshll.u32 %v1708, %v1715
        %v1718 = vshrl.u32 %v1700, %v1716
        %v1719 = vor.u32 %v1717, %v1718
        %v1720 = vsub.s32 4294967266, %v1715
        %v1721 = vadd.s32 %v1720, 127
        %v1722 = vshll.u32 %v1721, 23
        %v1723 = vor.u32 4788187, %v1722
        %v1724 = vand.u32 2147483647, %v1723
        %v1726 = vcvt.s32.f32 %v1719
        %v1727 = vmul.f32 %v1726, %v1724
        %v1728 = vxor.u32 %v1727, 2147483648
        %v1729 = vsel %vm1646, %v1728, %v1727
        %v1730 = vsub.s32 4, %v1706
        %v1731 = vsel %vm1646, %v1730, %v1706
        %v1732 = vsel %vm1645, %v1016, %v1729
        %v1733 = vsel %vm1645, 0, %v1731
        %v1734 = vcosq.f32.pop %v1732
        %v1735 = vsinq.f32.pop %v1732
        %vm1736 = vweird.f32 %v1016
        %v1737 = vadd.s32 %v1733, 3
        %v1738 = vand.u32 %v1737, 3
        %vm1739 = vcmp.lt.s32.totalorder %v1738, 2
        %vm1740 = vcmp.eq.s32.totalorder %v1738, 0
        %v1741 = vxor.u32 %v1735, 2147483648
        %v1742 = vsel %vm1740, %v1734, %v1741
        %vm1743 = vcmp.eq.s32.totalorder %v1738, 2
        %v1744 = vxor.u32 %v1734, 2147483648
        %v1745 = vsel %vm1743, %v1744, %v1735
        %v1746 = vsel %vm1739, %v1742, %v1745
        %v1747 = vsel %vm1736, nan, %v1746
        %v1748 = vand.u32 2147483647, %v1018
        %vm1749 = vcmp.le.f32.partialorder %v1748, 0.7853982
        %vm1750 = vcmp.lt.s32.totalorder %v1018, 0
        %v1751 = vand.u32 %v1018, 2139095040
        %v1752 = vshrl.u32 %v1751, 23
        %v1753 = vsub.s32 %v1752, 127
        %v1754 = vand.u32 2147483647, %v1018
        %v1755 = vand.u32 %v1754, 8388607
        %v1756 = vor.u32 %v1755, 8388608
        %v1757 = vsub.s32 0, %v1756
        %v1758 = vadd.s32 %v1753, 1
        %vm1759 = vcmp.gt.s32.totalorder %v1758, 0
        %v1760 = vsel %vm1759, %v1758, 0
        %v1761 = vshrl.u32 %v1760, 5
        %v1762 = vand.u32 %v1760, 31
        %v1763 = vsub.s32 32, %v1762
        %v1764 = vshrl.u32 683565275, %v1763
        %v1765 = vshll.u32 683565275, %v1762
        %v1766 = vshrl.u32 2475754826, %v1763
        %v1767 = vor.u32 %v1765, %v1766
        %v1768 = vshll.u32 2475754826, %v1762
        %v1769 = vshrl.u32 2131351028, %v1763
        %v1770 = vor.u32 %v1768, %v1769
        %v1771 = vshll.u32 2131351028, %v1762
        %v1772 = vshrl.u32 2102212464, %v1763
        %v1773 = vor.u32 %v1771, %v1772
        %v1774 = vshll.u32 2102212464, %v1762
        %v1775 = vshrl.u32 920167782, %v1763
        %v1776 = vor.u32 %v1774, %v1775
        %v1777 = vshll.u32 920167782, %v1762
        %v1778 = vshrl.u32 1326507024, %v1763
        %v1779 = vor.u32 %v1777, %v1778
        %vm1780 = vcmp.lt.s32.totalorder %v1761, 1
        %vm1781 = vcmp.lt.s32.totalorder %v1761, 2
        %vm1782 = vcmp.lt.s32.totalorder %v1761, 3
        %vm1783 = vcmp.lt.s32.totalorder %v1761, 4
        %v1784 = vsel %vm1780, %v1764, %v1767
        %v1785 = vsel %vm1783, %v1773, 2102212464
        %v1786 = vsel %vm1782, %v1770, %v1785
        %v1787 = vsel %vm1781, %v1784, %v1786
        %v1788 = vsel %vm1780, %v1767, %v1770
        %v1789 = vsel %vm1783, %v1776, 920167782
        %v1790 = vsel %vm1782, %v1773, %v1789
        %v1791 = vsel %vm1781, %v1788, %v1790
        %v1792 = vsel %vm1780, %v1770, %v1773
        %v1793 = vsel %vm1783, %v1779, 1326507024
        %v1794 = vsel %vm1782, %v1776, %v1793
        %v1795 = vsel %vm1781, %v1792, %v1794
        %v1796 = vshll.u32 %v1756, 8
        %v1797 = vmul.u32.u64.compose %v1796, %v1795
        %v1798 = vextract.low.u32 %v1797
        %v1799 = vextract.high.u32 %v1797
        %v1800 = vmul.u32.u64.compose %v1796, %v1791
        %v1801 = vextract.low.u32 %v1800
        %v1802 = vextract.high.u32 %v1800
        %v1803 = vmul.u32 %v1796, %v1787
        %v1804 = vadd.s32 %v1799, %v1801
        %vm1805 = vc.u32 %v1799, %v1801
        %v1806 = vadd.s32 %v1802, 1
        %v1807 = vsel %vm1805, %v1806, %v1802
        %v1808 = vadd.s32 %v1803, %v1807
        %v1809 = vadd.s32 %v1808, 536870912
        %v1810 = vshrl.u32 %v1809, 30
        %v1811 = vshll.u32 %v1810, 30
        %v1812 = vsub.s32 %v1808, %v1811
        %vm1813 = vcmp.lt.s32.totalorder %v1812, 0
        %v1814 = vsub.s32 0, %v1812
        %v1815 = vsel %vm1813, %v1814, %v1812
        %v1816 = vclz %v1815
        %v1817 = vsub.s32 %v1816, 2
        %vm1818 = vcmp.gt.s32.totalorder 0, %v1817
        %v1819 = vsel %vm1818, 0, %v1817
        %v1820 = vsub.s32 32, %v1819
        %v1821 = vshll.u32 %v1812, %v1819
        %v1822 = vshrl.u32 %v1804, %v1820
        %v1823 = vor.u32 %v1821, %v1822
        %v1824 = vsub.s32 4294967266, %v1819
        %v1825 = vadd.s32 %v1824, 127
        %v1826 = vshll.u32 %v1825, 23
        %v1827 = vor.u32 4788187, %v1826
        %v1828 = vand.u32 2147483647, %v1827
        %v1830 = vcvt.s32.f32 %v1823
        %v1831 = vmul.f32 %v1830, %v1828
        %v1832 = vxor.u32 %v1831, 2147483648
        %v1833 = vsel %vm1750, %v1832, %v1831
        %v1834 = vsub.s32 4, %v1810
        %v1835 = vsel %vm1750, %v1834, %v1810
        %v1836 = vsel %vm1749, %v1018, %v1833
        %v1837 = vsel %vm1749, 0, %v1835
        %v1838 = vcosq.f32.pop %v1836
        %v1839 = vsinq.f32.pop %v1836
        %vm1840 = vweird.f32 %v1018
        %v1841 = vadd.s32 %v1837, 3
        %v1842 = vand.u32 %v1841, 3
        %vm1843 = vcmp.lt.s32.totalorder %v1842, 2
        %vm1844 = vcmp.eq.s32.totalorder %v1842, 0
        %v1845 = vxor.u32 %v1839, 2147483648
        %v1846 = vsel %vm1844, %v1838, %v1845
        %vm1847 = vcmp.eq.s32.totalorder %v1842, 2
        %v1848 = vxor.u32 %v1838, 2147483648
        %v1849 = vsel %vm1847, %v1848, %v1839
        %v1850 = vsel %vm1843, %v1846, %v1849
        %v1851 = vsel %vm1840, nan, %v1850
        %v1852 = vmul.f32 %v1123, 0.17677669
        %v1853 = vmul.f32 %v1227, 0.17677669
        %v1854 = vmul.f32 %v1331, 0.17677669
        %v1855 = vmul.f32 %v1435, 0.17677669
        %v1856 = vmul.f32 %v1539, 0.17677669
        %v1857 = vmul.f32 %v1643, 0.17677669
        %v1858 = vmul.f32 %v1747, 0.17677669
        %v1859 = vmul.f32 %v1851, 0.17677669
        %v1861 = vsel %vm555, %v753, 0
        %v1864 = vsel %vm555, %v758, 0
        %v1867 = vsel %vm555, %v763, 0
        %v1870 = vsel %vm555, %v768, 0
        %v1873 = vsel %vm555, %v773, 0
        %v1876 = vsel %vm555, %v778, 0
        %1878 = vmatprep.subr.mxu0 %v892
        %1879 = vmatpush1.msra.mxu0 %v891
        %1880 = vmatprep.subr.mxu0 %v894
        %1881 = vmatpush1.msra.mxu0 %v893
        %1882 = vmatprep.subr.mxu0 %v896
        %1883 = vmatpush1.msra.mxu0 %v895
        %1884 = vmatprep.subr.mxu0 %v898
        %1885 = vmatpush1.msra.mxu0 %v897
        %1886 = vmatprep.subr.mxu0 %v900
        %1887 = vmatpush1.msra.mxu0 %v899
        %1888 = vmatprep.subr.mxu0 %v902
        %1889 = vmatpush1.msra.mxu0 %v901
        %1890 = vmatprep.subr.mxu0 %v904
        %1891 = vmatpush1.msra.mxu0 %v903
        %1892 = vmatprep.subr.mxu0 %v906
        %1893 = vmatpush1.msra.mxu0 %v905
        %1894 = vmatprep.subr.mxu0 0.0
        %1895 = vmatpush1.msra.mxu0 0.0
        %1896 = vmatprep.subr.mxu0 0.0
        %1897 = vmatpush1.msra.mxu0 0.0
        %1898 = vmatprep.subr.mxu0 0.0
        %1899 = vmatpush1.msra.mxu0 0.0
        %1900 = vmatprep.subr.mxu0 0.0
        %1901 = vmatpush1.msra.mxu0 0.0
        %1902 = vmatprep.subr.mxu0 0.0
        %1903 = vmatpush1.msra.mxu0 0.0
        %1904 = vmatprep.subr.mxu0 0.0
        %1905 = vmatpush1.msra.mxu0 0.0
        %1906 = vmatprep.subr.mxu0 0.0
        %1907 = vmatpush1.msra.mxu0 0.0
        %1908 = vmatprep.subr.mxu0 0.0
        %1909 = vmatpush1.msra.mxu0 0.0
        %1910 = vmatprep.subr.mxu0 0.0
        %1911 = vmatpush1.msra.mxu0 0.0
        %1912 = vmatprep.subr.mxu0 0.0
        %1913 = vmatpush1.msra.mxu0 0.0
        %1914 = vmatprep.subr.mxu0 0.0
        %1915 = vmatpush1.msra.mxu0 0.0
        %1916 = vmatprep.subr.mxu0 0.0
        %1917 = vmatpush1.msra.mxu0 0.0
        %1918 = vmatprep.subr.mxu0 0.0
        %1919 = vmatpush1.msra.mxu0 0.0
        %1920 = vmatprep.subr.mxu0 0.0
        %1921 = vmatpush1.msra.mxu0 0.0
        %1922 = vmatprep.subr.mxu0 0.0
        %1923 = vmatpush1.msra.mxu0 0.0
        %1924 = vmatprep.subr.mxu0 0.0
        %1925 = vmatpush1.msra.mxu0 0.0
        %1926 = vmatprep.subr.mxu0 0.0
        %1927 = vmatpush1.msra.mxu0 0.0
        %1928 = vmatprep.subr.mxu0 0.0
        %1929 = vmatpush1.msra.mxu0 0.0
        %1930 = vmatprep.subr.mxu0 0.0
        %1931 = vmatpush1.msra.mxu0 0.0
        %1932 = vmatprep.subr.mxu0 0.0
        %1933 = vmatpush1.msra.mxu0 0.0
        %1934 = vmatprep.subr.mxu0 0.0
        %1935 = vmatpush1.msra.mxu0 0.0
        %1936 = vmatprep.subr.mxu0 0.0
        %1937 = vmatpush1.msra.mxu0 0.0
        %1938 = vmatprep.subr.mxu0 0.0
        %1939 = vmatpush1.msra.mxu0 0.0
        %1940 = vmatprep.subr.mxu0 0.0
        %1941 = vmatpush1.msra.mxu0 0.0
        %1942 = vmatprep.mubr.f32.mxu0 0.0
        %1943 = vmatmul.mubr.f32.gmra.mrb[0].mxu0 %v1861
        %v1944 = vpop.f32.mrb[0].mxu0
        %v1945 = vadd.f32 %v912, %v1944
        %v1946 = vpop.f32.mrb[0].mxu0
        %v1947 = vadd.f32 %v916, %v1946
        %1948 = vmatprep.mubr.f32.mxu0 0.0
        %1949 = vmatmul.mubr.f32.gmra.mrb[0].mxu0 %v1864
        %v1950 = vpop.f32.mrb[0].mxu0
        %v1951 = vadd.f32 %v912, %v1950
        %v1952 = vpop.f32.mrb[0].mxu0
        %v1953 = vadd.f32 %v916, %v1952
        %1954 = vmatprep.mubr.f32.mxu0 0.0
        %1955 = vmatmul.mubr.f32.gmra.mrb[0].mxu0 %v1867
        %v1956 = vpop.f32.mrb[0].mxu0
        %v1957 = vadd.f32 %v912, %v1956
        %v1958 = vpop.f32.mrb[0].mxu0
        %v1959 = vadd.f32 %v916, %v1958
        %1960 = vmatprep.mubr.f32.mxu0 0.0
        %1961 = vmatmul.mubr.f32.gmra.mrb[0].mxu0 %v1870
        %v1962 = vpop.f32.mrb[0].mxu0
        %v1963 = vadd.f32 %v912, %v1962
        %v1964 = vpop.f32.mrb[0].mxu0
        %v1965 = vadd.f32 %v916, %v1964
        %1966 = vmatprep.mubr.f32.mxu0 0.0
        %1967 = vmatmul.mubr.f32.gmra.mrb[0].mxu0 %v1873
        %v1968 = vpop.f32.mrb[0].mxu0
        %v1969 = vadd.f32 %v912, %v1968
        %v1970 = vpop.f32.mrb[0].mxu0
        %v1971 = vadd.f32 %v916, %v1970
        %1972 = vmatprep.mubr.f32.mxu0 0.0
        %1973 = vmatmul.mubr.f32.gmra.mrb[0].mxu0 %v1876
        %v1974 = vpop.f32.mrb[0].mxu0
        %v1975 = vadd.f32 %v912, %v1974
        %v1976 = vpop.f32.mrb[0].mxu0
        %v1977 = vadd.f32 %v916, %v1976
        %1978 = vdwg.mxu0
        %v1979 = vand.u32 2147483647, %v1945
        %vm1980 = vcmp.le.f32.partialorder %v1979, 0.7853982
        %vm1981 = vcmp.lt.s32.totalorder %v1945, 0
        %v1982 = vand.u32 %v1945, 2139095040
        %v1983 = vshrl.u32 %v1982, 23
        %v1984 = vsub.s32 %v1983, 127
        %v1985 = vand.u32 2147483647, %v1945
        %v1986 = vand.u32 %v1985, 8388607
        %v1987 = vor.u32 %v1986, 8388608
        %v1988 = vsub.s32 0, %v1987
        %v1989 = vadd.s32 %v1984, 1
        %vm1990 = vcmp.gt.s32.totalorder %v1989, 0
        %v1991 = vsel %vm1990, %v1989, 0
        %v1992 = vshrl.u32 %v1991, 5
        %v1993 = vand.u32 %v1991, 31
        %v1994 = vsub.s32 32, %v1993
        %v1995 = vshrl.u32 683565275, %v1994
        %v1996 = vshll.u32 683565275, %v1993
        %v1997 = vshrl.u32 2475754826, %v1994
        %v1998 = vor.u32 %v1996, %v1997
        %v1999 = vshll.u32 2475754826, %v1993
        %v2000 = vshrl.u32 2131351028, %v1994
        %v2001 = vor.u32 %v1999, %v2000
        %v2002 = vshll.u32 2131351028, %v1993
        %v2003 = vshrl.u32 2102212464, %v1994
        %v2004 = vor.u32 %v2002, %v2003
        %v2005 = vshll.u32 2102212464, %v1993
        %v2006 = vshrl.u32 920167782, %v1994
        %v2007 = vor.u32 %v2005, %v2006
        %v2008 = vshll.u32 920167782, %v1993
        %v2009 = vshrl.u32 1326507024, %v1994
        %v2010 = vor.u32 %v2008, %v2009
        %vm2011 = vcmp.lt.s32.totalorder %v1992, 1
        %vm2012 = vcmp.lt.s32.totalorder %v1992, 2
        %vm2013 = vcmp.lt.s32.totalorder %v1992, 3
        %vm2014 = vcmp.lt.s32.totalorder %v1992, 4
        %v2015 = vsel %vm2011, %v1995, %v1998
        %v2016 = vsel %vm2014, %v2004, 2102212464
        %v2017 = vsel %vm2013, %v2001, %v2016
        %v2018 = vsel %vm2012, %v2015, %v2017
        %v2019 = vsel %vm2011, %v1998, %v2001
        %v2020 = vsel %vm2014, %v2007, 920167782
        %v2021 = vsel %vm2013, %v2004, %v2020
        %v2022 = vsel %vm2012, %v2019, %v2021
        %v2023 = vsel %vm2011, %v2001, %v2004
        %v2024 = vsel %vm2014, %v2010, 1326507024
        %v2025 = vsel %vm2013, %v2007, %v2024
        %v2026 = vsel %vm2012, %v2023, %v2025
        %v2027 = vshll.u32 %v1987, 8
        %v2028 = vmul.u32.u64.compose %v2027, %v2026
        %v2029 = vextract.low.u32 %v2028
        %v2030 = vextract.high.u32 %v2028
        %v2031 = vmul.u32.u64.compose %v2027, %v2022
        %v2032 = vextract.low.u32 %v2031
        %v2033 = vextract.high.u32 %v2031
        %v2034 = vmul.u32 %v2027, %v2018
        %v2035 = vadd.s32 %v2030, %v2032
        %vm2036 = vc.u32 %v2030, %v2032
        %v2037 = vadd.s32 %v2033, 1
        %v2038 = vsel %vm2036, %v2037, %v2033
        %v2039 = vadd.s32 %v2034, %v2038
        %v2040 = vadd.s32 %v2039, 536870912
        %v2041 = vshrl.u32 %v2040, 30
        %v2042 = vshll.u32 %v2041, 30
        %v2043 = vsub.s32 %v2039, %v2042
        %vm2044 = vcmp.lt.s32.totalorder %v2043, 0
        %v2045 = vsub.s32 0, %v2043
        %v2046 = vsel %vm2044, %v2045, %v2043
        %v2047 = vclz %v2046
        %v2048 = vsub.s32 %v2047, 2
        %vm2049 = vcmp.gt.s32.totalorder 0, %v2048
        %v2050 = vsel %vm2049, 0, %v2048
        %v2051 = vsub.s32 32, %v2050
        %v2052 = vshll.u32 %v2043, %v2050
        %v2053 = vshrl.u32 %v2035, %v2051
        %v2054 = vor.u32 %v2052, %v2053
        %v2055 = vsub.s32 4294967266, %v2050
        %v2056 = vadd.s32 %v2055, 127
        %v2057 = vshll.u32 %v2056, 23
        %v2058 = vor.u32 4788187, %v2057
        %v2059 = vand.u32 2147483647, %v2058
        %v2061 = vcvt.s32.f32 %v2054
        %v2062 = vmul.f32 %v2061, %v2059
        %v2063 = vxor.u32 %v2062, 2147483648
        %v2064 = vsel %vm1981, %v2063, %v2062
        %v2065 = vsub.s32 4, %v2041
        %v2066 = vsel %vm1981, %v2065, %v2041
        %v2067 = vsel %vm1980, %v1945, %v2064
        %v2068 = vsel %vm1980, 0, %v2066
        %v2069 = vcosq.f32.pop %v2067
        %v2070 = vsinq.f32.pop %v2067
        %vm2071 = vweird.f32 %v1945
        %v2072 = vadd.s32 %v2068, 3
        %v2073 = vand.u32 %v2072, 3
        %vm2074 = vcmp.lt.s32.totalorder %v2073, 2
        %vm2075 = vcmp.eq.s32.totalorder %v2073, 0
        %v2076 = vxor.u32 %v2070, 2147483648
        %v2077 = vsel %vm2075, %v2069, %v2076
        %vm2078 = vcmp.eq.s32.totalorder %v2073, 2
        %v2079 = vxor.u32 %v2069, 2147483648
        %v2080 = vsel %vm2078, %v2079, %v2070
        %v2081 = vsel %vm2074, %v2077, %v2080
        %v2082 = vsel %vm2071, nan, %v2081
        %v2083 = vand.u32 2147483647, %v1947
        %vm2084 = vcmp.le.f32.partialorder %v2083, 0.7853982
        %vm2085 = vcmp.lt.s32.totalorder %v1947, 0
        %v2086 = vand.u32 %v1947, 2139095040
        %v2087 = vshrl.u32 %v2086, 23
        %v2088 = vsub.s32 %v2087, 127
        %v2089 = vand.u32 2147483647, %v1947
        %v2090 = vand.u32 %v2089, 8388607
        %v2091 = vor.u32 %v2090, 8388608
        %v2092 = vsub.s32 0, %v2091
        %v2093 = vadd.s32 %v2088, 1
        %vm2094 = vcmp.gt.s32.totalorder %v2093, 0
        %v2095 = vsel %vm2094, %v2093, 0
        %v2096 = vshrl.u32 %v2095, 5
        %v2097 = vand.u32 %v2095, 31
        %v2098 = vsub.s32 32, %v2097
        %v2099 = vshrl.u32 683565275, %v2098
        %v2100 = vshll.u32 683565275, %v2097
        %v2101 = vshrl.u32 2475754826, %v2098
        %v2102 = vor.u32 %v2100, %v2101
        %v2103 = vshll.u32 2475754826, %v2097
        %v2104 = vshrl.u32 2131351028, %v2098
        %v2105 = vor.u32 %v2103, %v2104
        %v2106 = vshll.u32 2131351028, %v2097
        %v2107 = vshrl.u32 2102212464, %v2098
        %v2108 = vor.u32 %v2106, %v2107
        %v2109 = vshll.u32 2102212464, %v2097
        %v2110 = vshrl.u32 920167782, %v2098
        %v2111 = vor.u32 %v2109, %v2110
        %v2112 = vshll.u32 920167782, %v2097
        %v2113 = vshrl.u32 1326507024, %v2098
        %v2114 = vor.u32 %v2112, %v2113
        %vm2115 = vcmp.lt.s32.totalorder %v2096, 1
        %vm2116 = vcmp.lt.s32.totalorder %v2096, 2
        %vm2117 = vcmp.lt.s32.totalorder %v2096, 3
        %vm2118 = vcmp.lt.s32.totalorder %v2096, 4
        %v2119 = vsel %vm2115, %v2099, %v2102
        %v2120 = vsel %vm2118, %v2108, 2102212464
        %v2121 = vsel %vm2117, %v2105, %v2120
        %v2122 = vsel %vm2116, %v2119, %v2121
        %v2123 = vsel %vm2115, %v2102, %v2105
        %v2124 = vsel %vm2118, %v2111, 920167782
        %v2125 = vsel %vm2117, %v2108, %v2124
        %v2126 = vsel %vm2116, %v2123, %v2125
        %v2127 = vsel %vm2115, %v2105, %v2108
        %v2128 = vsel %vm2118, %v2114, 1326507024
        %v2129 = vsel %vm2117, %v2111, %v2128
        %v2130 = vsel %vm2116, %v2127, %v2129
        %v2131 = vshll.u32 %v2091, 8
        %v2132 = vmul.u32.u64.compose %v2131, %v2130
        %v2133 = vextract.low.u32 %v2132
        %v2134 = vextract.high.u32 %v2132
        %v2135 = vmul.u32.u64.compose %v2131, %v2126
        %v2136 = vextract.low.u32 %v2135
        %v2137 = vextract.high.u32 %v2135
        %v2138 = vmul.u32 %v2131, %v2122
        %v2139 = vadd.s32 %v2134, %v2136
        %vm2140 = vc.u32 %v2134, %v2136
        %v2141 = vadd.s32 %v2137, 1
        %v2142 = vsel %vm2140, %v2141, %v2137
        %v2143 = vadd.s32 %v2138, %v2142
        %v2144 = vadd.s32 %v2143, 536870912
        %v2145 = vshrl.u32 %v2144, 30
        %v2146 = vshll.u32 %v2145, 30
        %v2147 = vsub.s32 %v2143, %v2146
        %vm2148 = vcmp.lt.s32.totalorder %v2147, 0
        %v2149 = vsub.s32 0, %v2147
        %v2150 = vsel %vm2148, %v2149, %v2147
        %v2151 = vclz %v2150
        %v2152 = vsub.s32 %v2151, 2
        %vm2153 = vcmp.gt.s32.totalorder 0, %v2152
        %v2154 = vsel %vm2153, 0, %v2152
        %v2155 = vsub.s32 32, %v2154
        %v2156 = vshll.u32 %v2147, %v2154
        %v2157 = vshrl.u32 %v2139, %v2155
        %v2158 = vor.u32 %v2156, %v2157
        %v2159 = vsub.s32 4294967266, %v2154
        %v2160 = vadd.s32 %v2159, 127
        %v2161 = vshll.u32 %v2160, 23
        %v2162 = vor.u32 4788187, %v2161
        %v2163 = vand.u32 2147483647, %v2162
        %v2165 = vcvt.s32.f32 %v2158
        %v2166 = vmul.f32 %v2165, %v2163
        %v2167 = vxor.u32 %v2166, 2147483648
        %v2168 = vsel %vm2085, %v2167, %v2166
        %v2169 = vsub.s32 4, %v2145
        %v2170 = vsel %vm2085, %v2169, %v2145
        %v2171 = vsel %vm2084, %v1947, %v2168
        %v2172 = vsel %vm2084, 0, %v2170
        %v2173 = vcosq.f32.pop %v2171
        %v2174 = vsinq.f32.pop %v2171
        %vm2175 = vweird.f32 %v1947
        %v2176 = vadd.s32 %v2172, 3
        %v2177 = vand.u32 %v2176, 3
        %vm2178 = vcmp.lt.s32.totalorder %v2177, 2
        %vm2179 = vcmp.eq.s32.totalorder %v2177, 0
        %v2180 = vxor.u32 %v2174, 2147483648
        %v2181 = vsel %vm2179, %v2173, %v2180
        %vm2182 = vcmp.eq.s32.totalorder %v2177, 2
        %v2183 = vxor.u32 %v2173, 2147483648
        %v2184 = vsel %vm2182, %v2183, %v2174
        %v2185 = vsel %vm2178, %v2181, %v2184
        %v2186 = vsel %vm2175, nan, %v2185
        %v2187 = vand.u32 2147483647, %v1951
        %vm2188 = vcmp.le.f32.partialorder %v2187, 0.7853982
        %vm2189 = vcmp.lt.s32.totalorder %v1951, 0
        %v2190 = vand.u32 %v1951, 2139095040
        %v2191 = vshrl.u32 %v2190, 23
        %v2192 = vsub.s32 %v2191, 127
        %v2193 = vand.u32 2147483647, %v1951
        %v2194 = vand.u32 %v2193, 8388607
        %v2195 = vor.u32 %v2194, 8388608
        %v2196 = vsub.s32 0, %v2195
        %v2197 = vadd.s32 %v2192, 1
        %vm2198 = vcmp.gt.s32.totalorder %v2197, 0
        %v2199 = vsel %vm2198, %v2197, 0
        %v2200 = vshrl.u32 %v2199, 5
        %v2201 = vand.u32 %v2199, 31
        %v2202 = vsub.s32 32, %v2201
        %v2203 = vshrl.u32 683565275, %v2202
        %v2204 = vshll.u32 683565275, %v2201
        %v2205 = vshrl.u32 2475754826, %v2202
        %v2206 = vor.u32 %v2204, %v2205
        %v2207 = vshll.u32 2475754826, %v2201
        %v2208 = vshrl.u32 2131351028, %v2202
        %v2209 = vor.u32 %v2207, %v2208
        %v2210 = vshll.u32 2131351028, %v2201
        %v2211 = vshrl.u32 2102212464, %v2202
        %v2212 = vor.u32 %v2210, %v2211
        %v2213 = vshll.u32 2102212464, %v2201
        %v2214 = vshrl.u32 920167782, %v2202
        %v2215 = vor.u32 %v2213, %v2214
        %v2216 = vshll.u32 920167782, %v2201
        %v2217 = vshrl.u32 1326507024, %v2202
        %v2218 = vor.u32 %v2216, %v2217
        %vm2219 = vcmp.lt.s32.totalorder %v2200, 1
        %vm2220 = vcmp.lt.s32.totalorder %v2200, 2
        %vm2221 = vcmp.lt.s32.totalorder %v2200, 3
        %vm2222 = vcmp.lt.s32.totalorder %v2200, 4
        %v2223 = vsel %vm2219, %v2203, %v2206
        %v2224 = vsel %vm2222, %v2212, 2102212464
        %v2225 = vsel %vm2221, %v2209, %v2224
        %v2226 = vsel %vm2220, %v2223, %v2225
        %v2227 = vsel %vm2219, %v2206, %v2209
        %v2228 = vsel %vm2222, %v2215, 920167782
        %v2229 = vsel %vm2221, %v2212, %v2228
        %v2230 = vsel %vm2220, %v2227, %v2229
        %v2231 = vsel %vm2219, %v2209, %v2212
        %v2232 = vsel %vm2222, %v2218, 1326507024
        %v2233 = vsel %vm2221, %v2215, %v2232
        %v2234 = vsel %vm2220, %v2231, %v2233
        %v2235 = vshll.u32 %v2195, 8
        %v2236 = vmul.u32.u64.compose %v2235, %v2234
        %v2237 = vextract.low.u32 %v2236
        %v2238 = vextract.high.u32 %v2236
        %v2239 = vmul.u32.u64.compose %v2235, %v2230
        %v2240 = vextract.low.u32 %v2239
        %v2241 = vextract.high.u32 %v2239
        %v2242 = vmul.u32 %v2235, %v2226
        %v2243 = vadd.s32 %v2238, %v2240
        %vm2244 = vc.u32 %v2238, %v2240
        %v2245 = vadd.s32 %v2241, 1
        %v2246 = vsel %vm2244, %v2245, %v2241
        %v2247 = vadd.s32 %v2242, %v2246
        %v2248 = vadd.s32 %v2247, 536870912
        %v2249 = vshrl.u32 %v2248, 30
        %v2250 = vshll.u32 %v2249, 30
        %v2251 = vsub.s32 %v2247, %v2250
        %vm2252 = vcmp.lt.s32.totalorder %v2251, 0
        %v2253 = vsub.s32 0, %v2251
        %v2254 = vsel %vm2252, %v2253, %v2251
        %v2255 = vclz %v2254
        %v2256 = vsub.s32 %v2255, 2
        %vm2257 = vcmp.gt.s32.totalorder 0, %v2256
        %v2258 = vsel %vm2257, 0, %v2256
        %v2259 = vsub.s32 32, %v2258
        %v2260 = vshll.u32 %v2251, %v2258
        %v2261 = vshrl.u32 %v2243, %v2259
        %v2262 = vor.u32 %v2260, %v2261
        %v2263 = vsub.s32 4294967266, %v2258
        %v2264 = vadd.s32 %v2263, 127
        %v2265 = vshll.u32 %v2264, 23
        %v2266 = vor.u32 4788187, %v2265
        %v2267 = vand.u32 2147483647, %v2266
        %v2269 = vcvt.s32.f32 %v2262
        %v2270 = vmul.f32 %v2269, %v2267
        %v2271 = vxor.u32 %v2270, 2147483648
        %v2272 = vsel %vm2189, %v2271, %v2270
        %v2273 = vsub.s32 4, %v2249
        %v2274 = vsel %vm2189, %v2273, %v2249
        %v2275 = vsel %vm2188, %v1951, %v2272
        %v2276 = vsel %vm2188, 0, %v2274
        %v2277 = vcosq.f32.pop %v2275
        %v2278 = vsinq.f32.pop %v2275
        %vm2279 = vweird.f32 %v1951
        %v2280 = vadd.s32 %v2276, 3
        %v2281 = vand.u32 %v2280, 3
        %vm2282 = vcmp.lt.s32.totalorder %v2281, 2
        %vm2283 = vcmp.eq.s32.totalorder %v2281, 0
        %v2284 = vxor.u32 %v2278, 2147483648
        %v2285 = vsel %vm2283, %v2277, %v2284
        %vm2286 = vcmp.eq.s32.totalorder %v2281, 2
        %v2287 = vxor.u32 %v2277, 2147483648
        %v2288 = vsel %vm2286, %v2287, %v2278
        %v2289 = vsel %vm2282, %v2285, %v2288
        %v2290 = vsel %vm2279, nan, %v2289
        %v2291 = vand.u32 2147483647, %v1953
        %vm2292 = vcmp.le.f32.partialorder %v2291, 0.7853982
        %vm2293 = vcmp.lt.s32.totalorder %v1953, 0
        %v2294 = vand.u32 %v1953, 2139095040
        %v2295 = vshrl.u32 %v2294, 23
        %v2296 = vsub.s32 %v2295, 127
        %v2297 = vand.u32 2147483647, %v1953
        %v2298 = vand.u32 %v2297, 8388607
        %v2299 = vor.u32 %v2298, 8388608
        %v2300 = vsub.s32 0, %v2299
        %v2301 = vadd.s32 %v2296, 1
        %vm2302 = vcmp.gt.s32.totalorder %v2301, 0
        %v2303 = vsel %vm2302, %v2301, 0
        %v2304 = vshrl.u32 %v2303, 5
        %v2305 = vand.u32 %v2303, 31
        %v2306 = vsub.s32 32, %v2305
        %v2307 = vshrl.u32 683565275, %v2306
        %v2308 = vshll.u32 683565275, %v2305
        %v2309 = vshrl.u32 2475754826, %v2306
        %v2310 = vor.u32 %v2308, %v2309
        %v2311 = vshll.u32 2475754826, %v2305
        %v2312 = vshrl.u32 2131351028, %v2306
        %v2313 = vor.u32 %v2311, %v2312
        %v2314 = vshll.u32 2131351028, %v2305
        %v2315 = vshrl.u32 2102212464, %v2306
        %v2316 = vor.u32 %v2314, %v2315
        %v2317 = vshll.u32 2102212464, %v2305
        %v2318 = vshrl.u32 920167782, %v2306
        %v2319 = vor.u32 %v2317, %v2318
        %v2320 = vshll.u32 920167782, %v2305
        %v2321 = vshrl.u32 1326507024, %v2306
        %v2322 = vor.u32 %v2320, %v2321
        %vm2323 = vcmp.lt.s32.totalorder %v2304, 1
        %vm2324 = vcmp.lt.s32.totalorder %v2304, 2
        %vm2325 = vcmp.lt.s32.totalorder %v2304, 3
        %vm2326 = vcmp.lt.s32.totalorder %v2304, 4
        %v2327 = vsel %vm2323, %v2307, %v2310
        %v2328 = vsel %vm2326, %v2316, 2102212464
        %v2329 = vsel %vm2325, %v2313, %v2328
        %v2330 = vsel %vm2324, %v2327, %v2329
        %v2331 = vsel %vm2323, %v2310, %v2313
        %v2332 = vsel %vm2326, %v2319, 920167782
        %v2333 = vsel %vm2325, %v2316, %v2332
        %v2334 = vsel %vm2324, %v2331, %v2333
        %v2335 = vsel %vm2323, %v2313, %v2316
        %v2336 = vsel %vm2326, %v2322, 1326507024
        %v2337 = vsel %vm2325, %v2319, %v2336
        %v2338 = vsel %vm2324, %v2335, %v2337
        %v2339 = vshll.u32 %v2299, 8
        %v2340 = vmul.u32.u64.compose %v2339, %v2338
        %v2341 = vextract.low.u32 %v2340
        %v2342 = vextract.high.u32 %v2340
        %v2343 = vmul.u32.u64.compose %v2339, %v2334
        %v2344 = vextract.low.u32 %v2343
        %v2345 = vextract.high.u32 %v2343
        %v2346 = vmul.u32 %v2339, %v2330
        %v2347 = vadd.s32 %v2342, %v2344
        %vm2348 = vc.u32 %v2342, %v2344
        %v2349 = vadd.s32 %v2345, 1
        %v2350 = vsel %vm2348, %v2349, %v2345
        %v2351 = vadd.s32 %v2346, %v2350
        %v2352 = vadd.s32 %v2351, 536870912
        %v2353 = vshrl.u32 %v2352, 30
        %v2354 = vshll.u32 %v2353, 30
        %v2355 = vsub.s32 %v2351, %v2354
        %vm2356 = vcmp.lt.s32.totalorder %v2355, 0
        %v2357 = vsub.s32 0, %v2355
        %v2358 = vsel %vm2356, %v2357, %v2355
        %v2359 = vclz %v2358
        %v2360 = vsub.s32 %v2359, 2
        %vm2361 = vcmp.gt.s32.totalorder 0, %v2360
        %v2362 = vsel %vm2361, 0, %v2360
        %v2363 = vsub.s32 32, %v2362
        %v2364 = vshll.u32 %v2355, %v2362
        %v2365 = vshrl.u32 %v2347, %v2363
        %v2366 = vor.u32 %v2364, %v2365
        %v2367 = vsub.s32 4294967266, %v2362
        %v2368 = vadd.s32 %v2367, 127
        %v2369 = vshll.u32 %v2368, 23
        %v2370 = vor.u32 4788187, %v2369
        %v2371 = vand.u32 2147483647, %v2370
        %v2373 = vcvt.s32.f32 %v2366
        %v2374 = vmul.f32 %v2373, %v2371
        %v2375 = vxor.u32 %v2374, 2147483648
        %v2376 = vsel %vm2293, %v2375, %v2374
        %v2377 = vsub.s32 4, %v2353
        %v2378 = vsel %vm2293, %v2377, %v2353
        %v2379 = vsel %vm2292, %v1953, %v2376
        %v2380 = vsel %vm2292, 0, %v2378
        %v2381 = vcosq.f32.pop %v2379
        %v2382 = vsinq.f32.pop %v2379
        %vm2383 = vweird.f32 %v1953
        %v2384 = vadd.s32 %v2380, 3
        %v2385 = vand.u32 %v2384, 3
        %vm2386 = vcmp.lt.s32.totalorder %v2385, 2
        %vm2387 = vcmp.eq.s32.totalorder %v2385, 0
        %v2388 = vxor.u32 %v2382, 2147483648
        %v2389 = vsel %vm2387, %v2381, %v2388
        %vm2390 = vcmp.eq.s32.totalorder %v2385, 2
        %v2391 = vxor.u32 %v2381, 2147483648
        %v2392 = vsel %vm2390, %v2391, %v2382
        %v2393 = vsel %vm2386, %v2389, %v2392
        %v2394 = vsel %vm2383, nan, %v2393
        %v2395 = vand.u32 2147483647, %v1957
        %vm2396 = vcmp.le.f32.partialorder %v2395, 0.7853982
        %vm2397 = vcmp.lt.s32.totalorder %v1957, 0
        %v2398 = vand.u32 %v1957, 2139095040
        %v2399 = vshrl.u32 %v2398, 23
        %v2400 = vsub.s32 %v2399, 127
        %v2401 = vand.u32 2147483647, %v1957
        %v2402 = vand.u32 %v2401, 8388607
        %v2403 = vor.u32 %v2402, 8388608
        %v2404 = vsub.s32 0, %v2403
        %v2405 = vadd.s32 %v2400, 1
        %vm2406 = vcmp.gt.s32.totalorder %v2405, 0
        %v2407 = vsel %vm2406, %v2405, 0
        %v2408 = vshrl.u32 %v2407, 5
        %v2409 = vand.u32 %v2407, 31
        %v2410 = vsub.s32 32, %v2409
        %v2411 = vshrl.u32 683565275, %v2410
        %v2412 = vshll.u32 683565275, %v2409
        %v2413 = vshrl.u32 2475754826, %v2410
        %v2414 = vor.u32 %v2412, %v2413
        %v2415 = vshll.u32 2475754826, %v2409
        %v2416 = vshrl.u32 2131351028, %v2410
        %v2417 = vor.u32 %v2415, %v2416
        %v2418 = vshll.u32 2131351028, %v2409
        %v2419 = vshrl.u32 2102212464, %v2410
        %v2420 = vor.u32 %v2418, %v2419
        %v2421 = vshll.u32 2102212464, %v2409
        %v2422 = vshrl.u32 920167782, %v2410
        %v2423 = vor.u32 %v2421, %v2422
        %v2424 = vshll.u32 920167782, %v2409
        %v2425 = vshrl.u32 1326507024, %v2410
        %v2426 = vor.u32 %v2424, %v2425
        %vm2427 = vcmp.lt.s32.totalorder %v2408, 1
        %vm2428 = vcmp.lt.s32.totalorder %v2408, 2
        %vm2429 = vcmp.lt.s32.totalorder %v2408, 3
        %vm2430 = vcmp.lt.s32.totalorder %v2408, 4
        %v2431 = vsel %vm2427, %v2411, %v2414
        %v2432 = vsel %vm2430, %v2420, 2102212464
        %v2433 = vsel %vm2429, %v2417, %v2432
        %v2434 = vsel %vm2428, %v2431, %v2433
        %v2435 = vsel %vm2427, %v2414, %v2417
        %v2436 = vsel %vm2430, %v2423, 920167782
        %v2437 = vsel %vm2429, %v2420, %v2436
        %v2438 = vsel %vm2428, %v2435, %v2437
        %v2439 = vsel %vm2427, %v2417, %v2420
        %v2440 = vsel %vm2430, %v2426, 1326507024
        %v2441 = vsel %vm2429, %v2423, %v2440
        %v2442 = vsel %vm2428, %v2439, %v2441
        %v2443 = vshll.u32 %v2403, 8
        %v2444 = vmul.u32.u64.compose %v2443, %v2442
        %v2445 = vextract.low.u32 %v2444
        %v2446 = vextract.high.u32 %v2444
        %v2447 = vmul.u32.u64.compose %v2443, %v2438
        %v2448 = vextract.low.u32 %v2447
        %v2449 = vextract.high.u32 %v2447
        %v2450 = vmul.u32 %v2443, %v2434
        %v2451 = vadd.s32 %v2446, %v2448
        %vm2452 = vc.u32 %v2446, %v2448
        %v2453 = vadd.s32 %v2449, 1
        %v2454 = vsel %vm2452, %v2453, %v2449
        %v2455 = vadd.s32 %v2450, %v2454
        %v2456 = vadd.s32 %v2455, 536870912
        %v2457 = vshrl.u32 %v2456, 30
        %v2458 = vshll.u32 %v2457, 30
        %v2459 = vsub.s32 %v2455, %v2458
        %vm2460 = vcmp.lt.s32.totalorder %v2459, 0
        %v2461 = vsub.s32 0, %v2459
        %v2462 = vsel %vm2460, %v2461, %v2459
        %v2463 = vclz %v2462
        %v2464 = vsub.s32 %v2463, 2
        %vm2465 = vcmp.gt.s32.totalorder 0, %v2464
        %v2466 = vsel %vm2465, 0, %v2464
        %v2467 = vsub.s32 32, %v2466
        %v2468 = vshll.u32 %v2459, %v2466
        %v2469 = vshrl.u32 %v2451, %v2467
        %v2470 = vor.u32 %v2468, %v2469
        %v2471 = vsub.s32 4294967266, %v2466
        %v2472 = vadd.s32 %v2471, 127
        %v2473 = vshll.u32 %v2472, 23
        %v2474 = vor.u32 4788187, %v2473
        %v2475 = vand.u32 2147483647, %v2474
        %v2477 = vcvt.s32.f32 %v2470
        %v2478 = vmul.f32 %v2477, %v2475
        %v2479 = vxor.u32 %v2478, 2147483648
        %v2480 = vsel %vm2397, %v2479, %v2478
        %v2481 = vsub.s32 4, %v2457
        %v2482 = vsel %vm2397, %v2481, %v2457
        %v2483 = vsel %vm2396, %v1957, %v2480
        %v2484 = vsel %vm2396, 0, %v2482
        %v2485 = vcosq.f32.pop %v2483
        %v2486 = vsinq.f32.pop %v2483
        %vm2487 = vweird.f32 %v1957
        %v2488 = vadd.s32 %v2484, 3
        %v2489 = vand.u32 %v2488, 3
        %vm2490 = vcmp.lt.s32.totalorder %v2489, 2
        %vm2491 = vcmp.eq.s32.totalorder %v2489, 0
        %v2492 = vxor.u32 %v2486, 2147483648
        %v2493 = vsel %vm2491, %v2485, %v2492
        %vm2494 = vcmp.eq.s32.totalorder %v2489, 2
        %v2495 = vxor.u32 %v2485, 2147483648
        %v2496 = vsel %vm2494, %v2495, %v2486
        %v2497 = vsel %vm2490, %v2493, %v2496
        %v2498 = vsel %vm2487, nan, %v2497
        %v2499 = vand.u32 2147483647, %v1959
        %vm2500 = vcmp.le.f32.partialorder %v2499, 0.7853982
        %vm2501 = vcmp.lt.s32.totalorder %v1959, 0
        %v2502 = vand.u32 %v1959, 2139095040
        %v2503 = vshrl.u32 %v2502, 23
        %v2504 = vsub.s32 %v2503, 127
        %v2505 = vand.u32 2147483647, %v1959
        %v2506 = vand.u32 %v2505, 8388607
        %v2507 = vor.u32 %v2506, 8388608
        %v2508 = vsub.s32 0, %v2507
        %v2509 = vadd.s32 %v2504, 1
        %vm2510 = vcmp.gt.s32.totalorder %v2509, 0
        %v2511 = vsel %vm2510, %v2509, 0
        %v2512 = vshrl.u32 %v2511, 5
        %v2513 = vand.u32 %v2511, 31
        %v2514 = vsub.s32 32, %v2513
        %v2515 = vshrl.u32 683565275, %v2514
        %v2516 = vshll.u32 683565275, %v2513
        %v2517 = vshrl.u32 2475754826, %v2514
        %v2518 = vor.u32 %v2516, %v2517
        %v2519 = vshll.u32 2475754826, %v2513
        %v2520 = vshrl.u32 2131351028, %v2514
        %v2521 = vor.u32 %v2519, %v2520
        %v2522 = vshll.u32 2131351028, %v2513
        %v2523 = vshrl.u32 2102212464, %v2514
        %v2524 = vor.u32 %v2522, %v2523
        %v2525 = vshll.u32 2102212464, %v2513
        %v2526 = vshrl.u32 920167782, %v2514
        %v2527 = vor.u32 %v2525, %v2526
        %v2528 = vshll.u32 920167782, %v2513
        %v2529 = vshrl.u32 1326507024, %v2514
        %v2530 = vor.u32 %v2528, %v2529
        %vm2531 = vcmp.lt.s32.totalorder %v2512, 1
        %vm2532 = vcmp.lt.s32.totalorder %v2512, 2
        %vm2533 = vcmp.lt.s32.totalorder %v2512, 3
        %vm2534 = vcmp.lt.s32.totalorder %v2512, 4
        %v2535 = vsel %vm2531, %v2515, %v2518
        %v2536 = vsel %vm2534, %v2524, 2102212464
        %v2537 = vsel %vm2533, %v2521, %v2536
        %v2538 = vsel %vm2532, %v2535, %v2537
        %v2539 = vsel %vm2531, %v2518, %v2521
        %v2540 = vsel %vm2534, %v2527, 920167782
        %v2541 = vsel %vm2533, %v2524, %v2540
        %v2542 = vsel %vm2532, %v2539, %v2541
        %v2543 = vsel %vm2531, %v2521, %v2524
        %v2544 = vsel %vm2534, %v2530, 1326507024
        %v2545 = vsel %vm2533, %v2527, %v2544
        %v2546 = vsel %vm2532, %v2543, %v2545
        %v2547 = vshll.u32 %v2507, 8
        %v2548 = vmul.u32.u64.compose %v2547, %v2546
        %v2549 = vextract.low.u32 %v2548
        %v2550 = vextract.high.u32 %v2548
        %v2551 = vmul.u32.u64.compose %v2547, %v2542
        %v2552 = vextract.low.u32 %v2551
        %v2553 = vextract.high.u32 %v2551
        %v2554 = vmul.u32 %v2547, %v2538
        %v2555 = vadd.s32 %v2550, %v2552
        %vm2556 = vc.u32 %v2550, %v2552
        %v2557 = vadd.s32 %v2553, 1
        %v2558 = vsel %vm2556, %v2557, %v2553
        %v2559 = vadd.s32 %v2554, %v2558
        %v2560 = vadd.s32 %v2559, 536870912
        %v2561 = vshrl.u32 %v2560, 30
        %v2562 = vshll.u32 %v2561, 30
        %v2563 = vsub.s32 %v2559, %v2562
        %vm2564 = vcmp.lt.s32.totalorder %v2563, 0
        %v2565 = vsub.s32 0, %v2563
        %v2566 = vsel %vm2564, %v2565, %v2563
        %v2567 = vclz %v2566
        %v2568 = vsub.s32 %v2567, 2
        %vm2569 = vcmp.gt.s32.totalorder 0, %v2568
        %v2570 = vsel %vm2569, 0, %v2568
        %v2571 = vsub.s32 32, %v2570
        %v2572 = vshll.u32 %v2563, %v2570
        %v2573 = vshrl.u32 %v2555, %v2571
        %v2574 = vor.u32 %v2572, %v2573
        %v2575 = vsub.s32 4294967266, %v2570
        %v2576 = vadd.s32 %v2575, 127
        %v2577 = vshll.u32 %v2576, 23
        %v2578 = vor.u32 4788187, %v2577
        %v2579 = vand.u32 2147483647, %v2578
        %v2581 = vcvt.s32.f32 %v2574
        %v2582 = vmul.f32 %v2581, %v2579
        %v2583 = vxor.u32 %v2582, 2147483648
        %v2584 = vsel %vm2501, %v2583, %v2582
        %v2585 = vsub.s32 4, %v2561
        %v2586 = vsel %vm2501, %v2585, %v2561
        %v2587 = vsel %vm2500, %v1959, %v2584
        %v2588 = vsel %vm2500, 0, %v2586
        %v2589 = vcosq.f32.pop %v2587
        %v2590 = vsinq.f32.pop %v2587
        %vm2591 = vweird.f32 %v1959
        %v2592 = vadd.s32 %v2588, 3
        %v2593 = vand.u32 %v2592, 3
        %vm2594 = vcmp.lt.s32.totalorder %v2593, 2
        %vm2595 = vcmp.eq.s32.totalorder %v2593, 0
        %v2596 = vxor.u32 %v2590, 2147483648
        %v2597 = vsel %vm2595, %v2589, %v2596
        %vm2598 = vcmp.eq.s32.totalorder %v2593, 2
        %v2599 = vxor.u32 %v2589, 2147483648
        %v2600 = vsel %vm2598, %v2599, %v2590
        %v2601 = vsel %vm2594, %v2597, %v2600
        %v2602 = vsel %vm2591, nan, %v2601
        %v2603 = vand.u32 2147483647, %v1963
        %vm2604 = vcmp.le.f32.partialorder %v2603, 0.7853982
        %vm2605 = vcmp.lt.s32.totalorder %v1963, 0
        %v2606 = vand.u32 %v1963, 2139095040
        %v2607 = vshrl.u32 %v2606, 23
        %v2608 = vsub.s32 %v2607, 127
        %v2609 = vand.u32 2147483647, %v1963
        %v2610 = vand.u32 %v2609, 8388607
        %v2611 = vor.u32 %v2610, 8388608
        %v2612 = vsub.s32 0, %v2611
        %v2613 = vadd.s32 %v2608, 1
        %vm2614 = vcmp.gt.s32.totalorder %v2613, 0
        %v2615 = vsel %vm2614, %v2613, 0
        %v2616 = vshrl.u32 %v2615, 5
        %v2617 = vand.u32 %v2615, 31
        %v2618 = vsub.s32 32, %v2617
        %v2619 = vshrl.u32 683565275, %v2618
        %v2620 = vshll.u32 683565275, %v2617
        %v2621 = vshrl.u32 2475754826, %v2618
        %v2622 = vor.u32 %v2620, %v2621
        %v2623 = vshll.u32 2475754826, %v2617
        %v2624 = vshrl.u32 2131351028, %v2618
        %v2625 = vor.u32 %v2623, %v2624
        %v2626 = vshll.u32 2131351028, %v2617
        %v2627 = vshrl.u32 2102212464, %v2618
        %v2628 = vor.u32 %v2626, %v2627
        %v2629 = vshll.u32 2102212464, %v2617
        %v2630 = vshrl.u32 920167782, %v2618
        %v2631 = vor.u32 %v2629, %v2630
        %v2632 = vshll.u32 920167782, %v2617
        %v2633 = vshrl.u32 1326507024, %v2618
        %v2634 = vor.u32 %v2632, %v2633
        %vm2635 = vcmp.lt.s32.totalorder %v2616, 1
        %vm2636 = vcmp.lt.s32.totalorder %v2616, 2
        %vm2637 = vcmp.lt.s32.totalorder %v2616, 3
        %vm2638 = vcmp.lt.s32.totalorder %v2616, 4
        %v2639 = vsel %vm2635, %v2619, %v2622
        %v2640 = vsel %vm2638, %v2628, 2102212464
        %v2641 = vsel %vm2637, %v2625, %v2640
        %v2642 = vsel %vm2636, %v2639, %v2641
        %v2643 = vsel %vm2635, %v2622, %v2625
        %v2644 = vsel %vm2638, %v2631, 920167782
        %v2645 = vsel %vm2637, %v2628, %v2644
        %v2646 = vsel %vm2636, %v2643, %v2645
        %v2647 = vsel %vm2635, %v2625, %v2628
        %v2648 = vsel %vm2638, %v2634, 1326507024
        %v2649 = vsel %vm2637, %v2631, %v2648
        %v2650 = vsel %vm2636, %v2647, %v2649
        %v2651 = vshll.u32 %v2611, 8
        %v2652 = vmul.u32.u64.compose %v2651, %v2650
        %v2653 = vextract.low.u32 %v2652
        %v2654 = vextract.high.u32 %v2652
        %v2655 = vmul.u32.u64.compose %v2651, %v2646
        %v2656 = vextract.low.u32 %v2655
        %v2657 = vextract.high.u32 %v2655
        %v2658 = vmul.u32 %v2651, %v2642
        %v2659 = vadd.s32 %v2654, %v2656
        %vm2660 = vc.u32 %v2654, %v2656
        %v2661 = vadd.s32 %v2657, 1
        %v2662 = vsel %vm2660, %v2661, %v2657
        %v2663 = vadd.s32 %v2658, %v2662
        %v2664 = vadd.s32 %v2663, 536870912
        %v2665 = vshrl.u32 %v2664, 30
        %v2666 = vshll.u32 %v2665, 30
        %v2667 = vsub.s32 %v2663, %v2666
        %vm2668 = vcmp.lt.s32.totalorder %v2667, 0
        %v2669 = vsub.s32 0, %v2667
        %v2670 = vsel %vm2668, %v2669, %v2667
        %v2671 = vclz %v2670
        %v2672 = vsub.s32 %v2671, 2
        %vm2673 = vcmp.gt.s32.totalorder 0, %v2672
        %v2674 = vsel %vm2673, 0, %v2672
        %v2675 = vsub.s32 32, %v2674
        %v2676 = vshll.u32 %v2667, %v2674
        %v2677 = vshrl.u32 %v2659, %v2675
        %v2678 = vor.u32 %v2676, %v2677
        %v2679 = vsub.s32 4294967266, %v2674
        %v2680 = vadd.s32 %v2679, 127
        %v2681 = vshll.u32 %v2680, 23
        %v2682 = vor.u32 4788187, %v2681
        %v2683 = vand.u32 2147483647, %v2682
        %v2685 = vcvt.s32.f32 %v2678
        %v2686 = vmul.f32 %v2685, %v2683
        %v2687 = vxor.u32 %v2686, 2147483648
        %v2688 = vsel %vm2605, %v2687, %v2686
        %v2689 = vsub.s32 4, %v2665
        %v2690 = vsel %vm2605, %v2689, %v2665
        %v2691 = vsel %vm2604, %v1963, %v2688
        %v2692 = vsel %vm2604, 0, %v2690
        %v2693 = vcosq.f32.pop %v2691
        %v2694 = vsinq.f32.pop %v2691
        %vm2695 = vweird.f32 %v1963
        %v2696 = vadd.s32 %v2692, 3
        %v2697 = vand.u32 %v2696, 3
        %vm2698 = vcmp.lt.s32.totalorder %v2697, 2
        %vm2699 = vcmp.eq.s32.totalorder %v2697, 0
        %v2700 = vxor.u32 %v2694, 2147483648
        %v2701 = vsel %vm2699, %v2693, %v2700
        %vm2702 = vcmp.eq.s32.totalorder %v2697, 2
        %v2703 = vxor.u32 %v2693, 2147483648
        %v2704 = vsel %vm2702, %v2703, %v2694
        %v2705 = vsel %vm2698, %v2701, %v2704
        %v2706 = vsel %vm2695, nan, %v2705
        %v2707 = vand.u32 2147483647, %v1965
        %vm2708 = vcmp.le.f32.partialorder %v2707, 0.7853982
        %vm2709 = vcmp.lt.s32.totalorder %v1965, 0
        %v2710 = vand.u32 %v1965, 2139095040
        %v2711 = vshrl.u32 %v2710, 23
        %v2712 = vsub.s32 %v2711, 127
        %v2713 = vand.u32 2147483647, %v1965
        %v2714 = vand.u32 %v2713, 8388607
        %v2715 = vor.u32 %v2714, 8388608
        %v2716 = vsub.s32 0, %v2715
        %v2717 = vadd.s32 %v2712, 1
        %vm2718 = vcmp.gt.s32.totalorder %v2717, 0
        %v2719 = vsel %vm2718, %v2717, 0
        %v2720 = vshrl.u32 %v2719, 5
        %v2721 = vand.u32 %v2719, 31
        %v2722 = vsub.s32 32, %v2721
        %v2723 = vshrl.u32 683565275, %v2722
        %v2724 = vshll.u32 683565275, %v2721
        %v2725 = vshrl.u32 2475754826, %v2722
        %v2726 = vor.u32 %v2724, %v2725
        %v2727 = vshll.u32 2475754826, %v2721
        %v2728 = vshrl.u32 2131351028, %v2722
        %v2729 = vor.u32 %v2727, %v2728
        %v2730 = vshll.u32 2131351028, %v2721
        %v2731 = vshrl.u32 2102212464, %v2722
        %v2732 = vor.u32 %v2730, %v2731
        %v2733 = vshll.u32 2102212464, %v2721
        %v2734 = vshrl.u32 920167782, %v2722
        %v2735 = vor.u32 %v2733, %v2734
        %v2736 = vshll.u32 920167782, %v2721
        %v2737 = vshrl.u32 1326507024, %v2722
        %v2738 = vor.u32 %v2736, %v2737
        %vm2739 = vcmp.lt.s32.totalorder %v2720, 1
        %vm2740 = vcmp.lt.s32.totalorder %v2720, 2
        %vm2741 = vcmp.lt.s32.totalorder %v2720, 3
        %vm2742 = vcmp.lt.s32.totalorder %v2720, 4
        %v2743 = vsel %vm2739, %v2723, %v2726
        %v2744 = vsel %vm2742, %v2732, 2102212464
        %v2745 = vsel %vm2741, %v2729, %v2744
        %v2746 = vsel %vm2740, %v2743, %v2745
        %v2747 = vsel %vm2739, %v2726, %v2729
        %v2748 = vsel %vm2742, %v2735, 920167782
        %v2749 = vsel %vm2741, %v2732, %v2748
        %v2750 = vsel %vm2740, %v2747, %v2749
        %v2751 = vsel %vm2739, %v2729, %v2732
        %v2752 = vsel %vm2742, %v2738, 1326507024
        %v2753 = vsel %vm2741, %v2735, %v2752
        %v2754 = vsel %vm2740, %v2751, %v2753
        %v2755 = vshll.u32 %v2715, 8
        %v2756 = vmul.u32.u64.compose %v2755, %v2754
        %v2757 = vextract.low.u32 %v2756
        %v2758 = vextract.high.u32 %v2756
        %v2759 = vmul.u32.u64.compose %v2755, %v2750
        %v2760 = vextract.low.u32 %v2759
        %v2761 = vextract.high.u32 %v2759
        %v2762 = vmul.u32 %v2755, %v2746
        %v2763 = vadd.s32 %v2758, %v2760
        %vm2764 = vc.u32 %v2758, %v2760
        %v2765 = vadd.s32 %v2761, 1
        %v2766 = vsel %vm2764, %v2765, %v2761
        %v2767 = vadd.s32 %v2762, %v2766
        %v2768 = vadd.s32 %v2767, 536870912
        %v2769 = vshrl.u32 %v2768, 30
        %v2770 = vshll.u32 %v2769, 30
        %v2771 = vsub.s32 %v2767, %v2770
        %vm2772 = vcmp.lt.s32.totalorder %v2771, 0
        %v2773 = vsub.s32 0, %v2771
        %v2774 = vsel %vm2772, %v2773, %v2771
        %v2775 = vclz %v2774
        %v2776 = vsub.s32 %v2775, 2
        %vm2777 = vcmp.gt.s32.totalorder 0, %v2776
        %v2778 = vsel %vm2777, 0, %v2776
        %v2779 = vsub.s32 32, %v2778
        %v2780 = vshll.u32 %v2771, %v2778
        %v2781 = vshrl.u32 %v2763, %v2779
        %v2782 = vor.u32 %v2780, %v2781
        %v2783 = vsub.s32 4294967266, %v2778
        %v2784 = vadd.s32 %v2783, 127
        %v2785 = vshll.u32 %v2784, 23
        %v2786 = vor.u32 4788187, %v2785
        %v2787 = vand.u32 2147483647, %v2786
        %v2789 = vcvt.s32.f32 %v2782
        %v2790 = vmul.f32 %v2789, %v2787
        %v2791 = vxor.u32 %v2790, 2147483648
        %v2792 = vsel %vm2709, %v2791, %v2790
        %v2793 = vsub.s32 4, %v2769
        %v2794 = vsel %vm2709, %v2793, %v2769
        %v2795 = vsel %vm2708, %v1965, %v2792
        %v2796 = vsel %vm2708, 0, %v2794
        %v2797 = vcosq.f32.pop %v2795
        %v2798 = vsinq.f32.pop %v2795
        %vm2799 = vweird.f32 %v1965
        %v2800 = vadd.s32 %v2796, 3
        %v2801 = vand.u32 %v2800, 3
        %vm2802 = vcmp.lt.s32.totalorder %v2801, 2
        %vm2803 = vcmp.eq.s32.totalorder %v2801, 0
        %v2804 = vxor.u32 %v2798, 2147483648
        %v2805 = vsel %vm2803, %v2797, %v2804
        %vm2806 = vcmp.eq.s32.totalorder %v2801, 2
        %v2807 = vxor.u32 %v2797, 2147483648
        %v2808 = vsel %vm2806, %v2807, %v2798
        %v2809 = vsel %vm2802, %v2805, %v2808
        %v2810 = vsel %vm2799, nan, %v2809
        %v2811 = vand.u32 2147483647, %v1969
        %vm2812 = vcmp.le.f32.partialorder %v2811, 0.7853982
        %vm2813 = vcmp.lt.s32.totalorder %v1969, 0
        %v2814 = vand.u32 %v1969, 2139095040
        %v2815 = vshrl.u32 %v2814, 23
        %v2816 = vsub.s32 %v2815, 127
        %v2817 = vand.u32 2147483647, %v1969
        %v2818 = vand.u32 %v2817, 8388607
        %v2819 = vor.u32 %v2818, 8388608
        %v2820 = vsub.s32 0, %v2819
        %v2821 = vadd.s32 %v2816, 1
        %vm2822 = vcmp.gt.s32.totalorder %v2821, 0
        %v2823 = vsel %vm2822, %v2821, 0
        %v2824 = vshrl.u32 %v2823, 5
        %v2825 = vand.u32 %v2823, 31
        %v2826 = vsub.s32 32, %v2825
        %v2827 = vshrl.u32 683565275, %v2826
        %v2828 = vshll.u32 683565275, %v2825
        %v2829 = vshrl.u32 2475754826, %v2826
        %v2830 = vor.u32 %v2828, %v2829
        %v2831 = vshll.u32 2475754826, %v2825
        %v2832 = vshrl.u32 2131351028, %v2826
        %v2833 = vor.u32 %v2831, %v2832
        %v2834 = vshll.u32 2131351028, %v2825
        %v2835 = vshrl.u32 2102212464, %v2826
        %v2836 = vor.u32 %v2834, %v2835
        %v2837 = vshll.u32 2102212464, %v2825
        %v2838 = vshrl.u32 920167782, %v2826
        %v2839 = vor.u32 %v2837, %v2838
        %v2840 = vshll.u32 920167782, %v2825
        %v2841 = vshrl.u32 1326507024, %v2826
        %v2842 = vor.u32 %v2840, %v2841
        %vm2843 = vcmp.lt.s32.totalorder %v2824, 1
        %vm2844 = vcmp.lt.s32.totalorder %v2824, 2
        %vm2845 = vcmp.lt.s32.totalorder %v2824, 3
        %vm2846 = vcmp.lt.s32.totalorder %v2824, 4
        %v2847 = vsel %vm2843, %v2827, %v2830
        %v2848 = vsel %vm2846, %v2836, 2102212464
        %v2849 = vsel %vm2845, %v2833, %v2848
        %v2850 = vsel %vm2844, %v2847, %v2849
        %v2851 = vsel %vm2843, %v2830, %v2833
        %v2852 = vsel %vm2846, %v2839, 920167782
        %v2853 = vsel %vm2845, %v2836, %v2852
        %v2854 = vsel %vm2844, %v2851, %v2853
        %v2855 = vsel %vm2843, %v2833, %v2836
        %v2856 = vsel %vm2846, %v2842, 1326507024
        %v2857 = vsel %vm2845, %v2839, %v2856
        %v2858 = vsel %vm2844, %v2855, %v2857
        %v2859 = vshll.u32 %v2819, 8
        %v2860 = vmul.u32.u64.compose %v2859, %v2858
        %v2861 = vextract.low.u32 %v2860
        %v2862 = vextract.high.u32 %v2860
        %v2863 = vmul.u32.u64.compose %v2859, %v2854
        %v2864 = vextract.low.u32 %v2863
        %v2865 = vextract.high.u32 %v2863
        %v2866 = vmul.u32 %v2859, %v2850
        %v2867 = vadd.s32 %v2862, %v2864
        %vm2868 = vc.u32 %v2862, %v2864
        %v2869 = vadd.s32 %v2865, 1
        %v2870 = vsel %vm2868, %v2869, %v2865
        %v2871 = vadd.s32 %v2866, %v2870
        %v2872 = vadd.s32 %v2871, 536870912
        %v2873 = vshrl.u32 %v2872, 30
        %v2874 = vshll.u32 %v2873, 30
        %v2875 = vsub.s32 %v2871, %v2874
        %vm2876 = vcmp.lt.s32.totalorder %v2875, 0
        %v2877 = vsub.s32 0, %v2875
        %v2878 = vsel %vm2876, %v2877, %v2875
        %v2879 = vclz %v2878
        %v2880 = vsub.s32 %v2879, 2
        %vm2881 = vcmp.gt.s32.totalorder 0, %v2880
        %v2882 = vsel %vm2881, 0, %v2880
        %v2883 = vsub.s32 32, %v2882
        %v2884 = vshll.u32 %v2875, %v2882
        %v2885 = vshrl.u32 %v2867, %v2883
        %v2886 = vor.u32 %v2884, %v2885
        %v2887 = vsub.s32 4294967266, %v2882
        %v2888 = vadd.s32 %v2887, 127
        %v2889 = vshll.u32 %v2888, 23
        %v2890 = vor.u32 4788187, %v2889
        %v2891 = vand.u32 2147483647, %v2890
        %v2893 = vcvt.s32.f32 %v2886
        %v2894 = vmul.f32 %v2893, %v2891
        %v2895 = vxor.u32 %v2894, 2147483648
        %v2896 = vsel %vm2813, %v2895, %v2894
        %v2897 = vsub.s32 4, %v2873
        %v2898 = vsel %vm2813, %v2897, %v2873
        %v2899 = vsel %vm2812, %v1969, %v2896
        %v2900 = vsel %vm2812, 0, %v2898
        %v2901 = vcosq.f32.pop %v2899
        %v2902 = vsinq.f32.pop %v2899
        %vm2903 = vweird.f32 %v1969
        %v2904 = vadd.s32 %v2900, 3
        %v2905 = vand.u32 %v2904, 3
        %vm2906 = vcmp.lt.s32.totalorder %v2905, 2
        %vm2907 = vcmp.eq.s32.totalorder %v2905, 0
        %v2908 = vxor.u32 %v2902, 2147483648
        %v2909 = vsel %vm2907, %v2901, %v2908
        %vm2910 = vcmp.eq.s32.totalorder %v2905, 2
        %v2911 = vxor.u32 %v2901, 2147483648
        %v2912 = vsel %vm2910, %v2911, %v2902
        %v2913 = vsel %vm2906, %v2909, %v2912
        %v2914 = vsel %vm2903, nan, %v2913
        %v2915 = vand.u32 2147483647, %v1971
        %vm2916 = vcmp.le.f32.partialorder %v2915, 0.7853982
        %vm2917 = vcmp.lt.s32.totalorder %v1971, 0
        %v2918 = vand.u32 %v1971, 2139095040
        %v2919 = vshrl.u32 %v2918, 23
        %v2920 = vsub.s32 %v2919, 127
        %v2921 = vand.u32 2147483647, %v1971
        %v2922 = vand.u32 %v2921, 8388607
        %v2923 = vor.u32 %v2922, 8388608
        %v2924 = vsub.s32 0, %v2923
        %v2925 = vadd.s32 %v2920, 1
        %vm2926 = vcmp.gt.s32.totalorder %v2925, 0
        %v2927 = vsel %vm2926, %v2925, 0
        %v2928 = vshrl.u32 %v2927, 5
        %v2929 = vand.u32 %v2927, 31
        %v2930 = vsub.s32 32, %v2929
        %v2931 = vshrl.u32 683565275, %v2930
        %v2932 = vshll.u32 683565275, %v2929
        %v2933 = vshrl.u32 2475754826, %v2930
        %v2934 = vor.u32 %v2932, %v2933
        %v2935 = vshll.u32 2475754826, %v2929
        %v2936 = vshrl.u32 2131351028, %v2930
        %v2937 = vor.u32 %v2935, %v2936
        %v2938 = vshll.u32 2131351028, %v2929
        %v2939 = vshrl.u32 2102212464, %v2930
        %v2940 = vor.u32 %v2938, %v2939
        %v2941 = vshll.u32 2102212464, %v2929
        %v2942 = vshrl.u32 920167782, %v2930
        %v2943 = vor.u32 %v2941, %v2942
        %v2944 = vshll.u32 920167782, %v2929
        %v2945 = vshrl.u32 1326507024, %v2930
        %v2946 = vor.u32 %v2944, %v2945
        %vm2947 = vcmp.lt.s32.totalorder %v2928, 1
        %vm2948 = vcmp.lt.s32.totalorder %v2928, 2
        %vm2949 = vcmp.lt.s32.totalorder %v2928, 3
        %vm2950 = vcmp.lt.s32.totalorder %v2928, 4
        %v2951 = vsel %vm2947, %v2931, %v2934
        %v2952 = vsel %vm2950, %v2940, 2102212464
        %v2953 = vsel %vm2949, %v2937, %v2952
        %v2954 = vsel %vm2948, %v2951, %v2953
        %v2955 = vsel %vm2947, %v2934, %v2937
        %v2956 = vsel %vm2950, %v2943, 920167782
        %v2957 = vsel %vm2949, %v2940, %v2956
        %v2958 = vsel %vm2948, %v2955, %v2957
        %v2959 = vsel %vm2947, %v2937, %v2940
        %v2960 = vsel %vm2950, %v2946, 1326507024
        %v2961 = vsel %vm2949, %v2943, %v2960
        %v2962 = vsel %vm2948, %v2959, %v2961
        %v2963 = vshll.u32 %v2923, 8
        %v2964 = vmul.u32.u64.compose %v2963, %v2962
        %v2965 = vextract.low.u32 %v2964
        %v2966 = vextract.high.u32 %v2964
        %v2967 = vmul.u32.u64.compose %v2963, %v2958
        %v2968 = vextract.low.u32 %v2967
        %v2969 = vextract.high.u32 %v2967
        %v2970 = vmul.u32 %v2963, %v2954
        %v2971 = vadd.s32 %v2966, %v2968
        %vm2972 = vc.u32 %v2966, %v2968
        %v2973 = vadd.s32 %v2969, 1
        %v2974 = vsel %vm2972, %v2973, %v2969
        %v2975 = vadd.s32 %v2970, %v2974
        %v2976 = vadd.s32 %v2975, 536870912
        %v2977 = vshrl.u32 %v2976, 30
        %v2978 = vshll.u32 %v2977, 30
        %v2979 = vsub.s32 %v2975, %v2978
        %vm2980 = vcmp.lt.s32.totalorder %v2979, 0
        %v2981 = vsub.s32 0, %v2979
        %v2982 = vsel %vm2980, %v2981, %v2979
        %v2983 = vclz %v2982
        %v2984 = vsub.s32 %v2983, 2
        %vm2985 = vcmp.gt.s32.totalorder 0, %v2984
        %v2986 = vsel %vm2985, 0, %v2984
        %v2987 = vsub.s32 32, %v2986
        %v2988 = vshll.u32 %v2979, %v2986
        %v2989 = vshrl.u32 %v2971, %v2987
        %v2990 = vor.u32 %v2988, %v2989
        %v2991 = vsub.s32 4294967266, %v2986
        %v2992 = vadd.s32 %v2991, 127
        %v2993 = vshll.u32 %v2992, 23
        %v2994 = vor.u32 4788187, %v2993
        %v2995 = vand.u32 2147483647, %v2994
        %v2997 = vcvt.s32.f32 %v2990
        %v2998 = vmul.f32 %v2997, %v2995
        %v2999 = vxor.u32 %v2998, 2147483648
        %v3000 = vsel %vm2917, %v2999, %v2998
        %v3001 = vsub.s32 4, %v2977
        %v3002 = vsel %vm2917, %v3001, %v2977
        %v3003 = vsel %vm2916, %v1971, %v3000
        %v3004 = vsel %vm2916, 0, %v3002
        %v3005 = vcosq.f32.pop %v3003
        %v3006 = vsinq.f32.pop %v3003
        %vm3007 = vweird.f32 %v1971
        %v3008 = vadd.s32 %v3004, 3
        %v3009 = vand.u32 %v3008, 3
        %vm3010 = vcmp.lt.s32.totalorder %v3009, 2
        %vm3011 = vcmp.eq.s32.totalorder %v3009, 0
        %v3012 = vxor.u32 %v3006, 2147483648
        %v3013 = vsel %vm3011, %v3005, %v3012
        %vm3014 = vcmp.eq.s32.totalorder %v3009, 2
        %v3015 = vxor.u32 %v3005, 2147483648
        %v3016 = vsel %vm3014, %v3015, %v3006
        %v3017 = vsel %vm3010, %v3013, %v3016
        %v3018 = vsel %vm3007, nan, %v3017
        %v3019 = vand.u32 2147483647, %v1975
        %vm3020 = vcmp.le.f32.partialorder %v3019, 0.7853982
        %vm3021 = vcmp.lt.s32.totalorder %v1975, 0
        %v3022 = vand.u32 %v1975, 2139095040
        %v3023 = vshrl.u32 %v3022, 23
        %v3024 = vsub.s32 %v3023, 127
        %v3025 = vand.u32 2147483647, %v1975
        %v3026 = vand.u32 %v3025, 8388607
        %v3027 = vor.u32 %v3026, 8388608
        %v3028 = vsub.s32 0, %v3027
        %v3029 = vadd.s32 %v3024, 1
        %vm3030 = vcmp.gt.s32.totalorder %v3029, 0
        %v3031 = vsel %vm3030, %v3029, 0
        %v3032 = vshrl.u32 %v3031, 5
        %v3033 = vand.u32 %v3031, 31
        %v3034 = vsub.s32 32, %v3033
        %v3035 = vshrl.u32 683565275, %v3034
        %v3036 = vshll.u32 683565275, %v3033
        %v3037 = vshrl.u32 2475754826, %v3034
        %v3038 = vor.u32 %v3036, %v3037
        %v3039 = vshll.u32 2475754826, %v3033
        %v3040 = vshrl.u32 2131351028, %v3034
        %v3041 = vor.u32 %v3039, %v3040
        %v3042 = vshll.u32 2131351028, %v3033
        %v3043 = vshrl.u32 2102212464, %v3034
        %v3044 = vor.u32 %v3042, %v3043
        %v3045 = vshll.u32 2102212464, %v3033
        %v3046 = vshrl.u32 920167782, %v3034
        %v3047 = vor.u32 %v3045, %v3046
        %v3048 = vshll.u32 920167782, %v3033
        %v3049 = vshrl.u32 1326507024, %v3034
        %v3050 = vor.u32 %v3048, %v3049
        %vm3051 = vcmp.lt.s32.totalorder %v3032, 1
        %vm3052 = vcmp.lt.s32.totalorder %v3032, 2
        %vm3053 = vcmp.lt.s32.totalorder %v3032, 3
        %vm3054 = vcmp.lt.s32.totalorder %v3032, 4
        %v3055 = vsel %vm3051, %v3035, %v3038
        %v3056 = vsel %vm3054, %v3044, 2102212464
        %v3057 = vsel %vm3053, %v3041, %v3056
        %v3058 = vsel %vm3052, %v3055, %v3057
        %v3059 = vsel %vm3051, %v3038, %v3041
        %v3060 = vsel %vm3054, %v3047, 920167782
        %v3061 = vsel %vm3053, %v3044, %v3060
        %v3062 = vsel %vm3052, %v3059, %v3061
        %v3063 = vsel %vm3051, %v3041, %v3044
        %v3064 = vsel %vm3054, %v3050, 1326507024
        %v3065 = vsel %vm3053, %v3047, %v3064
        %v3066 = vsel %vm3052, %v3063, %v3065
        %v3067 = vshll.u32 %v3027, 8
        %v3068 = vmul.u32.u64.compose %v3067, %v3066
        %v3069 = vextract.low.u32 %v3068
        %v3070 = vextract.high.u32 %v3068
        %v3071 = vmul.u32.u64.compose %v3067, %v3062
        %v3072 = vextract.low.u32 %v3071
        %v3073 = vextract.high.u32 %v3071
        %v3074 = vmul.u32 %v3067, %v3058
        %v3075 = vadd.s32 %v3070, %v3072
        %vm3076 = vc.u32 %v3070, %v3072
        %v3077 = vadd.s32 %v3073, 1
        %v3078 = vsel %vm3076, %v3077, %v3073
        %v3079 = vadd.s32 %v3074, %v3078
        %v3080 = vadd.s32 %v3079, 536870912
        %v3081 = vshrl.u32 %v3080, 30
        %v3082 = vshll.u32 %v3081, 30
        %v3083 = vsub.s32 %v3079, %v3082
        %vm3084 = vcmp.lt.s32.totalorder %v3083, 0
        %v3085 = vsub.s32 0, %v3083
        %v3086 = vsel %vm3084, %v3085, %v3083
        %v3087 = vclz %v3086
        %v3088 = vsub.s32 %v3087, 2
        %vm3089 = vcmp.gt.s32.totalorder 0, %v3088
        %v3090 = vsel %vm3089, 0, %v3088
        %v3091 = vsub.s32 32, %v3090
        %v3092 = vshll.u32 %v3083, %v3090
        %v3093 = vshrl.u32 %v3075, %v3091
        %v3094 = vor.u32 %v3092, %v3093
        %v3095 = vsub.s32 4294967266, %v3090
        %v3096 = vadd.s32 %v3095, 127
        %v3097 = vshll.u32 %v3096, 23
        %v3098 = vor.u32 4788187, %v3097
        %v3099 = vand.u32 2147483647, %v3098
        %v3101 = vcvt.s32.f32 %v3094
        %v3102 = vmul.f32 %v3101, %v3099
        %v3103 = vxor.u32 %v3102, 2147483648
        %v3104 = vsel %vm3021, %v3103, %v3102
        %v3105 = vsub.s32 4, %v3081
        %v3106 = vsel %vm3021, %v3105, %v3081
        %v3107 = vsel %vm3020, %v1975, %v3104
        %v3108 = vsel %vm3020, 0, %v3106
        %v3109 = vcosq.f32.pop %v3107
        %v3110 = vsinq.f32.pop %v3107
        %vm3111 = vweird.f32 %v1975
        %v3112 = vadd.s32 %v3108, 3
        %v3113 = vand.u32 %v3112, 3
        %vm3114 = vcmp.lt.s32.totalorder %v3113, 2
        %vm3115 = vcmp.eq.s32.totalorder %v3113, 0
        %v3116 = vxor.u32 %v3110, 2147483648
        %v3117 = vsel %vm3115, %v3109, %v3116
        %vm3118 = vcmp.eq.s32.totalorder %v3113, 2
        %v3119 = vxor.u32 %v3109, 2147483648
        %v3120 = vsel %vm3118, %v3119, %v3110
        %v3121 = vsel %vm3114, %v3117, %v3120
        %v3122 = vsel %vm3111, nan, %v3121
        %v3123 = vand.u32 2147483647, %v1977
        %vm3124 = vcmp.le.f32.partialorder %v3123, 0.7853982
        %vm3125 = vcmp.lt.s32.totalorder %v1977, 0
        %v3126 = vand.u32 %v1977, 2139095040
        %v3127 = vshrl.u32 %v3126, 23
        %v3128 = vsub.s32 %v3127, 127
        %v3129 = vand.u32 2147483647, %v1977
        %v3130 = vand.u32 %v3129, 8388607
        %v3131 = vor.u32 %v3130, 8388608
        %v3132 = vsub.s32 0, %v3131
        %v3133 = vadd.s32 %v3128, 1
        %vm3134 = vcmp.gt.s32.totalorder %v3133, 0
        %v3135 = vsel %vm3134, %v3133, 0
        %v3136 = vshrl.u32 %v3135, 5
        %v3137 = vand.u32 %v3135, 31
        %v3138 = vsub.s32 32, %v3137
        %v3139 = vshrl.u32 683565275, %v3138
        %v3140 = vshll.u32 683565275, %v3137
        %v3141 = vshrl.u32 2475754826, %v3138
        %v3142 = vor.u32 %v3140, %v3141
        %v3143 = vshll.u32 2475754826, %v3137
        %v3144 = vshrl.u32 2131351028, %v3138
        %v3145 = vor.u32 %v3143, %v3144
        %v3146 = vshll.u32 2131351028, %v3137
        %v3147 = vshrl.u32 2102212464, %v3138
        %v3148 = vor.u32 %v3146, %v3147
        %v3149 = vshll.u32 2102212464, %v3137
        %v3150 = vshrl.u32 920167782, %v3138
        %v3151 = vor.u32 %v3149, %v3150
        %v3152 = vshll.u32 920167782, %v3137
        %v3153 = vshrl.u32 1326507024, %v3138
        %v3154 = vor.u32 %v3152, %v3153
        %vm3155 = vcmp.lt.s32.totalorder %v3136, 1
        %vm3156 = vcmp.lt.s32.totalorder %v3136, 2
        %vm3157 = vcmp.lt.s32.totalorder %v3136, 3
        %vm3158 = vcmp.lt.s32.totalorder %v3136, 4
        %v3159 = vsel %vm3155, %v3139, %v3142
        %v3160 = vsel %vm3158, %v3148, 2102212464
        %v3161 = vsel %vm3157, %v3145, %v3160
        %v3162 = vsel %vm3156, %v3159, %v3161
        %v3163 = vsel %vm3155, %v3142, %v3145
        %v3164 = vsel %vm3158, %v3151, 920167782
        %v3165 = vsel %vm3157, %v3148, %v3164
        %v3166 = vsel %vm3156, %v3163, %v3165
        %v3167 = vsel %vm3155, %v3145, %v3148
        %v3168 = vsel %vm3158, %v3154, 1326507024
        %v3169 = vsel %vm3157, %v3151, %v3168
        %v3170 = vsel %vm3156, %v3167, %v3169
        %v3171 = vshll.u32 %v3131, 8
        %v3172 = vmul.u32.u64.compose %v3171, %v3170
        %v3173 = vextract.low.u32 %v3172
        %v3174 = vextract.high.u32 %v3172
        %v3175 = vmul.u32.u64.compose %v3171, %v3166
        %v3176 = vextract.low.u32 %v3175
        %v3177 = vextract.high.u32 %v3175
        %v3178 = vmul.u32 %v3171, %v3162
        %v3179 = vadd.s32 %v3174, %v3176
        %vm3180 = vc.u32 %v3174, %v3176
        %v3181 = vadd.s32 %v3177, 1
        %v3182 = vsel %vm3180, %v3181, %v3177
        %v3183 = vadd.s32 %v3178, %v3182
        %v3184 = vadd.s32 %v3183, 536870912
        %v3185 = vshrl.u32 %v3184, 30
        %v3186 = vshll.u32 %v3185, 30
        %v3187 = vsub.s32 %v3183, %v3186
        %vm3188 = vcmp.lt.s32.totalorder %v3187, 0
        %v3189 = vsub.s32 0, %v3187
        %v3190 = vsel %vm3188, %v3189, %v3187
        %v3191 = vclz %v3190
        %v3192 = vsub.s32 %v3191, 2
        %vm3193 = vcmp.gt.s32.totalorder 0, %v3192
        %v3194 = vsel %vm3193, 0, %v3192
        %v3195 = vsub.s32 32, %v3194
        %v3196 = vshll.u32 %v3187, %v3194
        %v3197 = vshrl.u32 %v3179, %v3195
        %v3198 = vor.u32 %v3196, %v3197
        %v3199 = vsub.s32 4294967266, %v3194
        %v3200 = vadd.s32 %v3199, 127
        %v3201 = vshll.u32 %v3200, 23
        %v3202 = vor.u32 4788187, %v3201
        %v3203 = vand.u32 2147483647, %v3202
        %v3205 = vcvt.s32.f32 %v3198
        %v3206 = vmul.f32 %v3205, %v3203
        %v3207 = vxor.u32 %v3206, 2147483648
        %v3208 = vsel %vm3125, %v3207, %v3206
        %v3209 = vsub.s32 4, %v3185
        %v3210 = vsel %vm3125, %v3209, %v3185
        %v3211 = vsel %vm3124, %v1977, %v3208
        %v3212 = vsel %vm3124, 0, %v3210
        %v3213 = vcosq.f32.pop %v3211
        %v3214 = vsinq.f32.pop %v3211
        %vm3215 = vweird.f32 %v1977
        %v3216 = vadd.s32 %v3212, 3
        %v3217 = vand.u32 %v3216, 3
        %vm3218 = vcmp.lt.s32.totalorder %v3217, 2
        %vm3219 = vcmp.eq.s32.totalorder %v3217, 0
        %v3220 = vxor.u32 %v3214, 2147483648
        %v3221 = vsel %vm3219, %v3213, %v3220
        %vm3222 = vcmp.eq.s32.totalorder %v3217, 2
        %v3223 = vxor.u32 %v3213, 2147483648
        %v3224 = vsel %vm3222, %v3223, %v3214
        %v3225 = vsel %vm3218, %v3221, %v3224
        %v3226 = vsel %vm3215, nan, %v3225
        %v3227 = vmul.f32 %v2082, 0.17677669
        %v3228 = vmul.f32 %v2186, 0.17677669
        %v3229 = vmul.f32 %v2290, 0.17677669
        %v3230 = vmul.f32 %v2394, 0.17677669
        %v3231 = vmul.f32 %v2498, 0.17677669
        %v3232 = vmul.f32 %v2602, 0.17677669
        %v3233 = vmul.f32 %v2706, 0.17677669
        %v3234 = vmul.f32 %v2810, 0.17677669
        %v3235 = vmul.f32 %v2914, 0.17677669
        %v3236 = vmul.f32 %v3018, 0.17677669
        %v3237 = vmul.f32 %v3122, 0.17677669
        %v3238 = vmul.f32 %v3226, 0.17677669
        %v3239 = vld [vmem:[%s527] sm:$0xff]
        %v3240 = vld [vmem:[%s527 + $0x8] sm:$0xff]
        %v3241 = vld [vmem:[%s527 + $0x10] sm:$0xff]
        %v3242 = vld [vmem:[%s527 + $0x18] sm:$0xff]
        %v3243 = vld [vmem:[%s527 + $0x20] sm:$0xff]
        %v3244 = vld [vmem:[%s527 + $0x28] sm:$0xff]
        %vm3245 = vcmp.gt.f32.partialorder %v3239, 0.5
        %vm3246 = vcmp.gt.f32.partialorder %v3240, 0.5
        %vm3247 = vcmp.gt.f32.partialorder %v3241, 0.5
        %vm3248 = vcmp.gt.f32.partialorder %v3242, 0.5
        %vm3249 = vcmp.gt.f32.partialorder %v3243, 0.5
        %vm3250 = vcmp.gt.f32.partialorder %v3244, 0.5
        %v3251 = vsel %vm3245, 1, 0
        %v3252 = vsel %vm3246, 1, 0
        %v3253 = vsel %vm3247, 1, 0
        %v3254 = vsel %vm3248, 1, 0
        %v3255 = vsel %vm3249, 1, 0
        %v3256 = vsel %vm3250, 1, 0
        %3257 = vset.pattern.permute.xlu0 0
        %3258 = vperm.xlu0 %3257, %v3251
        %v3259 = vpop.permute.xlu0 %3258
        %3260 = vset.pattern.permute.xlu0 0
        %3261 = vperm.xlu0 %3260, %v3252
        %v3262 = vpop.permute.xlu0 %3261
        %3263 = vset.pattern.permute.xlu0 0
        %3264 = vperm.xlu0 %3263, %v3253
        %v3265 = vpop.permute.xlu0 %3264
        %3266 = vset.pattern.permute.xlu0 0
        %3267 = vperm.xlu0 %3266, %v3254
        %v3268 = vpop.permute.xlu0 %3267
        %3269 = vset.pattern.permute.xlu0 0
        %3270 = vperm.xlu0 %3269, %v3255
        %v3271 = vpop.permute.xlu0 %3270
        %3272 = vset.pattern.permute.xlu0 0
        %3273 = vperm.xlu0 %3272, %v3256
        %v3274 = vpop.permute.xlu0 %3273
        %vm3275 = vcmp.eq.s32.totalorder %v3259, 1
        %vm3276 = vcmp.eq.s32.totalorder %v3262, 1
        %vm3277 = vcmp.eq.s32.totalorder %v3265, 1
        %vm3278 = vcmp.eq.s32.totalorder %v3268, 1
        %vm3279 = vcmp.eq.s32.totalorder %v3271, 1
        %vm3280 = vcmp.eq.s32.totalorder %v3274, 1
        %v3281 = vsel %vm3275, 0.0, %v3227
        %v3282 = vsel %vm3275, 0.0, %v3228
        %v3283 = vsel %vm3276, 0.0, %v3229
        %v3284 = vsel %vm3276, 0.0, %v3230
        %v3285 = vsel %vm3277, 0.0, %v3231
        %v3286 = vsel %vm3277, 0.0, %v3232
        %v3287 = vsel %vm3278, 0.0, %v3233
        %v3288 = vsel %vm3278, 0.0, %v3234
        %v3289 = vsel %vm3279, 0.0, %v3235
        %v3290 = vsel %vm3279, 0.0, %v3236
        %v3291 = vsel %vm3280, 0.0, %v3237
        %v3292 = vsel %vm3280, 0.0, %v3238
        %3297 = vrot.lane.b32.xlu0 %v1852, 64
        %v3298 = vpop.permute.xlu0 %3297
        %3299 = vrot.lane.b32.xlu0 %v1854, 64
        %v3300 = vpop.permute.xlu0 %3299
        %3301 = vrot.lane.b32.xlu0 %v1856, 64
        %v3302 = vpop.permute.xlu0 %3301
        %3303 = vrot.lane.b32.xlu0 %v1858, 64
        %v3304 = vpop.permute.xlu0 %3303
        %3313 = vrot.lane.b32.xlu0 %v1853, 64
        %v3314 = vpop.permute.xlu0 %3313
        %3315 = vrot.lane.b32.xlu0 %v1855, 64
        %v3316 = vpop.permute.xlu0 %3315
        %3317 = vrot.lane.b32.xlu0 %v1857, 64
        %v3318 = vpop.permute.xlu0 %3317
        %3319 = vrot.lane.b32.xlu0 %v1859, 64
        %v3320 = vpop.permute.xlu0 %3319
        %v3325 = vcombine.low %v1852, %v1853
        %v3326 = vcombine.high %v1852, %v1853
        %v3328 = vunpack.c.l.s4 1983009808
        %v3329 = vunpack.c.0.s8 %v3328
        %v3330 = vlaneseq
        %v3331 = vshrl.u32 %v3330, 7
        %v3332 = vsub.s32 %v3329, %v3331
        %v3333 = vrot.slane %v3325, %v3332
        %v3335 = vunpack.c.l.s4 1983009808
        %v3336 = vunpack.c.0.s8 %v3335
        %v3337 = vlaneseq
        %v3338 = vshrl.u32 %v3337, 7
        %v3339 = vsub.s32 %v3336, %v3338
        %v3340 = vrot.slane %v3326, %v3339
        %v3341 = vcombine.low %v3298, %v3314
        %v3342 = vcombine.high %v3298, %v3314
        %v3344 = vunpack.c.l.s4 1983009808
        %v3345 = vunpack.c.0.s8 %v3344
        %v3346 = vlaneseq
        %v3347 = vshrl.u32 %v3346, 7
        %v3348 = vsub.s32 %v3345, %v3347
        %v3349 = vrot.slane %v3341, %v3348
        %v3351 = vunpack.c.l.s4 1983009808
        %v3352 = vunpack.c.0.s8 %v3351
        %v3353 = vlaneseq
        %v3354 = vshrl.u32 %v3353, 7
        %v3355 = vsub.s32 %v3352, %v3354
        %v3356 = vrot.slane %v3342, %v3355
        %v3357 = vcombine.low %v3333, %v3349
        %v3358 = vcombine.high %v3333, %v3349
        %v3360 = vunpack.c.l.s4 1934713408
        %v3361 = vunpack.c.0.s8 %v3360
        %v3362 = vlaneseq
        %v3363 = vshrl.u32 %v3362, 7
        %v3364 = vsub.s32 %v3361, %v3363
        %v3365 = vrot.slane %v3357, %v3364
        %v3367 = vunpack.c.l.s4 1934713408
        %v3368 = vunpack.c.0.s8 %v3367
        %v3369 = vlaneseq
        %v3370 = vshrl.u32 %v3369, 7
        %v3371 = vsub.s32 %v3368, %v3370
        %v3372 = vrot.slane %v3358, %v3371
        %v3373 = vcombine.low %v3340, %v3356
        %v3374 = vcombine.high %v3340, %v3356
        %v3376 = vunpack.c.l.s4 1934713408
        %v3377 = vunpack.c.0.s8 %v3376
        %v3378 = vlaneseq
        %v3379 = vshrl.u32 %v3378, 7
        %v3380 = vsub.s32 %v3377, %v3379
        %v3381 = vrot.slane %v3373, %v3380
        %v3383 = vunpack.c.l.s4 1934713408
        %v3384 = vunpack.c.0.s8 %v3383
        %v3385 = vlaneseq
        %v3386 = vshrl.u32 %v3385, 7
        %v3387 = vsub.s32 %v3384, %v3386
        %v3388 = vrot.slane %v3374, %v3387
        %v3389 = vcombine.high %v3365, 0.0
        %v3390 = vcombine.high %v3372, 0.0
        %v3391 = vcombine.high %v3381, 0.0
        %v3392 = vcombine.high %v3388, 0.0
        %v3393 = vcombine.low %v1854, %v1855
        %v3394 = vcombine.high %v1854, %v1855
        %v3396 = vunpack.c.l.s4 1983009808
        %v3397 = vunpack.c.0.s8 %v3396
        %v3398 = vlaneseq
        %v3399 = vshrl.u32 %v3398, 7
        %v3400 = vsub.s32 %v3397, %v3399
        %v3401 = vrot.slane %v3393, %v3400
        %v3403 = vunpack.c.l.s4 1983009808
        %v3404 = vunpack.c.0.s8 %v3403
        %v3405 = vlaneseq
        %v3406 = vshrl.u32 %v3405, 7
        %v3407 = vsub.s32 %v3404, %v3406
        %v3408 = vrot.slane %v3394, %v3407
        %v3409 = vcombine.low %v3300, %v3316
        %v3410 = vcombine.high %v3300, %v3316
        %v3412 = vunpack.c.l.s4 1983009808
        %v3413 = vunpack.c.0.s8 %v3412
        %v3414 = vlaneseq
        %v3415 = vshrl.u32 %v3414, 7
        %v3416 = vsub.s32 %v3413, %v3415
        %v3417 = vrot.slane %v3409, %v3416
        %v3419 = vunpack.c.l.s4 1983009808
        %v3420 = vunpack.c.0.s8 %v3419
        %v3421 = vlaneseq
        %v3422 = vshrl.u32 %v3421, 7
        %v3423 = vsub.s32 %v3420, %v3422
        %v3424 = vrot.slane %v3410, %v3423
        %v3425 = vcombine.low %v3401, %v3417
        %v3426 = vcombine.high %v3401, %v3417
        %v3428 = vunpack.c.l.s4 1934713408
        %v3429 = vunpack.c.0.s8 %v3428
        %v3430 = vlaneseq
        %v3431 = vshrl.u32 %v3430, 7
        %v3432 = vsub.s32 %v3429, %v3431
        %v3433 = vrot.slane %v3425, %v3432
        %v3435 = vunpack.c.l.s4 1934713408
        %v3436 = vunpack.c.0.s8 %v3435
        %v3437 = vlaneseq
        %v3438 = vshrl.u32 %v3437, 7
        %v3439 = vsub.s32 %v3436, %v3438
        %v3440 = vrot.slane %v3426, %v3439
        %v3441 = vcombine.low %v3408, %v3424
        %v3442 = vcombine.high %v3408, %v3424
        %v3444 = vunpack.c.l.s4 1934713408
        %v3445 = vunpack.c.0.s8 %v3444
        %v3446 = vlaneseq
        %v3447 = vshrl.u32 %v3446, 7
        %v3448 = vsub.s32 %v3445, %v3447
        %v3449 = vrot.slane %v3441, %v3448
        %v3451 = vunpack.c.l.s4 1934713408
        %v3452 = vunpack.c.0.s8 %v3451
        %v3453 = vlaneseq
        %v3454 = vshrl.u32 %v3453, 7
        %v3455 = vsub.s32 %v3452, %v3454
        %v3456 = vrot.slane %v3442, %v3455
        %v3457 = vcombine.high %v3433, 0.0
        %v3458 = vcombine.high %v3440, 0.0
        %v3459 = vcombine.high %v3449, 0.0
        %v3460 = vcombine.high %v3456, 0.0
        %v3461 = vcombine.low %v1856, %v1857
        %v3462 = vcombine.high %v1856, %v1857
        %v3464 = vunpack.c.l.s4 1983009808
        %v3465 = vunpack.c.0.s8 %v3464
        %v3466 = vlaneseq
        %v3467 = vshrl.u32 %v3466, 7
        %v3468 = vsub.s32 %v3465, %v3467
        %v3469 = vrot.slane %v3461, %v3468
        %v3471 = vunpack.c.l.s4 1983009808
        %v3472 = vunpack.c.0.s8 %v3471
        %v3473 = vlaneseq
        %v3474 = vshrl.u32 %v3473, 7
        %v3475 = vsub.s32 %v3472, %v3474
        %v3476 = vrot.slane %v3462, %v3475
        %v3477 = vcombine.low %v3302, %v3318
        %v3478 = vcombine.high %v3302, %v3318
        %v3480 = vunpack.c.l.s4 1983009808
        %v3481 = vunpack.c.0.s8 %v3480
        %v3482 = vlaneseq
        %v3483 = vshrl.u32 %v3482, 7
        %v3484 = vsub.s32 %v3481, %v3483
        %v3485 = vrot.slane %v3477, %v3484
        %v3487 = vunpack.c.l.s4 1983009808
        %v3488 = vunpack.c.0.s8 %v3487
        %v3489 = vlaneseq
        %v3490 = vshrl.u32 %v3489, 7
        %v3491 = vsub.s32 %v3488, %v3490
        %v3492 = vrot.slane %v3478, %v3491
        %v3493 = vcombine.low %v3469, %v3485
        %v3494 = vcombine.high %v3469, %v3485
        %v3496 = vunpack.c.l.s4 1934713408
        %v3497 = vunpack.c.0.s8 %v3496
        %v3498 = vlaneseq
        %v3499 = vshrl.u32 %v3498, 7
        %v3500 = vsub.s32 %v3497, %v3499
        %v3501 = vrot.slane %v3493, %v3500
        %v3503 = vunpack.c.l.s4 1934713408
        %v3504 = vunpack.c.0.s8 %v3503
        %v3505 = vlaneseq
        %v3506 = vshrl.u32 %v3505, 7
        %v3507 = vsub.s32 %v3504, %v3506
        %v3508 = vrot.slane %v3494, %v3507
        %v3509 = vcombine.low %v3476, %v3492
        %v3510 = vcombine.high %v3476, %v3492
        %v3512 = vunpack.c.l.s4 1934713408
        %v3513 = vunpack.c.0.s8 %v3512
        %v3514 = vlaneseq
        %v3515 = vshrl.u32 %v3514, 7
        %v3516 = vsub.s32 %v3513, %v3515
        %v3517 = vrot.slane %v3509, %v3516
        %v3519 = vunpack.c.l.s4 1934713408
        %v3520 = vunpack.c.0.s8 %v3519
        %v3521 = vlaneseq
        %v3522 = vshrl.u32 %v3521, 7
        %v3523 = vsub.s32 %v3520, %v3522
        %v3524 = vrot.slane %v3510, %v3523
        %v3525 = vcombine.high %v3501, 0.0
        %v3526 = vcombine.high %v3508, 0.0
        %v3527 = vcombine.high %v3517, 0.0
        %v3528 = vcombine.high %v3524, 0.0
        %v3529 = vcombine.low %v1858, %v1859
        %v3530 = vcombine.high %v1858, %v1859
        %v3532 = vunpack.c.l.s4 1983009808
        %v3533 = vunpack.c.0.s8 %v3532
        %v3534 = vlaneseq
        %v3535 = vshrl.u32 %v3534, 7
        %v3536 = vsub.s32 %v3533, %v3535
        %v3537 = vrot.slane %v3529, %v3536
        %v3539 = vunpack.c.l.s4 1983009808
        %v3540 = vunpack.c.0.s8 %v3539
        %v3541 = vlaneseq
        %v3542 = vshrl.u32 %v3541, 7
        %v3543 = vsub.s32 %v3540, %v3542
        %v3544 = vrot.slane %v3530, %v3543
        %v3545 = vcombine.low %v3304, %v3320
        %v3546 = vcombine.high %v3304, %v3320
        %v3548 = vunpack.c.l.s4 1983009808
        %v3549 = vunpack.c.0.s8 %v3548
        %v3550 = vlaneseq
        %v3551 = vshrl.u32 %v3550, 7
        %v3552 = vsub.s32 %v3549, %v3551
        %v3553 = vrot.slane %v3545, %v3552
        %v3555 = vunpack.c.l.s4 1983009808
        %v3556 = vunpack.c.0.s8 %v3555
        %v3557 = vlaneseq
        %v3558 = vshrl.u32 %v3557, 7
        %v3559 = vsub.s32 %v3556, %v3558
        %v3560 = vrot.slane %v3546, %v3559
        %v3561 = vcombine.low %v3537, %v3553
        %v3562 = vcombine.high %v3537, %v3553
        %v3564 = vunpack.c.l.s4 1934713408
        %v3565 = vunpack.c.0.s8 %v3564
        %v3566 = vlaneseq
        %v3567 = vshrl.u32 %v3566, 7
        %v3568 = vsub.s32 %v3565, %v3567
        %v3569 = vrot.slane %v3561, %v3568
        %v3571 = vunpack.c.l.s4 1934713408
        %v3572 = vunpack.c.0.s8 %v3571
        %v3573 = vlaneseq
        %v3574 = vshrl.u32 %v3573, 7
        %v3575 = vsub.s32 %v3572, %v3574
        %v3576 = vrot.slane %v3562, %v3575
        %v3577 = vcombine.low %v3544, %v3560
        %v3578 = vcombine.high %v3544, %v3560
        %v3580 = vunpack.c.l.s4 1934713408
        %v3581 = vunpack.c.0.s8 %v3580
        %v3582 = vlaneseq
        %v3583 = vshrl.u32 %v3582, 7
        %v3584 = vsub.s32 %v3581, %v3583
        %v3585 = vrot.slane %v3577, %v3584
        %v3587 = vunpack.c.l.s4 1934713408
        %v3588 = vunpack.c.0.s8 %v3587
        %v3589 = vlaneseq
        %v3590 = vshrl.u32 %v3589, 7
        %v3591 = vsub.s32 %v3588, %v3590
        %v3592 = vrot.slane %v3578, %v3591
        %v3593 = vcombine.high %v3569, 0.0
        %v3594 = vcombine.high %v3576, 0.0
        %v3595 = vcombine.high %v3585, 0.0
        %v3596 = vcombine.high %v3592, 0.0
        %v3597 = vcombine.low %v3365, %v3372
        %v3599 = vunpack.c.l.s4 1983009808
        %v3600 = vunpack.c.0.s8 %v3599
        %v3601 = vlaneseq
        %v3602 = vshrl.u32 %v3601, 7
        %v3603 = vsub.s32 %v3600, %v3602
        %v3604 = vrot.slane %v3597, %v3603
        %v3605 = vcombine.low %v3389, %v3390
        %v3607 = vunpack.c.l.s4 1983009808
        %v3608 = vunpack.c.0.s8 %v3607
        %v3609 = vlaneseq
        %v3610 = vshrl.u32 %v3609, 7
        %v3611 = vsub.s32 %v3608, %v3610
        %v3612 = vrot.slane %v3605, %v3611
        %v3613 = vcombine.low %v3381, %v3388
        %v3615 = vunpack.c.l.s4 1983009808
        %v3616 = vunpack.c.0.s8 %v3615
        %v3617 = vlaneseq
        %v3618 = vshrl.u32 %v3617, 7
        %v3619 = vsub.s32 %v3616, %v3618
        %v3620 = vrot.slane %v3613, %v3619
        %v3621 = vcombine.low %v3391, %v3392
        %v3623 = vunpack.c.l.s4 1983009808
        %v3624 = vunpack.c.0.s8 %v3623
        %v3625 = vlaneseq
        %v3626 = vshrl.u32 %v3625, 7
        %v3627 = vsub.s32 %v3624, %v3626
        %v3628 = vrot.slane %v3621, %v3627
        %v3629 = vcombine.low %v3604, %v3612
        %v3630 = vcombine.high %v3604, %v3612
        %v3632 = vunpack.c.l.s4 1934713408
        %v3633 = vunpack.c.0.s8 %v3632
        %v3634 = vlaneseq
        %v3635 = vshrl.u32 %v3634, 7
        %v3636 = vsub.s32 %v3633, %v3635
        %v3637 = vrot.slane %v3629, %v3636
        %v3639 = vunpack.c.l.s4 1934713408
        %v3640 = vunpack.c.0.s8 %v3639
        %v3641 = vlaneseq
        %v3642 = vshrl.u32 %v3641, 7
        %v3643 = vsub.s32 %v3640, %v3642
        %v3644 = vrot.slane %v3630, %v3643
        %v3645 = vcombine.low %v3620, %v3628
        %v3646 = vcombine.high %v3620, %v3628
        %v3648 = vunpack.c.l.s4 1934713408
        %v3649 = vunpack.c.0.s8 %v3648
        %v3650 = vlaneseq
        %v3651 = vshrl.u32 %v3650, 7
        %v3652 = vsub.s32 %v3649, %v3651
        %v3653 = vrot.slane %v3645, %v3652
        %v3655 = vunpack.c.l.s4 1934713408
        %v3656 = vunpack.c.0.s8 %v3655
        %v3657 = vlaneseq
        %v3658 = vshrl.u32 %v3657, 7
        %v3659 = vsub.s32 %v3656, %v3658
        %v3660 = vrot.slane %v3646, %v3659
        %v3661 = vcombine.low %v3637, %v3653
        %v3662 = vcombine.high %v3637, %v3653
        %v3663 = vcombine.low %v3644, %v3660
        %v3664 = vcombine.high %v3644, %v3660
        %v3665 = vcombine.low %v3433, %v3440
        %v3667 = vunpack.c.l.s4 1983009808
        %v3668 = vunpack.c.0.s8 %v3667
        %v3669 = vlaneseq
        %v3670 = vshrl.u32 %v3669, 7
        %v3671 = vsub.s32 %v3668, %v3670
        %v3672 = vrot.slane %v3665, %v3671
        %v3673 = vcombine.low %v3457, %v3458
        %v3675 = vunpack.c.l.s4 1983009808
        %v3676 = vunpack.c.0.s8 %v3675
        %v3677 = vlaneseq
        %v3678 = vshrl.u32 %v3677, 7
        %v3679 = vsub.s32 %v3676, %v3678
        %v3680 = vrot.slane %v3673, %v3679
        %v3681 = vcombine.low %v3449, %v3456
        %v3683 = vunpack.c.l.s4 1983009808
        %v3684 = vunpack.c.0.s8 %v3683
        %v3685 = vlaneseq
        %v3686 = vshrl.u32 %v3685, 7
        %v3687 = vsub.s32 %v3684, %v3686
        %v3688 = vrot.slane %v3681, %v3687
        %v3689 = vcombine.low %v3459, %v3460
        %v3691 = vunpack.c.l.s4 1983009808
        %v3692 = vunpack.c.0.s8 %v3691
        %v3693 = vlaneseq
        %v3694 = vshrl.u32 %v3693, 7
        %v3695 = vsub.s32 %v3692, %v3694
        %v3696 = vrot.slane %v3689, %v3695
        %v3697 = vcombine.low %v3672, %v3680
        %v3698 = vcombine.high %v3672, %v3680
        %v3700 = vunpack.c.l.s4 1934713408
        %v3701 = vunpack.c.0.s8 %v3700
        %v3702 = vlaneseq
        %v3703 = vshrl.u32 %v3702, 7
        %v3704 = vsub.s32 %v3701, %v3703
        %v3705 = vrot.slane %v3697, %v3704
        %v3707 = vunpack.c.l.s4 1934713408
        %v3708 = vunpack.c.0.s8 %v3707
        %v3709 = vlaneseq
        %v3710 = vshrl.u32 %v3709, 7
        %v3711 = vsub.s32 %v3708, %v3710
        %v3712 = vrot.slane %v3698, %v3711
        %v3713 = vcombine.low %v3688, %v3696
        %v3714 = vcombine.high %v3688, %v3696
        %v3716 = vunpack.c.l.s4 1934713408
        %v3717 = vunpack.c.0.s8 %v3716
        %v3718 = vlaneseq
        %v3719 = vshrl.u32 %v3718, 7
        %v3720 = vsub.s32 %v3717, %v3719
        %v3721 = vrot.slane %v3713, %v3720
        %v3723 = vunpack.c.l.s4 1934713408
        %v3724 = vunpack.c.0.s8 %v3723
        %v3725 = vlaneseq
        %v3726 = vshrl.u32 %v3725, 7
        %v3727 = vsub.s32 %v3724, %v3726
        %v3728 = vrot.slane %v3714, %v3727
        %v3729 = vcombine.low %v3705, %v3721
        %v3730 = vcombine.high %v3705, %v3721
        %v3731 = vcombine.low %v3712, %v3728
        %v3732 = vcombine.high %v3712, %v3728
        %v3733 = vcombine.low %v3501, %v3508
        %v3735 = vunpack.c.l.s4 1983009808
        %v3736 = vunpack.c.0.s8 %v3735
        %v3737 = vlaneseq
        %v3738 = vshrl.u32 %v3737, 7
        %v3739 = vsub.s32 %v3736, %v3738
        %v3740 = vrot.slane %v3733, %v3739
        %v3741 = vcombine.low %v3525, %v3526
        %v3743 = vunpack.c.l.s4 1983009808
        %v3744 = vunpack.c.0.s8 %v3743
        %v3745 = vlaneseq
        %v3746 = vshrl.u32 %v3745, 7
        %v3747 = vsub.s32 %v3744, %v3746
        %v3748 = vrot.slane %v3741, %v3747
        %v3749 = vcombine.low %v3517, %v3524
        %v3751 = vunpack.c.l.s4 1983009808
        %v3752 = vunpack.c.0.s8 %v3751
        %v3753 = vlaneseq
        %v3754 = vshrl.u32 %v3753, 7
        %v3755 = vsub.s32 %v3752, %v3754
        %v3756 = vrot.slane %v3749, %v3755
        %v3757 = vcombine.low %v3527, %v3528
        %v3759 = vunpack.c.l.s4 1983009808
        %v3760 = vunpack.c.0.s8 %v3759
        %v3761 = vlaneseq
        %v3762 = vshrl.u32 %v3761, 7
        %v3763 = vsub.s32 %v3760, %v3762
        %v3764 = vrot.slane %v3757, %v3763
        %v3765 = vcombine.low %v3740, %v3748
        %v3766 = vcombine.high %v3740, %v3748
        %v3768 = vunpack.c.l.s4 1934713408
        %v3769 = vunpack.c.0.s8 %v3768
        %v3770 = vlaneseq
        %v3771 = vshrl.u32 %v3770, 7
        %v3772 = vsub.s32 %v3769, %v3771
        %v3773 = vrot.slane %v3765, %v3772
        %v3775 = vunpack.c.l.s4 1934713408
        %v3776 = vunpack.c.0.s8 %v3775
        %v3777 = vlaneseq
        %v3778 = vshrl.u32 %v3777, 7
        %v3779 = vsub.s32 %v3776, %v3778
        %v3780 = vrot.slane %v3766, %v3779
        %v3781 = vcombine.low %v3756, %v3764
        %v3782 = vcombine.high %v3756, %v3764
        %v3784 = vunpack.c.l.s4 1934713408
        %v3785 = vunpack.c.0.s8 %v3784
        %v3786 = vlaneseq
        %v3787 = vshrl.u32 %v3786, 7
        %v3788 = vsub.s32 %v3785, %v3787
        %v3789 = vrot.slane %v3781, %v3788
        %v3791 = vunpack.c.l.s4 1934713408
        %v3792 = vunpack.c.0.s8 %v3791
        %v3793 = vlaneseq
        %v3794 = vshrl.u32 %v3793, 7
        %v3795 = vsub.s32 %v3792, %v3794
        %v3796 = vrot.slane %v3782, %v3795
        %v3797 = vcombine.low %v3773, %v3789
        %v3798 = vcombine.high %v3773, %v3789
        %v3799 = vcombine.low %v3780, %v3796
        %v3800 = vcombine.high %v3780, %v3796
        %v3801 = vcombine.low %v3569, %v3576
        %v3803 = vunpack.c.l.s4 1983009808
        %v3804 = vunpack.c.0.s8 %v3803
        %v3805 = vlaneseq
        %v3806 = vshrl.u32 %v3805, 7
        %v3807 = vsub.s32 %v3804, %v3806
        %v3808 = vrot.slane %v3801, %v3807
        %v3809 = vcombine.low %v3593, %v3594
        %v3811 = vunpack.c.l.s4 1983009808
        %v3812 = vunpack.c.0.s8 %v3811
        %v3813 = vlaneseq
        %v3814 = vshrl.u32 %v3813, 7
        %v3815 = vsub.s32 %v3812, %v3814
        %v3816 = vrot.slane %v3809, %v3815
        %v3817 = vcombine.low %v3585, %v3592
        %v3819 = vunpack.c.l.s4 1983009808
        %v3820 = vunpack.c.0.s8 %v3819
        %v3821 = vlaneseq
        %v3822 = vshrl.u32 %v3821, 7
        %v3823 = vsub.s32 %v3820, %v3822
        %v3824 = vrot.slane %v3817, %v3823
        %v3825 = vcombine.low %v3595, %v3596
        %v3827 = vunpack.c.l.s4 1983009808
        %v3828 = vunpack.c.0.s8 %v3827
        %v3829 = vlaneseq
        %v3830 = vshrl.u32 %v3829, 7
        %v3831 = vsub.s32 %v3828, %v3830
        %v3832 = vrot.slane %v3825, %v3831
        %v3833 = vcombine.low %v3808, %v3816
        %v3834 = vcombine.high %v3808, %v3816
        %v3836 = vunpack.c.l.s4 1934713408
        %v3837 = vunpack.c.0.s8 %v3836
        %v3838 = vlaneseq
        %v3839 = vshrl.u32 %v3838, 7
        %v3840 = vsub.s32 %v3837, %v3839
        %v3841 = vrot.slane %v3833, %v3840
        %v3843 = vunpack.c.l.s4 1934713408
        %v3844 = vunpack.c.0.s8 %v3843
        %v3845 = vlaneseq
        %v3846 = vshrl.u32 %v3845, 7
        %v3847 = vsub.s32 %v3844, %v3846
        %v3848 = vrot.slane %v3834, %v3847
        %v3849 = vcombine.low %v3824, %v3832
        %v3850 = vcombine.high %v3824, %v3832
        %v3852 = vunpack.c.l.s4 1934713408
        %v3853 = vunpack.c.0.s8 %v3852
        %v3854 = vlaneseq
        %v3855 = vshrl.u32 %v3854, 7
        %v3856 = vsub.s32 %v3853, %v3855
        %v3857 = vrot.slane %v3849, %v3856
        %v3859 = vunpack.c.l.s4 1934713408
        %v3860 = vunpack.c.0.s8 %v3859
        %v3861 = vlaneseq
        %v3862 = vshrl.u32 %v3861, 7
        %v3863 = vsub.s32 %v3860, %v3862
        %v3864 = vrot.slane %v3850, %v3863
        %v3865 = vcombine.low %v3841, %v3857
        %v3866 = vcombine.high %v3841, %v3857
        %v3867 = vcombine.low %v3848, %v3864
        %v3868 = vcombine.high %v3848, %v3864
        %3875 = vrot.lane.b32.xlu0 %v3281, 64
        %v3876 = vpop.permute.xlu0 %3875
        %3877 = vrot.lane.b32.xlu0 %v3283, 64
        %v3878 = vpop.permute.xlu0 %3877
        %3879 = vrot.lane.b32.xlu0 %v3285, 64
        %v3880 = vpop.permute.xlu0 %3879
        %3881 = vrot.lane.b32.xlu0 %v3287, 64
        %v3882 = vpop.permute.xlu0 %3881
        %3883 = vrot.lane.b32.xlu0 %v3289, 64
        %v3884 = vpop.permute.xlu0 %3883
        %3885 = vrot.lane.b32.xlu0 %v3291, 64
        %v3886 = vpop.permute.xlu0 %3885
        %3899 = vrot.lane.b32.xlu0 %v3282, 64
        %v3900 = vpop.permute.xlu0 %3899
        %3901 = vrot.lane.b32.xlu0 %v3284, 64
        %v3902 = vpop.permute.xlu0 %3901
        %3903 = vrot.lane.b32.xlu0 %v3286, 64
        %v3904 = vpop.permute.xlu0 %3903
        %3905 = vrot.lane.b32.xlu0 %v3288, 64
        %v3906 = vpop.permute.xlu0 %3905
        %3907 = vrot.lane.b32.xlu0 %v3290, 64
        %v3908 = vpop.permute.xlu0 %3907
        %3909 = vrot.lane.b32.xlu0 %v3292, 64
        %v3910 = vpop.permute.xlu0 %3909
        %v3917 = vcombine.low %v3281, %v3282
        %v3918 = vcombine.high %v3281, %v3282
        %v3920 = vunpack.c.l.s4 1983009808
        %v3921 = vunpack.c.0.s8 %v3920
        %v3922 = vlaneseq
        %v3923 = vshrl.u32 %v3922, 7
        %v3924 = vsub.s32 %v3921, %v3923
        %v3925 = vrot.slane %v3917, %v3924
        %v3927 = vunpack.c.l.s4 1983009808
        %v3928 = vunpack.c.0.s8 %v3927
        %v3929 = vlaneseq
        %v3930 = vshrl.u32 %v3929, 7
        %v3931 = vsub.s32 %v3928, %v3930
        %v3932 = vrot.slane %v3918, %v3931
        %v3933 = vcombine.low %v3876, %v3900
        %v3934 = vcombine.high %v3876, %v3900
        %v3936 = vunpack.c.l.s4 1983009808
        %v3937 = vunpack.c.0.s8 %v3936
        %v3938 = vlaneseq
        %v3939 = vshrl.u32 %v3938, 7
        %v3940 = vsub.s32 %v3937, %v3939
        %v3941 = vrot.slane %v3933, %v3940
        %v3943 = vunpack.c.l.s4 1983009808
        %v3944 = vunpack.c.0.s8 %v3943
        %v3945 = vlaneseq
        %v3946 = vshrl.u32 %v3945, 7
        %v3947 = vsub.s32 %v3944, %v3946
        %v3948 = vrot.slane %v3934, %v3947
        %v3949 = vcombine.low %v3925, %v3941
        %v3950 = vcombine.high %v3925, %v3941
        %v3952 = vunpack.c.l.s4 1934713408
        %v3953 = vunpack.c.0.s8 %v3952
        %v3954 = vlaneseq
        %v3955 = vshrl.u32 %v3954, 7
        %v3956 = vsub.s32 %v3953, %v3955
        %v3957 = vrot.slane %v3949, %v3956
        %v3959 = vunpack.c.l.s4 1934713408
        %v3960 = vunpack.c.0.s8 %v3959
        %v3961 = vlaneseq
        %v3962 = vshrl.u32 %v3961, 7
        %v3963 = vsub.s32 %v3960, %v3962
        %v3964 = vrot.slane %v3950, %v3963
        %v3965 = vcombine.low %v3932, %v3948
        %v3966 = vcombine.high %v3932, %v3948
        %v3968 = vunpack.c.l.s4 1934713408
        %v3969 = vunpack.c.0.s8 %v3968
        %v3970 = vlaneseq
        %v3971 = vshrl.u32 %v3970, 7
        %v3972 = vsub.s32 %v3969, %v3971
        %v3973 = vrot.slane %v3965, %v3972
        %v3975 = vunpack.c.l.s4 1934713408
        %v3976 = vunpack.c.0.s8 %v3975
        %v3977 = vlaneseq
        %v3978 = vshrl.u32 %v3977, 7
        %v3979 = vsub.s32 %v3976, %v3978
        %v3980 = vrot.slane %v3966, %v3979
        %v3981 = vcombine.high %v3957, 0.0
        %v3982 = vcombine.high %v3964, 0.0
        %v3983 = vcombine.high %v3973, 0.0
        %v3984 = vcombine.high %v3980, 0.0
        %v3985 = vcombine.low %v3283, %v3284
        %v3986 = vcombine.high %v3283, %v3284
        %v3988 = vunpack.c.l.s4 1983009808
        %v3989 = vunpack.c.0.s8 %v3988
        %v3990 = vlaneseq
        %v3991 = vshrl.u32 %v3990, 7
        %v3992 = vsub.s32 %v3989, %v3991
        %v3993 = vrot.slane %v3985, %v3992
        %v3995 = vunpack.c.l.s4 1983009808
        %v3996 = vunpack.c.0.s8 %v3995
        %v3997 = vlaneseq
        %v3998 = vshrl.u32 %v3997, 7
        %v3999 = vsub.s32 %v3996, %v3998
        %v4000 = vrot.slane %v3986, %v3999
        %v4001 = vcombine.low %v3878, %v3902
        %v4002 = vcombine.high %v3878, %v3902
        %v4004 = vunpack.c.l.s4 1983009808
        %v4005 = vunpack.c.0.s8 %v4004
        %v4006 = vlaneseq
        %v4007 = vshrl.u32 %v4006, 7
        %v4008 = vsub.s32 %v4005, %v4007
        %v4009 = vrot.slane %v4001, %v4008
        %v4011 = vunpack.c.l.s4 1983009808
        %v4012 = vunpack.c.0.s8 %v4011
        %v4013 = vlaneseq
        %v4014 = vshrl.u32 %v4013, 7
        %v4015 = vsub.s32 %v4012, %v4014
        %v4016 = vrot.slane %v4002, %v4015
        %v4017 = vcombine.low %v3993, %v4009
        %v4018 = vcombine.high %v3993, %v4009
        %v4020 = vunpack.c.l.s4 1934713408
        %v4021 = vunpack.c.0.s8 %v4020
        %v4022 = vlaneseq
        %v4023 = vshrl.u32 %v4022, 7
        %v4024 = vsub.s32 %v4021, %v4023
        %v4025 = vrot.slane %v4017, %v4024
        %v4027 = vunpack.c.l.s4 1934713408
        %v4028 = vunpack.c.0.s8 %v4027
        %v4029 = vlaneseq
        %v4030 = vshrl.u32 %v4029, 7
        %v4031 = vsub.s32 %v4028, %v4030
        %v4032 = vrot.slane %v4018, %v4031
        %v4033 = vcombine.low %v4000, %v4016
        %v4034 = vcombine.high %v4000, %v4016
        %v4036 = vunpack.c.l.s4 1934713408
        %v4037 = vunpack.c.0.s8 %v4036
        %v4038 = vlaneseq
        %v4039 = vshrl.u32 %v4038, 7
        %v4040 = vsub.s32 %v4037, %v4039
        %v4041 = vrot.slane %v4033, %v4040
        %v4043 = vunpack.c.l.s4 1934713408
        %v4044 = vunpack.c.0.s8 %v4043
        %v4045 = vlaneseq
        %v4046 = vshrl.u32 %v4045, 7
        %v4047 = vsub.s32 %v4044, %v4046
        %v4048 = vrot.slane %v4034, %v4047
        %v4049 = vcombine.high %v4025, 0.0
        %v4050 = vcombine.high %v4032, 0.0
        %v4051 = vcombine.high %v4041, 0.0
        %v4052 = vcombine.high %v4048, 0.0
        %v4053 = vcombine.low %v3285, %v3286
        %v4054 = vcombine.high %v3285, %v3286
        %v4056 = vunpack.c.l.s4 1983009808
        %v4057 = vunpack.c.0.s8 %v4056
        %v4058 = vlaneseq
        %v4059 = vshrl.u32 %v4058, 7
        %v4060 = vsub.s32 %v4057, %v4059
        %v4061 = vrot.slane %v4053, %v4060
        %v4063 = vunpack.c.l.s4 1983009808
        %v4064 = vunpack.c.0.s8 %v4063
        %v4065 = vlaneseq
        %v4066 = vshrl.u32 %v4065, 7
        %v4067 = vsub.s32 %v4064, %v4066
        %v4068 = vrot.slane %v4054, %v4067
        %v4069 = vcombine.low %v3880, %v3904
        %v4070 = vcombine.high %v3880, %v3904
        %v4072 = vunpack.c.l.s4 1983009808
        %v4073 = vunpack.c.0.s8 %v4072
        %v4074 = vlaneseq
        %v4075 = vshrl.u32 %v4074, 7
        %v4076 = vsub.s32 %v4073, %v4075
        %v4077 = vrot.slane %v4069, %v4076
        %v4079 = vunpack.c.l.s4 1983009808
        %v4080 = vunpack.c.0.s8 %v4079
        %v4081 = vlaneseq
        %v4082 = vshrl.u32 %v4081, 7
        %v4083 = vsub.s32 %v4080, %v4082
        %v4084 = vrot.slane %v4070, %v4083
        %v4085 = vcombine.low %v4061, %v4077
        %v4086 = vcombine.high %v4061, %v4077
        %v4088 = vunpack.c.l.s4 1934713408
        %v4089 = vunpack.c.0.s8 %v4088
        %v4090 = vlaneseq
        %v4091 = vshrl.u32 %v4090, 7
        %v4092 = vsub.s32 %v4089, %v4091
        %v4093 = vrot.slane %v4085, %v4092
        %v4095 = vunpack.c.l.s4 1934713408
        %v4096 = vunpack.c.0.s8 %v4095
        %v4097 = vlaneseq
        %v4098 = vshrl.u32 %v4097, 7
        %v4099 = vsub.s32 %v4096, %v4098
        %v4100 = vrot.slane %v4086, %v4099
        %v4101 = vcombine.low %v4068, %v4084
        %v4102 = vcombine.high %v4068, %v4084
        %v4104 = vunpack.c.l.s4 1934713408
        %v4105 = vunpack.c.0.s8 %v4104
        %v4106 = vlaneseq
        %v4107 = vshrl.u32 %v4106, 7
        %v4108 = vsub.s32 %v4105, %v4107
        %v4109 = vrot.slane %v4101, %v4108
        %v4111 = vunpack.c.l.s4 1934713408
        %v4112 = vunpack.c.0.s8 %v4111
        %v4113 = vlaneseq
        %v4114 = vshrl.u32 %v4113, 7
        %v4115 = vsub.s32 %v4112, %v4114
        %v4116 = vrot.slane %v4102, %v4115
        %v4117 = vcombine.high %v4093, 0.0
        %v4118 = vcombine.high %v4100, 0.0
        %v4119 = vcombine.high %v4109, 0.0
        %v4120 = vcombine.high %v4116, 0.0
        %v4121 = vcombine.low %v3287, %v3288
        %v4122 = vcombine.high %v3287, %v3288
        %v4124 = vunpack.c.l.s4 1983009808
        %v4125 = vunpack.c.0.s8 %v4124
        %v4126 = vlaneseq
        %v4127 = vshrl.u32 %v4126, 7
        %v4128 = vsub.s32 %v4125, %v4127
        %v4129 = vrot.slane %v4121, %v4128
        %v4131 = vunpack.c.l.s4 1983009808
        %v4132 = vunpack.c.0.s8 %v4131
        %v4133 = vlaneseq
        %v4134 = vshrl.u32 %v4133, 7
        %v4135 = vsub.s32 %v4132, %v4134
        %v4136 = vrot.slane %v4122, %v4135
        %v4137 = vcombine.low %v3882, %v3906
        %v4138 = vcombine.high %v3882, %v3906
        %v4140 = vunpack.c.l.s4 1983009808
        %v4141 = vunpack.c.0.s8 %v4140
        %v4142 = vlaneseq
        %v4143 = vshrl.u32 %v4142, 7
        %v4144 = vsub.s32 %v4141, %v4143
        %v4145 = vrot.slane %v4137, %v4144
        %v4147 = vunpack.c.l.s4 1983009808
        %v4148 = vunpack.c.0.s8 %v4147
        %v4149 = vlaneseq
        %v4150 = vshrl.u32 %v4149, 7
        %v4151 = vsub.s32 %v4148, %v4150
        %v4152 = vrot.slane %v4138, %v4151
        %v4153 = vcombine.low %v4129, %v4145
        %v4154 = vcombine.high %v4129, %v4145
        %v4156 = vunpack.c.l.s4 1934713408
        %v4157 = vunpack.c.0.s8 %v4156
        %v4158 = vlaneseq
        %v4159 = vshrl.u32 %v4158, 7
        %v4160 = vsub.s32 %v4157, %v4159
        %v4161 = vrot.slane %v4153, %v4160
        %v4163 = vunpack.c.l.s4 1934713408
        %v4164 = vunpack.c.0.s8 %v4163
        %v4165 = vlaneseq
        %v4166 = vshrl.u32 %v4165, 7
        %v4167 = vsub.s32 %v4164, %v4166
        %v4168 = vrot.slane %v4154, %v4167
        %v4169 = vcombine.low %v4136, %v4152
        %v4170 = vcombine.high %v4136, %v4152
        %v4172 = vunpack.c.l.s4 1934713408
        %v4173 = vunpack.c.0.s8 %v4172
        %v4174 = vlaneseq
        %v4175 = vshrl.u32 %v4174, 7
        %v4176 = vsub.s32 %v4173, %v4175
        %v4177 = vrot.slane %v4169, %v4176
        %v4179 = vunpack.c.l.s4 1934713408
        %v4180 = vunpack.c.0.s8 %v4179
        %v4181 = vlaneseq
        %v4182 = vshrl.u32 %v4181, 7
        %v4183 = vsub.s32 %v4180, %v4182
        %v4184 = vrot.slane %v4170, %v4183
        %v4185 = vcombine.high %v4161, 0.0
        %v4186 = vcombine.high %v4168, 0.0
        %v4187 = vcombine.high %v4177, 0.0
        %v4188 = vcombine.high %v4184, 0.0
        %v4189 = vcombine.low %v3289, %v3290
        %v4190 = vcombine.high %v3289, %v3290
        %v4192 = vunpack.c.l.s4 1983009808
        %v4193 = vunpack.c.0.s8 %v4192
        %v4194 = vlaneseq
        %v4195 = vshrl.u32 %v4194, 7
        %v4196 = vsub.s32 %v4193, %v4195
        %v4197 = vrot.slane %v4189, %v4196
        %v4199 = vunpack.c.l.s4 1983009808
        %v4200 = vunpack.c.0.s8 %v4199
        %v4201 = vlaneseq
        %v4202 = vshrl.u32 %v4201, 7
        %v4203 = vsub.s32 %v4200, %v4202
        %v4204 = vrot.slane %v4190, %v4203
        %v4205 = vcombine.low %v3884, %v3908
        %v4206 = vcombine.high %v3884, %v3908
        %v4208 = vunpack.c.l.s4 1983009808
        %v4209 = vunpack.c.0.s8 %v4208
        %v4210 = vlaneseq
        %v4211 = vshrl.u32 %v4210, 7
        %v4212 = vsub.s32 %v4209, %v4211
        %v4213 = vrot.slane %v4205, %v4212
        %v4215 = vunpack.c.l.s4 1983009808
        %v4216 = vunpack.c.0.s8 %v4215
        %v4217 = vlaneseq
        %v4218 = vshrl.u32 %v4217, 7
        %v4219 = vsub.s32 %v4216, %v4218
        %v4220 = vrot.slane %v4206, %v4219
        %v4221 = vcombine.low %v4197, %v4213
        %v4222 = vcombine.high %v4197, %v4213
        %v4224 = vunpack.c.l.s4 1934713408
        %v4225 = vunpack.c.0.s8 %v4224
        %v4226 = vlaneseq
        %v4227 = vshrl.u32 %v4226, 7
        %v4228 = vsub.s32 %v4225, %v4227
        %v4229 = vrot.slane %v4221, %v4228
        %v4231 = vunpack.c.l.s4 1934713408
        %v4232 = vunpack.c.0.s8 %v4231
        %v4233 = vlaneseq
        %v4234 = vshrl.u32 %v4233, 7
        %v4235 = vsub.s32 %v4232, %v4234
        %v4236 = vrot.slane %v4222, %v4235
        %v4237 = vcombine.low %v4204, %v4220
        %v4238 = vcombine.high %v4204, %v4220
        %v4240 = vunpack.c.l.s4 1934713408
        %v4241 = vunpack.c.0.s8 %v4240
        %v4242 = vlaneseq
        %v4243 = vshrl.u32 %v4242, 7
        %v4244 = vsub.s32 %v4241, %v4243
        %v4245 = vrot.slane %v4237, %v4244
        %v4247 = vunpack.c.l.s4 1934713408
        %v4248 = vunpack.c.0.s8 %v4247
        %v4249 = vlaneseq
        %v4250 = vshrl.u32 %v4249, 7
        %v4251 = vsub.s32 %v4248, %v4250
        %v4252 = vrot.slane %v4238, %v4251
        %v4253 = vcombine.high %v4229, 0.0
        %v4254 = vcombine.high %v4236, 0.0
        %v4255 = vcombine.high %v4245, 0.0
        %v4256 = vcombine.high %v4252, 0.0
        %v4257 = vcombine.low %v3291, %v3292
        %v4258 = vcombine.high %v3291, %v3292
        %v4260 = vunpack.c.l.s4 1983009808
        %v4261 = vunpack.c.0.s8 %v4260
        %v4262 = vlaneseq
        %v4263 = vshrl.u32 %v4262, 7
        %v4264 = vsub.s32 %v4261, %v4263
        %v4265 = vrot.slane %v4257, %v4264
        %v4267 = vunpack.c.l.s4 1983009808
        %v4268 = vunpack.c.0.s8 %v4267
        %v4269 = vlaneseq
        %v4270 = vshrl.u32 %v4269, 7
        %v4271 = vsub.s32 %v4268, %v4270
        %v4272 = vrot.slane %v4258, %v4271
        %v4273 = vcombine.low %v3886, %v3910
        %v4274 = vcombine.high %v3886, %v3910
        %v4276 = vunpack.c.l.s4 1983009808
        %v4277 = vunpack.c.0.s8 %v4276
        %v4278 = vlaneseq
        %v4279 = vshrl.u32 %v4278, 7
        %v4280 = vsub.s32 %v4277, %v4279
        %v4281 = vrot.slane %v4273, %v4280
        %v4283 = vunpack.c.l.s4 1983009808
        %v4284 = vunpack.c.0.s8 %v4283
        %v4285 = vlaneseq
        %v4286 = vshrl.u32 %v4285, 7
        %v4287 = vsub.s32 %v4284, %v4286
        %v4288 = vrot.slane %v4274, %v4287
        %v4289 = vcombine.low %v4265, %v4281
        %v4290 = vcombine.high %v4265, %v4281
        %v4292 = vunpack.c.l.s4 1934713408
        %v4293 = vunpack.c.0.s8 %v4292
        %v4294 = vlaneseq
        %v4295 = vshrl.u32 %v4294, 7
        %v4296 = vsub.s32 %v4293, %v4295
        %v4297 = vrot.slane %v4289, %v4296
        %v4299 = vunpack.c.l.s4 1934713408
        %v4300 = vunpack.c.0.s8 %v4299
        %v4301 = vlaneseq
        %v4302 = vshrl.u32 %v4301, 7
        %v4303 = vsub.s32 %v4300, %v4302
        %v4304 = vrot.slane %v4290, %v4303
        %v4305 = vcombine.low %v4272, %v4288
        %v4306 = vcombine.high %v4272, %v4288
        %v4308 = vunpack.c.l.s4 1934713408
        %v4309 = vunpack.c.0.s8 %v4308
        %v4310 = vlaneseq
        %v4311 = vshrl.u32 %v4310, 7
        %v4312 = vsub.s32 %v4309, %v4311
        %v4313 = vrot.slane %v4305, %v4312
        %v4315 = vunpack.c.l.s4 1934713408
        %v4316 = vunpack.c.0.s8 %v4315
        %v4317 = vlaneseq
        %v4318 = vshrl.u32 %v4317, 7
        %v4319 = vsub.s32 %v4316, %v4318
        %v4320 = vrot.slane %v4306, %v4319
        %v4321 = vcombine.high %v4297, 0.0
        %v4322 = vcombine.high %v4304, 0.0
        %v4323 = vcombine.high %v4313, 0.0
        %v4324 = vcombine.high %v4320, 0.0
        %v4325 = vcombine.low %v3957, %v3964
        %v4327 = vunpack.c.l.s4 1983009808
        %v4328 = vunpack.c.0.s8 %v4327
        %v4329 = vlaneseq
        %v4330 = vshrl.u32 %v4329, 7
        %v4331 = vsub.s32 %v4328, %v4330
        %v4332 = vrot.slane %v4325, %v4331
        %v4333 = vcombine.low %v3981, %v3982
        %v4335 = vunpack.c.l.s4 1983009808
        %v4336 = vunpack.c.0.s8 %v4335
        %v4337 = vlaneseq
        %v4338 = vshrl.u32 %v4337, 7
        %v4339 = vsub.s32 %v4336, %v4338
        %v4340 = vrot.slane %v4333, %v4339
        %v4341 = vcombine.low %v3973, %v3980
        %v4343 = vunpack.c.l.s4 1983009808
        %v4344 = vunpack.c.0.s8 %v4343
        %v4345 = vlaneseq
        %v4346 = vshrl.u32 %v4345, 7
        %v4347 = vsub.s32 %v4344, %v4346
        %v4348 = vrot.slane %v4341, %v4347
        %v4349 = vcombine.low %v3983, %v3984
        %v4351 = vunpack.c.l.s4 1983009808
        %v4352 = vunpack.c.0.s8 %v4351
        %v4353 = vlaneseq
        %v4354 = vshrl.u32 %v4353, 7
        %v4355 = vsub.s32 %v4352, %v4354
        %v4356 = vrot.slane %v4349, %v4355
        %v4357 = vcombine.low %v4332, %v4340
        %v4358 = vcombine.high %v4332, %v4340
        %v4360 = vunpack.c.l.s4 1934713408
        %v4361 = vunpack.c.0.s8 %v4360
        %v4362 = vlaneseq
        %v4363 = vshrl.u32 %v4362, 7
        %v4364 = vsub.s32 %v4361, %v4363
        %v4365 = vrot.slane %v4357, %v4364
        %v4367 = vunpack.c.l.s4 1934713408
        %v4368 = vunpack.c.0.s8 %v4367
        %v4369 = vlaneseq
        %v4370 = vshrl.u32 %v4369, 7
        %v4371 = vsub.s32 %v4368, %v4370
        %v4372 = vrot.slane %v4358, %v4371
        %v4373 = vcombine.low %v4348, %v4356
        %v4374 = vcombine.high %v4348, %v4356
        %v4376 = vunpack.c.l.s4 1934713408
        %v4377 = vunpack.c.0.s8 %v4376
        %v4378 = vlaneseq
        %v4379 = vshrl.u32 %v4378, 7
        %v4380 = vsub.s32 %v4377, %v4379
        %v4381 = vrot.slane %v4373, %v4380
        %v4383 = vunpack.c.l.s4 1934713408
        %v4384 = vunpack.c.0.s8 %v4383
        %v4385 = vlaneseq
        %v4386 = vshrl.u32 %v4385, 7
        %v4387 = vsub.s32 %v4384, %v4386
        %v4388 = vrot.slane %v4374, %v4387
        %v4389 = vcombine.low %v4365, %v4381
        %v4390 = vcombine.high %v4365, %v4381
        %v4391 = vcombine.low %v4372, %v4388
        %v4392 = vcombine.high %v4372, %v4388
        %v4393 = vcombine.low %v4025, %v4032
        %v4395 = vunpack.c.l.s4 1983009808
        %v4396 = vunpack.c.0.s8 %v4395
        %v4397 = vlaneseq
        %v4398 = vshrl.u32 %v4397, 7
        %v4399 = vsub.s32 %v4396, %v4398
        %v4400 = vrot.slane %v4393, %v4399
        %v4401 = vcombine.low %v4049, %v4050
        %v4403 = vunpack.c.l.s4 1983009808
        %v4404 = vunpack.c.0.s8 %v4403
        %v4405 = vlaneseq
        %v4406 = vshrl.u32 %v4405, 7
        %v4407 = vsub.s32 %v4404, %v4406
        %v4408 = vrot.slane %v4401, %v4407
        %v4409 = vcombine.low %v4041, %v4048
        %v4411 = vunpack.c.l.s4 1983009808
        %v4412 = vunpack.c.0.s8 %v4411
        %v4413 = vlaneseq
        %v4414 = vshrl.u32 %v4413, 7
        %v4415 = vsub.s32 %v4412, %v4414
        %v4416 = vrot.slane %v4409, %v4415
        %v4417 = vcombine.low %v4051, %v4052
        %v4419 = vunpack.c.l.s4 1983009808
        %v4420 = vunpack.c.0.s8 %v4419
        %v4421 = vlaneseq
        %v4422 = vshrl.u32 %v4421, 7
        %v4423 = vsub.s32 %v4420, %v4422
        %v4424 = vrot.slane %v4417, %v4423
        %v4425 = vcombine.low %v4400, %v4408
        %v4426 = vcombine.high %v4400, %v4408
        %v4428 = vunpack.c.l.s4 1934713408
        %v4429 = vunpack.c.0.s8 %v4428
        %v4430 = vlaneseq
        %v4431 = vshrl.u32 %v4430, 7
        %v4432 = vsub.s32 %v4429, %v4431
        %v4433 = vrot.slane %v4425, %v4432
        %v4435 = vunpack.c.l.s4 1934713408
        %v4436 = vunpack.c.0.s8 %v4435
        %v4437 = vlaneseq
        %v4438 = vshrl.u32 %v4437, 7
        %v4439 = vsub.s32 %v4436, %v4438
        %v4440 = vrot.slane %v4426, %v4439
        %v4441 = vcombine.low %v4416, %v4424
        %v4442 = vcombine.high %v4416, %v4424
        %v4444 = vunpack.c.l.s4 1934713408
        %v4445 = vunpack.c.0.s8 %v4444
        %v4446 = vlaneseq
        %v4447 = vshrl.u32 %v4446, 7
        %v4448 = vsub.s32 %v4445, %v4447
        %v4449 = vrot.slane %v4441, %v4448
        %v4451 = vunpack.c.l.s4 1934713408
        %v4452 = vunpack.c.0.s8 %v4451
        %v4453 = vlaneseq
        %v4454 = vshrl.u32 %v4453, 7
        %v4455 = vsub.s32 %v4452, %v4454
        %v4456 = vrot.slane %v4442, %v4455
        %v4457 = vcombine.low %v4433, %v4449
        %v4458 = vcombine.high %v4433, %v4449
        %v4459 = vcombine.low %v4440, %v4456
        %v4460 = vcombine.high %v4440, %v4456
        %v4461 = vcombine.low %v4093, %v4100
        %v4463 = vunpack.c.l.s4 1983009808
        %v4464 = vunpack.c.0.s8 %v4463
        %v4465 = vlaneseq
        %v4466 = vshrl.u32 %v4465, 7
        %v4467 = vsub.s32 %v4464, %v4466
        %v4468 = vrot.slane %v4461, %v4467
        %v4469 = vcombine.low %v4117, %v4118
        %v4471 = vunpack.c.l.s4 1983009808
        %v4472 = vunpack.c.0.s8 %v4471
        %v4473 = vlaneseq
        %v4474 = vshrl.u32 %v4473, 7
        %v4475 = vsub.s32 %v4472, %v4474
        %v4476 = vrot.slane %v4469, %v4475
        %v4477 = vcombine.low %v4109, %v4116
        %v4479 = vunpack.c.l.s4 1983009808
        %v4480 = vunpack.c.0.s8 %v4479
        %v4481 = vlaneseq
        %v4482 = vshrl.u32 %v4481, 7
        %v4483 = vsub.s32 %v4480, %v4482
        %v4484 = vrot.slane %v4477, %v4483
        %v4485 = vcombine.low %v4119, %v4120
        %v4487 = vunpack.c.l.s4 1983009808
        %v4488 = vunpack.c.0.s8 %v4487
        %v4489 = vlaneseq
        %v4490 = vshrl.u32 %v4489, 7
        %v4491 = vsub.s32 %v4488, %v4490
        %v4492 = vrot.slane %v4485, %v4491
        %v4493 = vcombine.low %v4468, %v4476
        %v4494 = vcombine.high %v4468, %v4476
        %v4496 = vunpack.c.l.s4 1934713408
        %v4497 = vunpack.c.0.s8 %v4496
        %v4498 = vlaneseq
        %v4499 = vshrl.u32 %v4498, 7
        %v4500 = vsub.s32 %v4497, %v4499
        %v4501 = vrot.slane %v4493, %v4500
        %v4503 = vunpack.c.l.s4 1934713408
        %v4504 = vunpack.c.0.s8 %v4503
        %v4505 = vlaneseq
        %v4506 = vshrl.u32 %v4505, 7
        %v4507 = vsub.s32 %v4504, %v4506
        %v4508 = vrot.slane %v4494, %v4507
        %v4509 = vcombine.low %v4484, %v4492
        %v4510 = vcombine.high %v4484, %v4492
        %v4512 = vunpack.c.l.s4 1934713408
        %v4513 = vunpack.c.0.s8 %v4512
        %v4514 = vlaneseq
        %v4515 = vshrl.u32 %v4514, 7
        %v4516 = vsub.s32 %v4513, %v4515
        %v4517 = vrot.slane %v4509, %v4516
        %v4519 = vunpack.c.l.s4 1934713408
        %v4520 = vunpack.c.0.s8 %v4519
        %v4521 = vlaneseq
        %v4522 = vshrl.u32 %v4521, 7
        %v4523 = vsub.s32 %v4520, %v4522
        %v4524 = vrot.slane %v4510, %v4523
        %v4525 = vcombine.low %v4501, %v4517
        %v4526 = vcombine.high %v4501, %v4517
        %v4527 = vcombine.low %v4508, %v4524
        %v4528 = vcombine.high %v4508, %v4524
        %v4529 = vcombine.low %v4161, %v4168
        %v4531 = vunpack.c.l.s4 1983009808
        %v4532 = vunpack.c.0.s8 %v4531
        %v4533 = vlaneseq
        %v4534 = vshrl.u32 %v4533, 7
        %v4535 = vsub.s32 %v4532, %v4534
        %v4536 = vrot.slane %v4529, %v4535
        %v4537 = vcombine.low %v4185, %v4186
        %v4539 = vunpack.c.l.s4 1983009808
        %v4540 = vunpack.c.0.s8 %v4539
        %v4541 = vlaneseq
        %v4542 = vshrl.u32 %v4541, 7
        %v4543 = vsub.s32 %v4540, %v4542
        %v4544 = vrot.slane %v4537, %v4543
        %v4545 = vcombine.low %v4177, %v4184
        %v4547 = vunpack.c.l.s4 1983009808
        %v4548 = vunpack.c.0.s8 %v4547
        %v4549 = vlaneseq
        %v4550 = vshrl.u32 %v4549, 7
        %v4551 = vsub.s32 %v4548, %v4550
        %v4552 = vrot.slane %v4545, %v4551
        %v4553 = vcombine.low %v4187, %v4188
        %v4555 = vunpack.c.l.s4 1983009808
        %v4556 = vunpack.c.0.s8 %v4555
        %v4557 = vlaneseq
        %v4558 = vshrl.u32 %v4557, 7
        %v4559 = vsub.s32 %v4556, %v4558
        %v4560 = vrot.slane %v4553, %v4559
        %v4561 = vcombine.low %v4536, %v4544
        %v4562 = vcombine.high %v4536, %v4544
        %v4564 = vunpack.c.l.s4 1934713408
        %v4565 = vunpack.c.0.s8 %v4564
        %v4566 = vlaneseq
        %v4567 = vshrl.u32 %v4566, 7
        %v4568 = vsub.s32 %v4565, %v4567
        %v4569 = vrot.slane %v4561, %v4568
        %v4571 = vunpack.c.l.s4 1934713408
        %v4572 = vunpack.c.0.s8 %v4571
        %v4573 = vlaneseq
        %v4574 = vshrl.u32 %v4573, 7
        %v4575 = vsub.s32 %v4572, %v4574
        %v4576 = vrot.slane %v4562, %v4575
        %v4577 = vcombine.low %v4552, %v4560
        %v4578 = vcombine.high %v4552, %v4560
        %v4580 = vunpack.c.l.s4 1934713408
        %v4581 = vunpack.c.0.s8 %v4580
        %v4582 = vlaneseq
        %v4583 = vshrl.u32 %v4582, 7
        %v4584 = vsub.s32 %v4581, %v4583
        %v4585 = vrot.slane %v4577, %v4584
        %v4587 = vunpack.c.l.s4 1934713408
        %v4588 = vunpack.c.0.s8 %v4587
        %v4589 = vlaneseq
        %v4590 = vshrl.u32 %v4589, 7
        %v4591 = vsub.s32 %v4588, %v4590
        %v4592 = vrot.slane %v4578, %v4591
        %v4593 = vcombine.low %v4569, %v4585
        %v4594 = vcombine.high %v4569, %v4585
        %v4595 = vcombine.low %v4576, %v4592
        %v4596 = vcombine.high %v4576, %v4592
        %v4597 = vcombine.low %v4229, %v4236
        %v4599 = vunpack.c.l.s4 1983009808
        %v4600 = vunpack.c.0.s8 %v4599
        %v4601 = vlaneseq
        %v4602 = vshrl.u32 %v4601, 7
        %v4603 = vsub.s32 %v4600, %v4602
        %v4604 = vrot.slane %v4597, %v4603
        %v4605 = vcombine.low %v4253, %v4254
        %v4607 = vunpack.c.l.s4 1983009808
        %v4608 = vunpack.c.0.s8 %v4607
        %v4609 = vlaneseq
        %v4610 = vshrl.u32 %v4609, 7
        %v4611 = vsub.s32 %v4608, %v4610
        %v4612 = vrot.slane %v4605, %v4611
        %v4613 = vcombine.low %v4245, %v4252
        %v4615 = vunpack.c.l.s4 1983009808
        %v4616 = vunpack.c.0.s8 %v4615
        %v4617 = vlaneseq
        %v4618 = vshrl.u32 %v4617, 7
        %v4619 = vsub.s32 %v4616, %v4618
        %v4620 = vrot.slane %v4613, %v4619
        %v4621 = vcombine.low %v4255, %v4256
        %v4623 = vunpack.c.l.s4 1983009808
        %v4624 = vunpack.c.0.s8 %v4623
        %v4625 = vlaneseq
        %v4626 = vshrl.u32 %v4625, 7
        %v4627 = vsub.s32 %v4624, %v4626
        %v4628 = vrot.slane %v4621, %v4627
        %v4629 = vcombine.low %v4604, %v4612
        %v4630 = vcombine.high %v4604, %v4612
        %v4632 = vunpack.c.l.s4 1934713408
        %v4633 = vunpack.c.0.s8 %v4632
        %v4634 = vlaneseq
        %v4635 = vshrl.u32 %v4634, 7
        %v4636 = vsub.s32 %v4633, %v4635
        %v4637 = vrot.slane %v4629, %v4636
        %v4639 = vunpack.c.l.s4 1934713408
        %v4640 = vunpack.c.0.s8 %v4639
        %v4641 = vlaneseq
        %v4642 = vshrl.u32 %v4641, 7
        %v4643 = vsub.s32 %v4640, %v4642
        %v4644 = vrot.slane %v4630, %v4643
        %v4645 = vcombine.low %v4620, %v4628
        %v4646 = vcombine.high %v4620, %v4628
        %v4648 = vunpack.c.l.s4 1934713408
        %v4649 = vunpack.c.0.s8 %v4648
        %v4650 = vlaneseq
        %v4651 = vshrl.u32 %v4650, 7
        %v4652 = vsub.s32 %v4649, %v4651
        %v4653 = vrot.slane %v4645, %v4652
        %v4655 = vunpack.c.l.s4 1934713408
        %v4656 = vunpack.c.0.s8 %v4655
        %v4657 = vlaneseq
        %v4658 = vshrl.u32 %v4657, 7
        %v4659 = vsub.s32 %v4656, %v4658
        %v4660 = vrot.slane %v4646, %v4659
        %v4661 = vcombine.low %v4637, %v4653
        %v4662 = vcombine.high %v4637, %v4653
        %v4663 = vcombine.low %v4644, %v4660
        %v4664 = vcombine.high %v4644, %v4660
        %v4665 = vcombine.low %v4297, %v4304
        %v4667 = vunpack.c.l.s4 1983009808
        %v4668 = vunpack.c.0.s8 %v4667
        %v4669 = vlaneseq
        %v4670 = vshrl.u32 %v4669, 7
        %v4671 = vsub.s32 %v4668, %v4670
        %v4672 = vrot.slane %v4665, %v4671
        %v4673 = vcombine.low %v4321, %v4322
        %v4675 = vunpack.c.l.s4 1983009808
        %v4676 = vunpack.c.0.s8 %v4675
        %v4677 = vlaneseq
        %v4678 = vshrl.u32 %v4677, 7
        %v4679 = vsub.s32 %v4676, %v4678
        %v4680 = vrot.slane %v4673, %v4679
        %v4681 = vcombine.low %v4313, %v4320
        %v4683 = vunpack.c.l.s4 1983009808
        %v4684 = vunpack.c.0.s8 %v4683
        %v4685 = vlaneseq
        %v4686 = vshrl.u32 %v4685, 7
        %v4687 = vsub.s32 %v4684, %v4686
        %v4688 = vrot.slane %v4681, %v4687
        %v4689 = vcombine.low %v4323, %v4324
        %v4691 = vunpack.c.l.s4 1983009808
        %v4692 = vunpack.c.0.s8 %v4691
        %v4693 = vlaneseq
        %v4694 = vshrl.u32 %v4693, 7
        %v4695 = vsub.s32 %v4692, %v4694
        %v4696 = vrot.slane %v4689, %v4695
        %v4697 = vcombine.low %v4672, %v4680
        %v4698 = vcombine.high %v4672, %v4680
        %v4700 = vunpack.c.l.s4 1934713408
        %v4701 = vunpack.c.0.s8 %v4700
        %v4702 = vlaneseq
        %v4703 = vshrl.u32 %v4702, 7
        %v4704 = vsub.s32 %v4701, %v4703
        %v4705 = vrot.slane %v4697, %v4704
        %v4707 = vunpack.c.l.s4 1934713408
        %v4708 = vunpack.c.0.s8 %v4707
        %v4709 = vlaneseq
        %v4710 = vshrl.u32 %v4709, 7
        %v4711 = vsub.s32 %v4708, %v4710
        %v4712 = vrot.slane %v4698, %v4711
        %v4713 = vcombine.low %v4688, %v4696
        %v4714 = vcombine.high %v4688, %v4696
        %v4716 = vunpack.c.l.s4 1934713408
        %v4717 = vunpack.c.0.s8 %v4716
        %v4718 = vlaneseq
        %v4719 = vshrl.u32 %v4718, 7
        %v4720 = vsub.s32 %v4717, %v4719
        %v4721 = vrot.slane %v4713, %v4720
        %v4723 = vunpack.c.l.s4 1934713408
        %v4724 = vunpack.c.0.s8 %v4723
        %v4725 = vlaneseq
        %v4726 = vshrl.u32 %v4725, 7
        %v4727 = vsub.s32 %v4724, %v4726
        %v4728 = vrot.slane %v4714, %v4727
        %v4729 = vcombine.low %v4705, %v4721
        %v4730 = vcombine.high %v4705, %v4721
        %v4731 = vcombine.low %v4712, %v4728
        %v4732 = vcombine.high %v4712, %v4728
        %4739 = vrot.lane.b32.xlu0 %v863, 112
        %v4740 = vpop.permute.xlu0 %4739
        %4741 = vrot.lane.b32.xlu0 %v868, 112
        %v4742 = vpop.permute.xlu0 %4741
        %4743 = vrot.lane.b32.xlu0 %v873, 112
        %v4744 = vpop.permute.xlu0 %4743
        %4745 = vrot.lane.b32.xlu0 %v878, 112
        %v4746 = vpop.permute.xlu0 %4745
        %4747 = vrot.lane.b32.xlu0 %v883, 112
        %v4748 = vpop.permute.xlu0 %4747
        %4749 = vrot.lane.b32.xlu0 %v888, 112
        %v4750 = vpop.permute.xlu0 %4749
        %4757 = vrot.lane.b32.xlu0 %v863, 96
        %v4758 = vpop.permute.xlu0 %4757
        %4759 = vrot.lane.b32.xlu0 %v868, 96
        %v4760 = vpop.permute.xlu0 %4759
        %4761 = vrot.lane.b32.xlu0 %v873, 96
        %v4762 = vpop.permute.xlu0 %4761
        %4763 = vrot.lane.b32.xlu0 %v878, 96
        %v4764 = vpop.permute.xlu0 %4763
        %4765 = vrot.lane.b32.xlu0 %v883, 96
        %v4766 = vpop.permute.xlu0 %4765
        %4767 = vrot.lane.b32.xlu0 %v888, 96
        %v4768 = vpop.permute.xlu0 %4767
        %4775 = vrot.lane.b32.xlu0 %v863, 80
        %v4776 = vpop.permute.xlu0 %4775
        %4777 = vrot.lane.b32.xlu0 %v868, 80
        %v4778 = vpop.permute.xlu0 %4777
        %4779 = vrot.lane.b32.xlu0 %v873, 80
        %v4780 = vpop.permute.xlu0 %4779
        %4781 = vrot.lane.b32.xlu0 %v878, 80
        %v4782 = vpop.permute.xlu0 %4781
        %4783 = vrot.lane.b32.xlu0 %v883, 80
        %v4784 = vpop.permute.xlu0 %4783
        %4785 = vrot.lane.b32.xlu0 %v888, 80
        %v4786 = vpop.permute.xlu0 %4785
        %v4793 = vcombine.low %v863, %v4758
        %v4794 = vcombine.high %v863, %v4758
        %v4796 = vunpack.c.l.s4 1983009808
        %v4797 = vunpack.c.0.s8 %v4796
        %v4798 = vlaneseq
        %v4799 = vshrl.u32 %v4798, 7
        %v4800 = vsub.s32 %v4797, %v4799
        %v4801 = vrot.slane %v4793, %v4800
        %v4803 = vunpack.c.l.s4 1983009808
        %v4804 = vunpack.c.0.s8 %v4803
        %v4805 = vlaneseq
        %v4806 = vshrl.u32 %v4805, 7
        %v4807 = vsub.s32 %v4804, %v4806
        %v4808 = vrot.slane %v4794, %v4807
        %v4809 = vcombine.low %v4740, %v4776
        %v4810 = vcombine.high %v4740, %v4776
        %v4812 = vunpack.c.l.s4 1983009808
        %v4813 = vunpack.c.0.s8 %v4812
        %v4814 = vlaneseq
        %v4815 = vshrl.u32 %v4814, 7
        %v4816 = vsub.s32 %v4813, %v4815
        %v4817 = vrot.slane %v4809, %v4816
        %v4819 = vunpack.c.l.s4 1983009808
        %v4820 = vunpack.c.0.s8 %v4819
        %v4821 = vlaneseq
        %v4822 = vshrl.u32 %v4821, 7
        %v4823 = vsub.s32 %v4820, %v4822
        %v4824 = vrot.slane %v4810, %v4823
        %v4825 = vcombine.low %v4801, %v4817
        %v4826 = vcombine.high %v4801, %v4817
        %v4828 = vunpack.c.l.s4 1934713408
        %v4829 = vunpack.c.0.s8 %v4828
        %v4830 = vlaneseq
        %v4831 = vshrl.u32 %v4830, 7
        %v4832 = vsub.s32 %v4829, %v4831
        %v4833 = vrot.slane %v4825, %v4832
        %v4835 = vunpack.c.l.s4 1934713408
        %v4836 = vunpack.c.0.s8 %v4835
        %v4837 = vlaneseq
        %v4838 = vshrl.u32 %v4837, 7
        %v4839 = vsub.s32 %v4836, %v4838
        %v4840 = vrot.slane %v4826, %v4839
        %v4841 = vcombine.low %v4808, %v4824
        %v4842 = vcombine.high %v4808, %v4824
        %v4844 = vunpack.c.l.s4 1934713408
        %v4845 = vunpack.c.0.s8 %v4844
        %v4846 = vlaneseq
        %v4847 = vshrl.u32 %v4846, 7
        %v4848 = vsub.s32 %v4845, %v4847
        %v4849 = vrot.slane %v4841, %v4848
        %v4851 = vunpack.c.l.s4 1934713408
        %v4852 = vunpack.c.0.s8 %v4851
        %v4853 = vlaneseq
        %v4854 = vshrl.u32 %v4853, 7
        %v4855 = vsub.s32 %v4852, %v4854
        %v4856 = vrot.slane %v4842, %v4855
        %v4857 = vcombine.high %v4833, 0.0
        %v4858 = vcombine.high %v4840, 0.0
        %v4859 = vcombine.high %v4849, 0.0
        %v4860 = vcombine.high %v4856, 0.0
        %v4861 = vcombine.low %v868, %v4760
        %v4862 = vcombine.high %v868, %v4760
        %v4864 = vunpack.c.l.s4 1983009808
        %v4865 = vunpack.c.0.s8 %v4864
        %v4866 = vlaneseq
        %v4867 = vshrl.u32 %v4866, 7
        %v4868 = vsub.s32 %v4865, %v4867
        %v4869 = vrot.slane %v4861, %v4868
        %v4871 = vunpack.c.l.s4 1983009808
        %v4872 = vunpack.c.0.s8 %v4871
        %v4873 = vlaneseq
        %v4874 = vshrl.u32 %v4873, 7
        %v4875 = vsub.s32 %v4872, %v4874
        %v4876 = vrot.slane %v4862, %v4875
        %v4877 = vcombine.low %v4742, %v4778
        %v4878 = vcombine.high %v4742, %v4778
        %v4880 = vunpack.c.l.s4 1983009808
        %v4881 = vunpack.c.0.s8 %v4880
        %v4882 = vlaneseq
        %v4883 = vshrl.u32 %v4882, 7
        %v4884 = vsub.s32 %v4881, %v4883
        %v4885 = vrot.slane %v4877, %v4884
        %v4887 = vunpack.c.l.s4 1983009808
        %v4888 = vunpack.c.0.s8 %v4887
        %v4889 = vlaneseq
        %v4890 = vshrl.u32 %v4889, 7
        %v4891 = vsub.s32 %v4888, %v4890
        %v4892 = vrot.slane %v4878, %v4891
        %v4893 = vcombine.low %v4869, %v4885
        %v4894 = vcombine.high %v4869, %v4885
        %v4896 = vunpack.c.l.s4 1934713408
        %v4897 = vunpack.c.0.s8 %v4896
        %v4898 = vlaneseq
        %v4899 = vshrl.u32 %v4898, 7
        %v4900 = vsub.s32 %v4897, %v4899
        %v4901 = vrot.slane %v4893, %v4900
        %v4903 = vunpack.c.l.s4 1934713408
        %v4904 = vunpack.c.0.s8 %v4903
        %v4905 = vlaneseq
        %v4906 = vshrl.u32 %v4905, 7
        %v4907 = vsub.s32 %v4904, %v4906
        %v4908 = vrot.slane %v4894, %v4907
        %v4909 = vcombine.low %v4876, %v4892
        %v4910 = vcombine.high %v4876, %v4892
        %v4912 = vunpack.c.l.s4 1934713408
        %v4913 = vunpack.c.0.s8 %v4912
        %v4914 = vlaneseq
        %v4915 = vshrl.u32 %v4914, 7
        %v4916 = vsub.s32 %v4913, %v4915
        %v4917 = vrot.slane %v4909, %v4916
        %v4919 = vunpack.c.l.s4 1934713408
        %v4920 = vunpack.c.0.s8 %v4919
        %v4921 = vlaneseq
        %v4922 = vshrl.u32 %v4921, 7
        %v4923 = vsub.s32 %v4920, %v4922
        %v4924 = vrot.slane %v4910, %v4923
        %v4925 = vcombine.high %v4901, 0.0
        %v4926 = vcombine.high %v4908, 0.0
        %v4927 = vcombine.high %v4917, 0.0
        %v4928 = vcombine.high %v4924, 0.0
        %v4929 = vcombine.low %v873, %v4762
        %v4930 = vcombine.high %v873, %v4762
        %v4932 = vunpack.c.l.s4 1983009808
        %v4933 = vunpack.c.0.s8 %v4932
        %v4934 = vlaneseq
        %v4935 = vshrl.u32 %v4934, 7
        %v4936 = vsub.s32 %v4933, %v4935
        %v4937 = vrot.slane %v4929, %v4936
        %v4939 = vunpack.c.l.s4 1983009808
        %v4940 = vunpack.c.0.s8 %v4939
        %v4941 = vlaneseq
        %v4942 = vshrl.u32 %v4941, 7
        %v4943 = vsub.s32 %v4940, %v4942
        %v4944 = vrot.slane %v4930, %v4943
        %v4945 = vcombine.low %v4744, %v4780
        %v4946 = vcombine.high %v4744, %v4780
        %v4948 = vunpack.c.l.s4 1983009808
        %v4949 = vunpack.c.0.s8 %v4948
        %v4950 = vlaneseq
        %v4951 = vshrl.u32 %v4950, 7
        %v4952 = vsub.s32 %v4949, %v4951
        %v4953 = vrot.slane %v4945, %v4952
        %v4955 = vunpack.c.l.s4 1983009808
        %v4956 = vunpack.c.0.s8 %v4955
        %v4957 = vlaneseq
        %v4958 = vshrl.u32 %v4957, 7
        %v4959 = vsub.s32 %v4956, %v4958
        %v4960 = vrot.slane %v4946, %v4959
        %v4961 = vcombine.low %v4937, %v4953
        %v4962 = vcombine.high %v4937, %v4953
        %v4964 = vunpack.c.l.s4 1934713408
        %v4965 = vunpack.c.0.s8 %v4964
        %v4966 = vlaneseq
        %v4967 = vshrl.u32 %v4966, 7
        %v4968 = vsub.s32 %v4965, %v4967
        %v4969 = vrot.slane %v4961, %v4968
        %v4971 = vunpack.c.l.s4 1934713408
        %v4972 = vunpack.c.0.s8 %v4971
        %v4973 = vlaneseq
        %v4974 = vshrl.u32 %v4973, 7
        %v4975 = vsub.s32 %v4972, %v4974
        %v4976 = vrot.slane %v4962, %v4975
        %v4977 = vcombine.low %v4944, %v4960
        %v4978 = vcombine.high %v4944, %v4960
        %v4980 = vunpack.c.l.s4 1934713408
        %v4981 = vunpack.c.0.s8 %v4980
        %v4982 = vlaneseq
        %v4983 = vshrl.u32 %v4982, 7
        %v4984 = vsub.s32 %v4981, %v4983
        %v4985 = vrot.slane %v4977, %v4984
        %v4987 = vunpack.c.l.s4 1934713408
        %v4988 = vunpack.c.0.s8 %v4987
        %v4989 = vlaneseq
        %v4990 = vshrl.u32 %v4989, 7
        %v4991 = vsub.s32 %v4988, %v4990
        %v4992 = vrot.slane %v4978, %v4991
        %v4993 = vcombine.high %v4969, 0.0
        %v4994 = vcombine.high %v4976, 0.0
        %v4995 = vcombine.high %v4985, 0.0
        %v4996 = vcombine.high %v4992, 0.0
        %v4997 = vcombine.low %v878, %v4764
        %v4998 = vcombine.high %v878, %v4764
        %v5000 = vunpack.c.l.s4 1983009808
        %v5001 = vunpack.c.0.s8 %v5000
        %v5002 = vlaneseq
        %v5003 = vshrl.u32 %v5002, 7
        %v5004 = vsub.s32 %v5001, %v5003
        %v5005 = vrot.slane %v4997, %v5004
        %v5007 = vunpack.c.l.s4 1983009808
        %v5008 = vunpack.c.0.s8 %v5007
        %v5009 = vlaneseq
        %v5010 = vshrl.u32 %v5009, 7
        %v5011 = vsub.s32 %v5008, %v5010
        %v5012 = vrot.slane %v4998, %v5011
        %v5013 = vcombine.low %v4746, %v4782
        %v5014 = vcombine.high %v4746, %v4782
        %v5016 = vunpack.c.l.s4 1983009808
        %v5017 = vunpack.c.0.s8 %v5016
        %v5018 = vlaneseq
        %v5019 = vshrl.u32 %v5018, 7
        %v5020 = vsub.s32 %v5017, %v5019
        %v5021 = vrot.slane %v5013, %v5020
        %v5023 = vunpack.c.l.s4 1983009808
        %v5024 = vunpack.c.0.s8 %v5023
        %v5025 = vlaneseq
        %v5026 = vshrl.u32 %v5025, 7
        %v5027 = vsub.s32 %v5024, %v5026
        %v5028 = vrot.slane %v5014, %v5027
        %v5029 = vcombine.low %v5005, %v5021
        %v5030 = vcombine.high %v5005, %v5021
        %v5032 = vunpack.c.l.s4 1934713408
        %v5033 = vunpack.c.0.s8 %v5032
        %v5034 = vlaneseq
        %v5035 = vshrl.u32 %v5034, 7
        %v5036 = vsub.s32 %v5033, %v5035
        %v5037 = vrot.slane %v5029, %v5036
        %v5039 = vunpack.c.l.s4 1934713408
        %v5040 = vunpack.c.0.s8 %v5039
        %v5041 = vlaneseq
        %v5042 = vshrl.u32 %v5041, 7
        %v5043 = vsub.s32 %v5040, %v5042
        %v5044 = vrot.slane %v5030, %v5043
        %v5045 = vcombine.low %v5012, %v5028
        %v5046 = vcombine.high %v5012, %v5028
        %v5048 = vunpack.c.l.s4 1934713408
        %v5049 = vunpack.c.0.s8 %v5048
        %v5050 = vlaneseq
        %v5051 = vshrl.u32 %v5050, 7
        %v5052 = vsub.s32 %v5049, %v5051
        %v5053 = vrot.slane %v5045, %v5052
        %v5055 = vunpack.c.l.s4 1934713408
        %v5056 = vunpack.c.0.s8 %v5055
        %v5057 = vlaneseq
        %v5058 = vshrl.u32 %v5057, 7
        %v5059 = vsub.s32 %v5056, %v5058
        %v5060 = vrot.slane %v5046, %v5059
        %v5061 = vcombine.high %v5037, 0.0
        %v5062 = vcombine.high %v5044, 0.0
        %v5063 = vcombine.high %v5053, 0.0
        %v5064 = vcombine.high %v5060, 0.0
        %v5065 = vcombine.low %v883, %v4766
        %v5066 = vcombine.high %v883, %v4766
        %v5068 = vunpack.c.l.s4 1983009808
        %v5069 = vunpack.c.0.s8 %v5068
        %v5070 = vlaneseq
        %v5071 = vshrl.u32 %v5070, 7
        %v5072 = vsub.s32 %v5069, %v5071
        %v5073 = vrot.slane %v5065, %v5072
        %v5075 = vunpack.c.l.s4 1983009808
        %v5076 = vunpack.c.0.s8 %v5075
        %v5077 = vlaneseq
        %v5078 = vshrl.u32 %v5077, 7
        %v5079 = vsub.s32 %v5076, %v5078
        %v5080 = vrot.slane %v5066, %v5079
        %v5081 = vcombine.low %v4748, %v4784
        %v5082 = vcombine.high %v4748, %v4784
        %v5084 = vunpack.c.l.s4 1983009808
        %v5085 = vunpack.c.0.s8 %v5084
        %v5086 = vlaneseq
        %v5087 = vshrl.u32 %v5086, 7
        %v5088 = vsub.s32 %v5085, %v5087
        %v5089 = vrot.slane %v5081, %v5088
        %v5091 = vunpack.c.l.s4 1983009808
        %v5092 = vunpack.c.0.s8 %v5091
        %v5093 = vlaneseq
        %v5094 = vshrl.u32 %v5093, 7
        %v5095 = vsub.s32 %v5092, %v5094
        %v5096 = vrot.slane %v5082, %v5095
        %v5097 = vcombine.low %v5073, %v5089
        %v5098 = vcombine.high %v5073, %v5089
        %v5100 = vunpack.c.l.s4 1934713408
        %v5101 = vunpack.c.0.s8 %v5100
        %v5102 = vlaneseq
        %v5103 = vshrl.u32 %v5102, 7
        %v5104 = vsub.s32 %v5101, %v5103
        %v5105 = vrot.slane %v5097, %v5104
        %v5107 = vunpack.c.l.s4 1934713408
        %v5108 = vunpack.c.0.s8 %v5107
        %v5109 = vlaneseq
        %v5110 = vshrl.u32 %v5109, 7
        %v5111 = vsub.s32 %v5108, %v5110
        %v5112 = vrot.slane %v5098, %v5111
        %v5113 = vcombine.low %v5080, %v5096
        %v5114 = vcombine.high %v5080, %v5096
        %v5116 = vunpack.c.l.s4 1934713408
        %v5117 = vunpack.c.0.s8 %v5116
        %v5118 = vlaneseq
        %v5119 = vshrl.u32 %v5118, 7
        %v5120 = vsub.s32 %v5117, %v5119
        %v5121 = vrot.slane %v5113, %v5120
        %v5123 = vunpack.c.l.s4 1934713408
        %v5124 = vunpack.c.0.s8 %v5123
        %v5125 = vlaneseq
        %v5126 = vshrl.u32 %v5125, 7
        %v5127 = vsub.s32 %v5124, %v5126
        %v5128 = vrot.slane %v5114, %v5127
        %v5129 = vcombine.high %v5105, 0.0
        %v5130 = vcombine.high %v5112, 0.0
        %v5131 = vcombine.high %v5121, 0.0
        %v5132 = vcombine.high %v5128, 0.0
        %v5133 = vcombine.low %v888, %v4768
        %v5134 = vcombine.high %v888, %v4768
        %v5136 = vunpack.c.l.s4 1983009808
        %v5137 = vunpack.c.0.s8 %v5136
        %v5138 = vlaneseq
        %v5139 = vshrl.u32 %v5138, 7
        %v5140 = vsub.s32 %v5137, %v5139
        %v5141 = vrot.slane %v5133, %v5140
        %v5143 = vunpack.c.l.s4 1983009808
        %v5144 = vunpack.c.0.s8 %v5143
        %v5145 = vlaneseq
        %v5146 = vshrl.u32 %v5145, 7
        %v5147 = vsub.s32 %v5144, %v5146
        %v5148 = vrot.slane %v5134, %v5147
        %v5149 = vcombine.low %v4750, %v4786
        %v5150 = vcombine.high %v4750, %v4786
        %v5152 = vunpack.c.l.s4 1983009808
        %v5153 = vunpack.c.0.s8 %v5152
        %v5154 = vlaneseq
        %v5155 = vshrl.u32 %v5154, 7
        %v5156 = vsub.s32 %v5153, %v5155
        %v5157 = vrot.slane %v5149, %v5156
        %v5159 = vunpack.c.l.s4 1983009808
        %v5160 = vunpack.c.0.s8 %v5159
        %v5161 = vlaneseq
        %v5162 = vshrl.u32 %v5161, 7
        %v5163 = vsub.s32 %v5160, %v5162
        %v5164 = vrot.slane %v5150, %v5163
        %v5165 = vcombine.low %v5141, %v5157
        %v5166 = vcombine.high %v5141, %v5157
        %v5168 = vunpack.c.l.s4 1934713408
        %v5169 = vunpack.c.0.s8 %v5168
        %v5170 = vlaneseq
        %v5171 = vshrl.u32 %v5170, 7
        %v5172 = vsub.s32 %v5169, %v5171
        %v5173 = vrot.slane %v5165, %v5172
        %v5175 = vunpack.c.l.s4 1934713408
        %v5176 = vunpack.c.0.s8 %v5175
        %v5177 = vlaneseq
        %v5178 = vshrl.u32 %v5177, 7
        %v5179 = vsub.s32 %v5176, %v5178
        %v5180 = vrot.slane %v5166, %v5179
        %v5181 = vcombine.low %v5148, %v5164
        %v5182 = vcombine.high %v5148, %v5164
        %v5184 = vunpack.c.l.s4 1934713408
        %v5185 = vunpack.c.0.s8 %v5184
        %v5186 = vlaneseq
        %v5187 = vshrl.u32 %v5186, 7
        %v5188 = vsub.s32 %v5185, %v5187
        %v5189 = vrot.slane %v5181, %v5188
        %v5191 = vunpack.c.l.s4 1934713408
        %v5192 = vunpack.c.0.s8 %v5191
        %v5193 = vlaneseq
        %v5194 = vshrl.u32 %v5193, 7
        %v5195 = vsub.s32 %v5192, %v5194
        %v5196 = vrot.slane %v5182, %v5195
        %v5197 = vcombine.high %v5173, 0.0
        %v5198 = vcombine.high %v5180, 0.0
        %v5199 = vcombine.high %v5189, 0.0
        %v5200 = vcombine.high %v5196, 0.0
        %v5201 = vcombine.low %v4833, %v4840
        %v5203 = vunpack.c.l.s4 1983009808
        %v5204 = vunpack.c.0.s8 %v5203
        %v5205 = vlaneseq
        %v5206 = vshrl.u32 %v5205, 7
        %v5207 = vsub.s32 %v5204, %v5206
        %v5208 = vrot.slane %v5201, %v5207
        %v5209 = vcombine.low %v4857, %v4858
        %v5211 = vunpack.c.l.s4 1983009808
        %v5212 = vunpack.c.0.s8 %v5211
        %v5213 = vlaneseq
        %v5214 = vshrl.u32 %v5213, 7
        %v5215 = vsub.s32 %v5212, %v5214
        %v5216 = vrot.slane %v5209, %v5215
        %v5217 = vcombine.low %v4849, %v4856
        %v5219 = vunpack.c.l.s4 1983009808
        %v5220 = vunpack.c.0.s8 %v5219
        %v5221 = vlaneseq
        %v5222 = vshrl.u32 %v5221, 7
        %v5223 = vsub.s32 %v5220, %v5222
        %v5224 = vrot.slane %v5217, %v5223
        %v5225 = vcombine.low %v4859, %v4860
        %v5227 = vunpack.c.l.s4 1983009808
        %v5228 = vunpack.c.0.s8 %v5227
        %v5229 = vlaneseq
        %v5230 = vshrl.u32 %v5229, 7
        %v5231 = vsub.s32 %v5228, %v5230
        %v5232 = vrot.slane %v5225, %v5231
        %v5233 = vcombine.low %v5208, %v5216
        %v5234 = vcombine.high %v5208, %v5216
        %v5236 = vunpack.c.l.s4 1934713408
        %v5237 = vunpack.c.0.s8 %v5236
        %v5238 = vlaneseq
        %v5239 = vshrl.u32 %v5238, 7
        %v5240 = vsub.s32 %v5237, %v5239
        %v5241 = vrot.slane %v5233, %v5240
        %v5243 = vunpack.c.l.s4 1934713408
        %v5244 = vunpack.c.0.s8 %v5243
        %v5245 = vlaneseq
        %v5246 = vshrl.u32 %v5245, 7
        %v5247 = vsub.s32 %v5244, %v5246
        %v5248 = vrot.slane %v5234, %v5247
        %v5249 = vcombine.low %v5224, %v5232
        %v5250 = vcombine.high %v5224, %v5232
        %v5252 = vunpack.c.l.s4 1934713408
        %v5253 = vunpack.c.0.s8 %v5252
        %v5254 = vlaneseq
        %v5255 = vshrl.u32 %v5254, 7
        %v5256 = vsub.s32 %v5253, %v5255
        %v5257 = vrot.slane %v5249, %v5256
        %v5259 = vunpack.c.l.s4 1934713408
        %v5260 = vunpack.c.0.s8 %v5259
        %v5261 = vlaneseq
        %v5262 = vshrl.u32 %v5261, 7
        %v5263 = vsub.s32 %v5260, %v5262
        %v5264 = vrot.slane %v5250, %v5263
        %v5265 = vcombine.low %v5241, %v5257
        %v5266 = vcombine.high %v5241, %v5257
        %v5267 = vcombine.low %v5248, %v5264
        %v5268 = vcombine.high %v5248, %v5264
        %v5269 = vcombine.low %v4901, %v4908
        %v5271 = vunpack.c.l.s4 1983009808
        %v5272 = vunpack.c.0.s8 %v5271
        %v5273 = vlaneseq
        %v5274 = vshrl.u32 %v5273, 7
        %v5275 = vsub.s32 %v5272, %v5274
        %v5276 = vrot.slane %v5269, %v5275
        %v5277 = vcombine.low %v4925, %v4926
        %v5279 = vunpack.c.l.s4 1983009808
        %v5280 = vunpack.c.0.s8 %v5279
        %v5281 = vlaneseq
        %v5282 = vshrl.u32 %v5281, 7
        %v5283 = vsub.s32 %v5280, %v5282
        %v5284 = vrot.slane %v5277, %v5283
        %v5285 = vcombine.low %v4917, %v4924
        %v5287 = vunpack.c.l.s4 1983009808
        %v5288 = vunpack.c.0.s8 %v5287
        %v5289 = vlaneseq
        %v5290 = vshrl.u32 %v5289, 7
        %v5291 = vsub.s32 %v5288, %v5290
        %v5292 = vrot.slane %v5285, %v5291
        %v5293 = vcombine.low %v4927, %v4928
        %v5295 = vunpack.c.l.s4 1983009808
        %v5296 = vunpack.c.0.s8 %v5295
        %v5297 = vlaneseq
        %v5298 = vshrl.u32 %v5297, 7
        %v5299 = vsub.s32 %v5296, %v5298
        %v5300 = vrot.slane %v5293, %v5299
        %v5301 = vcombine.low %v5276, %v5284
        %v5302 = vcombine.high %v5276, %v5284
        %v5304 = vunpack.c.l.s4 1934713408
        %v5305 = vunpack.c.0.s8 %v5304
        %v5306 = vlaneseq
        %v5307 = vshrl.u32 %v5306, 7
        %v5308 = vsub.s32 %v5305, %v5307
        %v5309 = vrot.slane %v5301, %v5308
        %v5311 = vunpack.c.l.s4 1934713408
        %v5312 = vunpack.c.0.s8 %v5311
        %v5313 = vlaneseq
        %v5314 = vshrl.u32 %v5313, 7
        %v5315 = vsub.s32 %v5312, %v5314
        %v5316 = vrot.slane %v5302, %v5315
        %v5317 = vcombine.low %v5292, %v5300
        %v5318 = vcombine.high %v5292, %v5300
        %v5320 = vunpack.c.l.s4 1934713408
        %v5321 = vunpack.c.0.s8 %v5320
        %v5322 = vlaneseq
        %v5323 = vshrl.u32 %v5322, 7
        %v5324 = vsub.s32 %v5321, %v5323
        %v5325 = vrot.slane %v5317, %v5324
        %v5327 = vunpack.c.l.s4 1934713408
        %v5328 = vunpack.c.0.s8 %v5327
        %v5329 = vlaneseq
        %v5330 = vshrl.u32 %v5329, 7
        %v5331 = vsub.s32 %v5328, %v5330
        %v5332 = vrot.slane %v5318, %v5331
        %v5333 = vcombine.low %v5309, %v5325
        %v5334 = vcombine.high %v5309, %v5325
        %v5335 = vcombine.low %v5316, %v5332
        %v5336 = vcombine.high %v5316, %v5332
        %v5337 = vcombine.low %v4969, %v4976
        %v5339 = vunpack.c.l.s4 1983009808
        %v5340 = vunpack.c.0.s8 %v5339
        %v5341 = vlaneseq
        %v5342 = vshrl.u32 %v5341, 7
        %v5343 = vsub.s32 %v5340, %v5342
        %v5344 = vrot.slane %v5337, %v5343
        %v5345 = vcombine.low %v4993, %v4994
        %v5347 = vunpack.c.l.s4 1983009808
        %v5348 = vunpack.c.0.s8 %v5347
        %v5349 = vlaneseq
        %v5350 = vshrl.u32 %v5349, 7
        %v5351 = vsub.s32 %v5348, %v5350
        %v5352 = vrot.slane %v5345, %v5351
        %v5353 = vcombine.low %v4985, %v4992
        %v5355 = vunpack.c.l.s4 1983009808
        %v5356 = vunpack.c.0.s8 %v5355
        %v5357 = vlaneseq
        %v5358 = vshrl.u32 %v5357, 7
        %v5359 = vsub.s32 %v5356, %v5358
        %v5360 = vrot.slane %v5353, %v5359
        %v5361 = vcombine.low %v4995, %v4996
        %v5363 = vunpack.c.l.s4 1983009808
        %v5364 = vunpack.c.0.s8 %v5363
        %v5365 = vlaneseq
        %v5366 = vshrl.u32 %v5365, 7
        %v5367 = vsub.s32 %v5364, %v5366
        %v5368 = vrot.slane %v5361, %v5367
        %v5369 = vcombine.low %v5344, %v5352
        %v5370 = vcombine.high %v5344, %v5352
        %v5372 = vunpack.c.l.s4 1934713408
        %v5373 = vunpack.c.0.s8 %v5372
        %v5374 = vlaneseq
        %v5375 = vshrl.u32 %v5374, 7
        %v5376 = vsub.s32 %v5373, %v5375
        %v5377 = vrot.slane %v5369, %v5376
        %v5379 = vunpack.c.l.s4 1934713408
        %v5380 = vunpack.c.0.s8 %v5379
        %v5381 = vlaneseq
        %v5382 = vshrl.u32 %v5381, 7
        %v5383 = vsub.s32 %v5380, %v5382
        %v5384 = vrot.slane %v5370, %v5383
        %v5385 = vcombine.low %v5360, %v5368
        %v5386 = vcombine.high %v5360, %v5368
        %v5388 = vunpack.c.l.s4 1934713408
        %v5389 = vunpack.c.0.s8 %v5388
        %v5390 = vlaneseq
        %v5391 = vshrl.u32 %v5390, 7
        %v5392 = vsub.s32 %v5389, %v5391
        %v5393 = vrot.slane %v5385, %v5392
        %v5395 = vunpack.c.l.s4 1934713408
        %v5396 = vunpack.c.0.s8 %v5395
        %v5397 = vlaneseq
        %v5398 = vshrl.u32 %v5397, 7
        %v5399 = vsub.s32 %v5396, %v5398
        %v5400 = vrot.slane %v5386, %v5399
        %v5401 = vcombine.low %v5377, %v5393
        %v5402 = vcombine.high %v5377, %v5393
        %v5403 = vcombine.low %v5384, %v5400
        %v5404 = vcombine.high %v5384, %v5400
        %v5405 = vcombine.low %v5037, %v5044
        %v5407 = vunpack.c.l.s4 1983009808
        %v5408 = vunpack.c.0.s8 %v5407
        %v5409 = vlaneseq
        %v5410 = vshrl.u32 %v5409, 7
        %v5411 = vsub.s32 %v5408, %v5410
        %v5412 = vrot.slane %v5405, %v5411
        %v5413 = vcombine.low %v5061, %v5062
        %v5415 = vunpack.c.l.s4 1983009808
        %v5416 = vunpack.c.0.s8 %v5415
        %v5417 = vlaneseq
        %v5418 = vshrl.u32 %v5417, 7
        %v5419 = vsub.s32 %v5416, %v5418
        %v5420 = vrot.slane %v5413, %v5419
        %v5421 = vcombine.low %v5053, %v5060
        %v5423 = vunpack.c.l.s4 1983009808
        %v5424 = vunpack.c.0.s8 %v5423
        %v5425 = vlaneseq
        %v5426 = vshrl.u32 %v5425, 7
        %v5427 = vsub.s32 %v5424, %v5426
        %v5428 = vrot.slane %v5421, %v5427
        %v5429 = vcombine.low %v5063, %v5064
        %v5431 = vunpack.c.l.s4 1983009808
        %v5432 = vunpack.c.0.s8 %v5431
        %v5433 = vlaneseq
        %v5434 = vshrl.u32 %v5433, 7
        %v5435 = vsub.s32 %v5432, %v5434
        %v5436 = vrot.slane %v5429, %v5435
        %v5437 = vcombine.low %v5412, %v5420
        %v5438 = vcombine.high %v5412, %v5420
        %v5440 = vunpack.c.l.s4 1934713408
        %v5441 = vunpack.c.0.s8 %v5440
        %v5442 = vlaneseq
        %v5443 = vshrl.u32 %v5442, 7
        %v5444 = vsub.s32 %v5441, %v5443
        %v5445 = vrot.slane %v5437, %v5444
        %v5447 = vunpack.c.l.s4 1934713408
        %v5448 = vunpack.c.0.s8 %v5447
        %v5449 = vlaneseq
        %v5450 = vshrl.u32 %v5449, 7
        %v5451 = vsub.s32 %v5448, %v5450
        %v5452 = vrot.slane %v5438, %v5451
        %v5453 = vcombine.low %v5428, %v5436
        %v5454 = vcombine.high %v5428, %v5436
        %v5456 = vunpack.c.l.s4 1934713408
        %v5457 = vunpack.c.0.s8 %v5456
        %v5458 = vlaneseq
        %v5459 = vshrl.u32 %v5458, 7
        %v5460 = vsub.s32 %v5457, %v5459
        %v5461 = vrot.slane %v5453, %v5460
        %v5463 = vunpack.c.l.s4 1934713408
        %v5464 = vunpack.c.0.s8 %v5463
        %v5465 = vlaneseq
        %v5466 = vshrl.u32 %v5465, 7
        %v5467 = vsub.s32 %v5464, %v5466
        %v5468 = vrot.slane %v5454, %v5467
        %v5469 = vcombine.low %v5445, %v5461
        %v5470 = vcombine.high %v5445, %v5461
        %v5471 = vcombine.low %v5452, %v5468
        %v5472 = vcombine.high %v5452, %v5468
        %v5473 = vcombine.low %v5105, %v5112
        %v5475 = vunpack.c.l.s4 1983009808
        %v5476 = vunpack.c.0.s8 %v5475
        %v5477 = vlaneseq
        %v5478 = vshrl.u32 %v5477, 7
        %v5479 = vsub.s32 %v5476, %v5478
        %v5480 = vrot.slane %v5473, %v5479
        %v5481 = vcombine.low %v5129, %v5130
        %v5483 = vunpack.c.l.s4 1983009808
        %v5484 = vunpack.c.0.s8 %v5483
        %v5485 = vlaneseq
        %v5486 = vshrl.u32 %v5485, 7
        %v5487 = vsub.s32 %v5484, %v5486
        %v5488 = vrot.slane %v5481, %v5487
        %v5489 = vcombine.low %v5121, %v5128
        %v5491 = vunpack.c.l.s4 1983009808
        %v5492 = vunpack.c.0.s8 %v5491
        %v5493 = vlaneseq
        %v5494 = vshrl.u32 %v5493, 7
        %v5495 = vsub.s32 %v5492, %v5494
        %v5496 = vrot.slane %v5489, %v5495
        %v5497 = vcombine.low %v5131, %v5132
        %v5499 = vunpack.c.l.s4 1983009808
        %v5500 = vunpack.c.0.s8 %v5499
        %v5501 = vlaneseq
        %v5502 = vshrl.u32 %v5501, 7
        %v5503 = vsub.s32 %v5500, %v5502
        %v5504 = vrot.slane %v5497, %v5503
        %v5505 = vcombine.low %v5480, %v5488
        %v5506 = vcombine.high %v5480, %v5488
        %v5508 = vunpack.c.l.s4 1934713408
        %v5509 = vunpack.c.0.s8 %v5508
        %v5510 = vlaneseq
        %v5511 = vshrl.u32 %v5510, 7
        %v5512 = vsub.s32 %v5509, %v5511
        %v5513 = vrot.slane %v5505, %v5512
        %v5515 = vunpack.c.l.s4 1934713408
        %v5516 = vunpack.c.0.s8 %v5515
        %v5517 = vlaneseq
        %v5518 = vshrl.u32 %v5517, 7
        %v5519 = vsub.s32 %v5516, %v5518
        %v5520 = vrot.slane %v5506, %v5519
        %v5521 = vcombine.low %v5496, %v5504
        %v5522 = vcombine.high %v5496, %v5504
        %v5524 = vunpack.c.l.s4 1934713408
        %v5525 = vunpack.c.0.s8 %v5524
        %v5526 = vlaneseq
        %v5527 = vshrl.u32 %v5526, 7
        %v5528 = vsub.s32 %v5525, %v5527
        %v5529 = vrot.slane %v5521, %v5528
        %v5531 = vunpack.c.l.s4 1934713408
        %v5532 = vunpack.c.0.s8 %v5531
        %v5533 = vlaneseq
        %v5534 = vshrl.u32 %v5533, 7
        %v5535 = vsub.s32 %v5532, %v5534
        %v5536 = vrot.slane %v5522, %v5535
        %v5537 = vcombine.low %v5513, %v5529
        %v5538 = vcombine.high %v5513, %v5529
        %v5539 = vcombine.low %v5520, %v5536
        %v5540 = vcombine.high %v5520, %v5536
        %v5541 = vcombine.low %v5173, %v5180
        %v5543 = vunpack.c.l.s4 1983009808
        %v5544 = vunpack.c.0.s8 %v5543
        %v5545 = vlaneseq
        %v5546 = vshrl.u32 %v5545, 7
        %v5547 = vsub.s32 %v5544, %v5546
        %v5548 = vrot.slane %v5541, %v5547
        %v5549 = vcombine.low %v5197, %v5198
        %v5551 = vunpack.c.l.s4 1983009808
        %v5552 = vunpack.c.0.s8 %v5551
        %v5553 = vlaneseq
        %v5554 = vshrl.u32 %v5553, 7
        %v5555 = vsub.s32 %v5552, %v5554
        %v5556 = vrot.slane %v5549, %v5555
        %v5557 = vcombine.low %v5189, %v5196
        %v5559 = vunpack.c.l.s4 1983009808
        %v5560 = vunpack.c.0.s8 %v5559
        %v5561 = vlaneseq
        %v5562 = vshrl.u32 %v5561, 7
        %v5563 = vsub.s32 %v5560, %v5562
        %v5564 = vrot.slane %v5557, %v5563
        %v5565 = vcombine.low %v5199, %v5200
        %v5567 = vunpack.c.l.s4 1983009808
        %v5568 = vunpack.c.0.s8 %v5567
        %v5569 = vlaneseq
        %v5570 = vshrl.u32 %v5569, 7
        %v5571 = vsub.s32 %v5568, %v5570
        %v5572 = vrot.slane %v5565, %v5571
        %v5573 = vcombine.low %v5548, %v5556
        %v5574 = vcombine.high %v5548, %v5556
        %v5576 = vunpack.c.l.s4 1934713408
        %v5577 = vunpack.c.0.s8 %v5576
        %v5578 = vlaneseq
        %v5579 = vshrl.u32 %v5578, 7
        %v5580 = vsub.s32 %v5577, %v5579
        %v5581 = vrot.slane %v5573, %v5580
        %v5583 = vunpack.c.l.s4 1934713408
        %v5584 = vunpack.c.0.s8 %v5583
        %v5585 = vlaneseq
        %v5586 = vshrl.u32 %v5585, 7
        %v5587 = vsub.s32 %v5584, %v5586
        %v5588 = vrot.slane %v5574, %v5587
        %v5589 = vcombine.low %v5564, %v5572
        %v5590 = vcombine.high %v5564, %v5572
        %v5592 = vunpack.c.l.s4 1934713408
        %v5593 = vunpack.c.0.s8 %v5592
        %v5594 = vlaneseq
        %v5595 = vshrl.u32 %v5594, 7
        %v5596 = vsub.s32 %v5593, %v5595
        %v5597 = vrot.slane %v5589, %v5596
        %v5599 = vunpack.c.l.s4 1934713408
        %v5600 = vunpack.c.0.s8 %v5599
        %v5601 = vlaneseq
        %v5602 = vshrl.u32 %v5601, 7
        %v5603 = vsub.s32 %v5600, %v5602
        %v5604 = vrot.slane %v5590, %v5603
        %v5605 = vcombine.low %v5581, %v5597
        %v5606 = vcombine.high %v5581, %v5597
        %v5607 = vcombine.low %v5588, %v5604
        %v5608 = vcombine.high %v5588, %v5604
        %v5610 = vsel %vm555, %v3661, 0
        %v5613 = vsel %vm555, %v3729, 0
        %v5616 = vsel %vm555, %v4389, 0
        %v5619 = vsel %vm555, %v4457, 0
        %v5622 = vsel %vm555, %v4525, 0
        %5624 = vmatprep.subr.mxu0 0.0
        %5625 = vmatpush1.xpose.msra.mxu0 %v5616
        %5626 = vmatprep.subr.mxu0 0.0
        %5627 = vmatpush1.xpose.msra.mxu0 %v5619
        %5628 = vmatprep.subr.mxu0 0.0
        %5629 = vmatpush1.xpose.msra.mxu0 %v5622
        %5630 = vmatprep.subr.mxu0 0.0
        %5631 = vmatpush1.xpose.msra.mxu0 0.0
        %5632 = vmatprep.subr.mxu0 0.0
        %5633 = vmatpush1.xpose.msra.mxu0 0.0
        %5634 = vmatprep.subr.mxu0 0.0
        %5635 = vmatpush1.xpose.msra.mxu0 0.0
        %5636 = vmatprep.subr.mxu0 0.0
        %5637 = vmatpush1.xpose.msra.mxu0 0.0
        %5638 = vmatprep.subr.mxu0 0.0
        %5639 = vmatpush1.xpose.msra.mxu0 0.0
        %5640 = vmatprep.subr.mxu0 0.0
        %5641 = vmatpush1.xpose.msra.mxu0 0.0
        %5642 = vmatprep.subr.mxu0 0.0
        %5643 = vmatpush1.xpose.msra.mxu0 0.0
        %5644 = vmatprep.subr.mxu0 0.0
        %5645 = vmatpush1.xpose.msra.mxu0 0.0
        %5646 = vmatprep.subr.mxu0 0.0
        %5647 = vmatpush1.xpose.msra.mxu0 0.0
        %5648 = vmatprep.subr.mxu0 0.0
        %5649 = vmatpush1.xpose.msra.mxu0 0.0
        %5650 = vmatprep.subr.mxu0 0.0
        %5651 = vmatpush1.xpose.msra.mxu0 0.0
        %5652 = vmatprep.subr.mxu0 0.0
        %5653 = vmatpush1.xpose.msra.mxu0 0.0
        %5654 = vmatprep.subr.mxu0 0.0
        %5655 = vmatpush1.xpose.msra.mxu0 0.0
        %5656 = vmatprep.subr.mxu0 0.0
        %5657 = vmatpush1.xpose.msra.mxu0 0.0
        %5658 = vmatprep.subr.mxu0 0.0
        %5659 = vmatpush1.xpose.msra.mxu0 0.0
        %5660 = vmatprep.subr.mxu0 0.0
        %5661 = vmatpush1.xpose.msra.mxu0 0.0
        %5662 = vmatprep.subr.mxu0 0.0
        %5663 = vmatpush1.xpose.msra.mxu0 0.0
        %5664 = vmatprep.subr.mxu0 0.0
        %5665 = vmatpush1.xpose.msra.mxu0 0.0
        %5666 = vmatprep.subr.mxu0 0.0
        %5667 = vmatpush1.xpose.msra.mxu0 0.0
        %5668 = vmatprep.subr.mxu0 0.0
        %5669 = vmatpush1.xpose.msra.mxu0 0.0
        %5670 = vmatprep.subr.mxu0 0.0
        %5671 = vmatpush1.xpose.msra.mxu0 0.0
        %5672 = vmatprep.subr.mxu0 0.0
        %5673 = vmatpush1.xpose.msra.mxu0 0.0
        %5674 = vmatprep.subr.mxu0 0.0
        %5675 = vmatpush1.xpose.msra.mxu0 0.0
        %5676 = vmatprep.subr.mxu0 0.0
        %5677 = vmatpush1.xpose.msra.mxu0 0.0
        %5678 = vmatprep.subr.mxu0 0.0
        %5679 = vmatpush1.xpose.msra.mxu0 0.0
        %5680 = vmatprep.subr.mxu0 0.0
        %5681 = vmatpush1.xpose.msra.mxu0 0.0
        %5682 = vmatprep.subr.mxu0 0.0
        %5683 = vmatpush1.xpose.msra.mxu0 0.0
        %5684 = vmatprep.subr.mxu0 0.0
        %5685 = vmatpush1.xpose.msra.mxu0 0.0
        %5686 = vmatprep.subr.mxu0 0.0
        %5687 = vmatpush1.xpose.msra.mxu0 0.0
        %5688 = vmatprep.mubr.f32.mxu0 0.0
        %5689 = vmatmul.mubr.f32.gmra.mrb[0].mxu0 %v5610
        %v5690 = vpop.f32.mrb[0].mxu0
        %v5691 = vadd.f32 0.0, %v5690
        %v5692 = vpop.f32.mrb[0].mxu0
        %5693 = vmatprep.mubr.f32.mxu0 0.0
        %5694 = vmatmul.mubr.f32.gmra.mrb[0].mxu0 %v5613
        %v5695 = vpop.f32.mrb[0].mxu0
        %v5696 = vadd.f32 0.0, %v5695
        %v5697 = vpop.f32.mrb[0].mxu0
        %5698 = vdwg.mxu0
        %v5700 = vsel %vm555, %v3662, 0
        %v5703 = vsel %vm555, %v3730, 0
        %v5706 = vsel %vm555, %v4390, 0
        %v5709 = vsel %vm555, %v4458, 0
        %v5712 = vsel %vm555, %v4526, 0
        %5714 = vmatprep.subr.mxu0 0.0
        %5715 = vmatpush1.xpose.msra.mxu0 %v5706
        %5716 = vmatprep.subr.mxu0 0.0
        %5717 = vmatpush1.xpose.msra.mxu0 %v5709
        %5718 = vmatprep.subr.mxu0 0.0
        %5719 = vmatpush1.xpose.msra.mxu0 %v5712
        %5720 = vmatprep.subr.mxu0 0.0
        %5721 = vmatpush1.xpose.msra.mxu0 0.0
        %5722 = vmatprep.subr.mxu0 0.0
        %5723 = vmatpush1.xpose.msra.mxu0 0.0
        %5724 = vmatprep.subr.mxu0 0.0
        %5725 = vmatpush1.xpose.msra.mxu0 0.0
        %5726 = vmatprep.subr.mxu0 0.0
        %5727 = vmatpush1.xpose.msra.mxu0 0.0
        %5728 = vmatprep.subr.mxu0 0.0
        %5729 = vmatpush1.xpose.msra.mxu0 0.0
        %5730 = vmatprep.subr.mxu0 0.0
        %5731 = vmatpush1.xpose.msra.mxu0 0.0
        %5732 = vmatprep.subr.mxu0 0.0
        %5733 = vmatpush1.xpose.msra.mxu0 0.0
        %5734 = vmatprep.subr.mxu0 0.0
        %5735 = vmatpush1.xpose.msra.mxu0 0.0
        %5736 = vmatprep.subr.mxu0 0.0
        %5737 = vmatpush1.xpose.msra.mxu0 0.0
        %5738 = vmatprep.subr.mxu0 0.0
        %5739 = vmatpush1.xpose.msra.mxu0 0.0
        %5740 = vmatprep.subr.mxu0 0.0
        %5741 = vmatpush1.xpose.msra.mxu0 0.0
        %5742 = vmatprep.subr.mxu0 0.0
        %5743 = vmatpush1.xpose.msra.mxu0 0.0
        %5744 = vmatprep.subr.mxu0 0.0
        %5745 = vmatpush1.xpose.msra.mxu0 0.0
        %5746 = vmatprep.subr.mxu0 0.0
        %5747 = vmatpush1.xpose.msra.mxu0 0.0
        %5748 = vmatprep.subr.mxu0 0.0
        %5749 = vmatpush1.xpose.msra.mxu0 0.0
        %5750 = vmatprep.subr.mxu0 0.0
        %5751 = vmatpush1.xpose.msra.mxu0 0.0
        %5752 = vmatprep.subr.mxu0 0.0
        %5753 = vmatpush1.xpose.msra.mxu0 0.0
        %5754 = vmatprep.subr.mxu0 0.0
        %5755 = vmatpush1.xpose.msra.mxu0 0.0
        %5756 = vmatprep.subr.mxu0 0.0
        %5757 = vmatpush1.xpose.msra.mxu0 0.0
        %5758 = vmatprep.subr.mxu0 0.0
        %5759 = vmatpush1.xpose.msra.mxu0 0.0
        %5760 = vmatprep.subr.mxu0 0.0
        %5761 = vmatpush1.xpose.msra.mxu0 0.0
        %5762 = vmatprep.subr.mxu0 0.0
        %5763 = vmatpush1.xpose.msra.mxu0 0.0
        %5764 = vmatprep.subr.mxu0 0.0
        %5765 = vmatpush1.xpose.msra.mxu0 0.0
        %5766 = vmatprep.subr.mxu0 0.0
        %5767 = vmatpush1.xpose.msra.mxu0 0.0
        %5768 = vmatprep.subr.mxu0 0.0
        %5769 = vmatpush1.xpose.msra.mxu0 0.0
        %5770 = vmatprep.subr.mxu0 0.0
        %5771 = vmatpush1.xpose.msra.mxu0 0.0
        %5772 = vmatprep.subr.mxu0 0.0
        %5773 = vmatpush1.xpose.msra.mxu0 0.0
        %5774 = vmatprep.subr.mxu0 0.0
        %5775 = vmatpush1.xpose.msra.mxu0 0.0
        %5776 = vmatprep.subr.mxu0 0.0
        %5777 = vmatpush1.xpose.msra.mxu0 0.0
        %5778 = vmatprep.mubr.f32.mxu0 0.0
        %5779 = vmatmul.mubr.f32.gmra.mrb[0].mxu0 %v5700
        %v5780 = vpop.f32.mrb[0].mxu0
        %v5781 = vadd.f32 0.0, %v5780
        %v5782 = vpop.f32.mrb[0].mxu0
        %5783 = vmatprep.mubr.f32.mxu0 0.0
        %5784 = vmatmul.mubr.f32.gmra.mrb[0].mxu0 %v5703
        %v5785 = vpop.f32.mrb[0].mxu0
        %v5786 = vadd.f32 0.0, %v5785
        %v5787 = vpop.f32.mrb[0].mxu0
        %5788 = vdwg.mxu0
        %v5790 = vsel %vm555, %v3663, 0
        %v5793 = vsel %vm555, %v3731, 0
        %v5796 = vsel %vm555, %v4391, 0
        %v5799 = vsel %vm555, %v4459, 0
        %v5802 = vsel %vm555, %v4527, 0
        %5804 = vmatprep.subr.mxu0 0.0
        %5805 = vmatpush1.xpose.msra.mxu0 %v5796
        %5806 = vmatprep.subr.mxu0 0.0
        %5807 = vmatpush1.xpose.msra.mxu0 %v5799
        %5808 = vmatprep.subr.mxu0 0.0
        %5809 = vmatpush1.xpose.msra.mxu0 %v5802
        %5810 = vmatprep.subr.mxu0 0.0
        %5811 = vmatpush1.xpose.msra.mxu0 0.0
        %5812 = vmatprep.subr.mxu0 0.0
        %5813 = vmatpush1.xpose.msra.mxu0 0.0
        %5814 = vmatprep.subr.mxu0 0.0
        %5815 = vmatpush1.xpose.msra.mxu0 0.0
        %5816 = vmatprep.subr.mxu0 0.0
        %5817 = vmatpush1.xpose.msra.mxu0 0.0
        %5818 = vmatprep.subr.mxu0 0.0
        %5819 = vmatpush1.xpose.msra.mxu0 0.0
        %5820 = vmatprep.subr.mxu0 0.0
        %5821 = vmatpush1.xpose.msra.mxu0 0.0
        %5822 = vmatprep.subr.mxu0 0.0
        %5823 = vmatpush1.xpose.msra.mxu0 0.0
        %5824 = vmatprep.subr.mxu0 0.0
        %5825 = vmatpush1.xpose.msra.mxu0 0.0
        %5826 = vmatprep.subr.mxu0 0.0
        %5827 = vmatpush1.xpose.msra.mxu0 0.0
        %5828 = vmatprep.subr.mxu0 0.0
        %5829 = vmatpush1.xpose.msra.mxu0 0.0
        %5830 = vmatprep.subr.mxu0 0.0
        %5831 = vmatpush1.xpose.msra.mxu0 0.0
        %5832 = vmatprep.subr.mxu0 0.0
        %5833 = vmatpush1.xpose.msra.mxu0 0.0
        %5834 = vmatprep.subr.mxu0 0.0
        %5835 = vmatpush1.xpose.msra.mxu0 0.0
        %5836 = vmatprep.subr.mxu0 0.0
        %5837 = vmatpush1.xpose.msra.mxu0 0.0
        %5838 = vmatprep.subr.mxu0 0.0
        %5839 = vmatpush1.xpose.msra.mxu0 0.0
        %5840 = vmatprep.subr.mxu0 0.0
        %5841 = vmatpush1.xpose.msra.mxu0 0.0
        %5842 = vmatprep.subr.mxu0 0.0
        %5843 = vmatpush1.xpose.msra.mxu0 0.0
        %5844 = vmatprep.subr.mxu0 0.0
        %5845 = vmatpush1.xpose.msra.mxu0 0.0
        %5846 = vmatprep.subr.mxu0 0.0
        %5847 = vmatpush1.xpose.msra.mxu0 0.0
        %5848 = vmatprep.subr.mxu0 0.0
        %5849 = vmatpush1.xpose.msra.mxu0 0.0
        %5850 = vmatprep.subr.mxu0 0.0
        %5851 = vmatpush1.xpose.msra.mxu0 0.0
        %5852 = vmatprep.subr.mxu0 0.0
        %5853 = vmatpush1.xpose.msra.mxu0 0.0
        %5854 = vmatprep.subr.mxu0 0.0
        %5855 = vmatpush1.xpose.msra.mxu0 0.0
        %5856 = vmatprep.subr.mxu0 0.0
        %5857 = vmatpush1.xpose.msra.mxu0 0.0
        %5858 = vmatprep.subr.mxu0 0.0
        %5859 = vmatpush1.xpose.msra.mxu0 0.0
        %5860 = vmatprep.subr.mxu0 0.0
        %5861 = vmatpush1.xpose.msra.mxu0 0.0
        %5862 = vmatprep.subr.mxu0 0.0
        %5863 = vmatpush1.xpose.msra.mxu0 0.0
        %5864 = vmatprep.subr.mxu0 0.0
        %5865 = vmatpush1.xpose.msra.mxu0 0.0
        %5866 = vmatprep.subr.mxu0 0.0
        %5867 = vmatpush1.xpose.msra.mxu0 0.0
        %5868 = vmatprep.mubr.f32.mxu0 0.0
        %5869 = vmatmul.mubr.f32.gmra.mrb[0].mxu0 %v5790
        %v5870 = vpop.f32.mrb[0].mxu0
        %v5871 = vadd.f32 0.0, %v5870
        %v5872 = vpop.f32.mrb[0].mxu0
        %5873 = vmatprep.mubr.f32.mxu0 0.0
        %5874 = vmatmul.mubr.f32.gmra.mrb[0].mxu0 %v5793
        %v5875 = vpop.f32.mrb[0].mxu0
        %v5876 = vadd.f32 0.0, %v5875
        %v5877 = vpop.f32.mrb[0].mxu0
        %5878 = vdwg.mxu0
        %v5880 = vsel %vm555, %v3664, 0
        %v5883 = vsel %vm555, %v3732, 0
        %v5886 = vsel %vm555, %v4392, 0
        %v5889 = vsel %vm555, %v4460, 0
        %v5892 = vsel %vm555, %v4528, 0
        %5894 = vmatprep.subr.mxu0 0.0
        %5895 = vmatpush1.xpose.msra.mxu0 %v5886
        %5896 = vmatprep.subr.mxu0 0.0
        %5897 = vmatpush1.xpose.msra.mxu0 %v5889
        %5898 = vmatprep.subr.mxu0 0.0
        %5899 = vmatpush1.xpose.msra.mxu0 %v5892
        %5900 = vmatprep.subr.mxu0 0.0
        %5901 = vmatpush1.xpose.msra.mxu0 0.0
        %5902 = vmatprep.subr.mxu0 0.0
        %5903 = vmatpush1.xpose.msra.mxu0 0.0
        %5904 = vmatprep.subr.mxu0 0.0
        %5905 = vmatpush1.xpose.msra.mxu0 0.0
        %5906 = vmatprep.subr.mxu0 0.0
        %5907 = vmatpush1.xpose.msra.mxu0 0.0
        %5908 = vmatprep.subr.mxu0 0.0
        %5909 = vmatpush1.xpose.msra.mxu0 0.0
        %5910 = vmatprep.subr.mxu0 0.0
        %5911 = vmatpush1.xpose.msra.mxu0 0.0
        %5912 = vmatprep.subr.mxu0 0.0
        %5913 = vmatpush1.xpose.msra.mxu0 0.0
        %5914 = vmatprep.subr.mxu0 0.0
        %5915 = vmatpush1.xpose.msra.mxu0 0.0
        %5916 = vmatprep.subr.mxu0 0.0
        %5917 = vmatpush1.xpose.msra.mxu0 0.0
        %5918 = vmatprep.subr.mxu0 0.0
        %5919 = vmatpush1.xpose.msra.mxu0 0.0
        %5920 = vmatprep.subr.mxu0 0.0
        %5921 = vmatpush1.xpose.msra.mxu0 0.0
        %5922 = vmatprep.subr.mxu0 0.0
        %5923 = vmatpush1.xpose.msra.mxu0 0.0
        %5924 = vmatprep.subr.mxu0 0.0
        %5925 = vmatpush1.xpose.msra.mxu0 0.0
        %5926 = vmatprep.subr.mxu0 0.0
        %5927 = vmatpush1.xpose.msra.mxu0 0.0
        %5928 = vmatprep.subr.mxu0 0.0
        %5929 = vmatpush1.xpose.msra.mxu0 0.0
        %5930 = vmatprep.subr.mxu0 0.0
        %5931 = vmatpush1.xpose.msra.mxu0 0.0
        %5932 = vmatprep.subr.mxu0 0.0
        %5933 = vmatpush1.xpose.msra.mxu0 0.0
        %5934 = vmatprep.subr.mxu0 0.0
        %5935 = vmatpush1.xpose.msra.mxu0 0.0
        %5936 = vmatprep.subr.mxu0 0.0
        %5937 = vmatpush1.xpose.msra.mxu0 0.0
        %5938 = vmatprep.subr.mxu0 0.0
        %5939 = vmatpush1.xpose.msra.mxu0 0.0
        %5940 = vmatprep.subr.mxu0 0.0
        %5941 = vmatpush1.xpose.msra.mxu0 0.0
        %5942 = vmatprep.subr.mxu0 0.0
        %5943 = vmatpush1.xpose.msra.mxu0 0.0
        %5944 = vmatprep.subr.mxu0 0.0
        %5945 = vmatpush1.xpose.msra.mxu0 0.0
        %5946 = vmatprep.subr.mxu0 0.0
        %5947 = vmatpush1.xpose.msra.mxu0 0.0
        %5948 = vmatprep.subr.mxu0 0.0
        %5949 = vmatpush1.xpose.msra.mxu0 0.0
        %5950 = vmatprep.subr.mxu0 0.0
        %5951 = vmatpush1.xpose.msra.mxu0 0.0
        %5952 = vmatprep.subr.mxu0 0.0
        %5953 = vmatpush1.xpose.msra.mxu0 0.0
        %5954 = vmatprep.subr.mxu0 0.0
        %5955 = vmatpush1.xpose.msra.mxu0 0.0
        %5956 = vmatprep.subr.mxu0 0.0
        %5957 = vmatpush1.xpose.msra.mxu0 0.0
        %5958 = vmatprep.mubr.f32.mxu0 0.0
        %5959 = vmatmul.mubr.f32.gmra.mrb[0].mxu0 %v5880
        %v5960 = vpop.f32.mrb[0].mxu0
        %v5961 = vadd.f32 0.0, %v5960
        %v5962 = vpop.f32.mrb[0].mxu0
        %5963 = vmatprep.mubr.f32.mxu0 0.0
        %5964 = vmatmul.mubr.f32.gmra.mrb[0].mxu0 %v5883
        %v5965 = vpop.f32.mrb[0].mxu0
        %v5966 = vadd.f32 0.0, %v5965
        %v5967 = vpop.f32.mrb[0].mxu0
        %5968 = vdwg.mxu0
        %vm5969 = vcmask 195584
        %v5970 = vsel %vm5969, %v5691, 0.0
        %5971 = vadd.xlane.f32.xlu0 %v5970
        %v5972 = vpop.xlane.xlu0 %5971
        %v5973 = vsel %vm5969, %v5696, 0.0
        %5974 = vadd.xlane.f32.xlu0 %v5973
        %v5975 = vpop.xlane.xlu0 %5974
        %v5976 = vsel %vm5969, %v5781, 0.0
        %5977 = vadd.xlane.f32.xlu0 %v5976
        %v5978 = vpop.xlane.xlu0 %5977
        %v5979 = vsel %vm5969, %v5786, 0.0
        %5980 = vadd.xlane.f32.xlu0 %v5979
        %v5981 = vpop.xlane.xlu0 %5980
        %v5982 = vsel %vm5969, %v5871, 0.0
        %5983 = vadd.xlane.f32.xlu0 %v5982
        %v5984 = vpop.xlane.xlu0 %5983
        %v5985 = vsel %vm5969, %v5876, 0.0
        %5986 = vadd.xlane.f32.xlu0 %v5985
        %v5987 = vpop.xlane.xlu0 %5986
        %v5988 = vsel %vm5969, %v5961, 0.0
        %5989 = vadd.xlane.f32.xlu0 %v5988
        %v5990 = vpop.xlane.xlu0 %5989
        %v5991 = vsel %vm5969, %v5966, 0.0
        %5992 = vadd.xlane.f32.xlu0 %v5991
        %v5993 = vpop.xlane.xlu0 %5992
        %v5994 = vmax.f32 %v5972, 1e-06
        %v5995 = vmax.f32 %v5975, 1e-06
        %v5996 = vmax.f32 %v5978, 1e-06
        %v5997 = vmax.f32 %v5981, 1e-06
        %v5998 = vmax.f32 %v5984, 1e-06
        %v5999 = vmax.f32 %v5987, 1e-06
        %v6000 = vmax.f32 %v5990, 1e-06
        %v6001 = vmax.f32 %v5993, 1e-06
        %v6002 = vrcp.pop %v5994
        %v6003 = vrcp.pop %v5995
        %v6004 = vrcp.pop %v5996
        %v6005 = vrcp.pop %v5997
        %v6006 = vrcp.pop %v5998
        %v6007 = vrcp.pop %v5999
        %v6008 = vrcp.pop %v6000
        %v6009 = vrcp.pop %v6001
        %v6010 = vmul.f32 %v5691, %v6002
        %v6011 = vmul.f32 %v5696, %v6003
        %v6012 = vmul.f32 %v5781, %v6004
        %v6013 = vmul.f32 %v5786, %v6005
        %v6014 = vmul.f32 %v5871, %v6006
        %v6015 = vmul.f32 %v5876, %v6007
        %v6016 = vmul.f32 %v5961, %v6008
        %v6017 = vmul.f32 %v5966, %v6009
        %v6019 = vsel %vm5969, %v6010, 0
        %v6022 = vsel %vm5969, %v6011, 0
        %6024 = vmatprep.subr.mxu0 0.0
        %6025 = vmatpush1.msra.mxu0 %v5265
        %6026 = vmatprep.subr.mxu0 0.0
        %6027 = vmatpush1.msra.mxu0 %v5333
        %6028 = vmatprep.subr.mxu0 0.0
        %6029 = vmatpush1.msra.mxu0 %v5401
        %6030 = vmatprep.subr.mxu0 0.0
        %6031 = vmatpush1.msra.mxu0 0.0
        %6032 = vmatprep.subr.mxu0 0.0
        %6033 = vmatpush1.msra.mxu0 0.0
        %6034 = vmatprep.subr.mxu0 0.0
        %6035 = vmatpush1.msra.mxu0 0.0
        %6036 = vmatprep.subr.mxu0 0.0
        %6037 = vmatpush1.msra.mxu0 0.0
        %6038 = vmatprep.subr.mxu0 0.0
        %6039 = vmatpush1.msra.mxu0 0.0
        %6040 = vmatprep.subr.mxu0 0.0
        %6041 = vmatpush1.msra.mxu0 0.0
        %6042 = vmatprep.subr.mxu0 0.0
        %6043 = vmatpush1.msra.mxu0 0.0
        %6044 = vmatprep.subr.mxu0 0.0
        %6045 = vmatpush1.msra.mxu0 0.0
        %6046 = vmatprep.subr.mxu0 0.0
        %6047 = vmatpush1.msra.mxu0 0.0
        %6048 = vmatprep.subr.mxu0 0.0
        %6049 = vmatpush1.msra.mxu0 0.0
        %6050 = vmatprep.subr.mxu0 0.0
        %6051 = vmatpush1.msra.mxu0 0.0
        %6052 = vmatprep.subr.mxu0 0.0
        %6053 = vmatpush1.msra.mxu0 0.0
        %6054 = vmatprep.subr.mxu0 0.0
        %6055 = vmatpush1.msra.mxu0 0.0
        %6056 = vmatprep.subr.mxu0 0.0
        %6057 = vmatpush1.msra.mxu0 0.0
        %6058 = vmatprep.subr.mxu0 0.0
        %6059 = vmatpush1.msra.mxu0 0.0
        %6060 = vmatprep.subr.mxu0 0.0
        %6061 = vmatpush1.msra.mxu0 0.0
        %6062 = vmatprep.subr.mxu0 0.0
        %6063 = vmatpush1.msra.mxu0 0.0
        %6064 = vmatprep.subr.mxu0 0.0
        %6065 = vmatpush1.msra.mxu0 0.0
        %6066 = vmatprep.subr.mxu0 0.0
        %6067 = vmatpush1.msra.mxu0 0.0
        %6068 = vmatprep.subr.mxu0 0.0
        %6069 = vmatpush1.msra.mxu0 0.0
        %6070 = vmatprep.subr.mxu0 0.0
        %6071 = vmatpush1.msra.mxu0 0.0
        %6072 = vmatprep.subr.mxu0 0.0
        %6073 = vmatpush1.msra.mxu0 0.0
        %6074 = vmatprep.subr.mxu0 0.0
        %6075 = vmatpush1.msra.mxu0 0.0
        %6076 = vmatprep.subr.mxu0 0.0
        %6077 = vmatpush1.msra.mxu0 0.0
        %6078 = vmatprep.subr.mxu0 0.0
        %6079 = vmatpush1.msra.mxu0 0.0
        %6080 = vmatprep.subr.mxu0 0.0
        %6081 = vmatpush1.msra.mxu0 0.0
        %6082 = vmatprep.subr.mxu0 0.0
        %6083 = vmatpush1.msra.mxu0 0.0
        %6084 = vmatprep.subr.mxu0 0.0
        %6085 = vmatpush1.msra.mxu0 0.0
        %6086 = vmatprep.subr.mxu0 0.0
        %6087 = vmatpush1.msra.mxu0 0.0
        %6088 = vmatprep.mubr.f32.mxu0 0.0
        %6089 = vmatmul.mubr.f32.gmra.mrb[0].mxu0 %v6019
        %v6090 = vpop.f32.mrb[0].mxu0
        %v6091 = vadd.f32 0.0, %v6090
        %v6092 = vpop.f32.mrb[0].mxu0
        %6093 = vmatprep.mubr.f32.mxu0 0.0
        %6094 = vmatmul.mubr.f32.gmra.mrb[0].mxu0 %v6022
        %v6095 = vpop.f32.mrb[0].mxu0
        %v6096 = vadd.f32 0.0, %v6095
        %v6097 = vpop.f32.mrb[0].mxu0
        %6098 = vdwg.mxu0
        %v6100 = vsel %vm5969, %v6012, 0
        %v6103 = vsel %vm5969, %v6013, 0
        %6105 = vmatprep.subr.mxu0 0.0
        %6106 = vmatpush1.msra.mxu0 %v5266
        %6107 = vmatprep.subr.mxu0 0.0
        %6108 = vmatpush1.msra.mxu0 %v5334
        %6109 = vmatprep.subr.mxu0 0.0
        %6110 = vmatpush1.msra.mxu0 %v5402
        %6111 = vmatprep.subr.mxu0 0.0
        %6112 = vmatpush1.msra.mxu0 0.0
        %6113 = vmatprep.subr.mxu0 0.0
        %6114 = vmatpush1.msra.mxu0 0.0
        %6115 = vmatprep.subr.mxu0 0.0
        %6116 = vmatpush1.msra.mxu0 0.0
        %6117 = vmatprep.subr.mxu0 0.0
        %6118 = vmatpush1.msra.mxu0 0.0
        %6119 = vmatprep.subr.mxu0 0.0
        %6120 = vmatpush1.msra.mxu0 0.0
        %6121 = vmatprep.subr.mxu0 0.0
        %6122 = vmatpush1.msra.mxu0 0.0
        %6123 = vmatprep.subr.mxu0 0.0
        %6124 = vmatpush1.msra.mxu0 0.0
        %6125 = vmatprep.subr.mxu0 0.0
        %6126 = vmatpush1.msra.mxu0 0.0
        %6127 = vmatprep.subr.mxu0 0.0
        %6128 = vmatpush1.msra.mxu0 0.0
        %6129 = vmatprep.subr.mxu0 0.0
        %6130 = vmatpush1.msra.mxu0 0.0
        %6131 = vmatprep.subr.mxu0 0.0
        %6132 = vmatpush1.msra.mxu0 0.0
        %6133 = vmatprep.subr.mxu0 0.0
        %6134 = vmatpush1.msra.mxu0 0.0
        %6135 = vmatprep.subr.mxu0 0.0
        %6136 = vmatpush1.msra.mxu0 0.0
        %6137 = vmatprep.subr.mxu0 0.0
        %6138 = vmatpush1.msra.mxu0 0.0
        %6139 = vmatprep.subr.mxu0 0.0
        %6140 = vmatpush1.msra.mxu0 0.0
        %6141 = vmatprep.subr.mxu0 0.0
        %6142 = vmatpush1.msra.mxu0 0.0
        %6143 = vmatprep.subr.mxu0 0.0
        %6144 = vmatpush1.msra.mxu0 0.0
        %6145 = vmatprep.subr.mxu0 0.0
        %6146 = vmatpush1.msra.mxu0 0.0
        %6147 = vmatprep.subr.mxu0 0.0
        %6148 = vmatpush1.msra.mxu0 0.0
        %6149 = vmatprep.subr.mxu0 0.0
        %6150 = vmatpush1.msra.mxu0 0.0
        %6151 = vmatprep.subr.mxu0 0.0
        %6152 = vmatpush1.msra.mxu0 0.0
        %6153 = vmatprep.subr.mxu0 0.0
        %6154 = vmatpush1.msra.mxu0 0.0
        %6155 = vmatprep.subr.mxu0 0.0
        %6156 = vmatpush1.msra.mxu0 0.0
        %6157 = vmatprep.subr.mxu0 0.0
        %6158 = vmatpush1.msra.mxu0 0.0
        %6159 = vmatprep.subr.mxu0 0.0
        %6160 = vmatpush1.msra.mxu0 0.0
        %6161 = vmatprep.subr.mxu0 0.0
        %6162 = vmatpush1.msra.mxu0 0.0
        %6163 = vmatprep.subr.mxu0 0.0
        %6164 = vmatpush1.msra.mxu0 0.0
        %6165 = vmatprep.subr.mxu0 0.0
        %6166 = vmatpush1.msra.mxu0 0.0
        %6167 = vmatprep.subr.mxu0 0.0
        %6168 = vmatpush1.msra.mxu0 0.0
        %6169 = vmatprep.mubr.f32.mxu0 0.0
        %6170 = vmatmul.mubr.f32.gmra.mrb[0].mxu0 %v6100
        %v6171 = vpop.f32.mrb[0].mxu0
        %v6172 = vadd.f32 0.0, %v6171
        %v6173 = vpop.f32.mrb[0].mxu0
        %6174 = vmatprep.mubr.f32.mxu0 0.0
        %6175 = vmatmul.mubr.f32.gmra.mrb[0].mxu0 %v6103
        %v6176 = vpop.f32.mrb[0].mxu0
        %v6177 = vadd.f32 0.0, %v6176
        %v6178 = vpop.f32.mrb[0].mxu0
        %6179 = vdwg.mxu0
        %v6181 = vsel %vm5969, %v6014, 0
        %v6184 = vsel %vm5969, %v6015, 0
        %6186 = vmatprep.subr.mxu0 0.0
        %6187 = vmatpush1.msra.mxu0 %v5267
        %6188 = vmatprep.subr.mxu0 0.0
        %6189 = vmatpush1.msra.mxu0 %v5335
        %6190 = vmatprep.subr.mxu0 0.0
        %6191 = vmatpush1.msra.mxu0 %v5403
        %6192 = vmatprep.subr.mxu0 0.0
        %6193 = vmatpush1.msra.mxu0 0.0
        %6194 = vmatprep.subr.mxu0 0.0
        %6195 = vmatpush1.msra.mxu0 0.0
        %6196 = vmatprep.subr.mxu0 0.0
        %6197 = vmatpush1.msra.mxu0 0.0
        %6198 = vmatprep.subr.mxu0 0.0
        %6199 = vmatpush1.msra.mxu0 0.0
        %6200 = vmatprep.subr.mxu0 0.0
        %6201 = vmatpush1.msra.mxu0 0.0
        %6202 = vmatprep.subr.mxu0 0.0
        %6203 = vmatpush1.msra.mxu0 0.0
        %6204 = vmatprep.subr.mxu0 0.0
        %6205 = vmatpush1.msra.mxu0 0.0
        %6206 = vmatprep.subr.mxu0 0.0
        %6207 = vmatpush1.msra.mxu0 0.0
        %6208 = vmatprep.subr.mxu0 0.0
        %6209 = vmatpush1.msra.mxu0 0.0
        %6210 = vmatprep.subr.mxu0 0.0
        %6211 = vmatpush1.msra.mxu0 0.0
        %6212 = vmatprep.subr.mxu0 0.0
        %6213 = vmatpush1.msra.mxu0 0.0
        %6214 = vmatprep.subr.mxu0 0.0
        %6215 = vmatpush1.msra.mxu0 0.0
        %6216 = vmatprep.subr.mxu0 0.0
        %6217 = vmatpush1.msra.mxu0 0.0
        %6218 = vmatprep.subr.mxu0 0.0
        %6219 = vmatpush1.msra.mxu0 0.0
        %6220 = vmatprep.subr.mxu0 0.0
        %6221 = vmatpush1.msra.mxu0 0.0
        %6222 = vmatprep.subr.mxu0 0.0
        %6223 = vmatpush1.msra.mxu0 0.0
        %6224 = vmatprep.subr.mxu0 0.0
        %6225 = vmatpush1.msra.mxu0 0.0
        %6226 = vmatprep.subr.mxu0 0.0
        %6227 = vmatpush1.msra.mxu0 0.0
        %6228 = vmatprep.subr.mxu0 0.0
        %6229 = vmatpush1.msra.mxu0 0.0
        %6230 = vmatprep.subr.mxu0 0.0
        %6231 = vmatpush1.msra.mxu0 0.0
        %6232 = vmatprep.subr.mxu0 0.0
        %6233 = vmatpush1.msra.mxu0 0.0
        %6234 = vmatprep.subr.mxu0 0.0
        %6235 = vmatpush1.msra.mxu0 0.0
        %6236 = vmatprep.subr.mxu0 0.0
        %6237 = vmatpush1.msra.mxu0 0.0
        %6238 = vmatprep.subr.mxu0 0.0
        %6239 = vmatpush1.msra.mxu0 0.0
        %6240 = vmatprep.subr.mxu0 0.0
        %6241 = vmatpush1.msra.mxu0 0.0
        %6242 = vmatprep.subr.mxu0 0.0
        %6243 = vmatpush1.msra.mxu0 0.0
        %6244 = vmatprep.subr.mxu0 0.0
        %6245 = vmatpush1.msra.mxu0 0.0
        %6246 = vmatprep.subr.mxu0 0.0
        %6247 = vmatpush1.msra.mxu0 0.0
        %6248 = vmatprep.subr.mxu0 0.0
        %6249 = vmatpush1.msra.mxu0 0.0
        %6250 = vmatprep.mubr.f32.mxu0 0.0
        %6251 = vmatmul.mubr.f32.gmra.mrb[0].mxu0 %v6181
        %v6252 = vpop.f32.mrb[0].mxu0
        %v6253 = vadd.f32 0.0, %v6252
        %v6254 = vpop.f32.mrb[0].mxu0
        %6255 = vmatprep.mubr.f32.mxu0 0.0
        %6256 = vmatmul.mubr.f32.gmra.mrb[0].mxu0 %v6184
        %v6257 = vpop.f32.mrb[0].mxu0
        %v6258 = vadd.f32 0.0, %v6257
        %v6259 = vpop.f32.mrb[0].mxu0
        %6260 = vdwg.mxu0
        %v6262 = vsel %vm5969, %v6016, 0
        %v6265 = vsel %vm5969, %v6017, 0
        %6267 = vmatprep.subr.mxu0 0.0
        %6268 = vmatpush1.msra.mxu0 %v5268
        %6269 = vmatprep.subr.mxu0 0.0
        %6270 = vmatpush1.msra.mxu0 %v5336
        %6271 = vmatprep.subr.mxu0 0.0
        %6272 = vmatpush1.msra.mxu0 %v5404
        %6273 = vmatprep.subr.mxu0 0.0
        %6274 = vmatpush1.msra.mxu0 0.0
        %6275 = vmatprep.subr.mxu0 0.0
        %6276 = vmatpush1.msra.mxu0 0.0
        %6277 = vmatprep.subr.mxu0 0.0
        %6278 = vmatpush1.msra.mxu0 0.0
        %6279 = vmatprep.subr.mxu0 0.0
        %6280 = vmatpush1.msra.mxu0 0.0
        %6281 = vmatprep.subr.mxu0 0.0
        %6282 = vmatpush1.msra.mxu0 0.0
        %6283 = vmatprep.subr.mxu0 0.0
        %6284 = vmatpush1.msra.mxu0 0.0
        %6285 = vmatprep.subr.mxu0 0.0
        %6286 = vmatpush1.msra.mxu0 0.0
        %6287 = vmatprep.subr.mxu0 0.0
        %6288 = vmatpush1.msra.mxu0 0.0
        %6289 = vmatprep.subr.mxu0 0.0
        %6290 = vmatpush1.msra.mxu0 0.0
        %6291 = vmatprep.subr.mxu0 0.0
        %6292 = vmatpush1.msra.mxu0 0.0
        %6293 = vmatprep.subr.mxu0 0.0
        %6294 = vmatpush1.msra.mxu0 0.0
        %6295 = vmatprep.subr.mxu0 0.0
        %6296 = vmatpush1.msra.mxu0 0.0
        %6297 = vmatprep.subr.mxu0 0.0
        %6298 = vmatpush1.msra.mxu0 0.0
        %6299 = vmatprep.subr.mxu0 0.0
        %6300 = vmatpush1.msra.mxu0 0.0
        %6301 = vmatprep.subr.mxu0 0.0
        %6302 = vmatpush1.msra.mxu0 0.0
        %6303 = vmatprep.subr.mxu0 0.0
        %6304 = vmatpush1.msra.mxu0 0.0
        %6305 = vmatprep.subr.mxu0 0.0
        %6306 = vmatpush1.msra.mxu0 0.0
        %6307 = vmatprep.subr.mxu0 0.0
        %6308 = vmatpush1.msra.mxu0 0.0
        %6309 = vmatprep.subr.mxu0 0.0
        %6310 = vmatpush1.msra.mxu0 0.0
        %6311 = vmatprep.subr.mxu0 0.0
        %6312 = vmatpush1.msra.mxu0 0.0
        %6313 = vmatprep.subr.mxu0 0.0
        %6314 = vmatpush1.msra.mxu0 0.0
        %6315 = vmatprep.subr.mxu0 0.0
        %6316 = vmatpush1.msra.mxu0 0.0
        %6317 = vmatprep.subr.mxu0 0.0
        %6318 = vmatpush1.msra.mxu0 0.0
        %6319 = vmatprep.subr.mxu0 0.0
        %6320 = vmatpush1.msra.mxu0 0.0
        %6321 = vmatprep.subr.mxu0 0.0
        %6322 = vmatpush1.msra.mxu0 0.0
        %6323 = vmatprep.subr.mxu0 0.0
        %6324 = vmatpush1.msra.mxu0 0.0
        %6325 = vmatprep.subr.mxu0 0.0
        %6326 = vmatpush1.msra.mxu0 0.0
        %6327 = vmatprep.subr.mxu0 0.0
        %6328 = vmatpush1.msra.mxu0 0.0
        %6329 = vmatprep.subr.mxu0 0.0
        %6330 = vmatpush1.msra.mxu0 0.0
        %6331 = vmatprep.mubr.f32.mxu0 0.0
        %6332 = vmatmul.mubr.f32.gmra.mrb[0].mxu0 %v6262
        %v6333 = vpop.f32.mrb[0].mxu0
        %v6334 = vadd.f32 0.0, %v6333
        %v6335 = vpop.f32.mrb[0].mxu0
        %6336 = vmatprep.mubr.f32.mxu0 0.0
        %6337 = vmatmul.mubr.f32.gmra.mrb[0].mxu0 %v6265
        %v6338 = vpop.f32.mrb[0].mxu0
        %v6339 = vadd.f32 0.0, %v6338
        %v6340 = vpop.f32.mrb[0].mxu0
        %6341 = vdwg.mxu0
        %v6342 = vld [vmem:[#allocation7] sm:$0xff]
        %v6343 = vld [vmem:[#allocation7 + $0x8] sm:$0xff]
        %s6344 = scalar_lea.vmem [#allocation7], 16
        %v6345 = vld [vmem:[%s6344] sm:$0xff]
        %v6346 = vld [vmem:[%s6344 + $0x8] sm:$0xff]
        %vm6347 = vcmask 130048
        %v6349 = vsel %vm6347, %v6172, 0
        %v6352 = vsel %vm6347, %v6177, 0
        %6354 = vmatprep.subr.mxu0 0.0
        %6355 = vmatpush1.msra.mxu0 %v6345
        %6356 = vmatprep.subr.mxu0 0.0
        %6357 = vmatpush1.msra.mxu0 %v6346
        %6358 = vmatprep.subr.mxu0 0.0
        %6359 = vmatpush1.msra.mxu0 0.0
        %6360 = vmatprep.subr.mxu0 0.0
        %6361 = vmatpush1.msra.mxu0 0.0
        %6362 = vmatprep.subr.mxu0 0.0
        %6363 = vmatpush1.msra.mxu0 0.0
        %6364 = vmatprep.subr.mxu0 0.0
        %6365 = vmatpush1.msra.mxu0 0.0
        %6366 = vmatprep.subr.mxu0 0.0
        %6367 = vmatpush1.msra.mxu0 0.0
        %6368 = vmatprep.subr.mxu0 0.0
        %6369 = vmatpush1.msra.mxu0 0.0
        %6370 = vmatprep.subr.mxu0 0.0
        %6371 = vmatpush1.msra.mxu0 0.0
        %6372 = vmatprep.subr.mxu0 0.0
        %6373 = vmatpush1.msra.mxu0 0.0
        %6374 = vmatprep.subr.mxu0 0.0
        %6375 = vmatpush1.msra.mxu0 0.0
        %6376 = vmatprep.subr.mxu0 0.0
        %6377 = vmatpush1.msra.mxu0 0.0
        %6378 = vmatprep.subr.mxu0 0.0
        %6379 = vmatpush1.msra.mxu0 0.0
        %6380 = vmatprep.subr.mxu0 0.0
        %6381 = vmatpush1.msra.mxu0 0.0
        %6382 = vmatprep.subr.mxu0 0.0
        %6383 = vmatpush1.msra.mxu0 0.0
        %6384 = vmatprep.subr.mxu0 0.0
        %6385 = vmatpush1.msra.mxu0 0.0
        %6386 = vmatprep.subr.mxu0 0.0
        %6387 = vmatpush1.msra.mxu0 0.0
        %6388 = vmatprep.subr.mxu0 0.0
        %6389 = vmatpush1.msra.mxu0 0.0
        %6390 = vmatprep.subr.mxu0 0.0
        %6391 = vmatpush1.msra.mxu0 0.0
        %6392 = vmatprep.subr.mxu0 0.0
        %6393 = vmatpush1.msra.mxu0 0.0
        %6394 = vmatprep.subr.mxu0 0.0
        %6395 = vmatpush1.msra.mxu0 0.0
        %6396 = vmatprep.subr.mxu0 0.0
        %6397 = vmatpush1.msra.mxu0 0.0
        %6398 = vmatprep.subr.mxu0 0.0
        %6399 = vmatpush1.msra.mxu0 0.0
        %6400 = vmatprep.subr.mxu0 0.0
        %6401 = vmatpush1.msra.mxu0 0.0
        %6402 = vmatprep.subr.mxu0 0.0
        %6403 = vmatpush1.msra.mxu0 0.0
        %6404 = vmatprep.subr.mxu0 0.0
        %6405 = vmatpush1.msra.mxu0 0.0
        %6406 = vmatprep.subr.mxu0 0.0
        %6407 = vmatpush1.msra.mxu0 0.0
        %6408 = vmatprep.subr.mxu0 0.0
        %6409 = vmatpush1.msra.mxu0 0.0
        %6410 = vmatprep.subr.mxu0 0.0
        %6411 = vmatpush1.msra.mxu0 0.0
        %6412 = vmatprep.subr.mxu0 0.0
        %6413 = vmatpush1.msra.mxu0 0.0
        %6414 = vmatprep.subr.mxu0 0.0
        %6415 = vmatpush1.msra.mxu0 0.0
        %6416 = vmatprep.subr.mxu0 0.0
        %6417 = vmatpush1.msra.mxu0 0.0
        %6418 = vmatprep.mubr.f32.mxu0 0.0
        %6419 = vmatmul.mubr.f32.gmra.mrb[0].mxu0 %v6349
        %v6420 = vpop.f32.mrb[0].mxu0
        %v6421 = vadd.f32 0.0, %v6420
        %v6422 = vpop.f32.mrb[0].mxu0
        %6423 = vmatprep.mubr.f32.mxu0 0.0
        %6424 = vmatmul.mubr.f32.gmra.mrb[0].mxu0 %v6352
        %v6425 = vpop.f32.mrb[0].mxu0
        %v6426 = vadd.f32 0.0, %v6425
        %v6427 = vpop.f32.mrb[0].mxu0
        %6428 = vdwg.mxu0
        %v6430 = vsel %vm6347, %v6091, 0
        %v6433 = vsel %vm6347, %v6096, 0
        %6435 = vmatprep.subr.mxu0 0.0
        %6436 = vmatpush1.msra.mxu0 %v6342
        %6437 = vmatprep.subr.mxu0 0.0
        %6438 = vmatpush1.msra.mxu0 %v6343
        %6439 = vmatprep.subr.mxu0 0.0
        %6440 = vmatpush1.msra.mxu0 0.0
        %6441 = vmatprep.subr.mxu0 0.0
        %6442 = vmatpush1.msra.mxu0 0.0
        %6443 = vmatprep.subr.mxu0 0.0
        %6444 = vmatpush1.msra.mxu0 0.0
        %6445 = vmatprep.subr.mxu0 0.0
        %6446 = vmatpush1.msra.mxu0 0.0
        %6447 = vmatprep.subr.mxu0 0.0
        %6448 = vmatpush1.msra.mxu0 0.0
        %6449 = vmatprep.subr.mxu0 0.0
        %6450 = vmatpush1.msra.mxu0 0.0
        %6451 = vmatprep.subr.mxu0 0.0
        %6452 = vmatpush1.msra.mxu0 0.0
        %6453 = vmatprep.subr.mxu0 0.0
        %6454 = vmatpush1.msra.mxu0 0.0
        %6455 = vmatprep.subr.mxu0 0.0
        %6456 = vmatpush1.msra.mxu0 0.0
        %6457 = vmatprep.subr.mxu0 0.0
        %6458 = vmatpush1.msra.mxu0 0.0
        %6459 = vmatprep.subr.mxu0 0.0
        %6460 = vmatpush1.msra.mxu0 0.0
        %6461 = vmatprep.subr.mxu0 0.0
        %6462 = vmatpush1.msra.mxu0 0.0
        %6463 = vmatprep.subr.mxu0 0.0
        %6464 = vmatpush1.msra.mxu0 0.0
        %6465 = vmatprep.subr.mxu0 0.0
        %6466 = vmatpush1.msra.mxu0 0.0
        %6467 = vmatprep.subr.mxu0 0.0
        %6468 = vmatpush1.msra.mxu0 0.0
        %6469 = vmatprep.subr.mxu0 0.0
        %6470 = vmatpush1.msra.mxu0 0.0
        %6471 = vmatprep.subr.mxu0 0.0
        %6472 = vmatpush1.msra.mxu0 0.0
        %6473 = vmatprep.subr.mxu0 0.0
        %6474 = vmatpush1.msra.mxu0 0.0
        %6475 = vmatprep.subr.mxu0 0.0
        %6476 = vmatpush1.msra.mxu0 0.0
        %6477 = vmatprep.subr.mxu0 0.0
        %6478 = vmatpush1.msra.mxu0 0.0
        %6479 = vmatprep.subr.mxu0 0.0
        %6480 = vmatpush1.msra.mxu0 0.0
        %6481 = vmatprep.subr.mxu0 0.0
        %6482 = vmatpush1.msra.mxu0 0.0
        %6483 = vmatprep.subr.mxu0 0.0
        %6484 = vmatpush1.msra.mxu0 0.0
        %6485 = vmatprep.subr.mxu0 0.0
        %6486 = vmatpush1.msra.mxu0 0.0
        %6487 = vmatprep.subr.mxu0 0.0
        %6488 = vmatpush1.msra.mxu0 0.0
        %6489 = vmatprep.subr.mxu0 0.0
        %6490 = vmatpush1.msra.mxu0 0.0
        %6491 = vmatprep.subr.mxu0 0.0
        %6492 = vmatpush1.msra.mxu0 0.0
        %6493 = vmatprep.subr.mxu0 0.0
        %6494 = vmatpush1.msra.mxu0 0.0
        %6495 = vmatprep.subr.mxu0 0.0
        %6496 = vmatpush1.msra.mxu0 0.0
        %6497 = vmatprep.subr.mxu0 0.0
        %6498 = vmatpush1.msra.mxu0 0.0
        %6499 = vmatprep.mubr.f32.mxu0 0.0
        %6500 = vmatmul.mubr.f32.gmra.mrb[0].mxu0 %v6430
        %v6501 = vpop.f32.mrb[0].mxu0
        %v6502 = vadd.f32 %v6421, %v6501
        %v6503 = vpop.f32.mrb[0].mxu0
        %6504 = vmatprep.mubr.f32.mxu0 0.0
        %6505 = vmatmul.mubr.f32.gmra.mrb[0].mxu0 %v6433
        %v6506 = vpop.f32.mrb[0].mxu0
        %v6507 = vadd.f32 %v6426, %v6506
        %v6508 = vpop.f32.mrb[0].mxu0
        %6509 = vdwg.mxu0
        %s6510 = scalar_lea.vmem [#allocation7], 32
        %v6511 = vld [vmem:[%s6510] sm:$0xff]
        %v6512 = vld [vmem:[%s6510 + $0x8] sm:$0xff]
        %v6514 = vsel %vm6347, %v6253, 0
        %v6517 = vsel %vm6347, %v6258, 0
        %6519 = vmatprep.subr.mxu0 0.0
        %6520 = vmatpush1.msra.mxu0 %v6511
        %6521 = vmatprep.subr.mxu0 0.0
        %6522 = vmatpush1.msra.mxu0 %v6512
        %6523 = vmatprep.subr.mxu0 0.0
        %6524 = vmatpush1.msra.mxu0 0.0
        %6525 = vmatprep.subr.mxu0 0.0
        %6526 = vmatpush1.msra.mxu0 0.0
        %6527 = vmatprep.subr.mxu0 0.0
        %6528 = vmatpush1.msra.mxu0 0.0
        %6529 = vmatprep.subr.mxu0 0.0
        %6530 = vmatpush1.msra.mxu0 0.0
        %6531 = vmatprep.subr.mxu0 0.0
        %6532 = vmatpush1.msra.mxu0 0.0
        %6533 = vmatprep.subr.mxu0 0.0
        %6534 = vmatpush1.msra.mxu0 0.0
        %6535 = vmatprep.subr.mxu0 0.0
        %6536 = vmatpush1.msra.mxu0 0.0
        %6537 = vmatprep.subr.mxu0 0.0
        %6538 = vmatpush1.msra.mxu0 0.0
        %6539 = vmatprep.subr.mxu0 0.0
        %6540 = vmatpush1.msra.mxu0 0.0
        %6541 = vmatprep.subr.mxu0 0.0
        %6542 = vmatpush1.msra.mxu0 0.0
        %6543 = vmatprep.subr.mxu0 0.0
        %6544 = vmatpush1.msra.mxu0 0.0
        %6545 = vmatprep.subr.mxu0 0.0
        %6546 = vmatpush1.msra.mxu0 0.0
        %6547 = vmatprep.subr.mxu0 0.0
        %6548 = vmatpush1.msra.mxu0 0.0
        %6549 = vmatprep.subr.mxu0 0.0
        %6550 = vmatpush1.msra.mxu0 0.0
        %6551 = vmatprep.subr.mxu0 0.0
        %6552 = vmatpush1.msra.mxu0 0.0
        %6553 = vmatprep.subr.mxu0 0.0
        %6554 = vmatpush1.msra.mxu0 0.0
        %6555 = vmatprep.subr.mxu0 0.0
        %6556 = vmatpush1.msra.mxu0 0.0
        %6557 = vmatprep.subr.mxu0 0.0
        %6558 = vmatpush1.msra.mxu0 0.0
        %6559 = vmatprep.subr.mxu0 0.0
        %6560 = vmatpush1.msra.mxu0 0.0
        %6561 = vmatprep.subr.mxu0 0.0
        %6562 = vmatpush1.msra.mxu0 0.0
        %6563 = vmatprep.subr.mxu0 0.0
        %6564 = vmatpush1.msra.mxu0 0.0
        %6565 = vmatprep.subr.mxu0 0.0
        %6566 = vmatpush1.msra.mxu0 0.0
        %6567 = vmatprep.subr.mxu0 0.0
        %6568 = vmatpush1.msra.mxu0 0.0
        %6569 = vmatprep.subr.mxu0 0.0
        %6570 = vmatpush1.msra.mxu0 0.0
        %6571 = vmatprep.subr.mxu0 0.0
        %6572 = vmatpush1.msra.mxu0 0.0
        %6573 = vmatprep.subr.mxu0 0.0
        %6574 = vmatpush1.msra.mxu0 0.0
        %6575 = vmatprep.subr.mxu0 0.0
        %6576 = vmatpush1.msra.mxu0 0.0
        %6577 = vmatprep.subr.mxu0 0.0
        %6578 = vmatpush1.msra.mxu0 0.0
        %6579 = vmatprep.subr.mxu0 0.0
        %6580 = vmatpush1.msra.mxu0 0.0
        %6581 = vmatprep.subr.mxu0 0.0
        %6582 = vmatpush1.msra.mxu0 0.0
        %6583 = vmatprep.mubr.f32.mxu0 0.0
        %6584 = vmatmul.mubr.f32.gmra.mrb[0].mxu0 %v6514
        %v6585 = vpop.f32.mrb[0].mxu0
        %v6586 = vadd.f32 0.0, %v6585
        %v6587 = vpop.f32.mrb[0].mxu0
        %6588 = vmatprep.mubr.f32.mxu0 0.0
        %6589 = vmatmul.mubr.f32.gmra.mrb[0].mxu0 %v6517
        %v6590 = vpop.f32.mrb[0].mxu0
        %v6591 = vadd.f32 0.0, %v6590
        %v6592 = vpop.f32.mrb[0].mxu0
        %6593 = vdwg.mxu0
        %v6594 = vadd.f32 %v6502, %v6586
        %v6595 = vadd.f32 %v6507, %v6591
        %s6596 = scalar_lea.vmem [#allocation7], 48
        %v6597 = vld [vmem:[%s6596] sm:$0xff]
        %v6598 = vld [vmem:[%s6596 + $0x8] sm:$0xff]
        %v6600 = vsel %vm6347, %v6334, 0
        %v6603 = vsel %vm6347, %v6339, 0
        %6605 = vmatprep.subr.mxu0 0.0
        %6606 = vmatpush1.msra.mxu0 %v6597
        %6607 = vmatprep.subr.mxu0 0.0
        %6608 = vmatpush1.msra.mxu0 %v6598
        %6609 = vmatprep.subr.mxu0 0.0
        %6610 = vmatpush1.msra.mxu0 0.0
        %6611 = vmatprep.subr.mxu0 0.0
        %6612 = vmatpush1.msra.mxu0 0.0
        %6613 = vmatprep.subr.mxu0 0.0
        %6614 = vmatpush1.msra.mxu0 0.0
        %6615 = vmatprep.subr.mxu0 0.0
        %6616 = vmatpush1.msra.mxu0 0.0
        %6617 = vmatprep.subr.mxu0 0.0
        %6618 = vmatpush1.msra.mxu0 0.0
        %6619 = vmatprep.subr.mxu0 0.0
        %6620 = vmatpush1.msra.mxu0 0.0
        %6621 = vmatprep.subr.mxu0 0.0
        %6622 = vmatpush1.msra.mxu0 0.0
        %6623 = vmatprep.subr.mxu0 0.0
        %6624 = vmatpush1.msra.mxu0 0.0
        %6625 = vmatprep.subr.mxu0 0.0
        %6626 = vmatpush1.msra.mxu0 0.0
        %6627 = vmatprep.subr.mxu0 0.0
        %6628 = vmatpush1.msra.mxu0 0.0
        %6629 = vmatprep.subr.mxu0 0.0
        %6630 = vmatpush1.msra.mxu0 0.0
        %6631 = vmatprep.subr.mxu0 0.0
        %6632 = vmatpush1.msra.mxu0 0.0
        %6633 = vmatprep.subr.mxu0 0.0
        %6634 = vmatpush1.msra.mxu0 0.0
        %6635 = vmatprep.subr.mxu0 0.0
        %6636 = vmatpush1.msra.mxu0 0.0
        %6637 = vmatprep.subr.mxu0 0.0
        %6638 = vmatpush1.msra.mxu0 0.0
        %6639 = vmatprep.subr.mxu0 0.0
        %6640 = vmatpush1.msra.mxu0 0.0
        %6641 = vmatprep.subr.mxu0 0.0
        %6642 = vmatpush1.msra.mxu0 0.0
        %6643 = vmatprep.subr.mxu0 0.0
        %6644 = vmatpush1.msra.mxu0 0.0
        %6645 = vmatprep.subr.mxu0 0.0
        %6646 = vmatpush1.msra.mxu0 0.0
        %6647 = vmatprep.subr.mxu0 0.0
        %6648 = vmatpush1.msra.mxu0 0.0
        %6649 = vmatprep.subr.mxu0 0.0
        %6650 = vmatpush1.msra.mxu0 0.0
        %6651 = vmatprep.subr.mxu0 0.0
        %6652 = vmatpush1.msra.mxu0 0.0
        %6653 = vmatprep.subr.mxu0 0.0
        %6654 = vmatpush1.msra.mxu0 0.0
        %6655 = vmatprep.subr.mxu0 0.0
        %6656 = vmatpush1.msra.mxu0 0.0
        %6657 = vmatprep.subr.mxu0 0.0
        %6658 = vmatpush1.msra.mxu0 0.0
        %6659 = vmatprep.subr.mxu0 0.0
        %6660 = vmatpush1.msra.mxu0 0.0
        %6661 = vmatprep.subr.mxu0 0.0
        %6662 = vmatpush1.msra.mxu0 0.0
        %6663 = vmatprep.subr.mxu0 0.0
        %6664 = vmatpush1.msra.mxu0 0.0
        %6665 = vmatprep.subr.mxu0 0.0
        %6666 = vmatpush1.msra.mxu0 0.0
        %6667 = vmatprep.subr.mxu0 0.0
        %6668 = vmatpush1.msra.mxu0 0.0
        %6669 = vmatprep.mubr.f32.mxu0 0.0
        %6670 = vmatmul.mubr.f32.gmra.mrb[0].mxu0 %v6600
        %v6671 = vpop.f32.mrb[0].mxu0
        %v6672 = vadd.f32 0.0, %v6671
        %v6673 = vpop.f32.mrb[0].mxu0
        %6674 = vmatprep.mubr.f32.mxu0 0.0
        %6675 = vmatmul.mubr.f32.gmra.mrb[0].mxu0 %v6603
        %v6676 = vpop.f32.mrb[0].mxu0
        %v6677 = vadd.f32 0.0, %v6676
        %v6678 = vpop.f32.mrb[0].mxu0
        %6679 = vdwg.mxu0
        %v6680 = vadd.f32 %v6594, %v6672
        %v6681 = vadd.f32 %v6595, %v6677
        %v6682 = vld [vmem:[%s12] sm:$0x1]
        %v6684 = vlaneseq
        %v6685 = vshrl.u32 %v6684, 7
        %v6686 = vsub.s32 0, %v6685
        %v6687 = vrot.slane %v6682, %v6686
        %v6689 = vadd.f32 %v6680, %v6687
        %v6690 = vadd.f32 %v6681, %v6687
        %6691 = vst.msk [vmem:[%s510] sm:$0xff] %vm555, %v6689
        %6692 = vst.msk [vmem:[%s510 + $0x8] sm:$0xff] %vm555, %v6690
        %v6694 = vsel %vm555, %v3797, 0
        %v6697 = vsel %vm555, %v3865, 0
        %v6700 = vsel %vm555, %v4593, 0
        %v6703 = vsel %vm555, %v4661, 0
        %v6706 = vsel %vm555, %v4729, 0
        %6708 = vmatprep.subr.mxu0 0.0
        %6709 = vmatpush1.xpose.msra.mxu0 %v6700
        %6710 = vmatprep.subr.mxu0 0.0
        %6711 = vmatpush1.xpose.msra.mxu0 %v6703
        %6712 = vmatprep.subr.mxu0 0.0
        %6713 = vmatpush1.xpose.msra.mxu0 %v6706
        %6714 = vmatprep.subr.mxu0 0.0
        %6715 = vmatpush1.xpose.msra.mxu0 0.0
        %6716 = vmatprep.subr.mxu0 0.0
        %6717 = vmatpush1.xpose.msra.mxu0 0.0
        %6718 = vmatprep.subr.mxu0 0.0
        %6719 = vmatpush1.xpose.msra.mxu0 0.0
        %6720 = vmatprep.subr.mxu0 0.0
        %6721 = vmatpush1.xpose.msra.mxu0 0.0
        %6722 = vmatprep.subr.mxu0 0.0
        %6723 = vmatpush1.xpose.msra.mxu0 0.0
        %6724 = vmatprep.subr.mxu0 0.0
        %6725 = vmatpush1.xpose.msra.mxu0 0.0
        %6726 = vmatprep.subr.mxu0 0.0
        %6727 = vmatpush1.xpose.msra.mxu0 0.0
        %6728 = vmatprep.subr.mxu0 0.0
        %6729 = vmatpush1.xpose.msra.mxu0 0.0
        %6730 = vmatprep.subr.mxu0 0.0
        %6731 = vmatpush1.xpose.msra.mxu0 0.0
        %6732 = vmatprep.subr.mxu0 0.0
        %6733 = vmatpush1.xpose.msra.mxu0 0.0
        %6734 = vmatprep.subr.mxu0 0.0
        %6735 = vmatpush1.xpose.msra.mxu0 0.0
        %6736 = vmatprep.subr.mxu0 0.0
        %6737 = vmatpush1.xpose.msra.mxu0 0.0
        %6738 = vmatprep.subr.mxu0 0.0
        %6739 = vmatpush1.xpose.msra.mxu0 0.0
        %6740 = vmatprep.subr.mxu0 0.0
        %6741 = vmatpush1.xpose.msra.mxu0 0.0
        %6742 = vmatprep.subr.mxu0 0.0
        %6743 = vmatpush1.xpose.msra.mxu0 0.0
        %6744 = vmatprep.subr.mxu0 0.0
        %6745 = vmatpush1.xpose.msra.mxu0 0.0
        %6746 = vmatprep.subr.mxu0 0.0
        %6747 = vmatpush1.xpose.msra.mxu0 0.0
        %6748 = vmatprep.subr.mxu0 0.0
        %6749 = vmatpush1.xpose.msra.mxu0 0.0
        %6750 = vmatprep.subr.mxu0 0.0
        %6751 = vmatpush1.xpose.msra.mxu0 0.0
        %6752 = vmatprep.subr.mxu0 0.0
        %6753 = vmatpush1.xpose.msra.mxu0 0.0
        %6754 = vmatprep.subr.mxu0 0.0
        %6755 = vmatpush1.xpose.msra.mxu0 0.0
        %6756 = vmatprep.subr.mxu0 0.0
        %6757 = vmatpush1.xpose.msra.mxu0 0.0
        %6758 = vmatprep.subr.mxu0 0.0
        %6759 = vmatpush1.xpose.msra.mxu0 0.0
        %6760 = vmatprep.subr.mxu0 0.0
        %6761 = vmatpush1.xpose.msra.mxu0 0.0
        %6762 = vmatprep.subr.mxu0 0.0
        %6763 = vmatpush1.xpose.msra.mxu0 0.0
        %6764 = vmatprep.subr.mxu0 0.0
        %6765 = vmatpush1.xpose.msra.mxu0 0.0
        %6766 = vmatprep.subr.mxu0 0.0
        %6767 = vmatpush1.xpose.msra.mxu0 0.0
        %6768 = vmatprep.subr.mxu0 0.0
        %6769 = vmatpush1.xpose.msra.mxu0 0.0
        %6770 = vmatprep.subr.mxu0 0.0
        %6771 = vmatpush1.xpose.msra.mxu0 0.0
        %6772 = vmatprep.mubr.f32.mxu0 0.0
        %6773 = vmatmul.mubr.f32.gmra.mrb[0].mxu0 %v6694
        %v6774 = vpop.f32.mrb[0].mxu0
        %v6775 = vadd.f32 0.0, %v6774
        %v6776 = vpop.f32.mrb[0].mxu0
        %6777 = vmatprep.mubr.f32.mxu0 0.0
        %6778 = vmatmul.mubr.f32.gmra.mrb[0].mxu0 %v6697
        %v6779 = vpop.f32.mrb[0].mxu0
        %v6780 = vadd.f32 0.0, %v6779
        %v6781 = vpop.f32.mrb[0].mxu0
        %6782 = vdwg.mxu0
        %v6784 = vsel %vm555, %v3798, 0
        %v6787 = vsel %vm555, %v3866, 0
        %v6790 = vsel %vm555, %v4594, 0
        %v6793 = vsel %vm555, %v4662, 0
        %v6796 = vsel %vm555, %v4730, 0
        %6798 = vmatprep.subr.mxu0 0.0
        %6799 = vmatpush1.xpose.msra.mxu0 %v6790
        %6800 = vmatprep.subr.mxu0 0.0
        %6801 = vmatpush1.xpose.msra.mxu0 %v6793
        %6802 = vmatprep.subr.mxu0 0.0
        %6803 = vmatpush1.xpose.msra.mxu0 %v6796
        %6804 = vmatprep.subr.mxu0 0.0
        %6805 = vmatpush1.xpose.msra.mxu0 0.0
        %6806 = vmatprep.subr.mxu0 0.0
        %6807 = vmatpush1.xpose.msra.mxu0 0.0
        %6808 = vmatprep.subr.mxu0 0.0
        %6809 = vmatpush1.xpose.msra.mxu0 0.0
        %6810 = vmatprep.subr.mxu0 0.0
        %6811 = vmatpush1.xpose.msra.mxu0 0.0
        %6812 = vmatprep.subr.mxu0 0.0
        %6813 = vmatpush1.xpose.msra.mxu0 0.0
        %6814 = vmatprep.subr.mxu0 0.0
        %6815 = vmatpush1.xpose.msra.mxu0 0.0
        %6816 = vmatprep.subr.mxu0 0.0
        %6817 = vmatpush1.xpose.msra.mxu0 0.0
        %6818 = vmatprep.subr.mxu0 0.0
        %6819 = vmatpush1.xpose.msra.mxu0 0.0
        %6820 = vmatprep.subr.mxu0 0.0
        %6821 = vmatpush1.xpose.msra.mxu0 0.0
        %6822 = vmatprep.subr.mxu0 0.0
        %6823 = vmatpush1.xpose.msra.mxu0 0.0
        %6824 = vmatprep.subr.mxu0 0.0
        %6825 = vmatpush1.xpose.msra.mxu0 0.0
        %6826 = vmatprep.subr.mxu0 0.0
        %6827 = vmatpush1.xpose.msra.mxu0 0.0
        %6828 = vmatprep.subr.mxu0 0.0
        %6829 = vmatpush1.xpose.msra.mxu0 0.0
        %6830 = vmatprep.subr.mxu0 0.0
        %6831 = vmatpush1.xpose.msra.mxu0 0.0
        %6832 = vmatprep.subr.mxu0 0.0
        %6833 = vmatpush1.xpose.msra.mxu0 0.0
        %6834 = vmatprep.subr.mxu0 0.0
        %6835 = vmatpush1.xpose.msra.mxu0 0.0
        %6836 = vmatprep.subr.mxu0 0.0
        %6837 = vmatpush1.xpose.msra.mxu0 0.0
        %6838 = vmatprep.subr.mxu0 0.0
        %6839 = vmatpush1.xpose.msra.mxu0 0.0
        %6840 = vmatprep.subr.mxu0 0.0
        %6841 = vmatpush1.xpose.msra.mxu0 0.0
        %6842 = vmatprep.subr.mxu0 0.0
        %6843 = vmatpush1.xpose.msra.mxu0 0.0
        %6844 = vmatprep.subr.mxu0 0.0
        %6845 = vmatpush1.xpose.msra.mxu0 0.0
        %6846 = vmatprep.subr.mxu0 0.0
        %6847 = vmatpush1.xpose.msra.mxu0 0.0
        %6848 = vmatprep.subr.mxu0 0.0
        %6849 = vmatpush1.xpose.msra.mxu0 0.0
        %6850 = vmatprep.subr.mxu0 0.0
        %6851 = vmatpush1.xpose.msra.mxu0 0.0
        %6852 = vmatprep.subr.mxu0 0.0
        %6853 = vmatpush1.xpose.msra.mxu0 0.0
        %6854 = vmatprep.subr.mxu0 0.0
        %6855 = vmatpush1.xpose.msra.mxu0 0.0
        %6856 = vmatprep.subr.mxu0 0.0
        %6857 = vmatpush1.xpose.msra.mxu0 0.0
        %6858 = vmatprep.subr.mxu0 0.0
        %6859 = vmatpush1.xpose.msra.mxu0 0.0
        %6860 = vmatprep.subr.mxu0 0.0
        %6861 = vmatpush1.xpose.msra.mxu0 0.0
        %6862 = vmatprep.mubr.f32.mxu0 0.0
        %6863 = vmatmul.mubr.f32.gmra.mrb[0].mxu0 %v6784
        %v6864 = vpop.f32.mrb[0].mxu0
        %v6865 = vadd.f32 0.0, %v6864
        %v6866 = vpop.f32.mrb[0].mxu0
        %6867 = vmatprep.mubr.f32.mxu0 0.0
        %6868 = vmatmul.mubr.f32.gmra.mrb[0].mxu0 %v6787
        %v6869 = vpop.f32.mrb[0].mxu0
        %v6870 = vadd.f32 0.0, %v6869
        %v6871 = vpop.f32.mrb[0].mxu0
        %6872 = vdwg.mxu0
        %v6874 = vsel %vm555, %v3799, 0
        %v6877 = vsel %vm555, %v3867, 0
        %v6880 = vsel %vm555, %v4595, 0
        %v6883 = vsel %vm555, %v4663, 0
        %v6886 = vsel %vm555, %v4731, 0
        %6888 = vmatprep.subr.mxu0 0.0
        %6889 = vmatpush1.xpose.msra.mxu0 %v6880
        %6890 = vmatprep.subr.mxu0 0.0
        %6891 = vmatpush1.xpose.msra.mxu0 %v6883
        %6892 = vmatprep.subr.mxu0 0.0
        %6893 = vmatpush1.xpose.msra.mxu0 %v6886
        %6894 = vmatprep.subr.mxu0 0.0
        %6895 = vmatpush1.xpose.msra.mxu0 0.0
        %6896 = vmatprep.subr.mxu0 0.0
        %6897 = vmatpush1.xpose.msra.mxu0 0.0
        %6898 = vmatprep.subr.mxu0 0.0
        %6899 = vmatpush1.xpose.msra.mxu0 0.0
        %6900 = vmatprep.subr.mxu0 0.0
        %6901 = vmatpush1.xpose.msra.mxu0 0.0
        %6902 = vmatprep.subr.mxu0 0.0
        %6903 = vmatpush1.xpose.msra.mxu0 0.0
        %6904 = vmatprep.subr.mxu0 0.0
        %6905 = vmatpush1.xpose.msra.mxu0 0.0
        %6906 = vmatprep.subr.mxu0 0.0
        %6907 = vmatpush1.xpose.msra.mxu0 0.0
        %6908 = vmatprep.subr.mxu0 0.0
        %6909 = vmatpush1.xpose.msra.mxu0 0.0
        %6910 = vmatprep.subr.mxu0 0.0
        %6911 = vmatpush1.xpose.msra.mxu0 0.0
        %6912 = vmatprep.subr.mxu0 0.0
        %6913 = vmatpush1.xpose.msra.mxu0 0.0
        %6914 = vmatprep.subr.mxu0 0.0
        %6915 = vmatpush1.xpose.msra.mxu0 0.0
        %6916 = vmatprep.subr.mxu0 0.0
        %6917 = vmatpush1.xpose.msra.mxu0 0.0
        %6918 = vmatprep.subr.mxu0 0.0
        %6919 = vmatpush1.xpose.msra.mxu0 0.0
        %6920 = vmatprep.subr.mxu0 0.0
        %6921 = vmatpush1.xpose.msra.mxu0 0.0
        %6922 = vmatprep.subr.mxu0 0.0
        %6923 = vmatpush1.xpose.msra.mxu0 0.0
        %6924 = vmatprep.subr.mxu0 0.0
        %6925 = vmatpush1.xpose.msra.mxu0 0.0
        %6926 = vmatprep.subr.mxu0 0.0
        %6927 = vmatpush1.xpose.msra.mxu0 0.0
        %6928 = vmatprep.subr.mxu0 0.0
        %6929 = vmatpush1.xpose.msra.mxu0 0.0
        %6930 = vmatprep.subr.mxu0 0.0
        %6931 = vmatpush1.xpose.msra.mxu0 0.0
        %6932 = vmatprep.subr.mxu0 0.0
        %6933 = vmatpush1.xpose.msra.mxu0 0.0
        %6934 = vmatprep.subr.mxu0 0.0
        %6935 = vmatpush1.xpose.msra.mxu0 0.0
        %6936 = vmatprep.subr.mxu0 0.0
        %6937 = vmatpush1.xpose.msra.mxu0 0.0
        %6938 = vmatprep.subr.mxu0 0.0
        %6939 = vmatpush1.xpose.msra.mxu0 0.0
        %6940 = vmatprep.subr.mxu0 0.0
        %6941 = vmatpush1.xpose.msra.mxu0 0.0
        %6942 = vmatprep.subr.mxu0 0.0
        %6943 = vmatpush1.xpose.msra.mxu0 0.0
        %6944 = vmatprep.subr.mxu0 0.0
        %6945 = vmatpush1.xpose.msra.mxu0 0.0
        %6946 = vmatprep.subr.mxu0 0.0
        %6947 = vmatpush1.xpose.msra.mxu0 0.0
        %6948 = vmatprep.subr.mxu0 0.0
        %6949 = vmatpush1.xpose.msra.mxu0 0.0
        %6950 = vmatprep.subr.mxu0 0.0
        %6951 = vmatpush1.xpose.msra.mxu0 0.0
        %6952 = vmatprep.mubr.f32.mxu0 0.0
        %6953 = vmatmul.mubr.f32.gmra.mrb[0].mxu0 %v6874
        %v6954 = vpop.f32.mrb[0].mxu0
        %v6955 = vadd.f32 0.0, %v6954
        %v6956 = vpop.f32.mrb[0].mxu0
        %6957 = vmatprep.mubr.f32.mxu0 0.0
        %6958 = vmatmul.mubr.f32.gmra.mrb[0].mxu0 %v6877
        %v6959 = vpop.f32.mrb[0].mxu0
        %v6960 = vadd.f32 0.0, %v6959
        %v6961 = vpop.f32.mrb[0].mxu0
        %6962 = vdwg.mxu0
        %v6964 = vsel %vm555, %v3800, 0
        %v6967 = vsel %vm555, %v3868, 0
        %v6970 = vsel %vm555, %v4596, 0
        %v6973 = vsel %vm555, %v4664, 0
        %v6976 = vsel %vm555, %v4732, 0
        %6978 = vmatprep.subr.mxu0 0.0
        %6979 = vmatpush1.xpose.msra.mxu0 %v6970
        %6980 = vmatprep.subr.mxu0 0.0
        %6981 = vmatpush1.xpose.msra.mxu0 %v6973
        %6982 = vmatprep.subr.mxu0 0.0
        %6983 = vmatpush1.xpose.msra.mxu0 %v6976
        %6984 = vmatprep.subr.mxu0 0.0
        %6985 = vmatpush1.xpose.msra.mxu0 0.0
        %6986 = vmatprep.subr.mxu0 0.0
        %6987 = vmatpush1.xpose.msra.mxu0 0.0
        %6988 = vmatprep.subr.mxu0 0.0
        %6989 = vmatpush1.xpose.msra.mxu0 0.0
        %6990 = vmatprep.subr.mxu0 0.0
        %6991 = vmatpush1.xpose.msra.mxu0 0.0
        %6992 = vmatprep.subr.mxu0 0.0
        %6993 = vmatpush1.xpose.msra.mxu0 0.0
        %6994 = vmatprep.subr.mxu0 0.0
        %6995 = vmatpush1.xpose.msra.mxu0 0.0
        %6996 = vmatprep.subr.mxu0 0.0
        %6997 = vmatpush1.xpose.msra.mxu0 0.0
        %6998 = vmatprep.subr.mxu0 0.0
        %6999 = vmatpush1.xpose.msra.mxu0 0.0
        %7000 = vmatprep.subr.mxu0 0.0
        %7001 = vmatpush1.xpose.msra.mxu0 0.0
        %7002 = vmatprep.subr.mxu0 0.0
        %7003 = vmatpush1.xpose.msra.mxu0 0.0
        %7004 = vmatprep.subr.mxu0 0.0
        %7005 = vmatpush1.xpose.msra.mxu0 0.0
        %7006 = vmatprep.subr.mxu0 0.0
        %7007 = vmatpush1.xpose.msra.mxu0 0.0
        %7008 = vmatprep.subr.mxu0 0.0
        %7009 = vmatpush1.xpose.msra.mxu0 0.0
        %7010 = vmatprep.subr.mxu0 0.0
        %7011 = vmatpush1.xpose.msra.mxu0 0.0
        %7012 = vmatprep.subr.mxu0 0.0
        %7013 = vmatpush1.xpose.msra.mxu0 0.0
        %7014 = vmatprep.subr.mxu0 0.0
        %7015 = vmatpush1.xpose.msra.mxu0 0.0
        %7016 = vmatprep.subr.mxu0 0.0
        %7017 = vmatpush1.xpose.msra.mxu0 0.0
        %7018 = vmatprep.subr.mxu0 0.0
        %7019 = vmatpush1.xpose.msra.mxu0 0.0
        %7020 = vmatprep.subr.mxu0 0.0
        %7021 = vmatpush1.xpose.msra.mxu0 0.0
        %7022 = vmatprep.subr.mxu0 0.0
        %7023 = vmatpush1.xpose.msra.mxu0 0.0
        %7024 = vmatprep.subr.mxu0 0.0
        %7025 = vmatpush1.xpose.msra.mxu0 0.0
        %7026 = vmatprep.subr.mxu0 0.0
        %7027 = vmatpush1.xpose.msra.mxu0 0.0
        %7028 = vmatprep.subr.mxu0 0.0
        %7029 = vmatpush1.xpose.msra.mxu0 0.0
        %7030 = vmatprep.subr.mxu0 0.0
        %7031 = vmatpush1.xpose.msra.mxu0 0.0
        %7032 = vmatprep.subr.mxu0 0.0
        %7033 = vmatpush1.xpose.msra.mxu0 0.0
        %7034 = vmatprep.subr.mxu0 0.0
        %7035 = vmatpush1.xpose.msra.mxu0 0.0
        %7036 = vmatprep.subr.mxu0 0.0
        %7037 = vmatpush1.xpose.msra.mxu0 0.0
        %7038 = vmatprep.subr.mxu0 0.0
        %7039 = vmatpush1.xpose.msra.mxu0 0.0
        %7040 = vmatprep.subr.mxu0 0.0
        %7041 = vmatpush1.xpose.msra.mxu0 0.0
        %7042 = vmatprep.mubr.f32.mxu0 0.0
        %7043 = vmatmul.mubr.f32.gmra.mrb[0].mxu0 %v6964
        %v7044 = vpop.f32.mrb[0].mxu0
        %v7045 = vadd.f32 0.0, %v7044
        %v7046 = vpop.f32.mrb[0].mxu0
        %7047 = vmatprep.mubr.f32.mxu0 0.0
        %7048 = vmatmul.mubr.f32.gmra.mrb[0].mxu0 %v6967
        %v7049 = vpop.f32.mrb[0].mxu0
        %v7050 = vadd.f32 0.0, %v7049
        %v7051 = vpop.f32.mrb[0].mxu0
        %7052 = vdwg.mxu0
        %v7053 = vsel %vm5969, %v6775, 0.0
        %7054 = vadd.xlane.f32.xlu0 %v7053
        %v7055 = vpop.xlane.xlu0 %7054
        %v7056 = vsel %vm5969, %v6780, 0.0
        %7057 = vadd.xlane.f32.xlu0 %v7056
        %v7058 = vpop.xlane.xlu0 %7057
        %v7059 = vsel %vm5969, %v6865, 0.0
        %7060 = vadd.xlane.f32.xlu0 %v7059
        %v7061 = vpop.xlane.xlu0 %7060
        %v7062 = vsel %vm5969, %v6870, 0.0
        %7063 = vadd.xlane.f32.xlu0 %v7062
        %v7064 = vpop.xlane.xlu0 %7063
        %v7065 = vsel %vm5969, %v6955, 0.0
        %7066 = vadd.xlane.f32.xlu0 %v7065
        %v7067 = vpop.xlane.xlu0 %7066
        %v7068 = vsel %vm5969, %v6960, 0.0
        %7069 = vadd.xlane.f32.xlu0 %v7068
        %v7070 = vpop.xlane.xlu0 %7069
        %v7071 = vsel %vm5969, %v7045, 0.0
        %7072 = vadd.xlane.f32.xlu0 %v7071
        %v7073 = vpop.xlane.xlu0 %7072
        %v7074 = vsel %vm5969, %v7050, 0.0
        %7075 = vadd.xlane.f32.xlu0 %v7074
        %v7076 = vpop.xlane.xlu0 %7075
        %v7077 = vmax.f32 %v7055, 1e-06
        %v7078 = vmax.f32 %v7058, 1e-06
        %v7079 = vmax.f32 %v7061, 1e-06
        %v7080 = vmax.f32 %v7064, 1e-06
        %v7081 = vmax.f32 %v7067, 1e-06
        %v7082 = vmax.f32 %v7070, 1e-06
        %v7083 = vmax.f32 %v7073, 1e-06
        %v7084 = vmax.f32 %v7076, 1e-06
        %v7085 = vrcp.pop %v7077
        %v7086 = vrcp.pop %v7078
        %v7087 = vrcp.pop %v7079
        %v7088 = vrcp.pop %v7080
        %v7089 = vrcp.pop %v7081
        %v7090 = vrcp.pop %v7082
        %v7091 = vrcp.pop %v7083
        %v7092 = vrcp.pop %v7084
        %v7093 = vmul.f32 %v6775, %v7085
        %v7094 = vmul.f32 %v6780, %v7086
        %v7095 = vmul.f32 %v6865, %v7087
        %v7096 = vmul.f32 %v6870, %v7088
        %v7097 = vmul.f32 %v6955, %v7089
        %v7098 = vmul.f32 %v6960, %v7090
        %v7099 = vmul.f32 %v7045, %v7091
        %v7100 = vmul.f32 %v7050, %v7092
        %v7102 = vsel %vm5969, %v7093, 0
        %v7105 = vsel %vm5969, %v7094, 0
        %7107 = vmatprep.subr.mxu0 0.0
        %7108 = vmatpush1.msra.mxu0 %v5469
        %7109 = vmatprep.subr.mxu0 0.0
        %7110 = vmatpush1.msra.mxu0 %v5537
        %7111 = vmatprep.subr.mxu0 0.0
        %7112 = vmatpush1.msra.mxu0 %v5605
        %7113 = vmatprep.subr.mxu0 0.0
        %7114 = vmatpush1.msra.mxu0 0.0
        %7115 = vmatprep.subr.mxu0 0.0
        %7116 = vmatpush1.msra.mxu0 0.0
        %7117 = vmatprep.subr.mxu0 0.0
        %7118 = vmatpush1.msra.mxu0 0.0
        %7119 = vmatprep.subr.mxu0 0.0
        %7120 = vmatpush1.msra.mxu0 0.0
        %7121 = vmatprep.subr.mxu0 0.0
        %7122 = vmatpush1.msra.mxu0 0.0
        %7123 = vmatprep.subr.mxu0 0.0
        %7124 = vmatpush1.msra.mxu0 0.0
        %7125 = vmatprep.subr.mxu0 0.0
        %7126 = vmatpush1.msra.mxu0 0.0
        %7127 = vmatprep.subr.mxu0 0.0
        %7128 = vmatpush1.msra.mxu0 0.0
        %7129 = vmatprep.subr.mxu0 0.0
        %7130 = vmatpush1.msra.mxu0 0.0
        %7131 = vmatprep.subr.mxu0 0.0
        %7132 = vmatpush1.msra.mxu0 0.0
        %7133 = vmatprep.subr.mxu0 0.0
        %7134 = vmatpush1.msra.mxu0 0.0
        %7135 = vmatprep.subr.mxu0 0.0
        %7136 = vmatpush1.msra.mxu0 0.0
        %7137 = vmatprep.subr.mxu0 0.0
        %7138 = vmatpush1.msra.mxu0 0.0
        %7139 = vmatprep.subr.mxu0 0.0
        %7140 = vmatpush1.msra.mxu0 0.0
        %7141 = vmatprep.subr.mxu0 0.0
        %7142 = vmatpush1.msra.mxu0 0.0
        %7143 = vmatprep.subr.mxu0 0.0
        %7144 = vmatpush1.msra.mxu0 0.0
        %7145 = vmatprep.subr.mxu0 0.0
        %7146 = vmatpush1.msra.mxu0 0.0
        %7147 = vmatprep.subr.mxu0 0.0
        %7148 = vmatpush1.msra.mxu0 0.0
        %7149 = vmatprep.subr.mxu0 0.0
        %7150 = vmatpush1.msra.mxu0 0.0
        %7151 = vmatprep.subr.mxu0 0.0
        %7152 = vmatpush1.msra.mxu0 0.0
        %7153 = vmatprep.subr.mxu0 0.0
        %7154 = vmatpush1.msra.mxu0 0.0
        %7155 = vmatprep.subr.mxu0 0.0
        %7156 = vmatpush1.msra.mxu0 0.0
        %7157 = vmatprep.subr.mxu0 0.0
        %7158 = vmatpush1.msra.mxu0 0.0
        %7159 = vmatprep.subr.mxu0 0.0
        %7160 = vmatpush1.msra.mxu0 0.0
        %7161 = vmatprep.subr.mxu0 0.0
        %7162 = vmatpush1.msra.mxu0 0.0
        %7163 = vmatprep.subr.mxu0 0.0
        %7164 = vmatpush1.msra.mxu0 0.0
        %7165 = vmatprep.subr.mxu0 0.0
        %7166 = vmatpush1.msra.mxu0 0.0
        %7167 = vmatprep.subr.mxu0 0.0
        %7168 = vmatpush1.msra.mxu0 0.0
        %7169 = vmatprep.subr.mxu0 0.0
        %7170 = vmatpush1.msra.mxu0 0.0
        %7171 = vmatprep.mubr.f32.mxu0 0.0
        %7172 = vmatmul.mubr.f32.gmra.mrb[0].mxu0 %v7102
        %v7173 = vpop.f32.mrb[0].mxu0
        %v7174 = vadd.f32 0.0, %v7173
        %v7175 = vpop.f32.mrb[0].mxu0
        %7176 = vmatprep.mubr.f32.mxu0 0.0
        %7177 = vmatmul.mubr.f32.gmra.mrb[0].mxu0 %v7105
        %v7178 = vpop.f32.mrb[0].mxu0
        %v7179 = vadd.f32 0.0, %v7178
        %v7180 = vpop.f32.mrb[0].mxu0
        %7181 = vdwg.mxu0
        %v7183 = vsel %vm5969, %v7095, 0
        %v7186 = vsel %vm5969, %v7096, 0
        %7188 = vmatprep.subr.mxu0 0.0
        %7189 = vmatpush1.msra.mxu0 %v5470
        %7190 = vmatprep.subr.mxu0 0.0
        %7191 = vmatpush1.msra.mxu0 %v5538
        %7192 = vmatprep.subr.mxu0 0.0
        %7193 = vmatpush1.msra.mxu0 %v5606
        %7194 = vmatprep.subr.mxu0 0.0
        %7195 = vmatpush1.msra.mxu0 0.0
        %7196 = vmatprep.subr.mxu0 0.0
        %7197 = vmatpush1.msra.mxu0 0.0
        %7198 = vmatprep.subr.mxu0 0.0
        %7199 = vmatpush1.msra.mxu0 0.0
        %7200 = vmatprep.subr.mxu0 0.0
        %7201 = vmatpush1.msra.mxu0 0.0
        %7202 = vmatprep.subr.mxu0 0.0
        %7203 = vmatpush1.msra.mxu0 0.0
        %7204 = vmatprep.subr.mxu0 0.0
        %7205 = vmatpush1.msra.mxu0 0.0
        %7206 = vmatprep.subr.mxu0 0.0
        %7207 = vmatpush1.msra.mxu0 0.0
        %7208 = vmatprep.subr.mxu0 0.0
        %7209 = vmatpush1.msra.mxu0 0.0
        %7210 = vmatprep.subr.mxu0 0.0
        %7211 = vmatpush1.msra.mxu0 0.0
        %7212 = vmatprep.subr.mxu0 0.0
        %7213 = vmatpush1.msra.mxu0 0.0
        %7214 = vmatprep.subr.mxu0 0.0
        %7215 = vmatpush1.msra.mxu0 0.0
        %7216 = vmatprep.subr.mxu0 0.0
        %7217 = vmatpush1.msra.mxu0 0.0
        %7218 = vmatprep.subr.mxu0 0.0
        %7219 = vmatpush1.msra.mxu0 0.0
        %7220 = vmatprep.subr.mxu0 0.0
        %7221 = vmatpush1.msra.mxu0 0.0
        %7222 = vmatprep.subr.mxu0 0.0
        %7223 = vmatpush1.msra.mxu0 0.0
        %7224 = vmatprep.subr.mxu0 0.0
        %7225 = vmatpush1.msra.mxu0 0.0
        %7226 = vmatprep.subr.mxu0 0.0
        %7227 = vmatpush1.msra.mxu0 0.0
        %7228 = vmatprep.subr.mxu0 0.0
        %7229 = vmatpush1.msra.mxu0 0.0
        %7230 = vmatprep.subr.mxu0 0.0
        %7231 = vmatpush1.msra.mxu0 0.0
        %7232 = vmatprep.subr.mxu0 0.0
        %7233 = vmatpush1.msra.mxu0 0.0
        %7234 = vmatprep.subr.mxu0 0.0
        %7235 = vmatpush1.msra.mxu0 0.0
        %7236 = vmatprep.subr.mxu0 0.0
        %7237 = vmatpush1.msra.mxu0 0.0
        %7238 = vmatprep.subr.mxu0 0.0
        %7239 = vmatpush1.msra.mxu0 0.0
        %7240 = vmatprep.subr.mxu0 0.0
        %7241 = vmatpush1.msra.mxu0 0.0
        %7242 = vmatprep.subr.mxu0 0.0
        %7243 = vmatpush1.msra.mxu0 0.0
        %7244 = vmatprep.subr.mxu0 0.0
        %7245 = vmatpush1.msra.mxu0 0.0
        %7246 = vmatprep.subr.mxu0 0.0
        %7247 = vmatpush1.msra.mxu0 0.0
        %7248 = vmatprep.subr.mxu0 0.0
        %7249 = vmatpush1.msra.mxu0 0.0
        %7250 = vmatprep.subr.mxu0 0.0
        %7251 = vmatpush1.msra.mxu0 0.0
        %7252 = vmatprep.mubr.f32.mxu0 0.0
        %7253 = vmatmul.mubr.f32.gmra.mrb[0].mxu0 %v7183
        %v7254 = vpop.f32.mrb[0].mxu0
        %v7255 = vadd.f32 0.0, %v7254
        %v7256 = vpop.f32.mrb[0].mxu0
        %7257 = vmatprep.mubr.f32.mxu0 0.0
        %7258 = vmatmul.mubr.f32.gmra.mrb[0].mxu0 %v7186
        %v7259 = vpop.f32.mrb[0].mxu0
        %v7260 = vadd.f32 0.0, %v7259
        %v7261 = vpop.f32.mrb[0].mxu0
        %7262 = vdwg.mxu0
        %v7264 = vsel %vm5969, %v7097, 0
        %v7267 = vsel %vm5969, %v7098, 0
        %7269 = vmatprep.subr.mxu0 0.0
        %7270 = vmatpush1.msra.mxu0 %v5471
        %7271 = vmatprep.subr.mxu0 0.0
        %7272 = vmatpush1.msra.mxu0 %v5539
        %7273 = vmatprep.subr.mxu0 0.0
        %7274 = vmatpush1.msra.mxu0 %v5607
        %7275 = vmatprep.subr.mxu0 0.0
        %7276 = vmatpush1.msra.mxu0 0.0
        %7277 = vmatprep.subr.mxu0 0.0
        %7278 = vmatpush1.msra.mxu0 0.0
        %7279 = vmatprep.subr.mxu0 0.0
        %7280 = vmatpush1.msra.mxu0 0.0
        %7281 = vmatprep.subr.mxu0 0.0
        %7282 = vmatpush1.msra.mxu0 0.0
        %7283 = vmatprep.subr.mxu0 0.0
        %7284 = vmatpush1.msra.mxu0 0.0
        %7285 = vmatprep.subr.mxu0 0.0
        %7286 = vmatpush1.msra.mxu0 0.0
        %7287 = vmatprep.subr.mxu0 0.0
        %7288 = vmatpush1.msra.mxu0 0.0
        %7289 = vmatprep.subr.mxu0 0.0
        %7290 = vmatpush1.msra.mxu0 0.0
        %7291 = vmatprep.subr.mxu0 0.0
        %7292 = vmatpush1.msra.mxu0 0.0
        %7293 = vmatprep.subr.mxu0 0.0
        %7294 = vmatpush1.msra.mxu0 0.0
        %7295 = vmatprep.subr.mxu0 0.0
        %7296 = vmatpush1.msra.mxu0 0.0
        %7297 = vmatprep.subr.mxu0 0.0
        %7298 = vmatpush1.msra.mxu0 0.0
        %7299 = vmatprep.subr.mxu0 0.0
        %7300 = vmatpush1.msra.mxu0 0.0
        %7301 = vmatprep.subr.mxu0 0.0
        %7302 = vmatpush1.msra.mxu0 0.0
        %7303 = vmatprep.subr.mxu0 0.0
        %7304 = vmatpush1.msra.mxu0 0.0
        %7305 = vmatprep.subr.mxu0 0.0
        %7306 = vmatpush1.msra.mxu0 0.0
        %7307 = vmatprep.subr.mxu0 0.0
        %7308 = vmatpush1.msra.mxu0 0.0
        %7309 = vmatprep.subr.mxu0 0.0
        %7310 = vmatpush1.msra.mxu0 0.0
        %7311 = vmatprep.subr.mxu0 0.0
        %7312 = vmatpush1.msra.mxu0 0.0
        %7313 = vmatprep.subr.mxu0 0.0
        %7314 = vmatpush1.msra.mxu0 0.0
        %7315 = vmatprep.subr.mxu0 0.0
        %7316 = vmatpush1.msra.mxu0 0.0
        %7317 = vmatprep.subr.mxu0 0.0
        %7318 = vmatpush1.msra.mxu0 0.0
        %7319 = vmatprep.subr.mxu0 0.0
        %7320 = vmatpush1.msra.mxu0 0.0
        %7321 = vmatprep.subr.mxu0 0.0
        %7322 = vmatpush1.msra.mxu0 0.0
        %7323 = vmatprep.subr.mxu0 0.0
        %7324 = vmatpush1.msra.mxu0 0.0
        %7325 = vmatprep.subr.mxu0 0.0
        %7326 = vmatpush1.msra.mxu0 0.0
        %7327 = vmatprep.subr.mxu0 0.0
        %7328 = vmatpush1.msra.mxu0 0.0
        %7329 = vmatprep.subr.mxu0 0.0
        %7330 = vmatpush1.msra.mxu0 0.0
        %7331 = vmatprep.subr.mxu0 0.0
        %7332 = vmatpush1.msra.mxu0 0.0
        %7333 = vmatprep.mubr.f32.mxu0 0.0
        %7334 = vmatmul.mubr.f32.gmra.mrb[0].mxu0 %v7264
        %v7335 = vpop.f32.mrb[0].mxu0
        %v7336 = vadd.f32 0.0, %v7335
        %v7337 = vpop.f32.mrb[0].mxu0
        %7338 = vmatprep.mubr.f32.mxu0 0.0
        %7339 = vmatmul.mubr.f32.gmra.mrb[0].mxu0 %v7267
        %v7340 = vpop.f32.mrb[0].mxu0
        %v7341 = vadd.f32 0.0, %v7340
        %v7342 = vpop.f32.mrb[0].mxu0
        %7343 = vdwg.mxu0
        %v7345 = vsel %vm5969, %v7099, 0
        %v7348 = vsel %vm5969, %v7100, 0
        %7350 = vmatprep.subr.mxu0 0.0
        %7351 = vmatpush1.msra.mxu0 %v5472
        %7352 = vmatprep.subr.mxu0 0.0
        %7353 = vmatpush1.msra.mxu0 %v5540
        %7354 = vmatprep.subr.mxu0 0.0
        %7355 = vmatpush1.msra.mxu0 %v5608
        %7356 = vmatprep.subr.mxu0 0.0
        %7357 = vmatpush1.msra.mxu0 0.0
        %7358 = vmatprep.subr.mxu0 0.0
        %7359 = vmatpush1.msra.mxu0 0.0
        %7360 = vmatprep.subr.mxu0 0.0
        %7361 = vmatpush1.msra.mxu0 0.0
        %7362 = vmatprep.subr.mxu0 0.0
        %7363 = vmatpush1.msra.mxu0 0.0
        %7364 = vmatprep.subr.mxu0 0.0
        %7365 = vmatpush1.msra.mxu0 0.0
        %7366 = vmatprep.subr.mxu0 0.0
        %7367 = vmatpush1.msra.mxu0 0.0
        %7368 = vmatprep.subr.mxu0 0.0
        %7369 = vmatpush1.msra.mxu0 0.0
        %7370 = vmatprep.subr.mxu0 0.0
        %7371 = vmatpush1.msra.mxu0 0.0
        %7372 = vmatprep.subr.mxu0 0.0
        %7373 = vmatpush1.msra.mxu0 0.0
        %7374 = vmatprep.subr.mxu0 0.0
        %7375 = vmatpush1.msra.mxu0 0.0
        %7376 = vmatprep.subr.mxu0 0.0
        %7377 = vmatpush1.msra.mxu0 0.0
        %7378 = vmatprep.subr.mxu0 0.0
        %7379 = vmatpush1.msra.mxu0 0.0
        %7380 = vmatprep.subr.mxu0 0.0
        %7381 = vmatpush1.msra.mxu0 0.0
        %7382 = vmatprep.subr.mxu0 0.0
        %7383 = vmatpush1.msra.mxu0 0.0
        %7384 = vmatprep.subr.mxu0 0.0
        %7385 = vmatpush1.msra.mxu0 0.0
        %7386 = vmatprep.subr.mxu0 0.0
        %7387 = vmatpush1.msra.mxu0 0.0
        %7388 = vmatprep.subr.mxu0 0.0
        %7389 = vmatpush1.msra.mxu0 0.0
        %7390 = vmatprep.subr.mxu0 0.0
        %7391 = vmatpush1.msra.mxu0 0.0
        %7392 = vmatprep.subr.mxu0 0.0
        %7393 = vmatpush1.msra.mxu0 0.0
        %7394 = vmatprep.subr.mxu0 0.0
        %7395 = vmatpush1.msra.mxu0 0.0
        %7396 = vmatprep.subr.mxu0 0.0
        %7397 = vmatpush1.msra.mxu0 0.0
        %7398 = vmatprep.subr.mxu0 0.0
        %7399 = vmatpush1.msra.mxu0 0.0
        %7400 = vmatprep.subr.mxu0 0.0
        %7401 = vmatpush1.msra.mxu0 0.0
        %7402 = vmatprep.subr.mxu0 0.0
        %7403 = vmatpush1.msra.mxu0 0.0
        %7404 = vmatprep.subr.mxu0 0.0
        %7405 = vmatpush1.msra.mxu0 0.0
        %7406 = vmatprep.subr.mxu0 0.0
        %7407 = vmatpush1.msra.mxu0 0.0
        %7408 = vmatprep.subr.mxu0 0.0
        %7409 = vmatpush1.msra.mxu0 0.0
        %7410 = vmatprep.subr.mxu0 0.0
        %7411 = vmatpush1.msra.mxu0 0.0
        %7412 = vmatprep.subr.mxu0 0.0
        %7413 = vmatpush1.msra.mxu0 0.0
        %7414 = vmatprep.mubr.f32.mxu0 0.0
        %7415 = vmatmul.mubr.f32.gmra.mrb[0].mxu0 %v7345
        %v7416 = vpop.f32.mrb[0].mxu0
        %v7417 = vadd.f32 0.0, %v7416
        %v7418 = vpop.f32.mrb[0].mxu0
        %7419 = vmatprep.mubr.f32.mxu0 0.0
        %7420 = vmatmul.mubr.f32.gmra.mrb[0].mxu0 %v7348
        %v7421 = vpop.f32.mrb[0].mxu0
        %v7422 = vadd.f32 0.0, %v7421
        %v7423 = vpop.f32.mrb[0].mxu0
        %7424 = vdwg.mxu0
        %v7425 = vld [vmem:[#allocation7] sm:$0xff]
        %v7426 = vld [vmem:[#allocation7 + $0x8] sm:$0xff]
        %v7427 = vld [vmem:[%s6344] sm:$0xff]
        %v7428 = vld [vmem:[%s6344 + $0x8] sm:$0xff]
        %v7430 = vsel %vm6347, %v7255, 0
        %v7433 = vsel %vm6347, %v7260, 0
        %7435 = vmatprep.subr.mxu0 0.0
        %7436 = vmatpush1.msra.mxu0 %v7427
        %7437 = vmatprep.subr.mxu0 0.0
        %7438 = vmatpush1.msra.mxu0 %v7428
        %7439 = vmatprep.subr.mxu0 0.0
        %7440 = vmatpush1.msra.mxu0 0.0
        %7441 = vmatprep.subr.mxu0 0.0
        %7442 = vmatpush1.msra.mxu0 0.0
        %7443 = vmatprep.subr.mxu0 0.0
        %7444 = vmatpush1.msra.mxu0 0.0
        %7445 = vmatprep.subr.mxu0 0.0
        %7446 = vmatpush1.msra.mxu0 0.0
        %7447 = vmatprep.subr.mxu0 0.0
        %7448 = vmatpush1.msra.mxu0 0.0
        %7449 = vmatprep.subr.mxu0 0.0
        %7450 = vmatpush1.msra.mxu0 0.0
        %7451 = vmatprep.subr.mxu0 0.0
        %7452 = vmatpush1.msra.mxu0 0.0
        %7453 = vmatprep.subr.mxu0 0.0
        %7454 = vmatpush1.msra.mxu0 0.0
        %7455 = vmatprep.subr.mxu0 0.0
        %7456 = vmatpush1.msra.mxu0 0.0
        %7457 = vmatprep.subr.mxu0 0.0
        %7458 = vmatpush1.msra.mxu0 0.0
        %7459 = vmatprep.subr.mxu0 0.0
        %7460 = vmatpush1.msra.mxu0 0.0
        %7461 = vmatprep.subr.mxu0 0.0
        %7462 = vmatpush1.msra.mxu0 0.0
        %7463 = vmatprep.subr.mxu0 0.0
        %7464 = vmatpush1.msra.mxu0 0.0
        %7465 = vmatprep.subr.mxu0 0.0
        %7466 = vmatpush1.msra.mxu0 0.0
        %7467 = vmatprep.subr.mxu0 0.0
        %7468 = vmatpush1.msra.mxu0 0.0
        %7469 = vmatprep.subr.mxu0 0.0
        %7470 = vmatpush1.msra.mxu0 0.0
        %7471 = vmatprep.subr.mxu0 0.0
        %7472 = vmatpush1.msra.mxu0 0.0
        %7473 = vmatprep.subr.mxu0 0.0
        %7474 = vmatpush1.msra.mxu0 0.0
        %7475 = vmatprep.subr.mxu0 0.0
        %7476 = vmatpush1.msra.mxu0 0.0
        %7477 = vmatprep.subr.mxu0 0.0
        %7478 = vmatpush1.msra.mxu0 0.0
        %7479 = vmatprep.subr.mxu0 0.0
        %7480 = vmatpush1.msra.mxu0 0.0
        %7481 = vmatprep.subr.mxu0 0.0
        %7482 = vmatpush1.msra.mxu0 0.0
        %7483 = vmatprep.subr.mxu0 0.0
        %7484 = vmatpush1.msra.mxu0 0.0
        %7485 = vmatprep.subr.mxu0 0.0
        %7486 = vmatpush1.msra.mxu0 0.0
        %7487 = vmatprep.subr.mxu0 0.0
        %7488 = vmatpush1.msra.mxu0 0.0
        %7489 = vmatprep.subr.mxu0 0.0
        %7490 = vmatpush1.msra.mxu0 0.0
        %7491 = vmatprep.subr.mxu0 0.0
        %7492 = vmatpush1.msra.mxu0 0.0
        %7493 = vmatprep.subr.mxu0 0.0
        %7494 = vmatpush1.msra.mxu0 0.0
        %7495 = vmatprep.subr.mxu0 0.0
        %7496 = vmatpush1.msra.mxu0 0.0
        %7497 = vmatprep.subr.mxu0 0.0
        %7498 = vmatpush1.msra.mxu0 0.0
        %7499 = vmatprep.mubr.f32.mxu0 0.0
        %7500 = vmatmul.mubr.f32.gmra.mrb[0].mxu0 %v7430
        %v7501 = vpop.f32.mrb[0].mxu0
        %v7502 = vadd.f32 0.0, %v7501
        %v7503 = vpop.f32.mrb[0].mxu0
        %7504 = vmatprep.mubr.f32.mxu0 0.0
        %7505 = vmatmul.mubr.f32.gmra.mrb[0].mxu0 %v7433
        %v7506 = vpop.f32.mrb[0].mxu0
        %v7507 = vadd.f32 0.0, %v7506
        %v7508 = vpop.f32.mrb[0].mxu0
        %7509 = vdwg.mxu0
        %v7511 = vsel %vm6347, %v7174, 0
        %v7514 = vsel %vm6347, %v7179, 0
        %7516 = vmatprep.subr.mxu0 0.0
        %7517 = vmatpush1.msra.mxu0 %v7425
        %7518 = vmatprep.subr.mxu0 0.0
        %7519 = vmatpush1.msra.mxu0 %v7426
        %7520 = vmatprep.subr.mxu0 0.0
        %7521 = vmatpush1.msra.mxu0 0.0
        %7522 = vmatprep.subr.mxu0 0.0
        %7523 = vmatpush1.msra.mxu0 0.0
        %7524 = vmatprep.subr.mxu0 0.0
        %7525 = vmatpush1.msra.mxu0 0.0
        %7526 = vmatprep.subr.mxu0 0.0
        %7527 = vmatpush1.msra.mxu0 0.0
        %7528 = vmatprep.subr.mxu0 0.0
        %7529 = vmatpush1.msra.mxu0 0.0
        %7530 = vmatprep.subr.mxu0 0.0
        %7531 = vmatpush1.msra.mxu0 0.0
        %7532 = vmatprep.subr.mxu0 0.0
        %7533 = vmatpush1.msra.mxu0 0.0
        %7534 = vmatprep.subr.mxu0 0.0
        %7535 = vmatpush1.msra.mxu0 0.0
        %7536 = vmatprep.subr.mxu0 0.0
        %7537 = vmatpush1.msra.mxu0 0.0
        %7538 = vmatprep.subr.mxu0 0.0
        %7539 = vmatpush1.msra.mxu0 0.0
        %7540 = vmatprep.subr.mxu0 0.0
        %7541 = vmatpush1.msra.mxu0 0.0
        %7542 = vmatprep.subr.mxu0 0.0
        %7543 = vmatpush1.msra.mxu0 0.0
        %7544 = vmatprep.subr.mxu0 0.0
        %7545 = vmatpush1.msra.mxu0 0.0
        %7546 = vmatprep.subr.mxu0 0.0
        %7547 = vmatpush1.msra.mxu0 0.0
        %7548 = vmatprep.subr.mxu0 0.0
        %7549 = vmatpush1.msra.mxu0 0.0
        %7550 = vmatprep.subr.mxu0 0.0
        %7551 = vmatpush1.msra.mxu0 0.0
        %7552 = vmatprep.subr.mxu0 0.0
        %7553 = vmatpush1.msra.mxu0 0.0
        %7554 = vmatprep.subr.mxu0 0.0
        %7555 = vmatpush1.msra.mxu0 0.0
        %7556 = vmatprep.subr.mxu0 0.0
        %7557 = vmatpush1.msra.mxu0 0.0
        %7558 = vmatprep.subr.mxu0 0.0
        %7559 = vmatpush1.msra.mxu0 0.0
        %7560 = vmatprep.subr.mxu0 0.0
        %7561 = vmatpush1.msra.mxu0 0.0
        %7562 = vmatprep.subr.mxu0 0.0
        %7563 = vmatpush1.msra.mxu0 0.0
        %7564 = vmatprep.subr.mxu0 0.0
        %7565 = vmatpush1.msra.mxu0 0.0
        %7566 = vmatprep.subr.mxu0 0.0
        %7567 = vmatpush1.msra.mxu0 0.0
        %7568 = vmatprep.subr.mxu0 0.0
        %7569 = vmatpush1.msra.mxu0 0.0
        %7570 = vmatprep.subr.mxu0 0.0
        %7571 = vmatpush1.msra.mxu0 0.0
        %7572 = vmatprep.subr.mxu0 0.0
        %7573 = vmatpush1.msra.mxu0 0.0
        %7574 = vmatprep.subr.mxu0 0.0
        %7575 = vmatpush1.msra.mxu0 0.0
        %7576 = vmatprep.subr.mxu0 0.0
        %7577 = vmatpush1.msra.mxu0 0.0
        %7578 = vmatprep.subr.mxu0 0.0
        %7579 = vmatpush1.msra.mxu0 0.0
        %7580 = vmatprep.mubr.f32.mxu0 0.0
        %7581 = vmatmul.mubr.f32.gmra.mrb[0].mxu0 %v7511
        %v7582 = vpop.f32.mrb[0].mxu0
        %v7583 = vadd.f32 %v7502, %v7582
        %v7584 = vpop.f32.mrb[0].mxu0
        %7585 = vmatprep.mubr.f32.mxu0 0.0
        %7586 = vmatmul.mubr.f32.gmra.mrb[0].mxu0 %v7514
        %v7587 = vpop.f32.mrb[0].mxu0
        %v7588 = vadd.f32 %v7507, %v7587
        %v7589 = vpop.f32.mrb[0].mxu0
        %7590 = vdwg.mxu0
        %v7591 = vld [vmem:[%s6510] sm:$0xff]
        %v7592 = vld [vmem:[%s6510 + $0x8] sm:$0xff]
        %v7594 = vsel %vm6347, %v7336, 0
        %v7597 = vsel %vm6347, %v7341, 0
        %7599 = vmatprep.subr.mxu0 0.0
        %7600 = vmatpush1.msra.mxu0 %v7591
        %7601 = vmatprep.subr.mxu0 0.0
        %7602 = vmatpush1.msra.mxu0 %v7592
        %7603 = vmatprep.subr.mxu0 0.0
        %7604 = vmatpush1.msra.mxu0 0.0
        %7605 = vmatprep.subr.mxu0 0.0
        %7606 = vmatpush1.msra.mxu0 0.0
        %7607 = vmatprep.subr.mxu0 0.0
        %7608 = vmatpush1.msra.mxu0 0.0
        %7609 = vmatprep.subr.mxu0 0.0
        %7610 = vmatpush1.msra.mxu0 0.0
        %7611 = vmatprep.subr.mxu0 0.0
        %7612 = vmatpush1.msra.mxu0 0.0
        %7613 = vmatprep.subr.mxu0 0.0
        %7614 = vmatpush1.msra.mxu0 0.0
        %7615 = vmatprep.subr.mxu0 0.0
        %7616 = vmatpush1.msra.mxu0 0.0
        %7617 = vmatprep.subr.mxu0 0.0
        %7618 = vmatpush1.msra.mxu0 0.0
        %7619 = vmatprep.subr.mxu0 0.0
        %7620 = vmatpush1.msra.mxu0 0.0
        %7621 = vmatprep.subr.mxu0 0.0
        %7622 = vmatpush1.msra.mxu0 0.0
        %7623 = vmatprep.subr.mxu0 0.0
        %7624 = vmatpush1.msra.mxu0 0.0
        %7625 = vmatprep.subr.mxu0 0.0
        %7626 = vmatpush1.msra.mxu0 0.0
        %7627 = vmatprep.subr.mxu0 0.0
        %7628 = vmatpush1.msra.mxu0 0.0
        %7629 = vmatprep.subr.mxu0 0.0
        %7630 = vmatpush1.msra.mxu0 0.0
        %7631 = vmatprep.subr.mxu0 0.0
        %7632 = vmatpush1.msra.mxu0 0.0
        %7633 = vmatprep.subr.mxu0 0.0
        %7634 = vmatpush1.msra.mxu0 0.0
        %7635 = vmatprep.subr.mxu0 0.0
        %7636 = vmatpush1.msra.mxu0 0.0
        %7637 = vmatprep.subr.mxu0 0.0
        %7638 = vmatpush1.msra.mxu0 0.0
        %7639 = vmatprep.subr.mxu0 0.0
        %7640 = vmatpush1.msra.mxu0 0.0
        %7641 = vmatprep.subr.mxu0 0.0
        %7642 = vmatpush1.msra.mxu0 0.0
        %7643 = vmatprep.subr.mxu0 0.0
        %7644 = vmatpush1.msra.mxu0 0.0
        %7645 = vmatprep.subr.mxu0 0.0
        %7646 = vmatpush1.msra.mxu0 0.0
        %7647 = vmatprep.subr.mxu0 0.0
        %7648 = vmatpush1.msra.mxu0 0.0
        %7649 = vmatprep.subr.mxu0 0.0
        %7650 = vmatpush1.msra.mxu0 0.0
        %7651 = vmatprep.subr.mxu0 0.0
        %7652 = vmatpush1.msra.mxu0 0.0
        %7653 = vmatprep.subr.mxu0 0.0
        %7654 = vmatpush1.msra.mxu0 0.0
        %7655 = vmatprep.subr.mxu0 0.0
        %7656 = vmatpush1.msra.mxu0 0.0
        %7657 = vmatprep.subr.mxu0 0.0
        %7658 = vmatpush1.msra.mxu0 0.0
        %7659 = vmatprep.subr.mxu0 0.0
        %7660 = vmatpush1.msra.mxu0 0.0
        %7661 = vmatprep.subr.mxu0 0.0
        %7662 = vmatpush1.msra.mxu0 0.0
        %7663 = vmatprep.mubr.f32.mxu0 0.0
        %7664 = vmatmul.mubr.f32.gmra.mrb[0].mxu0 %v7594
        %v7665 = vpop.f32.mrb[0].mxu0
        %v7666 = vadd.f32 0.0, %v7665
        %v7667 = vpop.f32.mrb[0].mxu0
        %7668 = vmatprep.mubr.f32.mxu0 0.0
        %7669 = vmatmul.mubr.f32.gmra.mrb[0].mxu0 %v7597
        %v7670 = vpop.f32.mrb[0].mxu0
        %v7671 = vadd.f32 0.0, %v7670
        %v7672 = vpop.f32.mrb[0].mxu0
        %7673 = vdwg.mxu0
        %v7674 = vadd.f32 %v7583, %v7666
        %v7675 = vadd.f32 %v7588, %v7671
        %v7676 = vld [vmem:[%s6596] sm:$0xff]
        %v7677 = vld [vmem:[%s6596 + $0x8] sm:$0xff]
        %v7679 = vsel %vm6347, %v7417, 0
        %v7682 = vsel %vm6347, %v7422, 0
        %7684 = vmatprep.subr.mxu0 0.0
        %7685 = vmatpush1.msra.mxu0 %v7676
        %7686 = vmatprep.subr.mxu0 0.0
        %7687 = vmatpush1.msra.mxu0 %v7677
        %7688 = vmatprep.subr.mxu0 0.0
        %7689 = vmatpush1.msra.mxu0 0.0
        %7690 = vmatprep.subr.mxu0 0.0
        %7691 = vmatpush1.msra.mxu0 0.0
        %7692 = vmatprep.subr.mxu0 0.0
        %7693 = vmatpush1.msra.mxu0 0.0
        %7694 = vmatprep.subr.mxu0 0.0
        %7695 = vmatpush1.msra.mxu0 0.0
        %7696 = vmatprep.subr.mxu0 0.0
        %7697 = vmatpush1.msra.mxu0 0.0
        %7698 = vmatprep.subr.mxu0 0.0
        %7699 = vmatpush1.msra.mxu0 0.0
        %7700 = vmatprep.subr.mxu0 0.0
        %7701 = vmatpush1.msra.mxu0 0.0
        %7702 = vmatprep.subr.mxu0 0.0
        %7703 = vmatpush1.msra.mxu0 0.0
        %7704 = vmatprep.subr.mxu0 0.0
        %7705 = vmatpush1.msra.mxu0 0.0
        %7706 = vmatprep.subr.mxu0 0.0
        %7707 = vmatpush1.msra.mxu0 0.0
        %7708 = vmatprep.subr.mxu0 0.0
        %7709 = vmatpush1.msra.mxu0 0.0
        %7710 = vmatprep.subr.mxu0 0.0
        %7711 = vmatpush1.msra.mxu0 0.0
        %7712 = vmatprep.subr.mxu0 0.0
        %7713 = vmatpush1.msra.mxu0 0.0
        %7714 = vmatprep.subr.mxu0 0.0
        %7715 = vmatpush1.msra.mxu0 0.0
        %7716 = vmatprep.subr.mxu0 0.0
        %7717 = vmatpush1.msra.mxu0 0.0
        %7718 = vmatprep.subr.mxu0 0.0
        %7719 = vmatpush1.msra.mxu0 0.0
        %7720 = vmatprep.subr.mxu0 0.0
        %7721 = vmatpush1.msra.mxu0 0.0
        %7722 = vmatprep.subr.mxu0 0.0
        %7723 = vmatpush1.msra.mxu0 0.0
        %7724 = vmatprep.subr.mxu0 0.0
        %7725 = vmatpush1.msra.mxu0 0.0
        %7726 = vmatprep.subr.mxu0 0.0
        %7727 = vmatpush1.msra.mxu0 0.0
        %7728 = vmatprep.subr.mxu0 0.0
        %7729 = vmatpush1.msra.mxu0 0.0
        %7730 = vmatprep.subr.mxu0 0.0
        %7731 = vmatpush1.msra.mxu0 0.0
        %7732 = vmatprep.subr.mxu0 0.0
        %7733 = vmatpush1.msra.mxu0 0.0
        %7734 = vmatprep.subr.mxu0 0.0
        %7735 = vmatpush1.msra.mxu0 0.0
        %7736 = vmatprep.subr.mxu0 0.0
        %7737 = vmatpush1.msra.mxu0 0.0
        %7738 = vmatprep.subr.mxu0 0.0
        %7739 = vmatpush1.msra.mxu0 0.0
        %7740 = vmatprep.subr.mxu0 0.0
        %7741 = vmatpush1.msra.mxu0 0.0
        %7742 = vmatprep.subr.mxu0 0.0
        %7743 = vmatpush1.msra.mxu0 0.0
        %7744 = vmatprep.subr.mxu0 0.0
        %7745 = vmatpush1.msra.mxu0 0.0
        %7746 = vmatprep.subr.mxu0 0.0
        %7747 = vmatpush1.msra.mxu0 0.0
        %7748 = vmatprep.mubr.f32.mxu0 0.0
        %7749 = vmatmul.mubr.f32.gmra.mrb[0].mxu0 %v7679
        %v7750 = vpop.f32.mrb[0].mxu0
        %v7751 = vadd.f32 0.0, %v7750
        %v7752 = vpop.f32.mrb[0].mxu0
        %7753 = vmatprep.mubr.f32.mxu0 0.0
        %7754 = vmatmul.mubr.f32.gmra.mrb[0].mxu0 %v7682
        %v7755 = vpop.f32.mrb[0].mxu0
        %v7756 = vadd.f32 0.0, %v7755
        %v7757 = vpop.f32.mrb[0].mxu0
        %7758 = vdwg.mxu0
        %v7759 = vadd.f32 %v7674, %v7751
        %v7760 = vadd.f32 %v7675, %v7756
        %v7761 = vld [vmem:[%s12] sm:$0x1]
        %v7763 = vlaneseq
        %v7764 = vshrl.u32 %v7763, 7
        %v7765 = vsub.s32 0, %v7764
        %v7766 = vrot.slane %v7761, %v7765
        %v7768 = vadd.f32 %v7759, %v7766
        %v7769 = vadd.f32 %v7760, %v7766
        %7770 = vst.msk [vmem:[%s510 + $0x10] sm:$0xff] %vm555, %v7768
        %7771 = vst.msk [vmem:[%s510 + $0x18] sm:$0xff] %vm555, %v7769
        %s7772 = sand.u32 %s325, 1
        %s7773 = scalar_lea.sflag [#allocation4], %s7772
        %s7774 = sand.u32 %s325, 1
        %s7775 = smul.addr %s7774, 32
        %s7776 = scalar_lea.vmem [#allocation8], %s7775
        // Predicated region
        $region85: #{tpu_custom_call.1} parent=71 // pred_check
          %p7777 = pneg %p335
        $region86: #{tpu_custom_call.1} parent=71 // pred_check_branch
          %7779 = sbr.rel (%p7777) target = $region88
        $region87: #{tpu_custom_call.1} parent=71 // pred_region
          %s7780 = smul.u32 4, %s29
          %s7782 = ssub.s32 512, 512
          %7783 = vsyncadd %s7773, %s7782
          %s7784 = smul.addr %s7780, 128
          %s7785 = scalar_lea.hbm %s13, %s7784
          %s7786 = sshll.u32 %s7776, 4
          %s7787 = int_to_ptr.vmem [resolvable:$true] %s7786
          %7792 = dma.vmem_to_hbm [thread:$0]  %s7787, 512, %s7785, %s7773, 128, 128, 8
        $region88: #{tpu_custom_call.1} parent=71 // pred_fallthru
          _
      $region72: #{tpu_custom_call.1} parent=5 // pred_fallthru
        _
      %p7793 = scmp.le.s32.totalorder 2, %s24
      // Predicated region
      $region89: #{tpu_custom_call.1} parent=5 // pred_check
        %p7794 = pneg %p7793
      $region90: #{tpu_custom_call.1} parent=5 // pred_check_branch
        %7796 = sbr.rel (%p7794) target = $region92
      $region91: #{tpu_custom_call.1} parent=5 // pred_region
        %s7797 = ssub.s32 %s24, 2
        // Predicated region
        $region93: #{tpu_custom_call.1} parent=91 // pred_check
          %p7798 = pneg %p341
        $region94: #{tpu_custom_call.1} parent=91 // pred_check_branch
          %7800 = sbr.rel (%p7798) target = $region96
        $region95: #{tpu_custom_call.1} parent=91 // pred_region
          %s7801 = sand.u32 %s326, 1
          %s7802 = scalar_lea.sflag [#allocation4], %s7801
          %s7803 = sand.u32 %s326, 1
          %s7804 = smul.addr %s7803, 32
          %s7805 = scalar_lea.vmem [#allocation8], %s7804
          %7806 = dma.done %s7802, 512
        $region96: #{tpu_custom_call.1} parent=91 // pred_fallthru
          _
      $region92: #{tpu_custom_call.1} parent=5 // pred_fallthru
        _
    $region6: #{tpu_custom_call.1} parent=1 // loop_footer
      %s28 = sadd.s32 1, %s24
    $region7: #{tpu_custom_call.1} parent=1 // loop_footer_branch
      %23 = sbr.rel target = $region3
    $region8: #{tpu_custom_call.1} parent=1 // loop_exit
      _
    %7807 = vsyncpa [#allocation3], 1
    %s7808 = scalar_lea.sflag [#allocation3], 1
    %7809 = vsyncpa %s7808, 1
    %7810 = vsyncpa [#allocation6], 1
    %7811 = vsyncpa [#allocation4], 1
    %s7812 = scalar_lea.sflag [#allocation4], 1
    %7813 = vsyncpa %s7812, 1

</llo_original>
